<compile_context>
chip_gen: v7x
topology: tpu7x:2x2x1
jax: 0.10.0
libtpu: 0.0.40
codegen_flags: <defaults>
</compile_context>

<pallas_src>
import functools

import jax
import jax.numpy as jnp
from jax.experimental import pallas as pl
from jax.experimental.pallas import tpu as pltpu  # noqa: F401  (TPU backend assumed)

PRELU_ALPHA = 0.25  # nn.PReLU() default init (single shared parameter)


# ----------------------------- config (mirrors `opt`) -----------------------------
class Opt:
    batch_size = 2
    c_max_sentence_len = 7      # caption_len T = c_max_sentence_len + 1 = 8
    k = 6                       # top-k; CNN (ks 3,3,2) collapses width 6 -> 1 (required by .view)
    c_vocab_size = 50
    pos_vocab_size = 12         # pos logits dim = pos_vocab_size + 1 = 13
    dm_emb_size = 32
    pos_emb_size = 16
    dm_rnn_size = 32
    dm_cnn_size = 64
    image_channels = 24
    c_rnn_size = 48
    use_caption_hidden = True
    use_dropout = False


def _prelu(y):
    return jnp.where(y >= 0, y, PRELU_ALPHA * y)


# ----------------------------- the single fused kernel -----------------------------
def fused_decision_kernel(
        # data
        emb_ref, sent_ref, probs_ref, xf_ref, xb_ref, pos_ref, img_ref, hid_ref, sel_ref,
        # GRU weights
        wih_f_ref, wih_b_ref, bih_f_ref, bih_b_ref, whh_ref, bhh_ref,
        # CNN (conv-as-matmul) weights
        w1_ref, b1_ref, w2_ref, b2_ref, w3_ref, b3_ref,
        # FC weights
        pw_ref, pb_ref, iw_ref, ib_ref, hw_ref, hb_ref,
        cwc_ref, cwp_ref, cwi_ref, cwh_ref, cb_ref,
        owc_ref, owu_ref, ob_ref,
        # output
        o_ref,
        *, B, T, H):
    f32 = jnp.float32
    eps, large = 1e-8, 1e6

    # ---- uncertainty features (Gram-matrix formulation; pairwise dots on the MXU) ----
    emb = emb_ref[...].astype(f32)            # (N, k, E) top-k word embeddings per token
    sent = sent_ref[...].astype(f32)          # (N, E)    sentence-sum embedding per token
    probs = probs_ref[...].astype(f32)        # (N, k)
    N, k, _ = emb.shape

    gram = jnp.einsum('nke,nje->nkj', emb, emb, preferred_element_type=f32)   # (N, k, k)
    sq = jnp.sum(emb * emb, axis=-1)                                          # (N, k)
    norms = jnp.maximum(jnp.sqrt(sq), eps)

    # min pairwise L2 distance, diagonal masked (Base.min_distance)
    d2 = sq[:, :, None] + sq[:, None, :] - 2.0 * gram
    row_i = jax.lax.broadcasted_iota(jnp.int32, (N, k, k), 1)
    col_j = jax.lax.broadcasted_iota(jnp.int32, (N, k, k), 2)
    d2 = jnp.where(row_i == col_j, large, jnp.maximum(d2, 0.0))  # clamp fp cancellation before sqrt
    min_d = jnp.sqrt(jnp.min(d2, axis=-1))                                    # (N, k)

    # cosine similarity of word 0 vs all words, entry 0 forced to 0 (cosine_distance_to_others)
    col = jax.lax.broadcasted_iota(jnp.int32, (N, k), 1)
    cos0 = gram[:, 0, :] / (norms[:, 0:1] * norms)
    cos_d = jnp.where(col == 0, 0.0, cos0)

    # cosine similarity of sentence-sum embedding vs each word (cosine_distance_sentence)
    snorm = jnp.maximum(jnp.sqrt(jnp.sum(sent * sent, axis=-1, keepdims=True)), eps)  # (N, 1)
    sdots = jnp.sum(sent[:, None, :] * emb, axis=-1)                                   # (N, k)
    scos_d = sdots / (snorm * norms)

    # ---- uncertainty CNN: each Conv1d folded into ONE matmul (precomputed weights) ----
    # feats[n, c*k + j] == uf[n, c, j] with channel order [min, cos, scos, probs] (torch layout)
    feats = jnp.concatenate([min_d, cos_d, scos_d, probs], axis=1)            # (N, 4k)
    y1 = _prelu(jnp.dot(feats, w1_ref[...], preferred_element_type=f32) + b1_ref[...])  # (N, L1*C1)
    y2 = _prelu(jnp.dot(y1, w2_ref[...], preferred_element_type=f32) + b2_ref[...])     # (N, L2*C2)
    unc_feat = _prelu(jnp.dot(y2, w3_ref[...], preferred_element_type=f32) + b3_ref[...])  # (N, C3)

    # ---- bidirectional GRU: both directions in one block-diagonal recurrence ----
    # Input projections hoisted out of the time loop (one matmul per direction).
    gi_f = jnp.dot(xf_ref[...], wih_f_ref[...], preferred_element_type=f32) + bih_f_ref[...]  # (T*B,3H)
    gi_b = jnp.dot(xb_ref[...], wih_b_ref[...], preferred_element_type=f32) + bih_b_ref[...]  # (T*B,3H)
    whh = whh_ref[...]                     # (2H, 3H) = [Whh_f ; Whh_b]
    bhh = bhh_ref[...]                     # (2B, 3H) per-row direction bias
    mask_f = (jax.lax.broadcasted_iota(jnp.int32, (2 * B, 1), 0) < B).astype(f32)

    h = jnp.zeros((2 * B, H), f32)         # rows [0:B] forward, [B:2B] backward
    for t in range(T):                     # statically unrolled (T small & fixed)
        gi_t = jnp.concatenate([gi_f[t * B:(t + 1) * B, :],
                                gi_b[t * B:(t + 1) * B, :]], axis=0)          # (2B, 3H)
        h_wide = jnp.concatenate([h * mask_f, h * (1.0 - mask_f)], axis=1)    # (2B, 2H)
        gh = jnp.dot(h_wide, whh, preferred_element_type=f32) + bhh           # (2B, 3H)
        r = jax.nn.sigmoid(gi_t[:, 0:H] + gh[:, 0:H])
        z = jax.nn.sigmoid(gi_t[:, H:2 * H] + gh[:, H:2 * H])
        n = jnp.tanh(gi_t[:, 2 * H:3 * H] + r * gh[:, 2 * H:3 * H])
        h = (1.0 - z) * n + z * h
    cap_feat = jnp.concatenate([h[0:B, :], h[B:2 * B, :]], axis=1)            # (B, 2H) [h_f | h_b]

    # ---- FC path (pos_embedding folded into pBlock's weight at init) ----
    pos_feat = _prelu(jnp.dot(pos_ref[...], pw_ref[...], preferred_element_type=f32) + pb_ref[...])
    img_feat = _prelu(jnp.dot(img_ref[...], iw_ref[...], preferred_element_type=f32) + ib_ref[...])
    hid_feat = _prelu(jnp.dot(hid_ref[...], hw_ref[...], preferred_element_type=f32) + hb_ref[...])

    # cBlock: concat([cap, pos, img, hid]) @ c_w  ==  sum of per-chunk matmuls (c_w pre-split);
    # cap_feat is broadcast to all T tokens of its batch row via the tiny selection matmul `sel`.
    cap_ctx = jnp.dot(sel_ref[...],
                      jnp.dot(cap_feat, cwc_ref[...], preferred_element_type=f32),
                      preferred_element_type=f32)                             # (N, 512)
    ctx = _prelu(cap_ctx
                 + jnp.dot(pos_feat, cwp_ref[...], preferred_element_type=f32)
                 + jnp.dot(img_feat, cwi_ref[...], preferred_element_type=f32)
                 + jnp.dot(hid_feat, cwh_ref[...], preferred_element_type=f32)
                 + cb_ref[...])                                               # (N, 512)

    # fcO on concat([ctx, unc_feat]) == split matmuls (o_w pre-split)
    o_ref[...] = (jnp.dot(ctx, owc_ref[...], preferred_element_type=f32)
                  + jnp.dot(unc_feat, owu_ref[...], preferred_element_type=f32)
                  + ob_ref[...])                                              # (N, 1)


# ----------------------------- parameters -----------------------------
def init_params(key, opt):
    C1, C2, C3 = opt.dm_cnn_size // 4, opt.dm_cnn_size // 2, opt.dm_cnn_size
    E, H = opt.dm_emb_size, opt.dm_rnn_size
    B, k = opt.batch_size, opt.k
    L1, L2 = k - 2, k - 4
    sizeP, sizeH, sizeI, sizeC = 256, 256, 512, 512
    keys = iter(jax.random.split(key, 64))

    def w(shape, scale=0.1):
        return (scale * jax.random.normal(next(keys), shape)).astype(jnp.float32)

    p = {}
    # embeddings (padding rows zeroed, as nn.Embedding(padding_idx=...) initializes them)
    p['cap_emb_w'] = w((opt.c_vocab_size + 1, E)).at[opt.c_vocab_size].set(0.0)
    pos_emb_w = w((opt.pos_vocab_size + 1, opt.pos_emb_size)).at[opt.pos_vocab_size].set(0.0)

    # bidirectional single-layer GRU (weights stored transposed for x @ W)
    wih_f, wih_b = w((E, 3 * H)), w((E, 3 * H))
    whh_f, whh_b = w((H, 3 * H)), w((H, 3 * H))
    bih_f, bih_b = w((1, 3 * H)), w((1, 3 * H))
    bhh_f, bhh_b = w((1, 3 * H)), w((1, 3 * H))
    p['gru_wih_f'], p['gru_wih_b'] = wih_f, wih_b
    p['gru_bih_f'], p['gru_bih_b'] = bih_f, bih_b
    p['gru_whh_stack'] = jnp.concatenate([whh_f, whh_b], axis=0)              # (2H, 3H)
    p['gru_bhh_stack'] = jnp.concatenate([jnp.broadcast_to(bhh_f, (B, 3 * H)),
                                          jnp.broadcast_to(bhh_b, (B, 3 * H))], axis=0)  # (2B, 3H)

    # CNN — Conv1d weights are (oc, ic, ks); fold every layer into a single dense matmul
    # whose output lays conv positions along lanes: Y[n, p*oc + o] = conv_out[n, o, p].
    W1, b1 = w((C1, 4, 3)), w((1, C1))
    W2, b2 = w((C2, C1, 3)), w((1, C2))
    W3, b3 = w((C3, C2, 2)), w((1, C3))

    w1_full = jnp.zeros((4 * k, L1 * C1), jnp.float32)        # rows: channel-major (c*k + j)
    for pp in range(L1):
        for c in range(4):
            # rows c*k+pp .. c*k+pp+2 of column block pp get W1[:, c, :].T ((ks, oc))
            w1_full = w1_full.at[c * k + pp:c * k + pp + 3,
                                 pp * C1:(pp + 1) * C1].set(W1[:, c, :].T)
    w2_flat = jnp.transpose(W2, (2, 1, 0)).reshape(3 * C1, C2)   # tap-major, channel-minor
    w2_full = jnp.zeros((L1 * C1, L2 * C2), jnp.float32)
    for q in range(L2):
        w2_full = w2_full.at[q * C1:(q + 3) * C1, q * C2:(q + 1) * C2].set(w2_flat)
    p['cnn_w1_full'] = w1_full
    p['cnn_w2_full'] = w2_full
    p['cnn_w3_full'] = jnp.transpose(W3, (2, 1, 0)).reshape(2 * C2, C3)
    p['cnn_b1_full'] = jnp.tile(b1, (1, L1))
    p['cnn_b2_full'] = jnp.tile(b2, (1, L2))
    p['cnn_b3_full'] = b3

    # FC blocks (stored as (in, out)); pos_embedding folded into pBlock (exact composition)
    p_w = w((opt.pos_emb_size, sizeP))
    p['posp_w'] = pos_emb_w @ p_w                                             # (13, 256)
    p['p_b'] = w((1, sizeP))
    p['i_w'], p['i_b'] = w((opt.image_channels, sizeI)), w((1, sizeI))
    p['h_w'], p['h_b'] = w((opt.c_rnn_size, sizeH)), w((1, sizeH))
    cin = 2 * H + sizeP + sizeI + sizeH
    c_w, p['c_b'] = w((cin, sizeC)), w((1, sizeC))
    p['c_w_cap'] = c_w[:2 * H]                                                # concat order:
    p['c_w_pos'] = c_w[2 * H:2 * H + sizeP]                                   # cap, pos, img, hid
    p['c_w_img'] = c_w[2 * H + sizeP:2 * H + sizeP + sizeI]
    p['c_w_hid'] = c_w[2 * H + sizeP + sizeI:]
    o_w, p['o_b'] = w((opt.dm_cnn_size + sizeC, 1)), w((1, 1))
    p['o_w_ctx'] = o_w[:sizeC]
    p['o_w_unc'] = o_w[sizeC:]
    return p


# ----------------------------- forward -----------------------------
def decision_maker_forward(params, opt, hidden, attended_img, caption, cap_len, pos,
                           topk_probs, topk_words, cap_embedding):
    B, T = caption.shape
    k = opt.k
    N = B * T
    E = cap_embedding.shape[-1]
    H = opt.dm_rnn_size

    # valid_pos (tiny argmax — glue)
    valid_pos = jnp.argmax(pos, axis=2) != (opt.pos_vocab_size - 1)

    # ---- gathers / layout glue (XLA); all reductions & matmuls happen inside the kernel ----
    emb = jnp.take(cap_embedding, topk_words, axis=0)                     # (T,B,k,E)
    emb = jnp.transpose(emb, (1, 0, 2, 3)).reshape(N, k, E).astype(jnp.float32)
    cap_tok_emb = jnp.take(cap_embedding, caption, axis=0)                # (B,T,E)
    mask = (jnp.arange(T)[None, :] < cap_len[:, None]).astype(jnp.float32)
    sent_sum = jnp.sum(cap_tok_emb * mask[:, :, None], axis=1)            # (B,E)
    sent = jnp.broadcast_to(sent_sum[:, None, :], (B, T, E)).reshape(N, E).astype(jnp.float32)
    probs = jnp.transpose(topk_probs, (1, 0, 2)).reshape(N, k).astype(jnp.float32)

    cap_emb2 = jnp.take(params['cap_emb_w'], caption, axis=0)             # (B,T,dm_emb)
    xf = jnp.transpose(cap_emb2, (1, 0, 2)).reshape(T * B, -1)            # time-major, forward
    xb = jnp.transpose(cap_emb2[:, ::-1, :], (1, 0, 2)).reshape(T * B, -1)  # time-major, reversed

    sel = jnp.repeat(jnp.eye(B, dtype=jnp.float32), T, axis=0)            # (N,B): row b*T+t -> b
    pos_flat = pos.reshape(N, -1).astype(jnp.float32)
    img_flat = attended_img.reshape(N, -1).astype(jnp.float32)
    hid_flat = hidden.reshape(N, -1).astype(jnp.float32)

    logits = pl.pallas_call(
        functools.partial(fused_decision_kernel, B=B, T=T, H=H),
        out_shape=jax.ShapeDtypeStruct((N, 1), jnp.float32),
    )(emb, sent, probs, xf, xb, pos_flat, img_flat, hid_flat, sel,
      params['gru_wih_f'], params['gru_wih_b'], params['gru_bih_f'], params['gru_bih_b'],
      params['gru_whh_stack'], params['gru_bhh_stack'],
      params['cnn_w1_full'], params['cnn_b1_full'], params['cnn_w2_full'], params['cnn_b2_full'],
      params['cnn_w3_full'], params['cnn_b3_full'],
      params['posp_w'], params['p_b'], params['i_w'], params['i_b'],
      params['h_w'], params['h_b'],
      params['c_w_cap'], params['c_w_pos'], params['c_w_img'], params['c_w_hid'], params['c_b'],
      params['o_w_ctx'], params['o_w_unc'], params['o_b'])

    return logits.reshape(B, T), valid_pos


# ----------------------------- main -----------------------------
if __name__ == "__main__":
    opt = Opt()
    B = opt.batch_size
    T = opt.c_max_sentence_len + 1

    key = jax.random.PRNGKey(0)
    kp, k1, k2, k3, k4, k5, k6, k7 = jax.random.split(key, 8)
    params = init_params(kp, opt)

    hidden = jax.random.normal(k1, (B, T, opt.c_rnn_size), jnp.float32)
    attended_img = jax.random.normal(k2, (B, T, opt.image_channels), jnp.float32)
    caption = jax.random.randint(k3, (B, T), 0, opt.c_vocab_size)
    cap_len = jnp.array([T - 2, T], dtype=jnp.int32)
    pos = jax.random.normal(k4, (B, T, opt.pos_vocab_size + 1), jnp.float32)
    topk_probs = jax.nn.softmax(jax.random.normal(k5, (T, B, opt.k), jnp.float32), axis=-1)
    topk_words = jax.random.randint(k6, (T, B, opt.k), 0, opt.c_vocab_size)
    cap_embedding = jax.random.normal(k7, (opt.c_vocab_size + 1, opt.dm_emb_size), jnp.float32)

    fwd = jax.jit(functools.partial(decision_maker_forward, params, opt))
    logits, valid_pos = fwd(hidden, attended_img, caption, cap_len, pos,
                            topk_probs, topk_words, cap_embedding)
    jax.block_until_ready((logits, valid_pos))
    assert logits.shape == (B, T) and valid_pos.shape == (B, T)
    assert bool(jnp.all(jnp.isfinite(logits)))
    print("KERNEL_OK")
</pallas_src>

<mosaic_0001>
module attributes {stable_mosaic.version = 11 : i64} {
  func.func @fused_decision_kernel(%arg0: memref<16x6x32xf32, #tpu.memory_space<vmem>>, %arg1: memref<16x32xf32, #tpu.memory_space<vmem>>, %arg2: memref<16x6xf32, #tpu.memory_space<vmem>>, %arg3: memref<16x32xf32, #tpu.memory_space<vmem>>, %arg4: memref<16x32xf32, #tpu.memory_space<vmem>>, %arg5: memref<16x13xf32, #tpu.memory_space<vmem>>, %arg6: memref<16x24xf32, #tpu.memory_space<vmem>>, %arg7: memref<16x48xf32, #tpu.memory_space<vmem>>, %arg8: memref<16x2xf32, #tpu.memory_space<vmem>>, %arg9: memref<32x96xf32, #tpu.memory_space<vmem>>, %arg10: memref<32x96xf32, #tpu.memory_space<vmem>>, %arg11: memref<1x96xf32, #tpu.memory_space<vmem>>, %arg12: memref<1x96xf32, #tpu.memory_space<vmem>>, %arg13: memref<64x96xf32, #tpu.memory_space<vmem>>, %arg14: memref<4x96xf32, #tpu.memory_space<vmem>>, %arg15: memref<24x64xf32, #tpu.memory_space<vmem>>, %arg16: memref<1x64xf32, #tpu.memory_space<vmem>>, %arg17: memref<64x64xf32, #tpu.memory_space<vmem>>, %arg18: memref<1x64xf32, #tpu.memory_space<vmem>>, %arg19: memref<64x64xf32, #tpu.memory_space<vmem>>, %arg20: memref<1x64xf32, #tpu.memory_space<vmem>>, %arg21: memref<13x256xf32, #tpu.memory_space<vmem>>, %arg22: memref<1x256xf32, #tpu.memory_space<vmem>>, %arg23: memref<24x512xf32, #tpu.memory_space<vmem>>, %arg24: memref<1x512xf32, #tpu.memory_space<vmem>>, %arg25: memref<48x256xf32, #tpu.memory_space<vmem>>, %arg26: memref<1x256xf32, #tpu.memory_space<vmem>>, %arg27: memref<64x512xf32, #tpu.memory_space<vmem>>, %arg28: memref<256x512xf32, #tpu.memory_space<vmem>>, %arg29: memref<512x512xf32, #tpu.memory_space<vmem>>, %arg30: memref<256x512xf32, #tpu.memory_space<vmem>>, %arg31: memref<1x512xf32, #tpu.memory_space<vmem>>, %arg32: memref<512x1xf32, #tpu.memory_space<vmem>>, %arg33: memref<64x1xf32, #tpu.memory_space<vmem>>, %arg34: memref<1x1xf32, #tpu.memory_space<vmem>>, %arg35: memref<16x1xf32, #tpu.memory_space<vmem>>) attributes {dimension_semantics = [], scalar_prefetch = 0 : i64, scratch_operands = 0 : i64, tpu.core_type = #tpu.core_type<tc>} {
    %c0 = arith.constant 0 : index
    %c0_0 = arith.constant 0 : index
    %c0_1 = arith.constant 0 : index
    %0 = vector.load %arg0[%c0, %c0_0, %c0_1] : memref<16x6x32xf32, #tpu.memory_space<vmem>>, vector<16x6x32xf32>
    %c0_2 = arith.constant 0 : index
    %c0_3 = arith.constant 0 : index
    %1 = vector.load %arg1[%c0_2, %c0_3] : memref<16x32xf32, #tpu.memory_space<vmem>>, vector<16x32xf32>
    %c0_4 = arith.constant 0 : index
    %c0_5 = arith.constant 0 : index
    %2 = vector.load %arg2[%c0_4, %c0_5] : memref<16x6xf32, #tpu.memory_space<vmem>>, vector<16x6xf32>
    "tpu.trace_start"() <{level = 10 : i32, message = "nke,nje->nkj"}> : () -> ()
    %cst = arith.constant dense<0.000000e+00> : vector<16x6x6xf32>
    %3 = tpu.matmul %0, %0, %cst {dimension_numbers = #tpu.dot_dimension_numbers<[2], [2], [1], [1], [0, 0, 0, 1, 1, 1], [0], [0]>} : vector<16x6x32xf32>, vector<16x6x32xf32>, vector<16x6x6xf32> -> vector<16x6x6xf32>
    "tpu.trace_stop"() : () -> ()
    %4 = arith.mulf %0, %0 : vector<16x6x32xf32>
    %cst_6 = arith.constant dense<0.000000e+00> : vector<16x6xf32>
    %5 = vector.multi_reduction <add>, %4, %cst_6 [2] : vector<16x6x32xf32> to vector<16x6xf32>
    %6 = math.sqrt %5 : vector<16x6xf32>
    %cst_7 = arith.constant 9.99999993E-9 : f32
    %7 = vector.broadcast %cst_7 : f32 to vector<16x6xf32>
    %8 = arith.maximumf %6, %7 : vector<16x6xf32>
    %9 = vector.shape_cast %5 : vector<16x6xf32> to vector<16x6x1xf32>
    %10 = vector.shape_cast %5 : vector<16x6xf32> to vector<16x1x6xf32>
    %11 = vector.broadcast %9 : vector<16x6x1xf32> to vector<16x6x6xf32>
    %12 = vector.broadcast %10 : vector<16x1x6xf32> to vector<16x6x6xf32>
    %13 = arith.addf %11, %12 : vector<16x6x6xf32>
    %cst_8 = arith.constant 2.000000e+00 : f32
    %14 = vector.broadcast %cst_8 : f32 to vector<16x6x6xf32>
    %15 = arith.mulf %14, %3 : vector<16x6x6xf32>
    %16 = arith.subf %13, %15 : vector<16x6x6xf32>
    %17 = tpu.iota {dimensions = array<i32: 1>} : vector<16x6x6xi32>
    %18 = tpu.iota {dimensions = array<i32: 2>} : vector<16x6x6xi32>
    %19 = arith.cmpi eq, %17, %18 : vector<16x6x6xi32>
    %cst_9 = arith.constant 0.000000e+00 : f32
    %20 = vector.broadcast %cst_9 : f32 to vector<16x6x6xf32>
    %21 = arith.maximumf %16, %20 : vector<16x6x6xf32>
    %cst_10 = arith.constant 1.000000e+06 : f32
    %22 = vector.broadcast %cst_10 : f32 to vector<16x6x6xf32>
    %23 = arith.select %19, %22, %21 : vector<16x6x6xi1>, vector<16x6x6xf32>
    %cst_11 = arith.constant dense<0x7F800000> : vector<16x6xf32>
    %24 = vector.multi_reduction <minimumf>, %23, %cst_11 [2] : vector<16x6x6xf32> to vector<16x6xf32>
    %25 = math.sqrt %24 : vector<16x6xf32>
    %26 = tpu.iota {dimensions = array<i32: 1>} : vector<16x6xi32>
    %27 = vector.extract_strided_slice %3 {offsets = [0, 0, 0], sizes = [16, 1, 6], strides = [1, 1, 1]} : vector<16x6x6xf32> to vector<16x1x6xf32>
    %28 = vector.shape_cast %27 : vector<16x1x6xf32> to vector<16x6xf32>
    %29 = vector.extract_strided_slice %8 {offsets = [0, 0], sizes = [16, 1], strides = [1, 1]} : vector<16x6xf32> to vector<16x1xf32>
    %30 = vector.broadcast %29 : vector<16x1xf32> to vector<16x6xf32>
    %31 = arith.mulf %30, %8 : vector<16x6xf32>
    %32 = arith.divf %28, %31 : vector<16x6xf32>
    %c0_i32 = arith.constant 0 : i32
    %33 = vector.broadcast %c0_i32 : i32 to vector<16x6xi32>
    %34 = arith.cmpi eq, %26, %33 : vector<16x6xi32>
    %cst_12 = arith.constant 0.000000e+00 : f32
    %35 = vector.broadcast %cst_12 : f32 to vector<16x6xf32>
    %36 = arith.select %34, %35, %32 : vector<16x6xi1>, vector<16x6xf32>
    %37 = arith.mulf %1, %1 : vector<16x32xf32>
    %cst_13 = arith.constant dense<0.000000e+00> : vector<16xf32>
    %38 = vector.multi_reduction <add>, %37, %cst_13 [1] : vector<16x32xf32> to vector<16xf32>
    %39 = vector.shape_cast %38 : vector<16xf32> to vector<16x1xf32>
    %40 = math.sqrt %39 : vector<16x1xf32>
    %cst_14 = arith.constant 9.99999993E-9 : f32
    %41 = vector.broadcast %cst_14 : f32 to vector<16x1xf32>
    %42 = arith.maximumf %40, %41 : vector<16x1xf32>
    %43 = vector.shape_cast %1 : vector<16x32xf32> to vector<16x1x32xf32>
    %44 = vector.broadcast %43 : vector<16x1x32xf32> to vector<16x6x32xf32>
    %45 = arith.mulf %44, %0 : vector<16x6x32xf32>
    %cst_15 = arith.constant dense<0.000000e+00> : vector<16x6xf32>
    %46 = vector.multi_reduction <add>, %45, %cst_15 [2] : vector<16x6x32xf32> to vector<16x6xf32>
    %47 = vector.broadcast %42 : vector<16x1xf32> to vector<16x6xf32>
    %48 = arith.mulf %47, %8 : vector<16x6xf32>
    %49 = arith.divf %46, %48 : vector<16x6xf32>
    %50 = tpu.concatenate %25, %36, %49, %2 in 1 : vector<16x6xf32>, vector<16x6xf32>, vector<16x6xf32>, vector<16x6xf32> -> vector<16x24xf32>
    %c0_16 = arith.constant 0 : index
    %c0_17 = arith.constant 0 : index
    %51 = vector.load %arg15[%c0_16, %c0_17] : memref<24x64xf32, #tpu.memory_space<vmem>>, vector<24x64xf32>
    %cst_18 = arith.constant dense<0.000000e+00> : vector<16x64xf32>
    %52 = tpu.matmul %50, %51, %cst_18 {dimension_numbers = #tpu.dot_dimension_numbers<[1], [0], [0], [1], [0, 0, 1, 1], [], []>} : vector<16x24xf32>, vector<24x64xf32>, vector<16x64xf32> -> vector<16x64xf32>
    %c0_19 = arith.constant 0 : index
    %c0_20 = arith.constant 0 : index
    %53 = vector.load %arg16[%c0_19, %c0_20] : memref<1x64xf32, #tpu.memory_space<vmem>>, vector<1x64xf32>
    %54 = vector.broadcast %53 : vector<1x64xf32> to vector<16x64xf32>
    %55 = arith.addf %52, %54 : vector<16x64xf32>
    %cst_21 = arith.constant 0.000000e+00 : f32
    %56 = vector.broadcast %cst_21 : f32 to vector<16x64xf32>
    %57 = arith.cmpf oge, %55, %56 : vector<16x64xf32>
    %cst_22 = arith.constant 2.500000e-01 : f32
    %58 = vector.broadcast %cst_22 : f32 to vector<16x64xf32>
    %59 = arith.mulf %58, %55 : vector<16x64xf32>
    %60 = arith.select %57, %55, %59 : vector<16x64xi1>, vector<16x64xf32>
    %c0_23 = arith.constant 0 : index
    %c0_24 = arith.constant 0 : index
    %61 = vector.load %arg17[%c0_23, %c0_24] : memref<64x64xf32, #tpu.memory_space<vmem>>, vector<64x64xf32>
    %cst_25 = arith.constant dense<0.000000e+00> : vector<16x64xf32>
    %62 = tpu.matmul %60, %61, %cst_25 {dimension_numbers = #tpu.dot_dimension_numbers<[1], [0], [0], [1], [0, 0, 1, 1], [], []>} : vector<16x64xf32>, vector<64x64xf32>, vector<16x64xf32> -> vector<16x64xf32>
    %c0_26 = arith.constant 0 : index
    %c0_27 = arith.constant 0 : index
    %63 = vector.load %arg18[%c0_26, %c0_27] : memref<1x64xf32, #tpu.memory_space<vmem>>, vector<1x64xf32>
    %64 = vector.broadcast %63 : vector<1x64xf32> to vector<16x64xf32>
    %65 = arith.addf %62, %64 : vector<16x64xf32>
    %cst_28 = arith.constant 0.000000e+00 : f32
    %66 = vector.broadcast %cst_28 : f32 to vector<16x64xf32>
    %67 = arith.cmpf oge, %65, %66 : vector<16x64xf32>
    %cst_29 = arith.constant 2.500000e-01 : f32
    %68 = vector.broadcast %cst_29 : f32 to vector<16x64xf32>
    %69 = arith.mulf %68, %65 : vector<16x64xf32>
    %70 = arith.select %67, %65, %69 : vector<16x64xi1>, vector<16x64xf32>
    %c0_30 = arith.constant 0 : index
    %c0_31 = arith.constant 0 : index
    %71 = vector.load %arg19[%c0_30, %c0_31] : memref<64x64xf32, #tpu.memory_space<vmem>>, vector<64x64xf32>
    %cst_32 = arith.constant dense<0.000000e+00> : vector<16x64xf32>
    %72 = tpu.matmul %70, %71, %cst_32 {dimension_numbers = #tpu.dot_dimension_numbers<[1], [0], [0], [1], [0, 0, 1, 1], [], []>} : vector<16x64xf32>, vector<64x64xf32>, vector<16x64xf32> -> vector<16x64xf32>
    %c0_33 = arith.constant 0 : index
    %c0_34 = arith.constant 0 : index
    %73 = vector.load %arg20[%c0_33, %c0_34] : memref<1x64xf32, #tpu.memory_space<vmem>>, vector<1x64xf32>
    %74 = vector.broadcast %73 : vector<1x64xf32> to vector<16x64xf32>
    %75 = arith.addf %72, %74 : vector<16x64xf32>
    %cst_35 = arith.constant 0.000000e+00 : f32
    %76 = vector.broadcast %cst_35 : f32 to vector<16x64xf32>
    %77 = arith.cmpf oge, %75, %76 : vector<16x64xf32>
    %cst_36 = arith.constant 2.500000e-01 : f32
    %78 = vector.broadcast %cst_36 : f32 to vector<16x64xf32>
    %79 = arith.mulf %78, %75 : vector<16x64xf32>
    %80 = arith.select %77, %75, %79 : vector<16x64xi1>, vector<16x64xf32>
    %c0_37 = arith.constant 0 : index
    %c0_38 = arith.constant 0 : index
    %81 = vector.load %arg3[%c0_37, %c0_38] : memref<16x32xf32, #tpu.memory_space<vmem>>, vector<16x32xf32>
    %c0_39 = arith.constant 0 : index
    %c0_40 = arith.constant 0 : index
    %82 = vector.load %arg9[%c0_39, %c0_40] : memref<32x96xf32, #tpu.memory_space<vmem>>, vector<32x96xf32>
    %cst_41 = arith.constant dense<0.000000e+00> : vector<16x96xf32>
    %83 = tpu.matmul %81, %82, %cst_41 {dimension_numbers = #tpu.dot_dimension_numbers<[1], [0], [0], [1], [0, 0, 1, 1], [], []>} : vector<16x32xf32>, vector<32x96xf32>, vector<16x96xf32> -> vector<16x96xf32>
    %c0_42 = arith.constant 0 : index
    %c0_43 = arith.constant 0 : index
    %84 = vector.load %arg11[%c0_42, %c0_43] : memref<1x96xf32, #tpu.memory_space<vmem>>, vector<1x96xf32>
    %85 = vector.broadcast %84 : vector<1x96xf32> to vector<16x96xf32>
    %86 = arith.addf %83, %85 : vector<16x96xf32>
    %c0_44 = arith.constant 0 : index
    %c0_45 = arith.constant 0 : index
    %87 = vector.load %arg4[%c0_44, %c0_45] : memref<16x32xf32, #tpu.memory_space<vmem>>, vector<16x32xf32>
    %c0_46 = arith.constant 0 : index
    %c0_47 = arith.constant 0 : index
    %88 = vector.load %arg10[%c0_46, %c0_47] : memref<32x96xf32, #tpu.memory_space<vmem>>, vector<32x96xf32>
    %cst_48 = arith.constant dense<0.000000e+00> : vector<16x96xf32>
    %89 = tpu.matmul %87, %88, %cst_48 {dimension_numbers = #tpu.dot_dimension_numbers<[1], [0], [0], [1], [0, 0, 1, 1], [], []>} : vector<16x32xf32>, vector<32x96xf32>, vector<16x96xf32> -> vector<16x96xf32>
    %c0_49 = arith.constant 0 : index
    %c0_50 = arith.constant 0 : index
    %90 = vector.load %arg12[%c0_49, %c0_50] : memref<1x96xf32, #tpu.memory_space<vmem>>, vector<1x96xf32>
    %91 = vector.broadcast %90 : vector<1x96xf32> to vector<16x96xf32>
    %92 = arith.addf %89, %91 : vector<16x96xf32>
    %c0_51 = arith.constant 0 : index
    %c0_52 = arith.constant 0 : index
    %93 = vector.load %arg13[%c0_51, %c0_52] : memref<64x96xf32, #tpu.memory_space<vmem>>, vector<64x96xf32>
    %c0_53 = arith.constant 0 : index
    %c0_54 = arith.constant 0 : index
    %94 = vector.load %arg14[%c0_53, %c0_54] : memref<4x96xf32, #tpu.memory_space<vmem>>, vector<4x96xf32>
    %95 = tpu.iota {dimensions = array<i32: 0>} : vector<4x1xi32>
    %c2_i32 = arith.constant 2 : i32
    %96 = vector.broadcast %c2_i32 : i32 to vector<4x1xi32>
    %97 = arith.cmpi slt, %95, %96 : vector<4x1xi32>
    %98 = arith.extui %97 : vector<4x1xi1> to vector<4x1xi32>
    %99 = arith.sitofp %98 : vector<4x1xi32> to vector<4x1xf32>
    %cst_55 = arith.constant 0.000000e+00 : f32
    %100 = vector.broadcast %cst_55 : f32 to vector<4x32xf32>
    %101 = vector.extract_strided_slice %86 {offsets = [0, 0], sizes = [2, 96], strides = [1, 1]} : vector<16x96xf32> to vector<2x96xf32>
    %102 = vector.extract_strided_slice %92 {offsets = [0, 0], sizes = [2, 96], strides = [1, 1]} : vector<16x96xf32> to vector<2x96xf32>
    %103 = tpu.concatenate %101, %102 in 0 : vector<2x96xf32>, vector<2x96xf32> -> vector<4x96xf32>
    %104 = vector.broadcast %99 : vector<4x1xf32> to vector<4x32xf32>
    %105 = arith.mulf %100, %104 : vector<4x32xf32>
    %cst_56 = arith.constant 1.000000e+00 : f32
    %106 = vector.broadcast %cst_56 : f32 to vector<4x1xf32>
    %107 = arith.subf %106, %99 : vector<4x1xf32>
    %108 = vector.broadcast %107 : vector<4x1xf32> to vector<4x32xf32>
    %109 = arith.mulf %100, %108 : vector<4x32xf32>
    %110 = tpu.concatenate %105, %109 in 1 : vector<4x32xf32>, vector<4x32xf32> -> vector<4x64xf32>
    %cst_57 = arith.constant dense<0.000000e+00> : vector<4x96xf32>
    %111 = tpu.matmul %110, %93, %cst_57 {dimension_numbers = #tpu.dot_dimension_numbers<[1], [0], [0], [1], [0, 0, 1, 1], [], []>} : vector<4x64xf32>, vector<64x96xf32>, vector<4x96xf32> -> vector<4x96xf32>
    %112 = arith.addf %111, %94 : vector<4x96xf32>
    %113 = vector.extract_strided_slice %103 {offsets = [0, 0], sizes = [4, 32], strides = [1, 1]} : vector<4x96xf32> to vector<4x32xf32>
    %114 = vector.extract_strided_slice %112 {offsets = [0, 0], sizes = [4, 32], strides = [1, 1]} : vector<4x96xf32> to vector<4x32xf32>
    %115 = arith.addf %113, %114 : vector<4x32xf32>
    %116 = arith.negf %115 : vector<4x32xf32>
    %117 = math.exp %116 : vector<4x32xf32>
    %cst_58 = arith.constant 1.000000e+00 : f32
    %118 = vector.broadcast %cst_58 : f32 to vector<4x32xf32>
    %119 = arith.addf %118, %117 : vector<4x32xf32>
    %120 = arith.divf %118, %119 : vector<4x32xf32>
    %121 = vector.extract_strided_slice %103 {offsets = [0, 32], sizes = [4, 32], strides = [1, 1]} : vector<4x96xf32> to vector<4x32xf32>
    %122 = vector.extract_strided_slice %112 {offsets = [0, 32], sizes = [4, 32], strides = [1, 1]} : vector<4x96xf32> to vector<4x32xf32>
    %123 = arith.addf %121, %122 : vector<4x32xf32>
    %124 = arith.negf %123 : vector<4x32xf32>
    %125 = math.exp %124 : vector<4x32xf32>
    %cst_59 = arith.constant 1.000000e+00 : f32
    %126 = vector.broadcast %cst_59 : f32 to vector<4x32xf32>
    %127 = arith.addf %126, %125 : vector<4x32xf32>
    %128 = arith.divf %126, %127 : vector<4x32xf32>
    %129 = vector.extract_strided_slice %103 {offsets = [0, 64], sizes = [4, 32], strides = [1, 1]} : vector<4x96xf32> to vector<4x32xf32>
    %130 = vector.extract_strided_slice %112 {offsets = [0, 64], sizes = [4, 32], strides = [1, 1]} : vector<4x96xf32> to vector<4x32xf32>
    %131 = arith.mulf %120, %130 : vector<4x32xf32>
    %132 = arith.addf %129, %131 : vector<4x32xf32>
    %133 = math.tanh %132 : vector<4x32xf32>
    %cst_60 = arith.constant 1.000000e+00 : f32
    %134 = vector.broadcast %cst_60 : f32 to vector<4x32xf32>
    %135 = arith.subf %134, %128 : vector<4x32xf32>
    %136 = arith.mulf %135, %133 : vector<4x32xf32>
    %137 = arith.mulf %128, %100 : vector<4x32xf32>
    %138 = arith.addf %136, %137 : vector<4x32xf32>
    %139 = vector.extract_strided_slice %86 {offsets = [2, 0], sizes = [2, 96], strides = [1, 1]} : vector<16x96xf32> to vector<2x96xf32>
    %140 = vector.extract_strided_slice %92 {offsets = [2, 0], sizes = [2, 96], strides = [1, 1]} : vector<16x96xf32> to vector<2x96xf32>
    %141 = tpu.concatenate %139, %140 in 0 : vector<2x96xf32>, vector<2x96xf32> -> vector<4x96xf32>
    %142 = vector.broadcast %99 : vector<4x1xf32> to vector<4x32xf32>
    %143 = arith.mulf %138, %142 : vector<4x32xf32>
    %cst_61 = arith.constant 1.000000e+00 : f32
    %144 = vector.broadcast %cst_61 : f32 to vector<4x1xf32>
    %145 = arith.subf %144, %99 : vector<4x1xf32>
    %146 = vector.broadcast %145 : vector<4x1xf32> to vector<4x32xf32>
    %147 = arith.mulf %138, %146 : vector<4x32xf32>
    %148 = tpu.concatenate %143, %147 in 1 : vector<4x32xf32>, vector<4x32xf32> -> vector<4x64xf32>
    %cst_62 = arith.constant dense<0.000000e+00> : vector<4x96xf32>
    %149 = tpu.matmul %148, %93, %cst_62 {dimension_numbers = #tpu.dot_dimension_numbers<[1], [0], [0], [1], [0, 0, 1, 1], [], []>} : vector<4x64xf32>, vector<64x96xf32>, vector<4x96xf32> -> vector<4x96xf32>
    %150 = arith.addf %149, %94 : vector<4x96xf32>
    %151 = vector.extract_strided_slice %141 {offsets = [0, 0], sizes = [4, 32], strides = [1, 1]} : vector<4x96xf32> to vector<4x32xf32>
    %152 = vector.extract_strided_slice %150 {offsets = [0, 0], sizes = [4, 32], strides = [1, 1]} : vector<4x96xf32> to vector<4x32xf32>
    %153 = arith.addf %151, %152 : vector<4x32xf32>
    %154 = arith.negf %153 : vector<4x32xf32>
    %155 = math.exp %154 : vector<4x32xf32>
    %cst_63 = arith.constant 1.000000e+00 : f32
    %156 = vector.broadcast %cst_63 : f32 to vector<4x32xf32>
    %157 = arith.addf %156, %155 : vector<4x32xf32>
    %158 = arith.divf %156, %157 : vector<4x32xf32>
    %159 = vector.extract_strided_slice %141 {offsets = [0, 32], sizes = [4, 32], strides = [1, 1]} : vector<4x96xf32> to vector<4x32xf32>
    %160 = vector.extract_strided_slice %150 {offsets = [0, 32], sizes = [4, 32], strides = [1, 1]} : vector<4x96xf32> to vector<4x32xf32>
    %161 = arith.addf %159, %160 : vector<4x32xf32>
    %162 = arith.negf %161 : vector<4x32xf32>
    %163 = math.exp %162 : vector<4x32xf32>
    %cst_64 = arith.constant 1.000000e+00 : f32
    %164 = vector.broadcast %cst_64 : f32 to vector<4x32xf32>
    %165 = arith.addf %164, %163 : vector<4x32xf32>
    %166 = arith.divf %164, %165 : vector<4x32xf32>
    %167 = vector.extract_strided_slice %141 {offsets = [0, 64], sizes = [4, 32], strides = [1, 1]} : vector<4x96xf32> to vector<4x32xf32>
    %168 = vector.extract_strided_slice %150 {offsets = [0, 64], sizes = [4, 32], strides = [1, 1]} : vector<4x96xf32> to vector<4x32xf32>
    %169 = arith.mulf %158, %168 : vector<4x32xf32>
    %170 = arith.addf %167, %169 : vector<4x32xf32>
    %171 = math.tanh %170 : vector<4x32xf32>
    %cst_65 = arith.constant 1.000000e+00 : f32
    %172 = vector.broadcast %cst_65 : f32 to vector<4x32xf32>
    %173 = arith.subf %172, %166 : vector<4x32xf32>
    %174 = arith.mulf %173, %171 : vector<4x32xf32>
    %175 = arith.mulf %166, %138 : vector<4x32xf32>
    %176 = arith.addf %174, %175 : vector<4x32xf32>
    %177 = vector.extract_strided_slice %86 {offsets = [4, 0], sizes = [2, 96], strides = [1, 1]} : vector<16x96xf32> to vector<2x96xf32>
    %178 = vector.extract_strided_slice %92 {offsets = [4, 0], sizes = [2, 96], strides = [1, 1]} : vector<16x96xf32> to vector<2x96xf32>
    %179 = tpu.concatenate %177, %178 in 0 : vector<2x96xf32>, vector<2x96xf32> -> vector<4x96xf32>
    %180 = vector.broadcast %99 : vector<4x1xf32> to vector<4x32xf32>
    %181 = arith.mulf %176, %180 : vector<4x32xf32>
    %cst_66 = arith.constant 1.000000e+00 : f32
    %182 = vector.broadcast %cst_66 : f32 to vector<4x1xf32>
    %183 = arith.subf %182, %99 : vector<4x1xf32>
    %184 = vector.broadcast %183 : vector<4x1xf32> to vector<4x32xf32>
    %185 = arith.mulf %176, %184 : vector<4x32xf32>
    %186 = tpu.concatenate %181, %185 in 1 : vector<4x32xf32>, vector<4x32xf32> -> vector<4x64xf32>
    %cst_67 = arith.constant dense<0.000000e+00> : vector<4x96xf32>
    %187 = tpu.matmul %186, %93, %cst_67 {dimension_numbers = #tpu.dot_dimension_numbers<[1], [0], [0], [1], [0, 0, 1, 1], [], []>} : vector<4x64xf32>, vector<64x96xf32>, vector<4x96xf32> -> vector<4x96xf32>
    %188 = arith.addf %187, %94 : vector<4x96xf32>
    %189 = vector.extract_strided_slice %179 {offsets = [0, 0], sizes = [4, 32], strides = [1, 1]} : vector<4x96xf32> to vector<4x32xf32>
    %190 = vector.extract_strided_slice %188 {offsets = [0, 0], sizes = [4, 32], strides = [1, 1]} : vector<4x96xf32> to vector<4x32xf32>
    %191 = arith.addf %189, %190 : vector<4x32xf32>
    %192 = arith.negf %191 : vector<4x32xf32>
    %193 = math.exp %192 : vector<4x32xf32>
    %cst_68 = arith.constant 1.000000e+00 : f32
    %194 = vector.broadcast %cst_68 : f32 to vector<4x32xf32>
    %195 = arith.addf %194, %193 : vector<4x32xf32>
    %196 = arith.divf %194, %195 : vector<4x32xf32>
    %197 = vector.extract_strided_slice %179 {offsets = [0, 32], sizes = [4, 32], strides = [1, 1]} : vector<4x96xf32> to vector<4x32xf32>
    %198 = vector.extract_strided_slice %188 {offsets = [0, 32], sizes = [4, 32], strides = [1, 1]} : vector<4x96xf32> to vector<4x32xf32>
    %199 = arith.addf %197, %198 : vector<4x32xf32>
    %200 = arith.negf %199 : vector<4x32xf32>
    %201 = math.exp %200 : vector<4x32xf32>
    %cst_69 = arith.constant 1.000000e+00 : f32
    %202 = vector.broadcast %cst_69 : f32 to vector<4x32xf32>
    %203 = arith.addf %202, %201 : vector<4x32xf32>
    %204 = arith.divf %202, %203 : vector<4x32xf32>
    %205 = vector.extract_strided_slice %179 {offsets = [0, 64], sizes = [4, 32], strides = [1, 1]} : vector<4x96xf32> to vector<4x32xf32>
    %206 = vector.extract_strided_slice %188 {offsets = [0, 64], sizes = [4, 32], strides = [1, 1]} : vector<4x96xf32> to vector<4x32xf32>
    %207 = arith.mulf %196, %206 : vector<4x32xf32>
    %208 = arith.addf %205, %207 : vector<4x32xf32>
    %209 = math.tanh %208 : vector<4x32xf32>
    %cst_70 = arith.constant 1.000000e+00 : f32
    %210 = vector.broadcast %cst_70 : f32 to vector<4x32xf32>
    %211 = arith.subf %210, %204 : vector<4x32xf32>
    %212 = arith.mulf %211, %209 : vector<4x32xf32>
    %213 = arith.mulf %204, %176 : vector<4x32xf32>
    %214 = arith.addf %212, %213 : vector<4x32xf32>
    %215 = vector.extract_strided_slice %86 {offsets = [6, 0], sizes = [2, 96], strides = [1, 1]} : vector<16x96xf32> to vector<2x96xf32>
    %216 = vector.extract_strided_slice %92 {offsets = [6, 0], sizes = [2, 96], strides = [1, 1]} : vector<16x96xf32> to vector<2x96xf32>
    %217 = tpu.concatenate %215, %216 in 0 : vector<2x96xf32>, vector<2x96xf32> -> vector<4x96xf32>
    %218 = vector.broadcast %99 : vector<4x1xf32> to vector<4x32xf32>
    %219 = arith.mulf %214, %218 : vector<4x32xf32>
    %cst_71 = arith.constant 1.000000e+00 : f32
    %220 = vector.broadcast %cst_71 : f32 to vector<4x1xf32>
    %221 = arith.subf %220, %99 : vector<4x1xf32>
    %222 = vector.broadcast %221 : vector<4x1xf32> to vector<4x32xf32>
    %223 = arith.mulf %214, %222 : vector<4x32xf32>
    %224 = tpu.concatenate %219, %223 in 1 : vector<4x32xf32>, vector<4x32xf32> -> vector<4x64xf32>
    %cst_72 = arith.constant dense<0.000000e+00> : vector<4x96xf32>
    %225 = tpu.matmul %224, %93, %cst_72 {dimension_numbers = #tpu.dot_dimension_numbers<[1], [0], [0], [1], [0, 0, 1, 1], [], []>} : vector<4x64xf32>, vector<64x96xf32>, vector<4x96xf32> -> vector<4x96xf32>
    %226 = arith.addf %225, %94 : vector<4x96xf32>
    %227 = vector.extract_strided_slice %217 {offsets = [0, 0], sizes = [4, 32], strides = [1, 1]} : vector<4x96xf32> to vector<4x32xf32>
    %228 = vector.extract_strided_slice %226 {offsets = [0, 0], sizes = [4, 32], strides = [1, 1]} : vector<4x96xf32> to vector<4x32xf32>
    %229 = arith.addf %227, %228 : vector<4x32xf32>
    %230 = arith.negf %229 : vector<4x32xf32>
    %231 = math.exp %230 : vector<4x32xf32>
    %cst_73 = arith.constant 1.000000e+00 : f32
    %232 = vector.broadcast %cst_73 : f32 to vector<4x32xf32>
    %233 = arith.addf %232, %231 : vector<4x32xf32>
    %234 = arith.divf %232, %233 : vector<4x32xf32>
    %235 = vector.extract_strided_slice %217 {offsets = [0, 32], sizes = [4, 32], strides = [1, 1]} : vector<4x96xf32> to vector<4x32xf32>
    %236 = vector.extract_strided_slice %226 {offsets = [0, 32], sizes = [4, 32], strides = [1, 1]} : vector<4x96xf32> to vector<4x32xf32>
    %237 = arith.addf %235, %236 : vector<4x32xf32>
    %238 = arith.negf %237 : vector<4x32xf32>
    %239 = math.exp %238 : vector<4x32xf32>
    %cst_74 = arith.constant 1.000000e+00 : f32
    %240 = vector.broadcast %cst_74 : f32 to vector<4x32xf32>
    %241 = arith.addf %240, %239 : vector<4x32xf32>
    %242 = arith.divf %240, %241 : vector<4x32xf32>
    %243 = vector.extract_strided_slice %217 {offsets = [0, 64], sizes = [4, 32], strides = [1, 1]} : vector<4x96xf32> to vector<4x32xf32>
    %244 = vector.extract_strided_slice %226 {offsets = [0, 64], sizes = [4, 32], strides = [1, 1]} : vector<4x96xf32> to vector<4x32xf32>
    %245 = arith.mulf %234, %244 : vector<4x32xf32>
    %246 = arith.addf %243, %245 : vector<4x32xf32>
    %247 = math.tanh %246 : vector<4x32xf32>
    %cst_75 = arith.constant 1.000000e+00 : f32
    %248 = vector.broadcast %cst_75 : f32 to vector<4x32xf32>
    %249 = arith.subf %248, %242 : vector<4x32xf32>
    %250 = arith.mulf %249, %247 : vector<4x32xf32>
    %251 = arith.mulf %242, %214 : vector<4x32xf32>
    %252 = arith.addf %250, %251 : vector<4x32xf32>
    %253 = vector.extract_strided_slice %86 {offsets = [8, 0], sizes = [2, 96], strides = [1, 1]} : vector<16x96xf32> to vector<2x96xf32>
    %254 = vector.extract_strided_slice %92 {offsets = [8, 0], sizes = [2, 96], strides = [1, 1]} : vector<16x96xf32> to vector<2x96xf32>
    %255 = tpu.concatenate %253, %254 in 0 : vector<2x96xf32>, vector<2x96xf32> -> vector<4x96xf32>
    %256 = vector.broadcast %99 : vector<4x1xf32> to vector<4x32xf32>
    %257 = arith.mulf %252, %256 : vector<4x32xf32>
    %cst_76 = arith.constant 1.000000e+00 : f32
    %258 = vector.broadcast %cst_76 : f32 to vector<4x1xf32>
    %259 = arith.subf %258, %99 : vector<4x1xf32>
    %260 = vector.broadcast %259 : vector<4x1xf32> to vector<4x32xf32>
    %261 = arith.mulf %252, %260 : vector<4x32xf32>
    %262 = tpu.concatenate %257, %261 in 1 : vector<4x32xf32>, vector<4x32xf32> -> vector<4x64xf32>
    %cst_77 = arith.constant dense<0.000000e+00> : vector<4x96xf32>
    %263 = tpu.matmul %262, %93, %cst_77 {dimension_numbers = #tpu.dot_dimension_numbers<[1], [0], [0], [1], [0, 0, 1, 1], [], []>} : vector<4x64xf32>, vector<64x96xf32>, vector<4x96xf32> -> vector<4x96xf32>
    %264 = arith.addf %263, %94 : vector<4x96xf32>
    %265 = vector.extract_strided_slice %255 {offsets = [0, 0], sizes = [4, 32], strides = [1, 1]} : vector<4x96xf32> to vector<4x32xf32>
    %266 = vector.extract_strided_slice %264 {offsets = [0, 0], sizes = [4, 32], strides = [1, 1]} : vector<4x96xf32> to vector<4x32xf32>
    %267 = arith.addf %265, %266 : vector<4x32xf32>
    %268 = arith.negf %267 : vector<4x32xf32>
    %269 = math.exp %268 : vector<4x32xf32>
    %cst_78 = arith.constant 1.000000e+00 : f32
    %270 = vector.broadcast %cst_78 : f32 to vector<4x32xf32>
    %271 = arith.addf %270, %269 : vector<4x32xf32>
    %272 = arith.divf %270, %271 : vector<4x32xf32>
    %273 = vector.extract_strided_slice %255 {offsets = [0, 32], sizes = [4, 32], strides = [1, 1]} : vector<4x96xf32> to vector<4x32xf32>
    %274 = vector.extract_strided_slice %264 {offsets = [0, 32], sizes = [4, 32], strides = [1, 1]} : vector<4x96xf32> to vector<4x32xf32>
    %275 = arith.addf %273, %274 : vector<4x32xf32>
    %276 = arith.negf %275 : vector<4x32xf32>
    %277 = math.exp %276 : vector<4x32xf32>
    %cst_79 = arith.constant 1.000000e+00 : f32
    %278 = vector.broadcast %cst_79 : f32 to vector<4x32xf32>
    %279 = arith.addf %278, %277 : vector<4x32xf32>
    %280 = arith.divf %278, %279 : vector<4x32xf32>
    %281 = vector.extract_strided_slice %255 {offsets = [0, 64], sizes = [4, 32], strides = [1, 1]} : vector<4x96xf32> to vector<4x32xf32>
    %282 = vector.extract_strided_slice %264 {offsets = [0, 64], sizes = [4, 32], strides = [1, 1]} : vector<4x96xf32> to vector<4x32xf32>
    %283 = arith.mulf %272, %282 : vector<4x32xf32>
    %284 = arith.addf %281, %283 : vector<4x32xf32>
    %285 = math.tanh %284 : vector<4x32xf32>
    %cst_80 = arith.constant 1.000000e+00 : f32
    %286 = vector.broadcast %cst_80 : f32 to vector<4x32xf32>
    %287 = arith.subf %286, %280 : vector<4x32xf32>
    %288 = arith.mulf %287, %285 : vector<4x32xf32>
    %289 = arith.mulf %280, %252 : vector<4x32xf32>
    %290 = arith.addf %288, %289 : vector<4x32xf32>
    %291 = vector.extract_strided_slice %86 {offsets = [10, 0], sizes = [2, 96], strides = [1, 1]} : vector<16x96xf32> to vector<2x96xf32>
    %292 = vector.extract_strided_slice %92 {offsets = [10, 0], sizes = [2, 96], strides = [1, 1]} : vector<16x96xf32> to vector<2x96xf32>
    %293 = tpu.concatenate %291, %292 in 0 : vector<2x96xf32>, vector<2x96xf32> -> vector<4x96xf32>
    %294 = vector.broadcast %99 : vector<4x1xf32> to vector<4x32xf32>
    %295 = arith.mulf %290, %294 : vector<4x32xf32>
    %cst_81 = arith.constant 1.000000e+00 : f32
    %296 = vector.broadcast %cst_81 : f32 to vector<4x1xf32>
    %297 = arith.subf %296, %99 : vector<4x1xf32>
    %298 = vector.broadcast %297 : vector<4x1xf32> to vector<4x32xf32>
    %299 = arith.mulf %290, %298 : vector<4x32xf32>
    %300 = tpu.concatenate %295, %299 in 1 : vector<4x32xf32>, vector<4x32xf32> -> vector<4x64xf32>
    %cst_82 = arith.constant dense<0.000000e+00> : vector<4x96xf32>
    %301 = tpu.matmul %300, %93, %cst_82 {dimension_numbers = #tpu.dot_dimension_numbers<[1], [0], [0], [1], [0, 0, 1, 1], [], []>} : vector<4x64xf32>, vector<64x96xf32>, vector<4x96xf32> -> vector<4x96xf32>
    %302 = arith.addf %301, %94 : vector<4x96xf32>
    %303 = vector.extract_strided_slice %293 {offsets = [0, 0], sizes = [4, 32], strides = [1, 1]} : vector<4x96xf32> to vector<4x32xf32>
    %304 = vector.extract_strided_slice %302 {offsets = [0, 0], sizes = [4, 32], strides = [1, 1]} : vector<4x96xf32> to vector<4x32xf32>
    %305 = arith.addf %303, %304 : vector<4x32xf32>
    %306 = arith.negf %305 : vector<4x32xf32>
    %307 = math.exp %306 : vector<4x32xf32>
    %cst_83 = arith.constant 1.000000e+00 : f32
    %308 = vector.broadcast %cst_83 : f32 to vector<4x32xf32>
    %309 = arith.addf %308, %307 : vector<4x32xf32>
    %310 = arith.divf %308, %309 : vector<4x32xf32>
    %311 = vector.extract_strided_slice %293 {offsets = [0, 32], sizes = [4, 32], strides = [1, 1]} : vector<4x96xf32> to vector<4x32xf32>
    %312 = vector.extract_strided_slice %302 {offsets = [0, 32], sizes = [4, 32], strides = [1, 1]} : vector<4x96xf32> to vector<4x32xf32>
    %313 = arith.addf %311, %312 : vector<4x32xf32>
    %314 = arith.negf %313 : vector<4x32xf32>
    %315 = math.exp %314 : vector<4x32xf32>
    %cst_84 = arith.constant 1.000000e+00 : f32
    %316 = vector.broadcast %cst_84 : f32 to vector<4x32xf32>
    %317 = arith.addf %316, %315 : vector<4x32xf32>
    %318 = arith.divf %316, %317 : vector<4x32xf32>
    %319 = vector.extract_strided_slice %293 {offsets = [0, 64], sizes = [4, 32], strides = [1, 1]} : vector<4x96xf32> to vector<4x32xf32>
    %320 = vector.extract_strided_slice %302 {offsets = [0, 64], sizes = [4, 32], strides = [1, 1]} : vector<4x96xf32> to vector<4x32xf32>
    %321 = arith.mulf %310, %320 : vector<4x32xf32>
    %322 = arith.addf %319, %321 : vector<4x32xf32>
    %323 = math.tanh %322 : vector<4x32xf32>
    %cst_85 = arith.constant 1.000000e+00 : f32
    %324 = vector.broadcast %cst_85 : f32 to vector<4x32xf32>
    %325 = arith.subf %324, %318 : vector<4x32xf32>
    %326 = arith.mulf %325, %323 : vector<4x32xf32>
    %327 = arith.mulf %318, %290 : vector<4x32xf32>
    %328 = arith.addf %326, %327 : vector<4x32xf32>
    %329 = vector.extract_strided_slice %86 {offsets = [12, 0], sizes = [2, 96], strides = [1, 1]} : vector<16x96xf32> to vector<2x96xf32>
    %330 = vector.extract_strided_slice %92 {offsets = [12, 0], sizes = [2, 96], strides = [1, 1]} : vector<16x96xf32> to vector<2x96xf32>
    %331 = tpu.concatenate %329, %330 in 0 : vector<2x96xf32>, vector<2x96xf32> -> vector<4x96xf32>
    %332 = vector.broadcast %99 : vector<4x1xf32> to vector<4x32xf32>
    %333 = arith.mulf %328, %332 : vector<4x32xf32>
    %cst_86 = arith.constant 1.000000e+00 : f32
    %334 = vector.broadcast %cst_86 : f32 to vector<4x1xf32>
    %335 = arith.subf %334, %99 : vector<4x1xf32>
    %336 = vector.broadcast %335 : vector<4x1xf32> to vector<4x32xf32>
    %337 = arith.mulf %328, %336 : vector<4x32xf32>
    %338 = tpu.concatenate %333, %337 in 1 : vector<4x32xf32>, vector<4x32xf32> -> vector<4x64xf32>
    %cst_87 = arith.constant dense<0.000000e+00> : vector<4x96xf32>
    %339 = tpu.matmul %338, %93, %cst_87 {dimension_numbers = #tpu.dot_dimension_numbers<[1], [0], [0], [1], [0, 0, 1, 1], [], []>} : vector<4x64xf32>, vector<64x96xf32>, vector<4x96xf32> -> vector<4x96xf32>
    %340 = arith.addf %339, %94 : vector<4x96xf32>
    %341 = vector.extract_strided_slice %331 {offsets = [0, 0], sizes = [4, 32], strides = [1, 1]} : vector<4x96xf32> to vector<4x32xf32>
    %342 = vector.extract_strided_slice %340 {offsets = [0, 0], sizes = [4, 32], strides = [1, 1]} : vector<4x96xf32> to vector<4x32xf32>
    %343 = arith.addf %341, %342 : vector<4x32xf32>
    %344 = arith.negf %343 : vector<4x32xf32>
    %345 = math.exp %344 : vector<4x32xf32>
    %cst_88 = arith.constant 1.000000e+00 : f32
    %346 = vector.broadcast %cst_88 : f32 to vector<4x32xf32>
    %347 = arith.addf %346, %345 : vector<4x32xf32>
    %348 = arith.divf %346, %347 : vector<4x32xf32>
    %349 = vector.extract_strided_slice %331 {offsets = [0, 32], sizes = [4, 32], strides = [1, 1]} : vector<4x96xf32> to vector<4x32xf32>
    %350 = vector.extract_strided_slice %340 {offsets = [0, 32], sizes = [4, 32], strides = [1, 1]} : vector<4x96xf32> to vector<4x32xf32>
    %351 = arith.addf %349, %350 : vector<4x32xf32>
    %352 = arith.negf %351 : vector<4x32xf32>
    %353 = math.exp %352 : vector<4x32xf32>
    %cst_89 = arith.constant 1.000000e+00 : f32
    %354 = vector.broadcast %cst_89 : f32 to vector<4x32xf32>
    %355 = arith.addf %354, %353 : vector<4x32xf32>
    %356 = arith.divf %354, %355 : vector<4x32xf32>
    %357 = vector.extract_strided_slice %331 {offsets = [0, 64], sizes = [4, 32], strides = [1, 1]} : vector<4x96xf32> to vector<4x32xf32>
    %358 = vector.extract_strided_slice %340 {offsets = [0, 64], sizes = [4, 32], strides = [1, 1]} : vector<4x96xf32> to vector<4x32xf32>
    %359 = arith.mulf %348, %358 : vector<4x32xf32>
    %360 = arith.addf %357, %359 : vector<4x32xf32>
    %361 = math.tanh %360 : vector<4x32xf32>
    %cst_90 = arith.constant 1.000000e+00 : f32
    %362 = vector.broadcast %cst_90 : f32 to vector<4x32xf32>
    %363 = arith.subf %362, %356 : vector<4x32xf32>
    %364 = arith.mulf %363, %361 : vector<4x32xf32>
    %365 = arith.mulf %356, %328 : vector<4x32xf32>
    %366 = arith.addf %364, %365 : vector<4x32xf32>
    %367 = vector.extract_strided_slice %86 {offsets = [14, 0], sizes = [2, 96], strides = [1, 1]} : vector<16x96xf32> to vector<2x96xf32>
    %368 = vector.extract_strided_slice %92 {offsets = [14, 0], sizes = [2, 96], strides = [1, 1]} : vector<16x96xf32> to vector<2x96xf32>
    %369 = tpu.concatenate %367, %368 in 0 : vector<2x96xf32>, vector<2x96xf32> -> vector<4x96xf32>
    %370 = vector.broadcast %99 : vector<4x1xf32> to vector<4x32xf32>
    %371 = arith.mulf %366, %370 : vector<4x32xf32>
    %cst_91 = arith.constant 1.000000e+00 : f32
    %372 = vector.broadcast %cst_91 : f32 to vector<4x1xf32>
    %373 = arith.subf %372, %99 : vector<4x1xf32>
    %374 = vector.broadcast %373 : vector<4x1xf32> to vector<4x32xf32>
    %375 = arith.mulf %366, %374 : vector<4x32xf32>
    %376 = tpu.concatenate %371, %375 in 1 : vector<4x32xf32>, vector<4x32xf32> -> vector<4x64xf32>
    %cst_92 = arith.constant dense<0.000000e+00> : vector<4x96xf32>
    %377 = tpu.matmul %376, %93, %cst_92 {dimension_numbers = #tpu.dot_dimension_numbers<[1], [0], [0], [1], [0, 0, 1, 1], [], []>} : vector<4x64xf32>, vector<64x96xf32>, vector<4x96xf32> -> vector<4x96xf32>
    %378 = arith.addf %377, %94 : vector<4x96xf32>
    %379 = vector.extract_strided_slice %369 {offsets = [0, 0], sizes = [4, 32], strides = [1, 1]} : vector<4x96xf32> to vector<4x32xf32>
    %380 = vector.extract_strided_slice %378 {offsets = [0, 0], sizes = [4, 32], strides = [1, 1]} : vector<4x96xf32> to vector<4x32xf32>
    %381 = arith.addf %379, %380 : vector<4x32xf32>
    %382 = arith.negf %381 : vector<4x32xf32>
    %383 = math.exp %382 : vector<4x32xf32>
    %cst_93 = arith.constant 1.000000e+00 : f32
    %384 = vector.broadcast %cst_93 : f32 to vector<4x32xf32>
    %385 = arith.addf %384, %383 : vector<4x32xf32>
    %386 = arith.divf %384, %385 : vector<4x32xf32>
    %387 = vector.extract_strided_slice %369 {offsets = [0, 32], sizes = [4, 32], strides = [1, 1]} : vector<4x96xf32> to vector<4x32xf32>
    %388 = vector.extract_strided_slice %378 {offsets = [0, 32], sizes = [4, 32], strides = [1, 1]} : vector<4x96xf32> to vector<4x32xf32>
    %389 = arith.addf %387, %388 : vector<4x32xf32>
    %390 = arith.negf %389 : vector<4x32xf32>
    %391 = math.exp %390 : vector<4x32xf32>
    %cst_94 = arith.constant 1.000000e+00 : f32
    %392 = vector.broadcast %cst_94 : f32 to vector<4x32xf32>
    %393 = arith.addf %392, %391 : vector<4x32xf32>
    %394 = arith.divf %392, %393 : vector<4x32xf32>
    %395 = vector.extract_strided_slice %369 {offsets = [0, 64], sizes = [4, 32], strides = [1, 1]} : vector<4x96xf32> to vector<4x32xf32>
    %396 = vector.extract_strided_slice %378 {offsets = [0, 64], sizes = [4, 32], strides = [1, 1]} : vector<4x96xf32> to vector<4x32xf32>
    %397 = arith.mulf %386, %396 : vector<4x32xf32>
    %398 = arith.addf %395, %397 : vector<4x32xf32>
    %399 = math.tanh %398 : vector<4x32xf32>
    %cst_95 = arith.constant 1.000000e+00 : f32
    %400 = vector.broadcast %cst_95 : f32 to vector<4x32xf32>
    %401 = arith.subf %400, %394 : vector<4x32xf32>
    %402 = arith.mulf %401, %399 : vector<4x32xf32>
    %403 = arith.mulf %394, %366 : vector<4x32xf32>
    %404 = arith.addf %402, %403 : vector<4x32xf32>
    %405 = vector.extract_strided_slice %404 {offsets = [0, 0], sizes = [2, 32], strides = [1, 1]} : vector<4x32xf32> to vector<2x32xf32>
    %406 = vector.extract_strided_slice %404 {offsets = [2, 0], sizes = [2, 32], strides = [1, 1]} : vector<4x32xf32> to vector<2x32xf32>
    %407 = tpu.concatenate %405, %406 in 1 : vector<2x32xf32>, vector<2x32xf32> -> vector<2x64xf32>
    %c0_96 = arith.constant 0 : index
    %c0_97 = arith.constant 0 : index
    %408 = vector.load %arg5[%c0_96, %c0_97] : memref<16x13xf32, #tpu.memory_space<vmem>>, vector<16x13xf32>
    %c0_98 = arith.constant 0 : index
    %c0_99 = arith.constant 0 : index
    %409 = vector.load %arg21[%c0_98, %c0_99] : memref<13x256xf32, #tpu.memory_space<vmem>>, vector<13x256xf32>
    %cst_100 = arith.constant dense<0.000000e+00> : vector<16x256xf32>
    %410 = tpu.matmul %408, %409, %cst_100 {dimension_numbers = #tpu.dot_dimension_numbers<[1], [0], [0], [1], [0, 0, 1, 1], [], []>} : vector<16x13xf32>, vector<13x256xf32>, vector<16x256xf32> -> vector<16x256xf32>
    %c0_101 = arith.constant 0 : index
    %c0_102 = arith.constant 0 : index
    %411 = vector.load %arg22[%c0_101, %c0_102] : memref<1x256xf32, #tpu.memory_space<vmem>>, vector<1x256xf32>
    %412 = vector.broadcast %411 : vector<1x256xf32> to vector<16x256xf32>
    %413 = arith.addf %410, %412 : vector<16x256xf32>
    %cst_103 = arith.constant 0.000000e+00 : f32
    %414 = vector.broadcast %cst_103 : f32 to vector<16x256xf32>
    %415 = arith.cmpf oge, %413, %414 : vector<16x256xf32>
    %cst_104 = arith.constant 2.500000e-01 : f32
    %416 = vector.broadcast %cst_104 : f32 to vector<16x256xf32>
    %417 = arith.mulf %416, %413 : vector<16x256xf32>
    %418 = arith.select %415, %413, %417 : vector<16x256xi1>, vector<16x256xf32>
    %c0_105 = arith.constant 0 : index
    %c0_106 = arith.constant 0 : index
    %419 = vector.load %arg6[%c0_105, %c0_106] : memref<16x24xf32, #tpu.memory_space<vmem>>, vector<16x24xf32>
    %c0_107 = arith.constant 0 : index
    %c0_108 = arith.constant 0 : index
    %420 = vector.load %arg23[%c0_107, %c0_108] : memref<24x512xf32, #tpu.memory_space<vmem>>, vector<24x512xf32>
    %cst_109 = arith.constant dense<0.000000e+00> : vector<16x512xf32>
    %421 = tpu.matmul %419, %420, %cst_109 {dimension_numbers = #tpu.dot_dimension_numbers<[1], [0], [0], [1], [0, 0, 1, 1], [], []>} : vector<16x24xf32>, vector<24x512xf32>, vector<16x512xf32> -> vector<16x512xf32>
    %c0_110 = arith.constant 0 : index
    %c0_111 = arith.constant 0 : index
    %422 = vector.load %arg24[%c0_110, %c0_111] : memref<1x512xf32, #tpu.memory_space<vmem>>, vector<1x512xf32>
    %423 = vector.broadcast %422 : vector<1x512xf32> to vector<16x512xf32>
    %424 = arith.addf %421, %423 : vector<16x512xf32>
    %cst_112 = arith.constant 0.000000e+00 : f32
    %425 = vector.broadcast %cst_112 : f32 to vector<16x512xf32>
    %426 = arith.cmpf oge, %424, %425 : vector<16x512xf32>
    %cst_113 = arith.constant 2.500000e-01 : f32
    %427 = vector.broadcast %cst_113 : f32 to vector<16x512xf32>
    %428 = arith.mulf %427, %424 : vector<16x512xf32>
    %429 = arith.select %426, %424, %428 : vector<16x512xi1>, vector<16x512xf32>
    %c0_114 = arith.constant 0 : index
    %c0_115 = arith.constant 0 : index
    %430 = vector.load %arg7[%c0_114, %c0_115] : memref<16x48xf32, #tpu.memory_space<vmem>>, vector<16x48xf32>
    %c0_116 = arith.constant 0 : index
    %c0_117 = arith.constant 0 : index
    %431 = vector.load %arg25[%c0_116, %c0_117] : memref<48x256xf32, #tpu.memory_space<vmem>>, vector<48x256xf32>
    %cst_118 = arith.constant dense<0.000000e+00> : vector<16x256xf32>
    %432 = tpu.matmul %430, %431, %cst_118 {dimension_numbers = #tpu.dot_dimension_numbers<[1], [0], [0], [1], [0, 0, 1, 1], [], []>} : vector<16x48xf32>, vector<48x256xf32>, vector<16x256xf32> -> vector<16x256xf32>
    %c0_119 = arith.constant 0 : index
    %c0_120 = arith.constant 0 : index
    %433 = vector.load %arg26[%c0_119, %c0_120] : memref<1x256xf32, #tpu.memory_space<vmem>>, vector<1x256xf32>
    %434 = vector.broadcast %433 : vector<1x256xf32> to vector<16x256xf32>
    %435 = arith.addf %432, %434 : vector<16x256xf32>
    %cst_121 = arith.constant 0.000000e+00 : f32
    %436 = vector.broadcast %cst_121 : f32 to vector<16x256xf32>
    %437 = arith.cmpf oge, %435, %436 : vector<16x256xf32>
    %cst_122 = arith.constant 2.500000e-01 : f32
    %438 = vector.broadcast %cst_122 : f32 to vector<16x256xf32>
    %439 = arith.mulf %438, %435 : vector<16x256xf32>
    %440 = arith.select %437, %435, %439 : vector<16x256xi1>, vector<16x256xf32>
    %c0_123 = arith.constant 0 : index
    %c0_124 = arith.constant 0 : index
    %441 = vector.load %arg8[%c0_123, %c0_124] : memref<16x2xf32, #tpu.memory_space<vmem>>, vector<16x2xf32>
    %c0_125 = arith.constant 0 : index
    %c0_126 = arith.constant 0 : index
    %442 = vector.load %arg27[%c0_125, %c0_126] : memref<64x512xf32, #tpu.memory_space<vmem>>, vector<64x512xf32>
    %cst_127 = arith.constant dense<0.000000e+00> : vector<2x512xf32>
    %443 = tpu.matmul %407, %442, %cst_127 {dimension_numbers = #tpu.dot_dimension_numbers<[1], [0], [0], [1], [0, 0, 1, 1], [], []>} : vector<2x64xf32>, vector<64x512xf32>, vector<2x512xf32> -> vector<2x512xf32>
    %cst_128 = arith.constant dense<0.000000e+00> : vector<16x512xf32>
    %444 = tpu.matmul %441, %443, %cst_128 {dimension_numbers = #tpu.dot_dimension_numbers<[1], [0], [0], [1], [0, 0, 1, 1], [], []>} : vector<16x2xf32>, vector<2x512xf32>, vector<16x512xf32> -> vector<16x512xf32>
    %c0_129 = arith.constant 0 : index
    %c0_130 = arith.constant 0 : index
    %445 = vector.load %arg28[%c0_129, %c0_130] : memref<256x512xf32, #tpu.memory_space<vmem>>, vector<256x512xf32>
    %cst_131 = arith.constant dense<0.000000e+00> : vector<16x512xf32>
    %446 = tpu.matmul %418, %445, %cst_131 {dimension_numbers = #tpu.dot_dimension_numbers<[1], [0], [0], [1], [0, 0, 1, 1], [], []>} : vector<16x256xf32>, vector<256x512xf32>, vector<16x512xf32> -> vector<16x512xf32>
    %447 = arith.addf %444, %446 : vector<16x512xf32>
    %c0_132 = arith.constant 0 : index
    %c0_133 = arith.constant 0 : index
    %448 = vector.load %arg29[%c0_132, %c0_133] : memref<512x512xf32, #tpu.memory_space<vmem>>, vector<512x512xf32>
    %cst_134 = arith.constant dense<0.000000e+00> : vector<16x512xf32>
    %449 = tpu.matmul %429, %448, %cst_134 {dimension_numbers = #tpu.dot_dimension_numbers<[1], [0], [0], [1], [0, 0, 1, 1], [], []>} : vector<16x512xf32>, vector<512x512xf32>, vector<16x512xf32> -> vector<16x512xf32>
    %450 = arith.addf %447, %449 : vector<16x512xf32>
    %c0_135 = arith.constant 0 : index
    %c0_136 = arith.constant 0 : index
    %451 = vector.load %arg30[%c0_135, %c0_136] : memref<256x512xf32, #tpu.memory_space<vmem>>, vector<256x512xf32>
    %cst_137 = arith.constant dense<0.000000e+00> : vector<16x512xf32>
    %452 = tpu.matmul %440, %451, %cst_137 {dimension_numbers = #tpu.dot_dimension_numbers<[1], [0], [0], [1], [0, 0, 1, 1], [], []>} : vector<16x256xf32>, vector<256x512xf32>, vector<16x512xf32> -> vector<16x512xf32>
    %453 = arith.addf %450, %452 : vector<16x512xf32>
    %c0_138 = arith.constant 0 : index
    %c0_139 = arith.constant 0 : index
    %454 = vector.load %arg31[%c0_138, %c0_139] : memref<1x512xf32, #tpu.memory_space<vmem>>, vector<1x512xf32>
    %455 = vector.broadcast %454 : vector<1x512xf32> to vector<16x512xf32>
    %456 = arith.addf %453, %455 : vector<16x512xf32>
    %cst_140 = arith.constant 0.000000e+00 : f32
    %457 = vector.broadcast %cst_140 : f32 to vector<16x512xf32>
    %458 = arith.cmpf oge, %456, %457 : vector<16x512xf32>
    %cst_141 = arith.constant 2.500000e-01 : f32
    %459 = vector.broadcast %cst_141 : f32 to vector<16x512xf32>
    %460 = arith.mulf %459, %456 : vector<16x512xf32>
    %461 = arith.select %458, %456, %460 : vector<16x512xi1>, vector<16x512xf32>
    %c0_142 = arith.constant 0 : index
    %c0_143 = arith.constant 0 : index
    %462 = vector.load %arg32[%c0_142, %c0_143] : memref<512x1xf32, #tpu.memory_space<vmem>>, vector<512x1xf32>
    %cst_144 = arith.constant dense<0.000000e+00> : vector<16x1xf32>
    %463 = tpu.matmul %461, %462, %cst_144 {dimension_numbers = #tpu.dot_dimension_numbers<[1], [0], [0], [1], [0, 0, 1, 1], [], []>} : vector<16x512xf32>, vector<512x1xf32>, vector<16x1xf32> -> vector<16x1xf32>
    %c0_145 = arith.constant 0 : index
    %c0_146 = arith.constant 0 : index
    %464 = vector.load %arg33[%c0_145, %c0_146] : memref<64x1xf32, #tpu.memory_space<vmem>>, vector<64x1xf32>
    %cst_147 = arith.constant dense<0.000000e+00> : vector<16x1xf32>
    %465 = tpu.matmul %80, %464, %cst_147 {dimension_numbers = #tpu.dot_dimension_numbers<[1], [0], [0], [1], [0, 0, 1, 1], [], []>} : vector<16x64xf32>, vector<64x1xf32>, vector<16x1xf32> -> vector<16x1xf32>
    %466 = arith.addf %463, %465 : vector<16x1xf32>
    %c0_148 = arith.constant 0 : index
    %c0_149 = arith.constant 0 : index
    %467 = vector.load %arg34[%c0_148, %c0_149] : memref<1x1xf32, #tpu.memory_space<vmem>>, vector<1x1xf32>
    %468 = vector.broadcast %467 : vector<1x1xf32> to vector<16x1xf32>
    %469 = arith.addf %466, %468 : vector<16x1xf32>
    %c0_150 = arith.constant 0 : index
    %c0_151 = arith.constant 0 : index
    %470 = vector.load %arg35[%c0_150, %c0_151] : memref<16x1xf32, #tpu.memory_space<vmem>>, vector<16x1xf32>
    tpu.vector_store %arg35[%c0_150, %c0_151], %469 {strides = array<i32>} : memref<16x1xf32, #tpu.memory_space<vmem>>, vector<16x1xf32>,
    return
  }
}

</mosaic_0001>

<llo_original>
// kernel: decision_maker_forward.1
$region0: #{decision_maker_forward.1}
  #allocation0 [shape = 'u32[]', space=smem, size = 0x4, offset = 0x4, fixed_abs, tag = 'smem constant byte address 0x4 - core index']
  #allocation1 [shape = 'u32[144,128]{1,0:T(1,128)}', space=vmem, size = 0x12000, scoped, tag = 'internal scratch']
  #allocation2 [shape = 'f32[1,1]{1,0:T(1,128)S(1)}', space=vmem, size = 0x200, scoped, tag = 'scoped memory for decision_maker_forward.1']
  %s0 = inlined_call_operand.smem [shape: u32[36], index: -1, kind: input, shape index: {}]
  %s1 = sld [smem:[%s0]]
  %s2 = scalar_lea.smem %s0, 1
  %s3 = sld [smem:[%s2]]
  %s4 = scalar_lea.smem %s0, 2
  %s5 = sld [smem:[%s4]]
  %s6 = scalar_lea.smem %s0, 3
  %s7 = sld [smem:[%s6]]
  %s8 = scalar_lea.smem %s0, 4
  %s9 = sld [smem:[%s8]]
  %s10 = scalar_lea.smem %s0, 5
  %s11 = sld [smem:[%s10]]
  %s12 = scalar_lea.smem %s0, 6
  %s13 = sld [smem:[%s12]]
  %s14 = scalar_lea.smem %s0, 7
  %s15 = sld [smem:[%s14]]
  %s16 = scalar_lea.smem %s0, 8
  %s17 = sld [smem:[%s16]]
  %s18 = scalar_lea.smem %s0, 9
  %s19 = sld [smem:[%s18]]
  %s20 = scalar_lea.smem %s0, 10
  %s21 = sld [smem:[%s20]]
  %s22 = scalar_lea.smem %s0, 11
  %s23 = sld [smem:[%s22]]
  %s24 = scalar_lea.smem %s0, 12
  %s25 = sld [smem:[%s24]]
  %s26 = scalar_lea.smem %s0, 13
  %s27 = sld [smem:[%s26]]
  %s28 = scalar_lea.smem %s0, 14
  %s29 = sld [smem:[%s28]]
  %s30 = scalar_lea.smem %s0, 15
  %s31 = sld [smem:[%s30]]
  %s32 = scalar_lea.smem %s0, 16
  %s33 = sld [smem:[%s32]]
  %s34 = scalar_lea.smem %s0, 17
  %s35 = sld [smem:[%s34]]
  %s36 = scalar_lea.smem %s0, 18
  %s37 = sld [smem:[%s36]]
  %s38 = scalar_lea.smem %s0, 19
  %s39 = sld [smem:[%s38]]
  %s40 = scalar_lea.smem %s0, 20
  %s41 = sld [smem:[%s40]]
  %s42 = scalar_lea.smem %s0, 21
  %s43 = sld [smem:[%s42]]
  %s44 = scalar_lea.smem %s0, 22
  %s45 = sld [smem:[%s44]]
  %s46 = scalar_lea.smem %s0, 23
  %s47 = sld [smem:[%s46]]
  %s48 = scalar_lea.smem %s0, 24
  %s49 = sld [smem:[%s48]]
  %s50 = scalar_lea.smem %s0, 25
  %s51 = sld [smem:[%s50]]
  %s52 = scalar_lea.smem %s0, 26
  %s53 = sld [smem:[%s52]]
  %s54 = scalar_lea.smem %s0, 27
  %s55 = sld [smem:[%s54]]
  %s56 = scalar_lea.smem %s0, 28
  %s57 = sld [smem:[%s56]]
  %s58 = scalar_lea.smem %s0, 29
  %s59 = sld [smem:[%s58]]
  %s60 = scalar_lea.smem %s0, 30
  %s61 = sld [smem:[%s60]]
  %s62 = scalar_lea.smem %s0, 31
  %s63 = sld [smem:[%s62]]
  %s64 = scalar_lea.smem %s0, 32
  %s65 = sld [smem:[%s64]]
  %s66 = scalar_lea.smem %s0, 33
  %s67 = sld [smem:[%s66]]
  %s68 = scalar_lea.smem %s0, 34
  %s69 = sld [smem:[%s68]]
  %s70 = scalar_lea.smem %s0, 35
  %s71 = sld [smem:[%s70]]
  %s72 = sld [smem:[#allocation0]]
  $region234: #{decision_maker_forward.1} parent=0
    _
  %s74 = ssub.s32 1, %s72
  %s75 = scalar_select 0, %s74, %s72
  %v76 = vstv %s69
  %77 = vst [vmem:[#allocation2] sm:$0x1] %v76
  $region1: #{decision_maker_forward.1} parent=0
    #allocation3 [shape = 'u8[8192]{0}', space=vmem, size = 0x2000, scoped, tag = 'input window, operand 6, single buffered']
    #allocation4 [shape = 's32[1]{0}', space=sflag, size = 0x4, scoped, tag = 'scoped memory for decision_maker_forward.1']
    #allocation5 [shape = 'u8[8192]{0}', space=vmem, size = 0x2000, scoped, tag = 'input window, operand 7, single buffered']
    #allocation6 [shape = 's32[1]{0}', space=sflag, size = 0x4, scoped, tag = 'scoped memory for decision_maker_forward.1']
    #allocation7 [shape = 'u8[512]{0}', space=vmem, size = 0x400, scoped, tag = 'input window, operand 12, single buffered']
    #allocation8 [shape = 'u8[32768]{0}', space=vmem, size = 0x8000, scoped, tag = 'input window, operand 13, single buffered']
    #allocation9 [shape = 's32[1]{0}', space=sflag, size = 0x4, scoped, tag = 'scoped memory for decision_maker_forward.1']
    #allocation10 [shape = 'u8[2048]{0}', space=vmem, size = 0x800, scoped, tag = 'input window, operand 14, single buffered']
    #allocation11 [shape = 'u8[12288]{0}', space=vmem, size = 0x3000, scoped, tag = 'input window, operand 15, single buffered']
    #allocation12 [shape = 's32[1]{0}', space=sflag, size = 0x4, scoped, tag = 'scoped memory for decision_maker_forward.1']
    #allocation13 [shape = 'u8[512]{0}', space=vmem, size = 0x400, scoped, tag = 'input window, operand 16, single buffered']
    #allocation14 [shape = 'u8[32768]{0}', space=vmem, size = 0x8000, scoped, tag = 'input window, operand 17, single buffered']
    #allocation15 [shape = 's32[1]{0}', space=sflag, size = 0x4, scoped, tag = 'scoped memory for decision_maker_forward.1']
    #allocation16 [shape = 'u8[512]{0}', space=vmem, size = 0x400, scoped, tag = 'input window, operand 18, single buffered']
    #allocation17 [shape = 'u8[32768]{0}', space=vmem, size = 0x8000, scoped, tag = 'input window, operand 19, single buffered']
    #allocation18 [shape = 's32[1]{0}', space=sflag, size = 0x4, scoped, tag = 'scoped memory for decision_maker_forward.1']
    #allocation19 [shape = 'u8[512]{0}', space=vmem, size = 0x400, scoped, tag = 'input window, operand 20, single buffered']
    #allocation20 [shape = 'u8[16384]{0}', space=vmem, size = 0x4000, scoped, tag = 'input window, operand 21, single buffered']
    #allocation21 [shape = 's32[1]{0}', space=sflag, size = 0x4, scoped, tag = 'scoped memory for decision_maker_forward.1']
    #allocation22 [shape = 'u8[1024]{0}', space=vmem, size = 0x400, scoped, tag = 'input window, operand 22, single buffered']
    #allocation23 [shape = 'u8[49152]{0}', space=vmem, size = 0xc000, scoped, tag = 'input window, operand 23, single buffered']
    #allocation24 [shape = 's32[1]{0}', space=sflag, size = 0x4, scoped, tag = 'scoped memory for decision_maker_forward.1']
    #allocation25 [shape = 'u8[2048]{0}', space=vmem, size = 0x800, scoped, tag = 'input window, operand 24, single buffered']
    #allocation26 [shape = 'u8[49152]{0}', space=vmem, size = 0xc000, scoped, tag = 'input window, operand 25, single buffered']
    #allocation27 [shape = 's32[1]{0}', space=sflag, size = 0x4, scoped, tag = 'scoped memory for decision_maker_forward.1']
    #allocation28 [shape = 'u8[1024]{0}', space=vmem, size = 0x400, scoped, tag = 'input window, operand 26, single buffered']
    #allocation29 [shape = 'u8[524288]{0}', space=vmem, size = 0x80000, scoped, tag = 'input window, operand 28, single buffered']
    #allocation30 [shape = 's32[1]{0}', space=sflag, size = 0x4, scoped, tag = 'scoped memory for decision_maker_forward.1']
    #allocation31 [shape = 'u8[524288]{0}', space=vmem, size = 0x80000, scoped, tag = 'input window, operand 30, single buffered']
    #allocation32 [shape = 'u8[2048]{0}', space=vmem, size = 0x800, scoped, tag = 'input window, operand 31, single buffered']
    #allocation33 [shape = 's32[1]{0}', space=sflag, size = 0x4, scoped, tag = 'scoped memory for decision_maker_forward.1']
    #allocation34 [shape = 'u8[32768]{0}', space=vmem, size = 0x8000, scoped, tag = 'input window, operand 33, single buffered']
    %78 = vsyncpa [#allocation4], 0
    %79 = vsyncpa [#allocation6], 0
    %80 = vsyncpa [#allocation9], 0
    %81 = vsyncpa [#allocation12], 0
    %82 = vsyncpa [#allocation15], 0
    %83 = vsyncpa [#allocation18], 0
    %84 = vsyncpa [#allocation21], 0
    %85 = vsyncpa [#allocation24], 0
    %86 = vsyncpa [#allocation27], 0
    %87 = vsyncpa [#allocation30], 0
    %88 = vsyncpa [#allocation33], 0
    // Predicated region
    $region2: #{decision_maker_forward.1} parent=1 // pred_check
      _
    $region3: #{decision_maker_forward.1} parent=1 // pred_check_branch
      %90 = sbr.rel (0) target = $region5
    $region4: #{decision_maker_forward.1} parent=1 // pred_region
      _
    $region5: #{decision_maker_forward.1} parent=1 // pred_fallthru
      _
    // Predicated region
    $region6: #{decision_maker_forward.1} parent=1 // pred_check
      _
    $region7: #{decision_maker_forward.1} parent=1 // pred_check_branch
      %92 = sbr.rel (0) target = $region9
    $region8: #{decision_maker_forward.1} parent=1 // pred_region
      _
    $region9: #{decision_maker_forward.1} parent=1 // pred_fallthru
      _
    // Predicated region
    $region10: #{decision_maker_forward.1} parent=1 // pred_check
      _
    $region11: #{decision_maker_forward.1} parent=1 // pred_check_branch
      %94 = sbr.rel (0) target = $region13
    $region12: #{decision_maker_forward.1} parent=1 // pred_region
      _
    $region13: #{decision_maker_forward.1} parent=1 // pred_fallthru
      _
    // Predicated region
    $region14: #{decision_maker_forward.1} parent=1 // pred_check
      _
    $region15: #{decision_maker_forward.1} parent=1 // pred_check_branch
      %96 = sbr.rel (0) target = $region17
    $region16: #{decision_maker_forward.1} parent=1 // pred_region
      _
    $region17: #{decision_maker_forward.1} parent=1 // pred_fallthru
      _
    // Predicated region
    $region18: #{decision_maker_forward.1} parent=1 // pred_check
      _
    $region19: #{decision_maker_forward.1} parent=1 // pred_check_branch
      %98 = sbr.rel (0) target = $region21
    $region20: #{decision_maker_forward.1} parent=1 // pred_region
      _
    $region21: #{decision_maker_forward.1} parent=1 // pred_fallthru
      _
    // Predicated region
    $region22: #{decision_maker_forward.1} parent=1 // pred_check
      _
    $region23: #{decision_maker_forward.1} parent=1 // pred_check_branch
      %100 = sbr.rel (0) target = $region25
    $region24: #{decision_maker_forward.1} parent=1 // pred_region
      _
    $region25: #{decision_maker_forward.1} parent=1 // pred_fallthru
      _
    // Predicated region
    $region26: #{decision_maker_forward.1} parent=1 // pred_check
      _
    $region27: #{decision_maker_forward.1} parent=1 // pred_check_branch
      %102 = sbr.rel (0) target = $region29
    $region28: #{decision_maker_forward.1} parent=1 // pred_region
      %s104 = ssub.s32 256, 256
      %105 = vsyncadd [#allocation4], %s104
      %s106 = sshll.u32 [#allocation3], 4
      %s107 = int_to_ptr.vmem [resolvable:$true] %s106
      %112 = dma.hbm_to_vmem [thread:$0]  %s13, 256, %s107, [#allocation4], 128, 128, 8
    $region29: #{decision_maker_forward.1} parent=1 // pred_fallthru
      _
    // Predicated region
    $region30: #{decision_maker_forward.1} parent=1 // pred_check
      _
    $region31: #{decision_maker_forward.1} parent=1 // pred_check_branch
      %114 = sbr.rel (0) target = $region33
    $region32: #{decision_maker_forward.1} parent=1 // pred_region
      %s116 = ssub.s32 256, 256
      %117 = vsyncadd [#allocation6], %s116
      %s118 = sshll.u32 [#allocation5], 4
      %s119 = int_to_ptr.vmem [resolvable:$true] %s118
      %124 = dma.hbm_to_vmem [thread:$0]  %s15, 256, %s119, [#allocation6], 128, 128, 8
    $region33: #{decision_maker_forward.1} parent=1 // pred_fallthru
      _
    // Predicated region
    $region34: #{decision_maker_forward.1} parent=1 // pred_check
      _
    $region35: #{decision_maker_forward.1} parent=1 // pred_check_branch
      %126 = sbr.rel (0) target = $region37
    $region36: #{decision_maker_forward.1} parent=1 // pred_region
      _
    $region37: #{decision_maker_forward.1} parent=1 // pred_fallthru
      _
    // Predicated region
    $region38: #{decision_maker_forward.1} parent=1 // pred_check
      _
    $region39: #{decision_maker_forward.1} parent=1 // pred_check_branch
      %128 = sbr.rel (0) target = $region41
    $region40: #{decision_maker_forward.1} parent=1 // pred_region
      _
    $region41: #{decision_maker_forward.1} parent=1 // pred_fallthru
      _
    // Predicated region
    $region42: #{decision_maker_forward.1} parent=1 // pred_check
      _
    $region43: #{decision_maker_forward.1} parent=1 // pred_check_branch
      %130 = sbr.rel (0) target = $region45
    $region44: #{decision_maker_forward.1} parent=1 // pred_region
      _
    $region45: #{decision_maker_forward.1} parent=1 // pred_fallthru
      _
    // Predicated region
    $region46: #{decision_maker_forward.1} parent=1 // pred_check
      _
    $region47: #{decision_maker_forward.1} parent=1 // pred_check_branch
      %132 = sbr.rel (0) target = $region49
    $region48: #{decision_maker_forward.1} parent=1 // pred_region
      _
    $region49: #{decision_maker_forward.1} parent=1 // pred_fallthru
      _
    // Predicated region
    $region50: #{decision_maker_forward.1} parent=1 // pred_check
      _
    $region51: #{decision_maker_forward.1} parent=1 // pred_check_branch
      %134 = sbr.rel (0) target = $region53
    $region52: #{decision_maker_forward.1} parent=1 // pred_region
      %s136 = ssub.s32 16, 16
      %137 = vsyncadd [#allocation6], %s136
      %s139 = sshll.u32 [#allocation7], 4
      %s140 = int_to_ptr.vmem [resolvable:$true] %s139
      %142 = dma.hbm_to_vmem [thread:$0]  %s25, 16, %s140, [#allocation6]
    $region53: #{decision_maker_forward.1} parent=1 // pred_fallthru
      _
    // Predicated region
    $region54: #{decision_maker_forward.1} parent=1 // pred_check
      _
    $region55: #{decision_maker_forward.1} parent=1 // pred_check_branch
      %144 = sbr.rel (0) target = $region57
    $region56: #{decision_maker_forward.1} parent=1 // pred_region
      %s146 = ssub.s32 1024, 1024
      %147 = vsyncadd [#allocation9], %s146
      %s148 = sshll.u32 [#allocation8], 4
      %s149 = int_to_ptr.vmem [resolvable:$true] %s148
      %154 = dma.hbm_to_vmem [thread:$0]  %s27, 1024, %s149, [#allocation9], 128, 128, 8
    $region57: #{decision_maker_forward.1} parent=1 // pred_fallthru
      _
    // Predicated region
    $region58: #{decision_maker_forward.1} parent=1 // pred_check
      _
    $region59: #{decision_maker_forward.1} parent=1 // pred_check_branch
      %156 = sbr.rel (0) target = $region61
    $region60: #{decision_maker_forward.1} parent=1 // pred_region
      %s158 = ssub.s32 64, 64
      %159 = vsyncadd [#allocation9], %s158
      %s161 = sshll.u32 [#allocation10], 4
      %s162 = int_to_ptr.vmem [resolvable:$true] %s161
      %164 = dma.hbm_to_vmem [thread:$0]  %s29, 64, %s162, [#allocation9]
    $region61: #{decision_maker_forward.1} parent=1 // pred_fallthru
      _
    // Predicated region
    $region62: #{decision_maker_forward.1} parent=1 // pred_check
      _
    $region63: #{decision_maker_forward.1} parent=1 // pred_check_branch
      %166 = sbr.rel (0) target = $region65
    $region64: #{decision_maker_forward.1} parent=1 // pred_region
      %s168 = ssub.s32 384, 384
      %169 = vsyncadd [#allocation12], %s168
      %s170 = sshll.u32 [#allocation11], 4
      %s171 = int_to_ptr.vmem [resolvable:$true] %s170
      %176 = dma.hbm_to_vmem [thread:$0]  %s31, 384, %s171, [#allocation12], 128, 128, 8
    $region65: #{decision_maker_forward.1} parent=1 // pred_fallthru
      _
    // Predicated region
    $region66: #{decision_maker_forward.1} parent=1 // pred_check
      _
    $region67: #{decision_maker_forward.1} parent=1 // pred_check_branch
      %178 = sbr.rel (0) target = $region69
    $region68: #{decision_maker_forward.1} parent=1 // pred_region
      %s180 = ssub.s32 16, 16
      %181 = vsyncadd [#allocation12], %s180
      %s183 = sshll.u32 [#allocation13], 4
      %s184 = int_to_ptr.vmem [resolvable:$true] %s183
      %186 = dma.hbm_to_vmem [thread:$0]  %s33, 16, %s184, [#allocation12]
    $region69: #{decision_maker_forward.1} parent=1 // pred_fallthru
      _
    // Predicated region
    $region70: #{decision_maker_forward.1} parent=1 // pred_check
      _
    $region71: #{decision_maker_forward.1} parent=1 // pred_check_branch
      %188 = sbr.rel (0) target = $region73
    $region72: #{decision_maker_forward.1} parent=1 // pred_region
      %s190 = ssub.s32 1024, 1024
      %191 = vsyncadd [#allocation15], %s190
      %s192 = sshll.u32 [#allocation14], 4
      %s193 = int_to_ptr.vmem [resolvable:$true] %s192
      %198 = dma.hbm_to_vmem [thread:$0]  %s35, 1024, %s193, [#allocation15], 128, 128, 8
    $region73: #{decision_maker_forward.1} parent=1 // pred_fallthru
      _
    // Predicated region
    $region74: #{decision_maker_forward.1} parent=1 // pred_check
      _
    $region75: #{decision_maker_forward.1} parent=1 // pred_check_branch
      %200 = sbr.rel (0) target = $region77
    $region76: #{decision_maker_forward.1} parent=1 // pred_region
      %s202 = ssub.s32 16, 16
      %203 = vsyncadd [#allocation15], %s202
      %s205 = sshll.u32 [#allocation16], 4
      %s206 = int_to_ptr.vmem [resolvable:$true] %s205
      %208 = dma.hbm_to_vmem [thread:$0]  %s37, 16, %s206, [#allocation15]
    $region77: #{decision_maker_forward.1} parent=1 // pred_fallthru
      _
    // Predicated region
    $region78: #{decision_maker_forward.1} parent=1 // pred_check
      _
    $region79: #{decision_maker_forward.1} parent=1 // pred_check_branch
      %210 = sbr.rel (0) target = $region81
    $region80: #{decision_maker_forward.1} parent=1 // pred_region
      %s212 = ssub.s32 1024, 1024
      %213 = vsyncadd [#allocation18], %s212
      %s214 = sshll.u32 [#allocation17], 4
      %s215 = int_to_ptr.vmem [resolvable:$true] %s214
      %220 = dma.hbm_to_vmem [thread:$0]  %s39, 1024, %s215, [#allocation18], 128, 128, 8
    $region81: #{decision_maker_forward.1} parent=1 // pred_fallthru
      _
    // Predicated region
    $region82: #{decision_maker_forward.1} parent=1 // pred_check
      _
    $region83: #{decision_maker_forward.1} parent=1 // pred_check_branch
      %222 = sbr.rel (0) target = $region85
    $region84: #{decision_maker_forward.1} parent=1 // pred_region
      %s224 = ssub.s32 16, 16
      %225 = vsyncadd [#allocation18], %s224
      %s227 = sshll.u32 [#allocation19], 4
      %s228 = int_to_ptr.vmem [resolvable:$true] %s227
      %230 = dma.hbm_to_vmem [thread:$0]  %s41, 16, %s228, [#allocation18]
    $region85: #{decision_maker_forward.1} parent=1 // pred_fallthru
      _
    // Predicated region
    $region86: #{decision_maker_forward.1} parent=1 // pred_check
      _
    $region87: #{decision_maker_forward.1} parent=1 // pred_check_branch
      %232 = sbr.rel (0) target = $region89
    $region88: #{decision_maker_forward.1} parent=1 // pred_region
      %s234 = ssub.s32 512, 512
      %235 = vsyncadd [#allocation21], %s234
      %s236 = sshll.u32 [#allocation20], 4
      %s237 = int_to_ptr.vmem [resolvable:$true] %s236
      %242 = dma.hbm_to_vmem [thread:$0]  %s43, 512, %s237, [#allocation21], 256, 256, 16
    $region89: #{decision_maker_forward.1} parent=1 // pred_fallthru
      _
    // Predicated region
    $region90: #{decision_maker_forward.1} parent=1 // pred_check
      _
    $region91: #{decision_maker_forward.1} parent=1 // pred_check_branch
      %244 = sbr.rel (0) target = $region93
    $region92: #{decision_maker_forward.1} parent=1 // pred_region
      %s246 = ssub.s32 32, 32
      %247 = vsyncadd [#allocation21], %s246
      %s249 = sshll.u32 [#allocation22], 4
      %s250 = int_to_ptr.vmem [resolvable:$true] %s249
      %252 = dma.hbm_to_vmem [thread:$0]  %s45, 32, %s250, [#allocation21]
    $region93: #{decision_maker_forward.1} parent=1 // pred_fallthru
      _
    // Predicated region
    $region94: #{decision_maker_forward.1} parent=1 // pred_check
      _
    $region95: #{decision_maker_forward.1} parent=1 // pred_check_branch
      %254 = sbr.rel (0) target = $region97
    $region96: #{decision_maker_forward.1} parent=1 // pred_region
      %s256 = ssub.s32 1536, 1536
      %257 = vsyncadd [#allocation24], %s256
      %s258 = sshll.u32 [#allocation23], 4
      %s259 = int_to_ptr.vmem [resolvable:$true] %s258
      %264 = dma.hbm_to_vmem [thread:$0]  %s47, 1536, %s259, [#allocation24], 512, 512, 32
    $region97: #{decision_maker_forward.1} parent=1 // pred_fallthru
      _
    // Predicated region
    $region98: #{decision_maker_forward.1} parent=1 // pred_check
      _
    $region99: #{decision_maker_forward.1} parent=1 // pred_check_branch
      %266 = sbr.rel (0) target = $region101
    $region100: #{decision_maker_forward.1} parent=1 // pred_region
      %s268 = ssub.s32 64, 64
      %269 = vsyncadd [#allocation24], %s268
      %s271 = sshll.u32 [#allocation25], 4
      %s272 = int_to_ptr.vmem [resolvable:$true] %s271
      %274 = dma.hbm_to_vmem [thread:$0]  %s49, 64, %s272, [#allocation24]
    $region101: #{decision_maker_forward.1} parent=1 // pred_fallthru
      _
    // Predicated region
    $region102: #{decision_maker_forward.1} parent=1 // pred_check
      _
    $region103: #{decision_maker_forward.1} parent=1 // pred_check_branch
      %276 = sbr.rel (0) target = $region105
    $region104: #{decision_maker_forward.1} parent=1 // pred_region
      %s278 = ssub.s32 1536, 1536
      %279 = vsyncadd [#allocation27], %s278
      %s280 = sshll.u32 [#allocation26], 4
      %s281 = int_to_ptr.vmem [resolvable:$true] %s280
      %286 = dma.hbm_to_vmem [thread:$0]  %s51, 1536, %s281, [#allocation27], 256, 256, 16
    $region105: #{decision_maker_forward.1} parent=1 // pred_fallthru
      _
    // Predicated region
    $region106: #{decision_maker_forward.1} parent=1 // pred_check
      _
    $region107: #{decision_maker_forward.1} parent=1 // pred_check_branch
      %288 = sbr.rel (0) target = $region109
    $region108: #{decision_maker_forward.1} parent=1 // pred_region
      %s290 = ssub.s32 32, 32
      %291 = vsyncadd [#allocation27], %s290
      %s293 = sshll.u32 [#allocation28], 4
      %s294 = int_to_ptr.vmem [resolvable:$true] %s293
      %296 = dma.hbm_to_vmem [thread:$0]  %s53, 32, %s294, [#allocation27]
    $region109: #{decision_maker_forward.1} parent=1 // pred_fallthru
      _
    // Predicated region
    $region110: #{decision_maker_forward.1} parent=1 // pred_check
      _
    $region111: #{decision_maker_forward.1} parent=1 // pred_check_branch
      %298 = sbr.rel (0) target = $region113
    $region112: #{decision_maker_forward.1} parent=1 // pred_region
      _
    $region113: #{decision_maker_forward.1} parent=1 // pred_fallthru
      _
    // Predicated region
    $region114: #{decision_maker_forward.1} parent=1 // pred_check
      _
    $region115: #{decision_maker_forward.1} parent=1 // pred_check_branch
      %300 = sbr.rel (0) target = $region117
    $region116: #{decision_maker_forward.1} parent=1 // pred_region
      %s302 = ssub.s32 16384, 16384
      %303 = vsyncadd [#allocation30], %s302
      %s304 = sshll.u32 [#allocation29], 4
      %s305 = int_to_ptr.vmem [resolvable:$true] %s304
      %310 = dma.hbm_to_vmem [thread:$0]  %s57, 16384, %s305, [#allocation30], 512, 512, 32
    $region117: #{decision_maker_forward.1} parent=1 // pred_fallthru
      _
    // Predicated region
    $region118: #{decision_maker_forward.1} parent=1 // pred_check
      _
    $region119: #{decision_maker_forward.1} parent=1 // pred_check_branch
      %312 = sbr.rel (0) target = $region121
    $region120: #{decision_maker_forward.1} parent=1 // pred_region
      _
    $region121: #{decision_maker_forward.1} parent=1 // pred_fallthru
      _
    // Predicated region
    $region122: #{decision_maker_forward.1} parent=1 // pred_check
      _
    $region123: #{decision_maker_forward.1} parent=1 // pred_check_branch
      %314 = sbr.rel (0) target = $region125
    $region124: #{decision_maker_forward.1} parent=1 // pred_region
      %s316 = ssub.s32 16384, 16384
      %317 = vsyncadd [#allocation30], %s316
      %s318 = sshll.u32 [#allocation31], 4
      %s319 = int_to_ptr.vmem [resolvable:$true] %s318
      %324 = dma.hbm_to_vmem [thread:$0]  %s61, 16384, %s319, [#allocation30], 512, 512, 32
    $region125: #{decision_maker_forward.1} parent=1 // pred_fallthru
      _
    // Predicated region
    $region126: #{decision_maker_forward.1} parent=1 // pred_check
      _
    $region127: #{decision_maker_forward.1} parent=1 // pred_check_branch
      %326 = sbr.rel (0) target = $region129
    $region128: #{decision_maker_forward.1} parent=1 // pred_region
      %s328 = ssub.s32 64, 64
      %329 = vsyncadd [#allocation33], %s328
      %s331 = sshll.u32 [#allocation32], 4
      %s332 = int_to_ptr.vmem [resolvable:$true] %s331
      %334 = dma.hbm_to_vmem [thread:$0]  %s63, 64, %s332, [#allocation33]
    $region129: #{decision_maker_forward.1} parent=1 // pred_fallthru
      _
    // Predicated region
    $region130: #{decision_maker_forward.1} parent=1 // pred_check
      _
    $region131: #{decision_maker_forward.1} parent=1 // pred_check_branch
      %336 = sbr.rel (0) target = $region133
    $region132: #{decision_maker_forward.1} parent=1 // pred_region
      _
    $region133: #{decision_maker_forward.1} parent=1 // pred_fallthru
      _
    // Predicated region
    $region134: #{decision_maker_forward.1} parent=1 // pred_check
      _
    $region135: #{decision_maker_forward.1} parent=1 // pred_check_branch
      %338 = sbr.rel (0) target = $region137
    $region136: #{decision_maker_forward.1} parent=1 // pred_region
      %s340 = ssub.s32 1024, 1024
      %341 = vsyncadd [#allocation33], %s340
      %s342 = sshll.u32 [#allocation34], 4
      %s343 = int_to_ptr.vmem [resolvable:$true] %s342
      %348 = dma.hbm_to_vmem [thread:$0]  %s67, 1024, %s343, [#allocation33], 128, 128, 8
    $region137: #{decision_maker_forward.1} parent=1 // pred_fallthru
      _
    // Predicated region
    $region138: #{decision_maker_forward.1} parent=1 // pred_check
      _
    $region139: #{decision_maker_forward.1} parent=1 // pred_check_branch
      %350 = sbr.rel (0) target = $region141
    $region140: #{decision_maker_forward.1} parent=1 // pred_region
      _
    $region141: #{decision_maker_forward.1} parent=1 // pred_fallthru
      _
    // Predicated region
    $region142: #{decision_maker_forward.1} parent=1 // pred_check
      _
    $region143: #{decision_maker_forward.1} parent=1 // pred_check_branch
      %352 = sbr.rel (0) target = $region145
    $region144: #{decision_maker_forward.1} parent=1 // pred_region
      %353 = dma.done [#allocation4], 256
    $region145: #{decision_maker_forward.1} parent=1 // pred_fallthru
      _
    // Predicated region
    $region146: #{decision_maker_forward.1} parent=1 // pred_check
      _
    $region147: #{decision_maker_forward.1} parent=1 // pred_check_branch
      %355 = sbr.rel (0) target = $region149
    $region148: #{decision_maker_forward.1} parent=1 // pred_region
      %356 = dma.done [#allocation6], 256
    $region149: #{decision_maker_forward.1} parent=1 // pred_fallthru
      _
    // Predicated region
    $region150: #{decision_maker_forward.1} parent=1 // pred_check
      _
    $region151: #{decision_maker_forward.1} parent=1 // pred_check_branch
      %358 = sbr.rel (0) target = $region153
    $region152: #{decision_maker_forward.1} parent=1 // pred_region
      %359 = dma.done [#allocation6], 16
    $region153: #{decision_maker_forward.1} parent=1 // pred_fallthru
      _
    // Predicated region
    $region154: #{decision_maker_forward.1} parent=1 // pred_check
      _
    $region155: #{decision_maker_forward.1} parent=1 // pred_check_branch
      %361 = sbr.rel (0) target = $region157
    $region156: #{decision_maker_forward.1} parent=1 // pred_region
      %362 = dma.done [#allocation9], 1024
    $region157: #{decision_maker_forward.1} parent=1 // pred_fallthru
      _
    // Predicated region
    $region158: #{decision_maker_forward.1} parent=1 // pred_check
      _
    $region159: #{decision_maker_forward.1} parent=1 // pred_check_branch
      %364 = sbr.rel (0) target = $region161
    $region160: #{decision_maker_forward.1} parent=1 // pred_region
      %365 = dma.done [#allocation9], 64
    $region161: #{decision_maker_forward.1} parent=1 // pred_fallthru
      _
    // Predicated region
    $region162: #{decision_maker_forward.1} parent=1 // pred_check
      _
    $region163: #{decision_maker_forward.1} parent=1 // pred_check_branch
      %367 = sbr.rel (0) target = $region165
    $region164: #{decision_maker_forward.1} parent=1 // pred_region
      %368 = dma.done [#allocation12], 384
    $region165: #{decision_maker_forward.1} parent=1 // pred_fallthru
      _
    // Predicated region
    $region166: #{decision_maker_forward.1} parent=1 // pred_check
      _
    $region167: #{decision_maker_forward.1} parent=1 // pred_check_branch
      %370 = sbr.rel (0) target = $region169
    $region168: #{decision_maker_forward.1} parent=1 // pred_region
      %371 = dma.done [#allocation12], 16
    $region169: #{decision_maker_forward.1} parent=1 // pred_fallthru
      _
    // Predicated region
    $region170: #{decision_maker_forward.1} parent=1 // pred_check
      _
    $region171: #{decision_maker_forward.1} parent=1 // pred_check_branch
      %373 = sbr.rel (0) target = $region173
    $region172: #{decision_maker_forward.1} parent=1 // pred_region
      %374 = dma.done [#allocation15], 1024
    $region173: #{decision_maker_forward.1} parent=1 // pred_fallthru
      _
    // Predicated region
    $region174: #{decision_maker_forward.1} parent=1 // pred_check
      _
    $region175: #{decision_maker_forward.1} parent=1 // pred_check_branch
      %376 = sbr.rel (0) target = $region177
    $region176: #{decision_maker_forward.1} parent=1 // pred_region
      %377 = dma.done [#allocation15], 16
    $region177: #{decision_maker_forward.1} parent=1 // pred_fallthru
      _
    // Predicated region
    $region178: #{decision_maker_forward.1} parent=1 // pred_check
      _
    $region179: #{decision_maker_forward.1} parent=1 // pred_check_branch
      %379 = sbr.rel (0) target = $region181
    $region180: #{decision_maker_forward.1} parent=1 // pred_region
      %380 = dma.done [#allocation18], 1024
    $region181: #{decision_maker_forward.1} parent=1 // pred_fallthru
      _
    // Predicated region
    $region182: #{decision_maker_forward.1} parent=1 // pred_check
      _
    $region183: #{decision_maker_forward.1} parent=1 // pred_check_branch
      %382 = sbr.rel (0) target = $region185
    $region184: #{decision_maker_forward.1} parent=1 // pred_region
      %383 = dma.done [#allocation18], 16
    $region185: #{decision_maker_forward.1} parent=1 // pred_fallthru
      _
    // Predicated region
    $region186: #{decision_maker_forward.1} parent=1 // pred_check
      _
    $region187: #{decision_maker_forward.1} parent=1 // pred_check_branch
      %385 = sbr.rel (0) target = $region189
    $region188: #{decision_maker_forward.1} parent=1 // pred_region
      %386 = dma.done [#allocation21], 512
    $region189: #{decision_maker_forward.1} parent=1 // pred_fallthru
      _
    // Predicated region
    $region190: #{decision_maker_forward.1} parent=1 // pred_check
      _
    $region191: #{decision_maker_forward.1} parent=1 // pred_check_branch
      %388 = sbr.rel (0) target = $region193
    $region192: #{decision_maker_forward.1} parent=1 // pred_region
      %389 = dma.done [#allocation21], 32
    $region193: #{decision_maker_forward.1} parent=1 // pred_fallthru
      _
    // Predicated region
    $region194: #{decision_maker_forward.1} parent=1 // pred_check
      _
    $region195: #{decision_maker_forward.1} parent=1 // pred_check_branch
      %391 = sbr.rel (0) target = $region197
    $region196: #{decision_maker_forward.1} parent=1 // pred_region
      %392 = dma.done [#allocation24], 1536
    $region197: #{decision_maker_forward.1} parent=1 // pred_fallthru
      _
    // Predicated region
    $region198: #{decision_maker_forward.1} parent=1 // pred_check
      _
    $region199: #{decision_maker_forward.1} parent=1 // pred_check_branch
      %394 = sbr.rel (0) target = $region201
    $region200: #{decision_maker_forward.1} parent=1 // pred_region
      %395 = dma.done [#allocation24], 64
    $region201: #{decision_maker_forward.1} parent=1 // pred_fallthru
      _
    // Predicated region
    $region202: #{decision_maker_forward.1} parent=1 // pred_check
      _
    $region203: #{decision_maker_forward.1} parent=1 // pred_check_branch
      %397 = sbr.rel (0) target = $region205
    $region204: #{decision_maker_forward.1} parent=1 // pred_region
      %398 = dma.done [#allocation27], 1536
    $region205: #{decision_maker_forward.1} parent=1 // pred_fallthru
      _
    // Predicated region
    $region206: #{decision_maker_forward.1} parent=1 // pred_check
      _
    $region207: #{decision_maker_forward.1} parent=1 // pred_check_branch
      %400 = sbr.rel (0) target = $region209
    $region208: #{decision_maker_forward.1} parent=1 // pred_region
      %401 = dma.done [#allocation27], 32
    $region209: #{decision_maker_forward.1} parent=1 // pred_fallthru
      _
    // Predicated region
    $region210: #{decision_maker_forward.1} parent=1 // pred_check
      _
    $region211: #{decision_maker_forward.1} parent=1 // pred_check_branch
      %403 = sbr.rel (0) target = $region213
    $region212: #{decision_maker_forward.1} parent=1 // pred_region
      %404 = dma.done [#allocation30], 16384
    $region213: #{decision_maker_forward.1} parent=1 // pred_fallthru
      _
    // Predicated region
    $region214: #{decision_maker_forward.1} parent=1 // pred_check
      _
    $region215: #{decision_maker_forward.1} parent=1 // pred_check_branch
      %406 = sbr.rel (0) target = $region217
    $region216: #{decision_maker_forward.1} parent=1 // pred_region
      %407 = dma.done [#allocation30], 16384
    $region217: #{decision_maker_forward.1} parent=1 // pred_fallthru
      _
    // Predicated region
    $region218: #{decision_maker_forward.1} parent=1 // pred_check
      _
    $region219: #{decision_maker_forward.1} parent=1 // pred_check_branch
      %409 = sbr.rel (0) target = $region221
    $region220: #{decision_maker_forward.1} parent=1 // pred_region
      %410 = dma.done [#allocation33], 64
    $region221: #{decision_maker_forward.1} parent=1 // pred_fallthru
      _
    // Predicated region
    $region222: #{decision_maker_forward.1} parent=1 // pred_check
      _
    $region223: #{decision_maker_forward.1} parent=1 // pred_check_branch
      %412 = sbr.rel (0) target = $region225
    $region224: #{decision_maker_forward.1} parent=1 // pred_region
      %413 = dma.done [#allocation33], 1024
    $region225: #{decision_maker_forward.1} parent=1 // pred_fallthru
      _
    %v414 = vld [vmem:[%s1] sm:$0x3f]
    %v415 = vld [vmem:[%s1 + $0x8] sm:$0x3f]
    %v416 = vld [vmem:[%s1 + $0x10] sm:$0x3f]
    %v417 = vld [vmem:[%s1 + $0x18] sm:$0x3f]
    %v418 = vld [vmem:[%s1 + $0x20] sm:$0x3f]
    %v419 = vld [vmem:[%s1 + $0x28] sm:$0x3f]
    %v420 = vld [vmem:[%s1 + $0x30] sm:$0x3f]
    %v421 = vld [vmem:[%s1 + $0x38] sm:$0x3f]
    %v422 = vld [vmem:[%s1 + $0x40] sm:$0x3f]
    %v423 = vld [vmem:[%s1 + $0x48] sm:$0x3f]
    %v424 = vld [vmem:[%s1 + $0x50] sm:$0x3f]
    %v425 = vld [vmem:[%s1 + $0x58] sm:$0x3f]
    %v426 = vld [vmem:[%s1 + $0x60] sm:$0x3f]
    %v427 = vld [vmem:[%s1 + $0x68] sm:$0x3f]
    %v428 = vld [vmem:[%s1 + $0x70] sm:$0x3f]
    %v429 = vld [vmem:[%s1 + $0x78] sm:$0x3f]
    %v430 = vld [vmem:[%s3] sm:$0xff]
    %v431 = vld [vmem:[%s3 + $0x8] sm:$0xff]
    %v432 = vld [vmem:[%s5] sm:$0xff]
    %v433 = vld [vmem:[%s5 + $0x8] sm:$0xff]
    %vm434 = vcmask 261120
    %v436 = vsel %vm434, %v414, 0
    %438 = vmatprep.subr.mxu0 0.0
    %439 = vmatpush1.xpose.msra.mxu0 %v436
    %440 = vmatprep.subr.mxu0 0.0
    %441 = vmatpush1.xpose.msra.mxu0 0.0
    %442 = vmatprep.subr.mxu0 0.0
    %443 = vmatpush1.xpose.msra.mxu0 0.0
    %444 = vmatprep.subr.mxu0 0.0
    %445 = vmatpush1.xpose.msra.mxu0 0.0
    %446 = vmatprep.subr.mxu0 0.0
    %447 = vmatpush1.xpose.msra.mxu0 0.0
    %448 = vmatprep.subr.mxu0 0.0
    %449 = vmatpush1.xpose.msra.mxu0 0.0
    %450 = vmatprep.subr.mxu0 0.0
    %451 = vmatpush1.xpose.msra.mxu0 0.0
    %452 = vmatprep.subr.mxu0 0.0
    %453 = vmatpush1.xpose.msra.mxu0 0.0
    %454 = vmatprep.subr.mxu0 0.0
    %455 = vmatpush1.xpose.msra.mxu0 0.0
    %456 = vmatprep.subr.mxu0 0.0
    %457 = vmatpush1.xpose.msra.mxu0 0.0
    %458 = vmatprep.subr.mxu0 0.0
    %459 = vmatpush1.xpose.msra.mxu0 0.0
    %460 = vmatprep.subr.mxu0 0.0
    %461 = vmatpush1.xpose.msra.mxu0 0.0
    %462 = vmatprep.subr.mxu0 0.0
    %463 = vmatpush1.xpose.msra.mxu0 0.0
    %464 = vmatprep.subr.mxu0 0.0
    %465 = vmatpush1.xpose.msra.mxu0 0.0
    %466 = vmatprep.subr.mxu0 0.0
    %467 = vmatpush1.xpose.msra.mxu0 0.0
    %468 = vmatprep.subr.mxu0 0.0
    %469 = vmatpush1.xpose.msra.mxu0 0.0
    %470 = vmatprep.subr.mxu0 0.0
    %471 = vmatpush1.xpose.msra.mxu0 0.0
    %472 = vmatprep.subr.mxu0 0.0
    %473 = vmatpush1.xpose.msra.mxu0 0.0
    %474 = vmatprep.subr.mxu0 0.0
    %475 = vmatpush1.xpose.msra.mxu0 0.0
    %476 = vmatprep.subr.mxu0 0.0
    %477 = vmatpush1.xpose.msra.mxu0 0.0
    %478 = vmatprep.subr.mxu0 0.0
    %479 = vmatpush1.xpose.msra.mxu0 0.0
    %480 = vmatprep.subr.mxu0 0.0
    %481 = vmatpush1.xpose.msra.mxu0 0.0
    %482 = vmatprep.subr.mxu0 0.0
    %483 = vmatpush1.xpose.msra.mxu0 0.0
    %484 = vmatprep.subr.mxu0 0.0
    %485 = vmatpush1.xpose.msra.mxu0 0.0
    %486 = vmatprep.subr.mxu0 0.0
    %487 = vmatpush1.xpose.msra.mxu0 0.0
    %488 = vmatprep.subr.mxu0 0.0
    %489 = vmatpush1.xpose.msra.mxu0 0.0
    %490 = vmatprep.subr.mxu0 0.0
    %491 = vmatpush1.xpose.msra.mxu0 0.0
    %492 = vmatprep.subr.mxu0 0.0
    %493 = vmatpush1.xpose.msra.mxu0 0.0
    %494 = vmatprep.subr.mxu0 0.0
    %495 = vmatpush1.xpose.msra.mxu0 0.0
    %496 = vmatprep.subr.mxu0 0.0
    %497 = vmatpush1.xpose.msra.mxu0 0.0
    %498 = vmatprep.subr.mxu0 0.0
    %499 = vmatpush1.xpose.msra.mxu0 0.0
    %500 = vmatprep.subr.mxu0 0.0
    %501 = vmatpush1.xpose.msra.mxu0 0.0
    %502 = vmatprep.mubr.f32.mxu0 0.0
    %503 = vmatmul.mubr.f32.gmra.mrb[0].mxu0 %v436
    %v504 = vpop.f32.mrb[0].mxu0
    %v505 = vadd.f32 0.0, %v504
    %v506 = vpop.f32.mrb[0].mxu0
    %507 = vdwg.mxu0
    %v509 = vsel %vm434, %v415, 0
    %511 = vmatprep.subr.mxu0 0.0
    %512 = vmatpush1.xpose.msra.mxu0 %v509
    %513 = vmatprep.subr.mxu0 0.0
    %514 = vmatpush1.xpose.msra.mxu0 0.0
    %515 = vmatprep.subr.mxu0 0.0
    %516 = vmatpush1.xpose.msra.mxu0 0.0
    %517 = vmatprep.subr.mxu0 0.0
    %518 = vmatpush1.xpose.msra.mxu0 0.0
    %519 = vmatprep.subr.mxu0 0.0
    %520 = vmatpush1.xpose.msra.mxu0 0.0
    %521 = vmatprep.subr.mxu0 0.0
    %522 = vmatpush1.xpose.msra.mxu0 0.0
    %523 = vmatprep.subr.mxu0 0.0
    %524 = vmatpush1.xpose.msra.mxu0 0.0
    %525 = vmatprep.subr.mxu0 0.0
    %526 = vmatpush1.xpose.msra.mxu0 0.0
    %527 = vmatprep.subr.mxu0 0.0
    %528 = vmatpush1.xpose.msra.mxu0 0.0
    %529 = vmatprep.subr.mxu0 0.0
    %530 = vmatpush1.xpose.msra.mxu0 0.0
    %531 = vmatprep.subr.mxu0 0.0
    %532 = vmatpush1.xpose.msra.mxu0 0.0
    %533 = vmatprep.subr.mxu0 0.0
    %534 = vmatpush1.xpose.msra.mxu0 0.0
    %535 = vmatprep.subr.mxu0 0.0
    %536 = vmatpush1.xpose.msra.mxu0 0.0
    %537 = vmatprep.subr.mxu0 0.0
    %538 = vmatpush1.xpose.msra.mxu0 0.0
    %539 = vmatprep.subr.mxu0 0.0
    %540 = vmatpush1.xpose.msra.mxu0 0.0
    %541 = vmatprep.subr.mxu0 0.0
    %542 = vmatpush1.xpose.msra.mxu0 0.0
    %543 = vmatprep.subr.mxu0 0.0
    %544 = vmatpush1.xpose.msra.mxu0 0.0
    %545 = vmatprep.subr.mxu0 0.0
    %546 = vmatpush1.xpose.msra.mxu0 0.0
    %547 = vmatprep.subr.mxu0 0.0
    %548 = vmatpush1.xpose.msra.mxu0 0.0
    %549 = vmatprep.subr.mxu0 0.0
    %550 = vmatpush1.xpose.msra.mxu0 0.0
    %551 = vmatprep.subr.mxu0 0.0
    %552 = vmatpush1.xpose.msra.mxu0 0.0
    %553 = vmatprep.subr.mxu0 0.0
    %554 = vmatpush1.xpose.msra.mxu0 0.0
    %555 = vmatprep.subr.mxu0 0.0
    %556 = vmatpush1.xpose.msra.mxu0 0.0
    %557 = vmatprep.subr.mxu0 0.0
    %558 = vmatpush1.xpose.msra.mxu0 0.0
    %559 = vmatprep.subr.mxu0 0.0
    %560 = vmatpush1.xpose.msra.mxu0 0.0
    %561 = vmatprep.subr.mxu0 0.0
    %562 = vmatpush1.xpose.msra.mxu0 0.0
    %563 = vmatprep.subr.mxu0 0.0
    %564 = vmatpush1.xpose.msra.mxu0 0.0
    %565 = vmatprep.subr.mxu0 0.0
    %566 = vmatpush1.xpose.msra.mxu0 0.0
    %567 = vmatprep.subr.mxu0 0.0
    %568 = vmatpush1.xpose.msra.mxu0 0.0
    %569 = vmatprep.subr.mxu0 0.0
    %570 = vmatpush1.xpose.msra.mxu0 0.0
    %571 = vmatprep.subr.mxu0 0.0
    %572 = vmatpush1.xpose.msra.mxu0 0.0
    %573 = vmatprep.subr.mxu0 0.0
    %574 = vmatpush1.xpose.msra.mxu0 0.0
    %575 = vmatprep.mubr.f32.mxu0 0.0
    %576 = vmatmul.mubr.f32.gmra.mrb[0].mxu0 %v509
    %v577 = vpop.f32.mrb[0].mxu0
    %v578 = vadd.f32 0.0, %v577
    %v579 = vpop.f32.mrb[0].mxu0
    %580 = vdwg.mxu0
    %v582 = vsel %vm434, %v416, 0
    %584 = vmatprep.subr.mxu0 0.0
    %585 = vmatpush1.xpose.msra.mxu0 %v582
    %586 = vmatprep.subr.mxu0 0.0
    %587 = vmatpush1.xpose.msra.mxu0 0.0
    %588 = vmatprep.subr.mxu0 0.0
    %589 = vmatpush1.xpose.msra.mxu0 0.0
    %590 = vmatprep.subr.mxu0 0.0
    %591 = vmatpush1.xpose.msra.mxu0 0.0
    %592 = vmatprep.subr.mxu0 0.0
    %593 = vmatpush1.xpose.msra.mxu0 0.0
    %594 = vmatprep.subr.mxu0 0.0
    %595 = vmatpush1.xpose.msra.mxu0 0.0
    %596 = vmatprep.subr.mxu0 0.0
    %597 = vmatpush1.xpose.msra.mxu0 0.0
    %598 = vmatprep.subr.mxu0 0.0
    %599 = vmatpush1.xpose.msra.mxu0 0.0
    %600 = vmatprep.subr.mxu0 0.0
    %601 = vmatpush1.xpose.msra.mxu0 0.0
    %602 = vmatprep.subr.mxu0 0.0
    %603 = vmatpush1.xpose.msra.mxu0 0.0
    %604 = vmatprep.subr.mxu0 0.0
    %605 = vmatpush1.xpose.msra.mxu0 0.0
    %606 = vmatprep.subr.mxu0 0.0
    %607 = vmatpush1.xpose.msra.mxu0 0.0
    %608 = vmatprep.subr.mxu0 0.0
    %609 = vmatpush1.xpose.msra.mxu0 0.0
    %610 = vmatprep.subr.mxu0 0.0
    %611 = vmatpush1.xpose.msra.mxu0 0.0
    %612 = vmatprep.subr.mxu0 0.0
    %613 = vmatpush1.xpose.msra.mxu0 0.0
    %614 = vmatprep.subr.mxu0 0.0
    %615 = vmatpush1.xpose.msra.mxu0 0.0
    %616 = vmatprep.subr.mxu0 0.0
    %617 = vmatpush1.xpose.msra.mxu0 0.0
    %618 = vmatprep.subr.mxu0 0.0
    %619 = vmatpush1.xpose.msra.mxu0 0.0
    %620 = vmatprep.subr.mxu0 0.0
    %621 = vmatpush1.xpose.msra.mxu0 0.0
    %622 = vmatprep.subr.mxu0 0.0
    %623 = vmatpush1.xpose.msra.mxu0 0.0
    %624 = vmatprep.subr.mxu0 0.0
    %625 = vmatpush1.xpose.msra.mxu0 0.0
    %626 = vmatprep.subr.mxu0 0.0
    %627 = vmatpush1.xpose.msra.mxu0 0.0
    %628 = vmatprep.subr.mxu0 0.0
    %629 = vmatpush1.xpose.msra.mxu0 0.0
    %630 = vmatprep.subr.mxu0 0.0
    %631 = vmatpush1.xpose.msra.mxu0 0.0
    %632 = vmatprep.subr.mxu0 0.0
    %633 = vmatpush1.xpose.msra.mxu0 0.0
    %634 = vmatprep.subr.mxu0 0.0
    %635 = vmatpush1.xpose.msra.mxu0 0.0
    %636 = vmatprep.subr.mxu0 0.0
    %637 = vmatpush1.xpose.msra.mxu0 0.0
    %638 = vmatprep.subr.mxu0 0.0
    %639 = vmatpush1.xpose.msra.mxu0 0.0
    %640 = vmatprep.subr.mxu0 0.0
    %641 = vmatpush1.xpose.msra.mxu0 0.0
    %642 = vmatprep.subr.mxu0 0.0
    %643 = vmatpush1.xpose.msra.mxu0 0.0
    %644 = vmatprep.subr.mxu0 0.0
    %645 = vmatpush1.xpose.msra.mxu0 0.0
    %646 = vmatprep.subr.mxu0 0.0
    %647 = vmatpush1.xpose.msra.mxu0 0.0
    %648 = vmatprep.mubr.f32.mxu0 0.0
    %649 = vmatmul.mubr.f32.gmra.mrb[0].mxu0 %v582
    %v650 = vpop.f32.mrb[0].mxu0
    %v651 = vadd.f32 0.0, %v650
    %v652 = vpop.f32.mrb[0].mxu0
    %653 = vdwg.mxu0
    %v655 = vsel %vm434, %v417, 0
    %657 = vmatprep.subr.mxu0 0.0
    %658 = vmatpush1.xpose.msra.mxu0 %v655
    %659 = vmatprep.subr.mxu0 0.0
    %660 = vmatpush1.xpose.msra.mxu0 0.0
    %661 = vmatprep.subr.mxu0 0.0
    %662 = vmatpush1.xpose.msra.mxu0 0.0
    %663 = vmatprep.subr.mxu0 0.0
    %664 = vmatpush1.xpose.msra.mxu0 0.0
    %665 = vmatprep.subr.mxu0 0.0
    %666 = vmatpush1.xpose.msra.mxu0 0.0
    %667 = vmatprep.subr.mxu0 0.0
    %668 = vmatpush1.xpose.msra.mxu0 0.0
    %669 = vmatprep.subr.mxu0 0.0
    %670 = vmatpush1.xpose.msra.mxu0 0.0
    %671 = vmatprep.subr.mxu0 0.0
    %672 = vmatpush1.xpose.msra.mxu0 0.0
    %673 = vmatprep.subr.mxu0 0.0
    %674 = vmatpush1.xpose.msra.mxu0 0.0
    %675 = vmatprep.subr.mxu0 0.0
    %676 = vmatpush1.xpose.msra.mxu0 0.0
    %677 = vmatprep.subr.mxu0 0.0
    %678 = vmatpush1.xpose.msra.mxu0 0.0
    %679 = vmatprep.subr.mxu0 0.0
    %680 = vmatpush1.xpose.msra.mxu0 0.0
    %681 = vmatprep.subr.mxu0 0.0
    %682 = vmatpush1.xpose.msra.mxu0 0.0
    %683 = vmatprep.subr.mxu0 0.0
    %684 = vmatpush1.xpose.msra.mxu0 0.0
    %685 = vmatprep.subr.mxu0 0.0
    %686 = vmatpush1.xpose.msra.mxu0 0.0
    %687 = vmatprep.subr.mxu0 0.0
    %688 = vmatpush1.xpose.msra.mxu0 0.0
    %689 = vmatprep.subr.mxu0 0.0
    %690 = vmatpush1.xpose.msra.mxu0 0.0
    %691 = vmatprep.subr.mxu0 0.0
    %692 = vmatpush1.xpose.msra.mxu0 0.0
    %693 = vmatprep.subr.mxu0 0.0
    %694 = vmatpush1.xpose.msra.mxu0 0.0
    %695 = vmatprep.subr.mxu0 0.0
    %696 = vmatpush1.xpose.msra.mxu0 0.0
    %697 = vmatprep.subr.mxu0 0.0
    %698 = vmatpush1.xpose.msra.mxu0 0.0
    %699 = vmatprep.subr.mxu0 0.0
    %700 = vmatpush1.xpose.msra.mxu0 0.0
    %701 = vmatprep.subr.mxu0 0.0
    %702 = vmatpush1.xpose.msra.mxu0 0.0
    %703 = vmatprep.subr.mxu0 0.0
    %704 = vmatpush1.xpose.msra.mxu0 0.0
    %705 = vmatprep.subr.mxu0 0.0
    %706 = vmatpush1.xpose.msra.mxu0 0.0
    %707 = vmatprep.subr.mxu0 0.0
    %708 = vmatpush1.xpose.msra.mxu0 0.0
    %709 = vmatprep.subr.mxu0 0.0
    %710 = vmatpush1.xpose.msra.mxu0 0.0
    %711 = vmatprep.subr.mxu0 0.0
    %712 = vmatpush1.xpose.msra.mxu0 0.0
    %713 = vmatprep.subr.mxu0 0.0
    %714 = vmatpush1.xpose.msra.mxu0 0.0
    %715 = vmatprep.subr.mxu0 0.0
    %716 = vmatpush1.xpose.msra.mxu0 0.0
    %717 = vmatprep.subr.mxu0 0.0
    %718 = vmatpush1.xpose.msra.mxu0 0.0
    %719 = vmatprep.subr.mxu0 0.0
    %720 = vmatpush1.xpose.msra.mxu0 0.0
    %721 = vmatprep.mubr.f32.mxu0 0.0
    %722 = vmatmul.mubr.f32.gmra.mrb[0].mxu0 %v655
    %v723 = vpop.f32.mrb[0].mxu0
    %v724 = vadd.f32 0.0, %v723
    %v725 = vpop.f32.mrb[0].mxu0
    %726 = vdwg.mxu0
    %v728 = vsel %vm434, %v418, 0
    %730 = vmatprep.subr.mxu0 0.0
    %731 = vmatpush1.xpose.msra.mxu0 %v728
    %732 = vmatprep.subr.mxu0 0.0
    %733 = vmatpush1.xpose.msra.mxu0 0.0
    %734 = vmatprep.subr.mxu0 0.0
    %735 = vmatpush1.xpose.msra.mxu0 0.0
    %736 = vmatprep.subr.mxu0 0.0
    %737 = vmatpush1.xpose.msra.mxu0 0.0
    %738 = vmatprep.subr.mxu0 0.0
    %739 = vmatpush1.xpose.msra.mxu0 0.0
    %740 = vmatprep.subr.mxu0 0.0
    %741 = vmatpush1.xpose.msra.mxu0 0.0
    %742 = vmatprep.subr.mxu0 0.0
    %743 = vmatpush1.xpose.msra.mxu0 0.0
    %744 = vmatprep.subr.mxu0 0.0
    %745 = vmatpush1.xpose.msra.mxu0 0.0
    %746 = vmatprep.subr.mxu0 0.0
    %747 = vmatpush1.xpose.msra.mxu0 0.0
    %748 = vmatprep.subr.mxu0 0.0
    %749 = vmatpush1.xpose.msra.mxu0 0.0
    %750 = vmatprep.subr.mxu0 0.0
    %751 = vmatpush1.xpose.msra.mxu0 0.0
    %752 = vmatprep.subr.mxu0 0.0
    %753 = vmatpush1.xpose.msra.mxu0 0.0
    %754 = vmatprep.subr.mxu0 0.0
    %755 = vmatpush1.xpose.msra.mxu0 0.0
    %756 = vmatprep.subr.mxu0 0.0
    %757 = vmatpush1.xpose.msra.mxu0 0.0
    %758 = vmatprep.subr.mxu0 0.0
    %759 = vmatpush1.xpose.msra.mxu0 0.0
    %760 = vmatprep.subr.mxu0 0.0
    %761 = vmatpush1.xpose.msra.mxu0 0.0
    %762 = vmatprep.subr.mxu0 0.0
    %763 = vmatpush1.xpose.msra.mxu0 0.0
    %764 = vmatprep.subr.mxu0 0.0
    %765 = vmatpush1.xpose.msra.mxu0 0.0
    %766 = vmatprep.subr.mxu0 0.0
    %767 = vmatpush1.xpose.msra.mxu0 0.0
    %768 = vmatprep.subr.mxu0 0.0
    %769 = vmatpush1.xpose.msra.mxu0 0.0
    %770 = vmatprep.subr.mxu0 0.0
    %771 = vmatpush1.xpose.msra.mxu0 0.0
    %772 = vmatprep.subr.mxu0 0.0
    %773 = vmatpush1.xpose.msra.mxu0 0.0
    %774 = vmatprep.subr.mxu0 0.0
    %775 = vmatpush1.xpose.msra.mxu0 0.0
    %776 = vmatprep.subr.mxu0 0.0
    %777 = vmatpush1.xpose.msra.mxu0 0.0
    %778 = vmatprep.subr.mxu0 0.0
    %779 = vmatpush1.xpose.msra.mxu0 0.0
    %780 = vmatprep.subr.mxu0 0.0
    %781 = vmatpush1.xpose.msra.mxu0 0.0
    %782 = vmatprep.subr.mxu0 0.0
    %783 = vmatpush1.xpose.msra.mxu0 0.0
    %784 = vmatprep.subr.mxu0 0.0
    %785 = vmatpush1.xpose.msra.mxu0 0.0
    %786 = vmatprep.subr.mxu0 0.0
    %787 = vmatpush1.xpose.msra.mxu0 0.0
    %788 = vmatprep.subr.mxu0 0.0
    %789 = vmatpush1.xpose.msra.mxu0 0.0
    %790 = vmatprep.subr.mxu0 0.0
    %791 = vmatpush1.xpose.msra.mxu0 0.0
    %792 = vmatprep.subr.mxu0 0.0
    %793 = vmatpush1.xpose.msra.mxu0 0.0
    %794 = vmatprep.mubr.f32.mxu0 0.0
    %795 = vmatmul.mubr.f32.gmra.mrb[0].mxu0 %v728
    %v796 = vpop.f32.mrb[0].mxu0
    %v797 = vadd.f32 0.0, %v796
    %v798 = vpop.f32.mrb[0].mxu0
    %799 = vdwg.mxu0
    %v801 = vsel %vm434, %v419, 0
    %803 = vmatprep.subr.mxu0 0.0
    %804 = vmatpush1.xpose.msra.mxu0 %v801
    %805 = vmatprep.subr.mxu0 0.0
    %806 = vmatpush1.xpose.msra.mxu0 0.0
    %807 = vmatprep.subr.mxu0 0.0
    %808 = vmatpush1.xpose.msra.mxu0 0.0
    %809 = vmatprep.subr.mxu0 0.0
    %810 = vmatpush1.xpose.msra.mxu0 0.0
    %811 = vmatprep.subr.mxu0 0.0
    %812 = vmatpush1.xpose.msra.mxu0 0.0
    %813 = vmatprep.subr.mxu0 0.0
    %814 = vmatpush1.xpose.msra.mxu0 0.0
    %815 = vmatprep.subr.mxu0 0.0
    %816 = vmatpush1.xpose.msra.mxu0 0.0
    %817 = vmatprep.subr.mxu0 0.0
    %818 = vmatpush1.xpose.msra.mxu0 0.0
    %819 = vmatprep.subr.mxu0 0.0
    %820 = vmatpush1.xpose.msra.mxu0 0.0
    %821 = vmatprep.subr.mxu0 0.0
    %822 = vmatpush1.xpose.msra.mxu0 0.0
    %823 = vmatprep.subr.mxu0 0.0
    %824 = vmatpush1.xpose.msra.mxu0 0.0
    %825 = vmatprep.subr.mxu0 0.0
    %826 = vmatpush1.xpose.msra.mxu0 0.0
    %827 = vmatprep.subr.mxu0 0.0
    %828 = vmatpush1.xpose.msra.mxu0 0.0
    %829 = vmatprep.subr.mxu0 0.0
    %830 = vmatpush1.xpose.msra.mxu0 0.0
    %831 = vmatprep.subr.mxu0 0.0
    %832 = vmatpush1.xpose.msra.mxu0 0.0
    %833 = vmatprep.subr.mxu0 0.0
    %834 = vmatpush1.xpose.msra.mxu0 0.0
    %835 = vmatprep.subr.mxu0 0.0
    %836 = vmatpush1.xpose.msra.mxu0 0.0
    %837 = vmatprep.subr.mxu0 0.0
    %838 = vmatpush1.xpose.msra.mxu0 0.0
    %839 = vmatprep.subr.mxu0 0.0
    %840 = vmatpush1.xpose.msra.mxu0 0.0
    %841 = vmatprep.subr.mxu0 0.0
    %842 = vmatpush1.xpose.msra.mxu0 0.0
    %843 = vmatprep.subr.mxu0 0.0
    %844 = vmatpush1.xpose.msra.mxu0 0.0
    %845 = vmatprep.subr.mxu0 0.0
    %846 = vmatpush1.xpose.msra.mxu0 0.0
    %847 = vmatprep.subr.mxu0 0.0
    %848 = vmatpush1.xpose.msra.mxu0 0.0
    %849 = vmatprep.subr.mxu0 0.0
    %850 = vmatpush1.xpose.msra.mxu0 0.0
    %851 = vmatprep.subr.mxu0 0.0
    %852 = vmatpush1.xpose.msra.mxu0 0.0
    %853 = vmatprep.subr.mxu0 0.0
    %854 = vmatpush1.xpose.msra.mxu0 0.0
    %855 = vmatprep.subr.mxu0 0.0
    %856 = vmatpush1.xpose.msra.mxu0 0.0
    %857 = vmatprep.subr.mxu0 0.0
    %858 = vmatpush1.xpose.msra.mxu0 0.0
    %859 = vmatprep.subr.mxu0 0.0
    %860 = vmatpush1.xpose.msra.mxu0 0.0
    %861 = vmatprep.subr.mxu0 0.0
    %862 = vmatpush1.xpose.msra.mxu0 0.0
    %863 = vmatprep.subr.mxu0 0.0
    %864 = vmatpush1.xpose.msra.mxu0 0.0
    %865 = vmatprep.subr.mxu0 0.0
    %866 = vmatpush1.xpose.msra.mxu0 0.0
    %867 = vmatprep.mubr.f32.mxu0 0.0
    %868 = vmatmul.mubr.f32.gmra.mrb[0].mxu0 %v801
    %v869 = vpop.f32.mrb[0].mxu0
    %v870 = vadd.f32 0.0, %v869
    %v871 = vpop.f32.mrb[0].mxu0
    %872 = vdwg.mxu0
    %v874 = vsel %vm434, %v420, 0
    %876 = vmatprep.subr.mxu0 0.0
    %877 = vmatpush1.xpose.msra.mxu0 %v874
    %878 = vmatprep.subr.mxu0 0.0
    %879 = vmatpush1.xpose.msra.mxu0 0.0
    %880 = vmatprep.subr.mxu0 0.0
    %881 = vmatpush1.xpose.msra.mxu0 0.0
    %882 = vmatprep.subr.mxu0 0.0
    %883 = vmatpush1.xpose.msra.mxu0 0.0
    %884 = vmatprep.subr.mxu0 0.0
    %885 = vmatpush1.xpose.msra.mxu0 0.0
    %886 = vmatprep.subr.mxu0 0.0
    %887 = vmatpush1.xpose.msra.mxu0 0.0
    %888 = vmatprep.subr.mxu0 0.0
    %889 = vmatpush1.xpose.msra.mxu0 0.0
    %890 = vmatprep.subr.mxu0 0.0
    %891 = vmatpush1.xpose.msra.mxu0 0.0
    %892 = vmatprep.subr.mxu0 0.0
    %893 = vmatpush1.xpose.msra.mxu0 0.0
    %894 = vmatprep.subr.mxu0 0.0
    %895 = vmatpush1.xpose.msra.mxu0 0.0
    %896 = vmatprep.subr.mxu0 0.0
    %897 = vmatpush1.xpose.msra.mxu0 0.0
    %898 = vmatprep.subr.mxu0 0.0
    %899 = vmatpush1.xpose.msra.mxu0 0.0
    %900 = vmatprep.subr.mxu0 0.0
    %901 = vmatpush1.xpose.msra.mxu0 0.0
    %902 = vmatprep.subr.mxu0 0.0
    %903 = vmatpush1.xpose.msra.mxu0 0.0
    %904 = vmatprep.subr.mxu0 0.0
    %905 = vmatpush1.xpose.msra.mxu0 0.0
    %906 = vmatprep.subr.mxu0 0.0
    %907 = vmatpush1.xpose.msra.mxu0 0.0
    %908 = vmatprep.subr.mxu0 0.0
    %909 = vmatpush1.xpose.msra.mxu0 0.0
    %910 = vmatprep.subr.mxu0 0.0
    %911 = vmatpush1.xpose.msra.mxu0 0.0
    %912 = vmatprep.subr.mxu0 0.0
    %913 = vmatpush1.xpose.msra.mxu0 0.0
    %914 = vmatprep.subr.mxu0 0.0
    %915 = vmatpush1.xpose.msra.mxu0 0.0
    %916 = vmatprep.subr.mxu0 0.0
    %917 = vmatpush1.xpose.msra.mxu0 0.0
    %918 = vmatprep.subr.mxu0 0.0
    %919 = vmatpush1.xpose.msra.mxu0 0.0
    %920 = vmatprep.subr.mxu0 0.0
    %921 = vmatpush1.xpose.msra.mxu0 0.0
    %922 = vmatprep.subr.mxu0 0.0
    %923 = vmatpush1.xpose.msra.mxu0 0.0
    %924 = vmatprep.subr.mxu0 0.0
    %925 = vmatpush1.xpose.msra.mxu0 0.0
    %926 = vmatprep.subr.mxu0 0.0
    %927 = vmatpush1.xpose.msra.mxu0 0.0
    %928 = vmatprep.subr.mxu0 0.0
    %929 = vmatpush1.xpose.msra.mxu0 0.0
    %930 = vmatprep.subr.mxu0 0.0
    %931 = vmatpush1.xpose.msra.mxu0 0.0
    %932 = vmatprep.subr.mxu0 0.0
    %933 = vmatpush1.xpose.msra.mxu0 0.0
    %934 = vmatprep.subr.mxu0 0.0
    %935 = vmatpush1.xpose.msra.mxu0 0.0
    %936 = vmatprep.subr.mxu0 0.0
    %937 = vmatpush1.xpose.msra.mxu0 0.0
    %938 = vmatprep.subr.mxu0 0.0
    %939 = vmatpush1.xpose.msra.mxu0 0.0
    %940 = vmatprep.mubr.f32.mxu0 0.0
    %941 = vmatmul.mubr.f32.gmra.mrb[0].mxu0 %v874
    %v942 = vpop.f32.mrb[0].mxu0
    %v943 = vadd.f32 0.0, %v942
    %v944 = vpop.f32.mrb[0].mxu0
    %945 = vdwg.mxu0
    %v947 = vsel %vm434, %v421, 0
    %949 = vmatprep.subr.mxu0 0.0
    %950 = vmatpush1.xpose.msra.mxu0 %v947
    %951 = vmatprep.subr.mxu0 0.0
    %952 = vmatpush1.xpose.msra.mxu0 0.0
    %953 = vmatprep.subr.mxu0 0.0
    %954 = vmatpush1.xpose.msra.mxu0 0.0
    %955 = vmatprep.subr.mxu0 0.0
    %956 = vmatpush1.xpose.msra.mxu0 0.0
    %957 = vmatprep.subr.mxu0 0.0
    %958 = vmatpush1.xpose.msra.mxu0 0.0
    %959 = vmatprep.subr.mxu0 0.0
    %960 = vmatpush1.xpose.msra.mxu0 0.0
    %961 = vmatprep.subr.mxu0 0.0
    %962 = vmatpush1.xpose.msra.mxu0 0.0
    %963 = vmatprep.subr.mxu0 0.0
    %964 = vmatpush1.xpose.msra.mxu0 0.0
    %965 = vmatprep.subr.mxu0 0.0
    %966 = vmatpush1.xpose.msra.mxu0 0.0
    %967 = vmatprep.subr.mxu0 0.0
    %968 = vmatpush1.xpose.msra.mxu0 0.0
    %969 = vmatprep.subr.mxu0 0.0
    %970 = vmatpush1.xpose.msra.mxu0 0.0
    %971 = vmatprep.subr.mxu0 0.0
    %972 = vmatpush1.xpose.msra.mxu0 0.0
    %973 = vmatprep.subr.mxu0 0.0
    %974 = vmatpush1.xpose.msra.mxu0 0.0
    %975 = vmatprep.subr.mxu0 0.0
    %976 = vmatpush1.xpose.msra.mxu0 0.0
    %977 = vmatprep.subr.mxu0 0.0
    %978 = vmatpush1.xpose.msra.mxu0 0.0
    %979 = vmatprep.subr.mxu0 0.0
    %980 = vmatpush1.xpose.msra.mxu0 0.0
    %981 = vmatprep.subr.mxu0 0.0
    %982 = vmatpush1.xpose.msra.mxu0 0.0
    %983 = vmatprep.subr.mxu0 0.0
    %984 = vmatpush1.xpose.msra.mxu0 0.0
    %985 = vmatprep.subr.mxu0 0.0
    %986 = vmatpush1.xpose.msra.mxu0 0.0
    %987 = vmatprep.subr.mxu0 0.0
    %988 = vmatpush1.xpose.msra.mxu0 0.0
    %989 = vmatprep.subr.mxu0 0.0
    %990 = vmatpush1.xpose.msra.mxu0 0.0
    %991 = vmatprep.subr.mxu0 0.0
    %992 = vmatpush1.xpose.msra.mxu0 0.0
    %993 = vmatprep.subr.mxu0 0.0
    %994 = vmatpush1.xpose.msra.mxu0 0.0
    %995 = vmatprep.subr.mxu0 0.0
    %996 = vmatpush1.xpose.msra.mxu0 0.0
    %997 = vmatprep.subr.mxu0 0.0
    %998 = vmatpush1.xpose.msra.mxu0 0.0
    %999 = vmatprep.subr.mxu0 0.0
    %1000 = vmatpush1.xpose.msra.mxu0 0.0
    %1001 = vmatprep.subr.mxu0 0.0
    %1002 = vmatpush1.xpose.msra.mxu0 0.0
    %1003 = vmatprep.subr.mxu0 0.0
    %1004 = vmatpush1.xpose.msra.mxu0 0.0
    %1005 = vmatprep.subr.mxu0 0.0
    %1006 = vmatpush1.xpose.msra.mxu0 0.0
    %1007 = vmatprep.subr.mxu0 0.0
    %1008 = vmatpush1.xpose.msra.mxu0 0.0
    %1009 = vmatprep.subr.mxu0 0.0
    %1010 = vmatpush1.xpose.msra.mxu0 0.0
    %1011 = vmatprep.subr.mxu0 0.0
    %1012 = vmatpush1.xpose.msra.mxu0 0.0
    %1013 = vmatprep.mubr.f32.mxu0 0.0
    %1014 = vmatmul.mubr.f32.gmra.mrb[0].mxu0 %v947
    %v1015 = vpop.f32.mrb[0].mxu0
    %v1016 = vadd.f32 0.0, %v1015
    %v1017 = vpop.f32.mrb[0].mxu0
    %1018 = vdwg.mxu0
    %v1020 = vsel %vm434, %v422, 0
    %1022 = vmatprep.subr.mxu0 0.0
    %1023 = vmatpush1.xpose.msra.mxu0 %v1020
    %1024 = vmatprep.subr.mxu0 0.0
    %1025 = vmatpush1.xpose.msra.mxu0 0.0
    %1026 = vmatprep.subr.mxu0 0.0
    %1027 = vmatpush1.xpose.msra.mxu0 0.0
    %1028 = vmatprep.subr.mxu0 0.0
    %1029 = vmatpush1.xpose.msra.mxu0 0.0
    %1030 = vmatprep.subr.mxu0 0.0
    %1031 = vmatpush1.xpose.msra.mxu0 0.0
    %1032 = vmatprep.subr.mxu0 0.0
    %1033 = vmatpush1.xpose.msra.mxu0 0.0
    %1034 = vmatprep.subr.mxu0 0.0
    %1035 = vmatpush1.xpose.msra.mxu0 0.0
    %1036 = vmatprep.subr.mxu0 0.0
    %1037 = vmatpush1.xpose.msra.mxu0 0.0
    %1038 = vmatprep.subr.mxu0 0.0
    %1039 = vmatpush1.xpose.msra.mxu0 0.0
    %1040 = vmatprep.subr.mxu0 0.0
    %1041 = vmatpush1.xpose.msra.mxu0 0.0
    %1042 = vmatprep.subr.mxu0 0.0
    %1043 = vmatpush1.xpose.msra.mxu0 0.0
    %1044 = vmatprep.subr.mxu0 0.0
    %1045 = vmatpush1.xpose.msra.mxu0 0.0
    %1046 = vmatprep.subr.mxu0 0.0
    %1047 = vmatpush1.xpose.msra.mxu0 0.0
    %1048 = vmatprep.subr.mxu0 0.0
    %1049 = vmatpush1.xpose.msra.mxu0 0.0
    %1050 = vmatprep.subr.mxu0 0.0
    %1051 = vmatpush1.xpose.msra.mxu0 0.0
    %1052 = vmatprep.subr.mxu0 0.0
    %1053 = vmatpush1.xpose.msra.mxu0 0.0
    %1054 = vmatprep.subr.mxu0 0.0
    %1055 = vmatpush1.xpose.msra.mxu0 0.0
    %1056 = vmatprep.subr.mxu0 0.0
    %1057 = vmatpush1.xpose.msra.mxu0 0.0
    %1058 = vmatprep.subr.mxu0 0.0
    %1059 = vmatpush1.xpose.msra.mxu0 0.0
    %1060 = vmatprep.subr.mxu0 0.0
    %1061 = vmatpush1.xpose.msra.mxu0 0.0
    %1062 = vmatprep.subr.mxu0 0.0
    %1063 = vmatpush1.xpose.msra.mxu0 0.0
    %1064 = vmatprep.subr.mxu0 0.0
    %1065 = vmatpush1.xpose.msra.mxu0 0.0
    %1066 = vmatprep.subr.mxu0 0.0
    %1067 = vmatpush1.xpose.msra.mxu0 0.0
    %1068 = vmatprep.subr.mxu0 0.0
    %1069 = vmatpush1.xpose.msra.mxu0 0.0
    %1070 = vmatprep.subr.mxu0 0.0
    %1071 = vmatpush1.xpose.msra.mxu0 0.0
    %1072 = vmatprep.subr.mxu0 0.0
    %1073 = vmatpush1.xpose.msra.mxu0 0.0
    %1074 = vmatprep.subr.mxu0 0.0
    %1075 = vmatpush1.xpose.msra.mxu0 0.0
    %1076 = vmatprep.subr.mxu0 0.0
    %1077 = vmatpush1.xpose.msra.mxu0 0.0
    %1078 = vmatprep.subr.mxu0 0.0
    %1079 = vmatpush1.xpose.msra.mxu0 0.0
    %1080 = vmatprep.subr.mxu0 0.0
    %1081 = vmatpush1.xpose.msra.mxu0 0.0
    %1082 = vmatprep.subr.mxu0 0.0
    %1083 = vmatpush1.xpose.msra.mxu0 0.0
    %1084 = vmatprep.subr.mxu0 0.0
    %1085 = vmatpush1.xpose.msra.mxu0 0.0
    %1086 = vmatprep.mubr.f32.mxu0 0.0
    %1087 = vmatmul.mubr.f32.gmra.mrb[0].mxu0 %v1020
    %v1088 = vpop.f32.mrb[0].mxu0
    %v1089 = vadd.f32 0.0, %v1088
    %v1090 = vpop.f32.mrb[0].mxu0
    %1091 = vdwg.mxu0
    %v1093 = vsel %vm434, %v423, 0
    %1095 = vmatprep.subr.mxu0 0.0
    %1096 = vmatpush1.xpose.msra.mxu0 %v1093
    %1097 = vmatprep.subr.mxu0 0.0
    %1098 = vmatpush1.xpose.msra.mxu0 0.0
    %1099 = vmatprep.subr.mxu0 0.0
    %1100 = vmatpush1.xpose.msra.mxu0 0.0
    %1101 = vmatprep.subr.mxu0 0.0
    %1102 = vmatpush1.xpose.msra.mxu0 0.0
    %1103 = vmatprep.subr.mxu0 0.0
    %1104 = vmatpush1.xpose.msra.mxu0 0.0
    %1105 = vmatprep.subr.mxu0 0.0
    %1106 = vmatpush1.xpose.msra.mxu0 0.0
    %1107 = vmatprep.subr.mxu0 0.0
    %1108 = vmatpush1.xpose.msra.mxu0 0.0
    %1109 = vmatprep.subr.mxu0 0.0
    %1110 = vmatpush1.xpose.msra.mxu0 0.0
    %1111 = vmatprep.subr.mxu0 0.0
    %1112 = vmatpush1.xpose.msra.mxu0 0.0
    %1113 = vmatprep.subr.mxu0 0.0
    %1114 = vmatpush1.xpose.msra.mxu0 0.0
    %1115 = vmatprep.subr.mxu0 0.0
    %1116 = vmatpush1.xpose.msra.mxu0 0.0
    %1117 = vmatprep.subr.mxu0 0.0
    %1118 = vmatpush1.xpose.msra.mxu0 0.0
    %1119 = vmatprep.subr.mxu0 0.0
    %1120 = vmatpush1.xpose.msra.mxu0 0.0
    %1121 = vmatprep.subr.mxu0 0.0
    %1122 = vmatpush1.xpose.msra.mxu0 0.0
    %1123 = vmatprep.subr.mxu0 0.0
    %1124 = vmatpush1.xpose.msra.mxu0 0.0
    %1125 = vmatprep.subr.mxu0 0.0
    %1126 = vmatpush1.xpose.msra.mxu0 0.0
    %1127 = vmatprep.subr.mxu0 0.0
    %1128 = vmatpush1.xpose.msra.mxu0 0.0
    %1129 = vmatprep.subr.mxu0 0.0
    %1130 = vmatpush1.xpose.msra.mxu0 0.0
    %1131 = vmatprep.subr.mxu0 0.0
    %1132 = vmatpush1.xpose.msra.mxu0 0.0
    %1133 = vmatprep.subr.mxu0 0.0
    %1134 = vmatpush1.xpose.msra.mxu0 0.0
    %1135 = vmatprep.subr.mxu0 0.0
    %1136 = vmatpush1.xpose.msra.mxu0 0.0
    %1137 = vmatprep.subr.mxu0 0.0
    %1138 = vmatpush1.xpose.msra.mxu0 0.0
    %1139 = vmatprep.subr.mxu0 0.0
    %1140 = vmatpush1.xpose.msra.mxu0 0.0
    %1141 = vmatprep.subr.mxu0 0.0
    %1142 = vmatpush1.xpose.msra.mxu0 0.0
    %1143 = vmatprep.subr.mxu0 0.0
    %1144 = vmatpush1.xpose.msra.mxu0 0.0
    %1145 = vmatprep.subr.mxu0 0.0
    %1146 = vmatpush1.xpose.msra.mxu0 0.0
    %1147 = vmatprep.subr.mxu0 0.0
    %1148 = vmatpush1.xpose.msra.mxu0 0.0
    %1149 = vmatprep.subr.mxu0 0.0
    %1150 = vmatpush1.xpose.msra.mxu0 0.0
    %1151 = vmatprep.subr.mxu0 0.0
    %1152 = vmatpush1.xpose.msra.mxu0 0.0
    %1153 = vmatprep.subr.mxu0 0.0
    %1154 = vmatpush1.xpose.msra.mxu0 0.0
    %1155 = vmatprep.subr.mxu0 0.0
    %1156 = vmatpush1.xpose.msra.mxu0 0.0
    %1157 = vmatprep.subr.mxu0 0.0
    %1158 = vmatpush1.xpose.msra.mxu0 0.0
    %1159 = vmatprep.mubr.f32.mxu0 0.0
    %1160 = vmatmul.mubr.f32.gmra.mrb[0].mxu0 %v1093
    %v1161 = vpop.f32.mrb[0].mxu0
    %v1162 = vadd.f32 0.0, %v1161
    %v1163 = vpop.f32.mrb[0].mxu0
    %1164 = vdwg.mxu0
    %v1166 = vsel %vm434, %v424, 0
    %1168 = vmatprep.subr.mxu0 0.0
    %1169 = vmatpush1.xpose.msra.mxu0 %v1166
    %1170 = vmatprep.subr.mxu0 0.0
    %1171 = vmatpush1.xpose.msra.mxu0 0.0
    %1172 = vmatprep.subr.mxu0 0.0
    %1173 = vmatpush1.xpose.msra.mxu0 0.0
    %1174 = vmatprep.subr.mxu0 0.0
    %1175 = vmatpush1.xpose.msra.mxu0 0.0
    %1176 = vmatprep.subr.mxu0 0.0
    %1177 = vmatpush1.xpose.msra.mxu0 0.0
    %1178 = vmatprep.subr.mxu0 0.0
    %1179 = vmatpush1.xpose.msra.mxu0 0.0
    %1180 = vmatprep.subr.mxu0 0.0
    %1181 = vmatpush1.xpose.msra.mxu0 0.0
    %1182 = vmatprep.subr.mxu0 0.0
    %1183 = vmatpush1.xpose.msra.mxu0 0.0
    %1184 = vmatprep.subr.mxu0 0.0
    %1185 = vmatpush1.xpose.msra.mxu0 0.0
    %1186 = vmatprep.subr.mxu0 0.0
    %1187 = vmatpush1.xpose.msra.mxu0 0.0
    %1188 = vmatprep.subr.mxu0 0.0
    %1189 = vmatpush1.xpose.msra.mxu0 0.0
    %1190 = vmatprep.subr.mxu0 0.0
    %1191 = vmatpush1.xpose.msra.mxu0 0.0
    %1192 = vmatprep.subr.mxu0 0.0
    %1193 = vmatpush1.xpose.msra.mxu0 0.0
    %1194 = vmatprep.subr.mxu0 0.0
    %1195 = vmatpush1.xpose.msra.mxu0 0.0
    %1196 = vmatprep.subr.mxu0 0.0
    %1197 = vmatpush1.xpose.msra.mxu0 0.0
    %1198 = vmatprep.subr.mxu0 0.0
    %1199 = vmatpush1.xpose.msra.mxu0 0.0
    %1200 = vmatprep.subr.mxu0 0.0
    %1201 = vmatpush1.xpose.msra.mxu0 0.0
    %1202 = vmatprep.subr.mxu0 0.0
    %1203 = vmatpush1.xpose.msra.mxu0 0.0
    %1204 = vmatprep.subr.mxu0 0.0
    %1205 = vmatpush1.xpose.msra.mxu0 0.0
    %1206 = vmatprep.subr.mxu0 0.0
    %1207 = vmatpush1.xpose.msra.mxu0 0.0
    %1208 = vmatprep.subr.mxu0 0.0
    %1209 = vmatpush1.xpose.msra.mxu0 0.0
    %1210 = vmatprep.subr.mxu0 0.0
    %1211 = vmatpush1.xpose.msra.mxu0 0.0
    %1212 = vmatprep.subr.mxu0 0.0
    %1213 = vmatpush1.xpose.msra.mxu0 0.0
    %1214 = vmatprep.subr.mxu0 0.0
    %1215 = vmatpush1.xpose.msra.mxu0 0.0
    %1216 = vmatprep.subr.mxu0 0.0
    %1217 = vmatpush1.xpose.msra.mxu0 0.0
    %1218 = vmatprep.subr.mxu0 0.0
    %1219 = vmatpush1.xpose.msra.mxu0 0.0
    %1220 = vmatprep.subr.mxu0 0.0
    %1221 = vmatpush1.xpose.msra.mxu0 0.0
    %1222 = vmatprep.subr.mxu0 0.0
    %1223 = vmatpush1.xpose.msra.mxu0 0.0
    %1224 = vmatprep.subr.mxu0 0.0
    %1225 = vmatpush1.xpose.msra.mxu0 0.0
    %1226 = vmatprep.subr.mxu0 0.0
    %1227 = vmatpush1.xpose.msra.mxu0 0.0
    %1228 = vmatprep.subr.mxu0 0.0
    %1229 = vmatpush1.xpose.msra.mxu0 0.0
    %1230 = vmatprep.subr.mxu0 0.0
    %1231 = vmatpush1.xpose.msra.mxu0 0.0
    %1232 = vmatprep.mubr.f32.mxu0 0.0
    %1233 = vmatmul.mubr.f32.gmra.mrb[0].mxu0 %v1166
    %v1234 = vpop.f32.mrb[0].mxu0
    %v1235 = vadd.f32 0.0, %v1234
    %v1236 = vpop.f32.mrb[0].mxu0
    %1237 = vdwg.mxu0
    %v1239 = vsel %vm434, %v425, 0
    %1241 = vmatprep.subr.mxu0 0.0
    %1242 = vmatpush1.xpose.msra.mxu0 %v1239
    %1243 = vmatprep.subr.mxu0 0.0
    %1244 = vmatpush1.xpose.msra.mxu0 0.0
    %1245 = vmatprep.subr.mxu0 0.0
    %1246 = vmatpush1.xpose.msra.mxu0 0.0
    %1247 = vmatprep.subr.mxu0 0.0
    %1248 = vmatpush1.xpose.msra.mxu0 0.0
    %1249 = vmatprep.subr.mxu0 0.0
    %1250 = vmatpush1.xpose.msra.mxu0 0.0
    %1251 = vmatprep.subr.mxu0 0.0
    %1252 = vmatpush1.xpose.msra.mxu0 0.0
    %1253 = vmatprep.subr.mxu0 0.0
    %1254 = vmatpush1.xpose.msra.mxu0 0.0
    %1255 = vmatprep.subr.mxu0 0.0
    %1256 = vmatpush1.xpose.msra.mxu0 0.0
    %1257 = vmatprep.subr.mxu0 0.0
    %1258 = vmatpush1.xpose.msra.mxu0 0.0
    %1259 = vmatprep.subr.mxu0 0.0
    %1260 = vmatpush1.xpose.msra.mxu0 0.0
    %1261 = vmatprep.subr.mxu0 0.0
    %1262 = vmatpush1.xpose.msra.mxu0 0.0
    %1263 = vmatprep.subr.mxu0 0.0
    %1264 = vmatpush1.xpose.msra.mxu0 0.0
    %1265 = vmatprep.subr.mxu0 0.0
    %1266 = vmatpush1.xpose.msra.mxu0 0.0
    %1267 = vmatprep.subr.mxu0 0.0
    %1268 = vmatpush1.xpose.msra.mxu0 0.0
    %1269 = vmatprep.subr.mxu0 0.0
    %1270 = vmatpush1.xpose.msra.mxu0 0.0
    %1271 = vmatprep.subr.mxu0 0.0
    %1272 = vmatpush1.xpose.msra.mxu0 0.0
    %1273 = vmatprep.subr.mxu0 0.0
    %1274 = vmatpush1.xpose.msra.mxu0 0.0
    %1275 = vmatprep.subr.mxu0 0.0
    %1276 = vmatpush1.xpose.msra.mxu0 0.0
    %1277 = vmatprep.subr.mxu0 0.0
    %1278 = vmatpush1.xpose.msra.mxu0 0.0
    %1279 = vmatprep.subr.mxu0 0.0
    %1280 = vmatpush1.xpose.msra.mxu0 0.0
    %1281 = vmatprep.subr.mxu0 0.0
    %1282 = vmatpush1.xpose.msra.mxu0 0.0
    %1283 = vmatprep.subr.mxu0 0.0
    %1284 = vmatpush1.xpose.msra.mxu0 0.0
    %1285 = vmatprep.subr.mxu0 0.0
    %1286 = vmatpush1.xpose.msra.mxu0 0.0
    %1287 = vmatprep.subr.mxu0 0.0
    %1288 = vmatpush1.xpose.msra.mxu0 0.0
    %1289 = vmatprep.subr.mxu0 0.0
    %1290 = vmatpush1.xpose.msra.mxu0 0.0
    %1291 = vmatprep.subr.mxu0 0.0
    %1292 = vmatpush1.xpose.msra.mxu0 0.0
    %1293 = vmatprep.subr.mxu0 0.0
    %1294 = vmatpush1.xpose.msra.mxu0 0.0
    %1295 = vmatprep.subr.mxu0 0.0
    %1296 = vmatpush1.xpose.msra.mxu0 0.0
    %1297 = vmatprep.subr.mxu0 0.0
    %1298 = vmatpush1.xpose.msra.mxu0 0.0
    %1299 = vmatprep.subr.mxu0 0.0
    %1300 = vmatpush1.xpose.msra.mxu0 0.0
    %1301 = vmatprep.subr.mxu0 0.0
    %1302 = vmatpush1.xpose.msra.mxu0 0.0
    %1303 = vmatprep.subr.mxu0 0.0
    %1304 = vmatpush1.xpose.msra.mxu0 0.0
    %1305 = vmatprep.mubr.f32.mxu0 0.0
    %1306 = vmatmul.mubr.f32.gmra.mrb[0].mxu0 %v1239
    %v1307 = vpop.f32.mrb[0].mxu0
    %v1308 = vadd.f32 0.0, %v1307
    %v1309 = vpop.f32.mrb[0].mxu0
    %1310 = vdwg.mxu0
    %v1312 = vsel %vm434, %v426, 0
    %1314 = vmatprep.subr.mxu0 0.0
    %1315 = vmatpush1.xpose.msra.mxu0 %v1312
    %1316 = vmatprep.subr.mxu0 0.0
    %1317 = vmatpush1.xpose.msra.mxu0 0.0
    %1318 = vmatprep.subr.mxu0 0.0
    %1319 = vmatpush1.xpose.msra.mxu0 0.0
    %1320 = vmatprep.subr.mxu0 0.0
    %1321 = vmatpush1.xpose.msra.mxu0 0.0
    %1322 = vmatprep.subr.mxu0 0.0
    %1323 = vmatpush1.xpose.msra.mxu0 0.0
    %1324 = vmatprep.subr.mxu0 0.0
    %1325 = vmatpush1.xpose.msra.mxu0 0.0
    %1326 = vmatprep.subr.mxu0 0.0
    %1327 = vmatpush1.xpose.msra.mxu0 0.0
    %1328 = vmatprep.subr.mxu0 0.0
    %1329 = vmatpush1.xpose.msra.mxu0 0.0
    %1330 = vmatprep.subr.mxu0 0.0
    %1331 = vmatpush1.xpose.msra.mxu0 0.0
    %1332 = vmatprep.subr.mxu0 0.0
    %1333 = vmatpush1.xpose.msra.mxu0 0.0
    %1334 = vmatprep.subr.mxu0 0.0
    %1335 = vmatpush1.xpose.msra.mxu0 0.0
    %1336 = vmatprep.subr.mxu0 0.0
    %1337 = vmatpush1.xpose.msra.mxu0 0.0
    %1338 = vmatprep.subr.mxu0 0.0
    %1339 = vmatpush1.xpose.msra.mxu0 0.0
    %1340 = vmatprep.subr.mxu0 0.0
    %1341 = vmatpush1.xpose.msra.mxu0 0.0
    %1342 = vmatprep.subr.mxu0 0.0
    %1343 = vmatpush1.xpose.msra.mxu0 0.0
    %1344 = vmatprep.subr.mxu0 0.0
    %1345 = vmatpush1.xpose.msra.mxu0 0.0
    %1346 = vmatprep.subr.mxu0 0.0
    %1347 = vmatpush1.xpose.msra.mxu0 0.0
    %1348 = vmatprep.subr.mxu0 0.0
    %1349 = vmatpush1.xpose.msra.mxu0 0.0
    %1350 = vmatprep.subr.mxu0 0.0
    %1351 = vmatpush1.xpose.msra.mxu0 0.0
    %1352 = vmatprep.subr.mxu0 0.0
    %1353 = vmatpush1.xpose.msra.mxu0 0.0
    %1354 = vmatprep.subr.mxu0 0.0
    %1355 = vmatpush1.xpose.msra.mxu0 0.0
    %1356 = vmatprep.subr.mxu0 0.0
    %1357 = vmatpush1.xpose.msra.mxu0 0.0
    %1358 = vmatprep.subr.mxu0 0.0
    %1359 = vmatpush1.xpose.msra.mxu0 0.0
    %1360 = vmatprep.subr.mxu0 0.0
    %1361 = vmatpush1.xpose.msra.mxu0 0.0
    %1362 = vmatprep.subr.mxu0 0.0
    %1363 = vmatpush1.xpose.msra.mxu0 0.0
    %1364 = vmatprep.subr.mxu0 0.0
    %1365 = vmatpush1.xpose.msra.mxu0 0.0
    %1366 = vmatprep.subr.mxu0 0.0
    %1367 = vmatpush1.xpose.msra.mxu0 0.0
    %1368 = vmatprep.subr.mxu0 0.0
    %1369 = vmatpush1.xpose.msra.mxu0 0.0
    %1370 = vmatprep.subr.mxu0 0.0
    %1371 = vmatpush1.xpose.msra.mxu0 0.0
    %1372 = vmatprep.subr.mxu0 0.0
    %1373 = vmatpush1.xpose.msra.mxu0 0.0
    %1374 = vmatprep.subr.mxu0 0.0
    %1375 = vmatpush1.xpose.msra.mxu0 0.0
    %1376 = vmatprep.subr.mxu0 0.0
    %1377 = vmatpush1.xpose.msra.mxu0 0.0
    %1378 = vmatprep.mubr.f32.mxu0 0.0
    %1379 = vmatmul.mubr.f32.gmra.mrb[0].mxu0 %v1312
    %v1380 = vpop.f32.mrb[0].mxu0
    %v1381 = vadd.f32 0.0, %v1380
    %v1382 = vpop.f32.mrb[0].mxu0
    %1383 = vdwg.mxu0
    %v1385 = vsel %vm434, %v427, 0
    %1387 = vmatprep.subr.mxu0 0.0
    %1388 = vmatpush1.xpose.msra.mxu0 %v1385
    %1389 = vmatprep.subr.mxu0 0.0
    %1390 = vmatpush1.xpose.msra.mxu0 0.0
    %1391 = vmatprep.subr.mxu0 0.0
    %1392 = vmatpush1.xpose.msra.mxu0 0.0
    %1393 = vmatprep.subr.mxu0 0.0
    %1394 = vmatpush1.xpose.msra.mxu0 0.0
    %1395 = vmatprep.subr.mxu0 0.0
    %1396 = vmatpush1.xpose.msra.mxu0 0.0
    %1397 = vmatprep.subr.mxu0 0.0
    %1398 = vmatpush1.xpose.msra.mxu0 0.0
    %1399 = vmatprep.subr.mxu0 0.0
    %1400 = vmatpush1.xpose.msra.mxu0 0.0
    %1401 = vmatprep.subr.mxu0 0.0
    %1402 = vmatpush1.xpose.msra.mxu0 0.0
    %1403 = vmatprep.subr.mxu0 0.0
    %1404 = vmatpush1.xpose.msra.mxu0 0.0
    %1405 = vmatprep.subr.mxu0 0.0
    %1406 = vmatpush1.xpose.msra.mxu0 0.0
    %1407 = vmatprep.subr.mxu0 0.0
    %1408 = vmatpush1.xpose.msra.mxu0 0.0
    %1409 = vmatprep.subr.mxu0 0.0
    %1410 = vmatpush1.xpose.msra.mxu0 0.0
    %1411 = vmatprep.subr.mxu0 0.0
    %1412 = vmatpush1.xpose.msra.mxu0 0.0
    %1413 = vmatprep.subr.mxu0 0.0
    %1414 = vmatpush1.xpose.msra.mxu0 0.0
    %1415 = vmatprep.subr.mxu0 0.0
    %1416 = vmatpush1.xpose.msra.mxu0 0.0
    %1417 = vmatprep.subr.mxu0 0.0
    %1418 = vmatpush1.xpose.msra.mxu0 0.0
    %1419 = vmatprep.subr.mxu0 0.0
    %1420 = vmatpush1.xpose.msra.mxu0 0.0
    %1421 = vmatprep.subr.mxu0 0.0
    %1422 = vmatpush1.xpose.msra.mxu0 0.0
    %1423 = vmatprep.subr.mxu0 0.0
    %1424 = vmatpush1.xpose.msra.mxu0 0.0
    %1425 = vmatprep.subr.mxu0 0.0
    %1426 = vmatpush1.xpose.msra.mxu0 0.0
    %1427 = vmatprep.subr.mxu0 0.0
    %1428 = vmatpush1.xpose.msra.mxu0 0.0
    %1429 = vmatprep.subr.mxu0 0.0
    %1430 = vmatpush1.xpose.msra.mxu0 0.0
    %1431 = vmatprep.subr.mxu0 0.0
    %1432 = vmatpush1.xpose.msra.mxu0 0.0
    %1433 = vmatprep.subr.mxu0 0.0
    %1434 = vmatpush1.xpose.msra.mxu0 0.0
    %1435 = vmatprep.subr.mxu0 0.0
    %1436 = vmatpush1.xpose.msra.mxu0 0.0
    %1437 = vmatprep.subr.mxu0 0.0
    %1438 = vmatpush1.xpose.msra.mxu0 0.0
    %1439 = vmatprep.subr.mxu0 0.0
    %1440 = vmatpush1.xpose.msra.mxu0 0.0
    %1441 = vmatprep.subr.mxu0 0.0
    %1442 = vmatpush1.xpose.msra.mxu0 0.0
    %1443 = vmatprep.subr.mxu0 0.0
    %1444 = vmatpush1.xpose.msra.mxu0 0.0
    %1445 = vmatprep.subr.mxu0 0.0
    %1446 = vmatpush1.xpose.msra.mxu0 0.0
    %1447 = vmatprep.subr.mxu0 0.0
    %1448 = vmatpush1.xpose.msra.mxu0 0.0
    %1449 = vmatprep.subr.mxu0 0.0
    %1450 = vmatpush1.xpose.msra.mxu0 0.0
    %1451 = vmatprep.mubr.f32.mxu0 0.0
    %1452 = vmatmul.mubr.f32.gmra.mrb[0].mxu0 %v1385
    %v1453 = vpop.f32.mrb[0].mxu0
    %v1454 = vadd.f32 0.0, %v1453
    %v1455 = vpop.f32.mrb[0].mxu0
    %1456 = vdwg.mxu0
    %v1458 = vsel %vm434, %v428, 0
    %1460 = vmatprep.subr.mxu0 0.0
    %1461 = vmatpush1.xpose.msra.mxu0 %v1458
    %1462 = vmatprep.subr.mxu0 0.0
    %1463 = vmatpush1.xpose.msra.mxu0 0.0
    %1464 = vmatprep.subr.mxu0 0.0
    %1465 = vmatpush1.xpose.msra.mxu0 0.0
    %1466 = vmatprep.subr.mxu0 0.0
    %1467 = vmatpush1.xpose.msra.mxu0 0.0
    %1468 = vmatprep.subr.mxu0 0.0
    %1469 = vmatpush1.xpose.msra.mxu0 0.0
    %1470 = vmatprep.subr.mxu0 0.0
    %1471 = vmatpush1.xpose.msra.mxu0 0.0
    %1472 = vmatprep.subr.mxu0 0.0
    %1473 = vmatpush1.xpose.msra.mxu0 0.0
    %1474 = vmatprep.subr.mxu0 0.0
    %1475 = vmatpush1.xpose.msra.mxu0 0.0
    %1476 = vmatprep.subr.mxu0 0.0
    %1477 = vmatpush1.xpose.msra.mxu0 0.0
    %1478 = vmatprep.subr.mxu0 0.0
    %1479 = vmatpush1.xpose.msra.mxu0 0.0
    %1480 = vmatprep.subr.mxu0 0.0
    %1481 = vmatpush1.xpose.msra.mxu0 0.0
    %1482 = vmatprep.subr.mxu0 0.0
    %1483 = vmatpush1.xpose.msra.mxu0 0.0
    %1484 = vmatprep.subr.mxu0 0.0
    %1485 = vmatpush1.xpose.msra.mxu0 0.0
    %1486 = vmatprep.subr.mxu0 0.0
    %1487 = vmatpush1.xpose.msra.mxu0 0.0
    %1488 = vmatprep.subr.mxu0 0.0
    %1489 = vmatpush1.xpose.msra.mxu0 0.0
    %1490 = vmatprep.subr.mxu0 0.0
    %1491 = vmatpush1.xpose.msra.mxu0 0.0
    %1492 = vmatprep.subr.mxu0 0.0
    %1493 = vmatpush1.xpose.msra.mxu0 0.0
    %1494 = vmatprep.subr.mxu0 0.0
    %1495 = vmatpush1.xpose.msra.mxu0 0.0
    %1496 = vmatprep.subr.mxu0 0.0
    %1497 = vmatpush1.xpose.msra.mxu0 0.0
    %1498 = vmatprep.subr.mxu0 0.0
    %1499 = vmatpush1.xpose.msra.mxu0 0.0
    %1500 = vmatprep.subr.mxu0 0.0
    %1501 = vmatpush1.xpose.msra.mxu0 0.0
    %1502 = vmatprep.subr.mxu0 0.0
    %1503 = vmatpush1.xpose.msra.mxu0 0.0
    %1504 = vmatprep.subr.mxu0 0.0
    %1505 = vmatpush1.xpose.msra.mxu0 0.0
    %1506 = vmatprep.subr.mxu0 0.0
    %1507 = vmatpush1.xpose.msra.mxu0 0.0
    %1508 = vmatprep.subr.mxu0 0.0
    %1509 = vmatpush1.xpose.msra.mxu0 0.0
    %1510 = vmatprep.subr.mxu0 0.0
    %1511 = vmatpush1.xpose.msra.mxu0 0.0
    %1512 = vmatprep.subr.mxu0 0.0
    %1513 = vmatpush1.xpose.msra.mxu0 0.0
    %1514 = vmatprep.subr.mxu0 0.0
    %1515 = vmatpush1.xpose.msra.mxu0 0.0
    %1516 = vmatprep.subr.mxu0 0.0
    %1517 = vmatpush1.xpose.msra.mxu0 0.0
    %1518 = vmatprep.subr.mxu0 0.0
    %1519 = vmatpush1.xpose.msra.mxu0 0.0
    %1520 = vmatprep.subr.mxu0 0.0
    %1521 = vmatpush1.xpose.msra.mxu0 0.0
    %1522 = vmatprep.subr.mxu0 0.0
    %1523 = vmatpush1.xpose.msra.mxu0 0.0
    %1524 = vmatprep.mubr.f32.mxu0 0.0
    %1525 = vmatmul.mubr.f32.gmra.mrb[0].mxu0 %v1458
    %v1526 = vpop.f32.mrb[0].mxu0
    %v1527 = vadd.f32 0.0, %v1526
    %v1528 = vpop.f32.mrb[0].mxu0
    %1529 = vdwg.mxu0
    %v1531 = vsel %vm434, %v429, 0
    %1533 = vmatprep.subr.mxu0 0.0
    %1534 = vmatpush1.xpose.msra.mxu0 %v1531
    %1535 = vmatprep.subr.mxu0 0.0
    %1536 = vmatpush1.xpose.msra.mxu0 0.0
    %1537 = vmatprep.subr.mxu0 0.0
    %1538 = vmatpush1.xpose.msra.mxu0 0.0
    %1539 = vmatprep.subr.mxu0 0.0
    %1540 = vmatpush1.xpose.msra.mxu0 0.0
    %1541 = vmatprep.subr.mxu0 0.0
    %1542 = vmatpush1.xpose.msra.mxu0 0.0
    %1543 = vmatprep.subr.mxu0 0.0
    %1544 = vmatpush1.xpose.msra.mxu0 0.0
    %1545 = vmatprep.subr.mxu0 0.0
    %1546 = vmatpush1.xpose.msra.mxu0 0.0
    %1547 = vmatprep.subr.mxu0 0.0
    %1548 = vmatpush1.xpose.msra.mxu0 0.0
    %1549 = vmatprep.subr.mxu0 0.0
    %1550 = vmatpush1.xpose.msra.mxu0 0.0
    %1551 = vmatprep.subr.mxu0 0.0
    %1552 = vmatpush1.xpose.msra.mxu0 0.0
    %1553 = vmatprep.subr.mxu0 0.0
    %1554 = vmatpush1.xpose.msra.mxu0 0.0
    %1555 = vmatprep.subr.mxu0 0.0
    %1556 = vmatpush1.xpose.msra.mxu0 0.0
    %1557 = vmatprep.subr.mxu0 0.0
    %1558 = vmatpush1.xpose.msra.mxu0 0.0
    %1559 = vmatprep.subr.mxu0 0.0
    %1560 = vmatpush1.xpose.msra.mxu0 0.0
    %1561 = vmatprep.subr.mxu0 0.0
    %1562 = vmatpush1.xpose.msra.mxu0 0.0
    %1563 = vmatprep.subr.mxu0 0.0
    %1564 = vmatpush1.xpose.msra.mxu0 0.0
    %1565 = vmatprep.subr.mxu0 0.0
    %1566 = vmatpush1.xpose.msra.mxu0 0.0
    %1567 = vmatprep.subr.mxu0 0.0
    %1568 = vmatpush1.xpose.msra.mxu0 0.0
    %1569 = vmatprep.subr.mxu0 0.0
    %1570 = vmatpush1.xpose.msra.mxu0 0.0
    %1571 = vmatprep.subr.mxu0 0.0
    %1572 = vmatpush1.xpose.msra.mxu0 0.0
    %1573 = vmatprep.subr.mxu0 0.0
    %1574 = vmatpush1.xpose.msra.mxu0 0.0
    %1575 = vmatprep.subr.mxu0 0.0
    %1576 = vmatpush1.xpose.msra.mxu0 0.0
    %1577 = vmatprep.subr.mxu0 0.0
    %1578 = vmatpush1.xpose.msra.mxu0 0.0
    %1579 = vmatprep.subr.mxu0 0.0
    %1580 = vmatpush1.xpose.msra.mxu0 0.0
    %1581 = vmatprep.subr.mxu0 0.0
    %1582 = vmatpush1.xpose.msra.mxu0 0.0
    %1583 = vmatprep.subr.mxu0 0.0
    %1584 = vmatpush1.xpose.msra.mxu0 0.0
    %1585 = vmatprep.subr.mxu0 0.0
    %1586 = vmatpush1.xpose.msra.mxu0 0.0
    %1587 = vmatprep.subr.mxu0 0.0
    %1588 = vmatpush1.xpose.msra.mxu0 0.0
    %1589 = vmatprep.subr.mxu0 0.0
    %1590 = vmatpush1.xpose.msra.mxu0 0.0
    %1591 = vmatprep.subr.mxu0 0.0
    %1592 = vmatpush1.xpose.msra.mxu0 0.0
    %1593 = vmatprep.subr.mxu0 0.0
    %1594 = vmatpush1.xpose.msra.mxu0 0.0
    %1595 = vmatprep.subr.mxu0 0.0
    %1596 = vmatpush1.xpose.msra.mxu0 0.0
    %1597 = vmatprep.mubr.f32.mxu0 0.0
    %1598 = vmatmul.mubr.f32.gmra.mrb[0].mxu0 %v1531
    %v1599 = vpop.f32.mrb[0].mxu0
    %v1600 = vadd.f32 0.0, %v1599
    %v1601 = vpop.f32.mrb[0].mxu0
    %1602 = vdwg.mxu0
    %v1603 = vmul.f32 %v414, %v414
    %v1604 = vmul.f32 %v415, %v415
    %v1605 = vmul.f32 %v416, %v416
    %v1606 = vmul.f32 %v417, %v417
    %v1607 = vmul.f32 %v418, %v418
    %v1608 = vmul.f32 %v419, %v419
    %v1609 = vmul.f32 %v420, %v420
    %v1610 = vmul.f32 %v421, %v421
    %v1611 = vmul.f32 %v422, %v422
    %v1612 = vmul.f32 %v423, %v423
    %v1613 = vmul.f32 %v424, %v424
    %v1614 = vmul.f32 %v425, %v425
    %v1615 = vmul.f32 %v426, %v426
    %v1616 = vmul.f32 %v427, %v427
    %v1617 = vmul.f32 %v428, %v428
    %v1618 = vmul.f32 %v429, %v429
    %vm1619 = vcmask 259072
    %v1620 = vsel %vm1619, %v1603, 0.0
    %1621 = vadd.xlane.f32.xlu0 %v1620
    %v1622 = vpop.xlane.xlu0 %1621
    %v1623 = vsel %vm1619, %v1604, 0.0
    %1624 = vadd.xlane.f32.xlu0 %v1623
    %v1625 = vpop.xlane.xlu0 %1624
    %v1626 = vsel %vm1619, %v1605, 0.0
    %1627 = vadd.xlane.f32.xlu0 %v1626
    %v1628 = vpop.xlane.xlu0 %1627
    %v1629 = vsel %vm1619, %v1606, 0.0
    %1630 = vadd.xlane.f32.xlu0 %v1629
    %v1631 = vpop.xlane.xlu0 %1630
    %v1632 = vsel %vm1619, %v1607, 0.0
    %1633 = vadd.xlane.f32.xlu0 %v1632
    %v1634 = vpop.xlane.xlu0 %1633
    %v1635 = vsel %vm1619, %v1608, 0.0
    %1636 = vadd.xlane.f32.xlu0 %v1635
    %v1637 = vpop.xlane.xlu0 %1636
    %v1638 = vsel %vm1619, %v1609, 0.0
    %1639 = vadd.xlane.f32.xlu0 %v1638
    %v1640 = vpop.xlane.xlu0 %1639
    %v1641 = vsel %vm1619, %v1610, 0.0
    %1642 = vadd.xlane.f32.xlu0 %v1641
    %v1643 = vpop.xlane.xlu0 %1642
    %v1644 = vsel %vm1619, %v1611, 0.0
    %1645 = vadd.xlane.f32.xlu0 %v1644
    %v1646 = vpop.xlane.xlu0 %1645
    %v1647 = vsel %vm1619, %v1612, 0.0
    %1648 = vadd.xlane.f32.xlu0 %v1647
    %v1649 = vpop.xlane.xlu0 %1648
    %v1650 = vsel %vm1619, %v1613, 0.0
    %1651 = vadd.xlane.f32.xlu0 %v1650
    %v1652 = vpop.xlane.xlu0 %1651
    %v1653 = vsel %vm1619, %v1614, 0.0
    %1654 = vadd.xlane.f32.xlu0 %v1653
    %v1655 = vpop.xlane.xlu0 %1654
    %v1656 = vsel %vm1619, %v1615, 0.0
    %1657 = vadd.xlane.f32.xlu0 %v1656
    %v1658 = vpop.xlane.xlu0 %1657
    %v1659 = vsel %vm1619, %v1616, 0.0
    %1660 = vadd.xlane.f32.xlu0 %v1659
    %v1661 = vpop.xlane.xlu0 %1660
    %v1662 = vsel %vm1619, %v1617, 0.0
    %1663 = vadd.xlane.f32.xlu0 %v1662
    %v1664 = vpop.xlane.xlu0 %1663
    %v1665 = vsel %vm1619, %v1618, 0.0
    %1666 = vadd.xlane.f32.xlu0 %v1665
    %v1667 = vpop.xlane.xlu0 %1666
    %v1668 = vrsqrt.pop %v1622
    %v1669 = vmul.f32 %v1622, %v1668
    %vm1670 = vcmp.eq.f32.partialorder %v1622, inf
    %v1671 = vsel %vm1670, %v1622, %v1669
    %vm1672 = vcmp.eq.f32.partialorder %v1622, 0.0
    %v1673 = vand.u32 %v1622, 2147483648
    %v1674 = vsel %vm1672, %v1673, %v1671
    %v1675 = vrsqrt.pop %v1625
    %v1676 = vmul.f32 %v1625, %v1675
    %vm1677 = vcmp.eq.f32.partialorder %v1625, inf
    %v1678 = vsel %vm1677, %v1625, %v1676
    %vm1679 = vcmp.eq.f32.partialorder %v1625, 0.0
    %v1680 = vand.u32 %v1625, 2147483648
    %v1681 = vsel %vm1679, %v1680, %v1678
    %v1682 = vrsqrt.pop %v1628
    %v1683 = vmul.f32 %v1628, %v1682
    %vm1684 = vcmp.eq.f32.partialorder %v1628, inf
    %v1685 = vsel %vm1684, %v1628, %v1683
    %vm1686 = vcmp.eq.f32.partialorder %v1628, 0.0
    %v1687 = vand.u32 %v1628, 2147483648
    %v1688 = vsel %vm1686, %v1687, %v1685
    %v1689 = vrsqrt.pop %v1631
    %v1690 = vmul.f32 %v1631, %v1689
    %vm1691 = vcmp.eq.f32.partialorder %v1631, inf
    %v1692 = vsel %vm1691, %v1631, %v1690
    %vm1693 = vcmp.eq.f32.partialorder %v1631, 0.0
    %v1694 = vand.u32 %v1631, 2147483648
    %v1695 = vsel %vm1693, %v1694, %v1692
    %v1696 = vrsqrt.pop %v1634
    %v1697 = vmul.f32 %v1634, %v1696
    %vm1698 = vcmp.eq.f32.partialorder %v1634, inf
    %v1699 = vsel %vm1698, %v1634, %v1697
    %vm1700 = vcmp.eq.f32.partialorder %v1634, 0.0
    %v1701 = vand.u32 %v1634, 2147483648
    %v1702 = vsel %vm1700, %v1701, %v1699
    %v1703 = vrsqrt.pop %v1637
    %v1704 = vmul.f32 %v1637, %v1703
    %vm1705 = vcmp.eq.f32.partialorder %v1637, inf
    %v1706 = vsel %vm1705, %v1637, %v1704
    %vm1707 = vcmp.eq.f32.partialorder %v1637, 0.0
    %v1708 = vand.u32 %v1637, 2147483648
    %v1709 = vsel %vm1707, %v1708, %v1706
    %v1710 = vrsqrt.pop %v1640
    %v1711 = vmul.f32 %v1640, %v1710
    %vm1712 = vcmp.eq.f32.partialorder %v1640, inf
    %v1713 = vsel %vm1712, %v1640, %v1711
    %vm1714 = vcmp.eq.f32.partialorder %v1640, 0.0
    %v1715 = vand.u32 %v1640, 2147483648
    %v1716 = vsel %vm1714, %v1715, %v1713
    %v1717 = vrsqrt.pop %v1643
    %v1718 = vmul.f32 %v1643, %v1717
    %vm1719 = vcmp.eq.f32.partialorder %v1643, inf
    %v1720 = vsel %vm1719, %v1643, %v1718
    %vm1721 = vcmp.eq.f32.partialorder %v1643, 0.0
    %v1722 = vand.u32 %v1643, 2147483648
    %v1723 = vsel %vm1721, %v1722, %v1720
    %v1724 = vrsqrt.pop %v1646
    %v1725 = vmul.f32 %v1646, %v1724
    %vm1726 = vcmp.eq.f32.partialorder %v1646, inf
    %v1727 = vsel %vm1726, %v1646, %v1725
    %vm1728 = vcmp.eq.f32.partialorder %v1646, 0.0
    %v1729 = vand.u32 %v1646, 2147483648
    %v1730 = vsel %vm1728, %v1729, %v1727
    %v1731 = vrsqrt.pop %v1649
    %v1732 = vmul.f32 %v1649, %v1731
    %vm1733 = vcmp.eq.f32.partialorder %v1649, inf
    %v1734 = vsel %vm1733, %v1649, %v1732
    %vm1735 = vcmp.eq.f32.partialorder %v1649, 0.0
    %v1736 = vand.u32 %v1649, 2147483648
    %v1737 = vsel %vm1735, %v1736, %v1734
    %v1738 = vrsqrt.pop %v1652
    %v1739 = vmul.f32 %v1652, %v1738
    %vm1740 = vcmp.eq.f32.partialorder %v1652, inf
    %v1741 = vsel %vm1740, %v1652, %v1739
    %vm1742 = vcmp.eq.f32.partialorder %v1652, 0.0
    %v1743 = vand.u32 %v1652, 2147483648
    %v1744 = vsel %vm1742, %v1743, %v1741
    %v1745 = vrsqrt.pop %v1655
    %v1746 = vmul.f32 %v1655, %v1745
    %vm1747 = vcmp.eq.f32.partialorder %v1655, inf
    %v1748 = vsel %vm1747, %v1655, %v1746
    %vm1749 = vcmp.eq.f32.partialorder %v1655, 0.0
    %v1750 = vand.u32 %v1655, 2147483648
    %v1751 = vsel %vm1749, %v1750, %v1748
    %v1752 = vrsqrt.pop %v1658
    %v1753 = vmul.f32 %v1658, %v1752
    %vm1754 = vcmp.eq.f32.partialorder %v1658, inf
    %v1755 = vsel %vm1754, %v1658, %v1753
    %vm1756 = vcmp.eq.f32.partialorder %v1658, 0.0
    %v1757 = vand.u32 %v1658, 2147483648
    %v1758 = vsel %vm1756, %v1757, %v1755
    %v1759 = vrsqrt.pop %v1661
    %v1760 = vmul.f32 %v1661, %v1759
    %vm1761 = vcmp.eq.f32.partialorder %v1661, inf
    %v1762 = vsel %vm1761, %v1661, %v1760
    %vm1763 = vcmp.eq.f32.partialorder %v1661, 0.0
    %v1764 = vand.u32 %v1661, 2147483648
    %v1765 = vsel %vm1763, %v1764, %v1762
    %v1766 = vrsqrt.pop %v1664
    %v1767 = vmul.f32 %v1664, %v1766
    %vm1768 = vcmp.eq.f32.partialorder %v1664, inf
    %v1769 = vsel %vm1768, %v1664, %v1767
    %vm1770 = vcmp.eq.f32.partialorder %v1664, 0.0
    %v1771 = vand.u32 %v1664, 2147483648
    %v1772 = vsel %vm1770, %v1771, %v1769
    %v1773 = vrsqrt.pop %v1667
    %v1774 = vmul.f32 %v1667, %v1773
    %vm1775 = vcmp.eq.f32.partialorder %v1667, inf
    %v1776 = vsel %vm1775, %v1667, %v1774
    %vm1777 = vcmp.eq.f32.partialorder %v1667, 0.0
    %v1778 = vand.u32 %v1667, 2147483648
    %v1779 = vsel %vm1777, %v1778, %v1776
    %v1780 = vmax.f32 %v1674, 1e-08
    %v1781 = vmax.f32 %v1681, 1e-08
    %v1782 = vmax.f32 %v1688, 1e-08
    %v1783 = vmax.f32 %v1695, 1e-08
    %v1784 = vmax.f32 %v1702, 1e-08
    %v1785 = vmax.f32 %v1709, 1e-08
    %v1786 = vmax.f32 %v1716, 1e-08
    %v1787 = vmax.f32 %v1723, 1e-08
    %v1788 = vmax.f32 %v1730, 1e-08
    %v1789 = vmax.f32 %v1737, 1e-08
    %v1790 = vmax.f32 %v1744, 1e-08
    %v1791 = vmax.f32 %v1751, 1e-08
    %v1792 = vmax.f32 %v1758, 1e-08
    %v1793 = vmax.f32 %v1765, 1e-08
    %v1794 = vmax.f32 %v1772, 1e-08
    %v1795 = vmax.f32 %v1779, 1e-08
    %v1812 = vlaneseq
    %v1813 = vand.u32 %v1812, 127
    %v1814 = vlaneseq
    %v1815 = vshrl.u32 %v1814, 7
    %v1816 = vsub.s32 %v1813, %v1815
    %v1817 = vrot.slane %v1622, %v1816
    %v1818 = vlaneseq
    %v1819 = vshrl.u32 %v1818, 7
    %v1820 = vsub.s32 %v1813, %v1819
    %v1821 = vrot.slane %v1625, %v1820
    %v1822 = vlaneseq
    %v1823 = vshrl.u32 %v1822, 7
    %v1824 = vsub.s32 %v1813, %v1823
    %v1825 = vrot.slane %v1628, %v1824
    %v1826 = vlaneseq
    %v1827 = vshrl.u32 %v1826, 7
    %v1828 = vsub.s32 %v1813, %v1827
    %v1829 = vrot.slane %v1631, %v1828
    %v1830 = vlaneseq
    %v1831 = vshrl.u32 %v1830, 7
    %v1832 = vsub.s32 %v1813, %v1831
    %v1833 = vrot.slane %v1634, %v1832
    %v1834 = vlaneseq
    %v1835 = vshrl.u32 %v1834, 7
    %v1836 = vsub.s32 %v1813, %v1835
    %v1837 = vrot.slane %v1637, %v1836
    %v1838 = vlaneseq
    %v1839 = vshrl.u32 %v1838, 7
    %v1840 = vsub.s32 %v1813, %v1839
    %v1841 = vrot.slane %v1640, %v1840
    %v1842 = vlaneseq
    %v1843 = vshrl.u32 %v1842, 7
    %v1844 = vsub.s32 %v1813, %v1843
    %v1845 = vrot.slane %v1643, %v1844
    %v1846 = vlaneseq
    %v1847 = vshrl.u32 %v1846, 7
    %v1848 = vsub.s32 %v1813, %v1847
    %v1849 = vrot.slane %v1646, %v1848
    %v1850 = vlaneseq
    %v1851 = vshrl.u32 %v1850, 7
    %v1852 = vsub.s32 %v1813, %v1851
    %v1853 = vrot.slane %v1649, %v1852
    %v1854 = vlaneseq
    %v1855 = vshrl.u32 %v1854, 7
    %v1856 = vsub.s32 %v1813, %v1855
    %v1857 = vrot.slane %v1652, %v1856
    %v1858 = vlaneseq
    %v1859 = vshrl.u32 %v1858, 7
    %v1860 = vsub.s32 %v1813, %v1859
    %v1861 = vrot.slane %v1655, %v1860
    %v1862 = vlaneseq
    %v1863 = vshrl.u32 %v1862, 7
    %v1864 = vsub.s32 %v1813, %v1863
    %v1865 = vrot.slane %v1658, %v1864
    %v1866 = vlaneseq
    %v1867 = vshrl.u32 %v1866, 7
    %v1868 = vsub.s32 %v1813, %v1867
    %v1869 = vrot.slane %v1661, %v1868
    %v1870 = vlaneseq
    %v1871 = vshrl.u32 %v1870, 7
    %v1872 = vsub.s32 %v1813, %v1871
    %v1873 = vrot.slane %v1664, %v1872
    %v1874 = vlaneseq
    %v1875 = vshrl.u32 %v1874, 7
    %v1876 = vsub.s32 %v1813, %v1875
    %v1877 = vrot.slane %v1667, %v1876
    %vm1878 = vcmask 1041409
    %vm1879 = vcmask 1042434
    %v1880 = vsel %vm1879, %v1817, %v1817
    %vm1881 = vcmask 1043459
    %v1882 = vsel %vm1881, %v1817, %v1880
    %vm1883 = vcmask 1044484
    %v1884 = vsel %vm1883, %v1817, %v1882
    %vm1885 = vcmask 1045509
    %v1886 = vsel %vm1885, %v1817, %v1884
    %v1887 = vsel %vm1879, %v1821, %v1821
    %v1888 = vsel %vm1881, %v1821, %v1887
    %v1889 = vsel %vm1883, %v1821, %v1888
    %v1890 = vsel %vm1885, %v1821, %v1889
    %v1891 = vsel %vm1879, %v1825, %v1825
    %v1892 = vsel %vm1881, %v1825, %v1891
    %v1893 = vsel %vm1883, %v1825, %v1892
    %v1894 = vsel %vm1885, %v1825, %v1893
    %v1895 = vsel %vm1879, %v1829, %v1829
    %v1896 = vsel %vm1881, %v1829, %v1895
    %v1897 = vsel %vm1883, %v1829, %v1896
    %v1898 = vsel %vm1885, %v1829, %v1897
    %v1899 = vsel %vm1879, %v1833, %v1833
    %v1900 = vsel %vm1881, %v1833, %v1899
    %v1901 = vsel %vm1883, %v1833, %v1900
    %v1902 = vsel %vm1885, %v1833, %v1901
    %v1903 = vsel %vm1879, %v1837, %v1837
    %v1904 = vsel %vm1881, %v1837, %v1903
    %v1905 = vsel %vm1883, %v1837, %v1904
    %v1906 = vsel %vm1885, %v1837, %v1905
    %v1907 = vsel %vm1879, %v1841, %v1841
    %v1908 = vsel %vm1881, %v1841, %v1907
    %v1909 = vsel %vm1883, %v1841, %v1908
    %v1910 = vsel %vm1885, %v1841, %v1909
    %v1911 = vsel %vm1879, %v1845, %v1845
    %v1912 = vsel %vm1881, %v1845, %v1911
    %v1913 = vsel %vm1883, %v1845, %v1912
    %v1914 = vsel %vm1885, %v1845, %v1913
    %v1915 = vsel %vm1879, %v1849, %v1849
    %v1916 = vsel %vm1881, %v1849, %v1915
    %v1917 = vsel %vm1883, %v1849, %v1916
    %v1918 = vsel %vm1885, %v1849, %v1917
    %v1919 = vsel %vm1879, %v1853, %v1853
    %v1920 = vsel %vm1881, %v1853, %v1919
    %v1921 = vsel %vm1883, %v1853, %v1920
    %v1922 = vsel %vm1885, %v1853, %v1921
    %v1923 = vsel %vm1879, %v1857, %v1857
    %v1924 = vsel %vm1881, %v1857, %v1923
    %v1925 = vsel %vm1883, %v1857, %v1924
    %v1926 = vsel %vm1885, %v1857, %v1925
    %v1927 = vsel %vm1879, %v1861, %v1861
    %v1928 = vsel %vm1881, %v1861, %v1927
    %v1929 = vsel %vm1883, %v1861, %v1928
    %v1930 = vsel %vm1885, %v1861, %v1929
    %v1931 = vsel %vm1879, %v1865, %v1865
    %v1932 = vsel %vm1881, %v1865, %v1931
    %v1933 = vsel %vm1883, %v1865, %v1932
    %v1934 = vsel %vm1885, %v1865, %v1933
    %v1935 = vsel %vm1879, %v1869, %v1869
    %v1936 = vsel %vm1881, %v1869, %v1935
    %v1937 = vsel %vm1883, %v1869, %v1936
    %v1938 = vsel %vm1885, %v1869, %v1937
    %v1939 = vsel %vm1879, %v1873, %v1873
    %v1940 = vsel %vm1881, %v1873, %v1939
    %v1941 = vsel %vm1883, %v1873, %v1940
    %v1942 = vsel %vm1885, %v1873, %v1941
    %v1943 = vsel %vm1879, %v1877, %v1877
    %v1944 = vsel %vm1881, %v1877, %v1943
    %v1945 = vsel %vm1883, %v1877, %v1944
    %v1946 = vsel %vm1885, %v1877, %v1945
    %v1963 = vadd.f32 %v1622, %v1886
    %v1964 = vadd.f32 %v1625, %v1890
    %v1965 = vadd.f32 %v1628, %v1894
    %v1966 = vadd.f32 %v1631, %v1898
    %v1967 = vadd.f32 %v1634, %v1902
    %v1968 = vadd.f32 %v1637, %v1906
    %v1969 = vadd.f32 %v1640, %v1910
    %v1970 = vadd.f32 %v1643, %v1914
    %v1971 = vadd.f32 %v1646, %v1918
    %v1972 = vadd.f32 %v1649, %v1922
    %v1973 = vadd.f32 %v1652, %v1926
    %v1974 = vadd.f32 %v1655, %v1930
    %v1975 = vadd.f32 %v1658, %v1934
    %v1976 = vadd.f32 %v1661, %v1938
    %v1977 = vadd.f32 %v1664, %v1942
    %v1978 = vadd.f32 %v1667, %v1946
    %v1979 = vmul.f32 %v505, 2.0
    %v1980 = vmul.f32 %v578, 2.0
    %v1981 = vmul.f32 %v651, 2.0
    %v1982 = vmul.f32 %v724, 2.0
    %v1983 = vmul.f32 %v797, 2.0
    %v1984 = vmul.f32 %v870, 2.0
    %v1985 = vmul.f32 %v943, 2.0
    %v1986 = vmul.f32 %v1016, 2.0
    %v1987 = vmul.f32 %v1089, 2.0
    %v1988 = vmul.f32 %v1162, 2.0
    %v1989 = vmul.f32 %v1235, 2.0
    %v1990 = vmul.f32 %v1308, 2.0
    %v1991 = vmul.f32 %v1381, 2.0
    %v1992 = vmul.f32 %v1454, 2.0
    %v1993 = vmul.f32 %v1527, 2.0
    %v1994 = vmul.f32 %v1600, 2.0
    %v1995 = vsub.f32 %v1963, %v1979
    %v1996 = vsub.f32 %v1964, %v1980
    %v1997 = vsub.f32 %v1965, %v1981
    %v1998 = vsub.f32 %v1966, %v1982
    %v1999 = vsub.f32 %v1967, %v1983
    %v2000 = vsub.f32 %v1968, %v1984
    %v2001 = vsub.f32 %v1969, %v1985
    %v2002 = vsub.f32 %v1970, %v1986
    %v2003 = vsub.f32 %v1971, %v1987
    %v2004 = vsub.f32 %v1972, %v1988
    %v2005 = vsub.f32 %v1973, %v1989
    %v2006 = vsub.f32 %v1974, %v1990
    %v2007 = vsub.f32 %v1975, %v1991
    %v2008 = vsub.f32 %v1976, %v1992
    %v2009 = vsub.f32 %v1977, %v1993
    %v2010 = vsub.f32 %v1978, %v1994
    %v2011 = vlaneseq
    %v2012 = vshrl.u32 %v2011, 7
    %vm2013 = vcmp.eq.s32.totalorder %v2012, %v1813
    %v2014 = vmax.f32 %v1995, 0.0
    %v2015 = vmax.f32 %v1996, 0.0
    %v2016 = vmax.f32 %v1997, 0.0
    %v2017 = vmax.f32 %v1998, 0.0
    %v2018 = vmax.f32 %v1999, 0.0
    %v2019 = vmax.f32 %v2000, 0.0
    %v2020 = vmax.f32 %v2001, 0.0
    %v2021 = vmax.f32 %v2002, 0.0
    %v2022 = vmax.f32 %v2003, 0.0
    %v2023 = vmax.f32 %v2004, 0.0
    %v2024 = vmax.f32 %v2005, 0.0
    %v2025 = vmax.f32 %v2006, 0.0
    %v2026 = vmax.f32 %v2007, 0.0
    %v2027 = vmax.f32 %v2008, 0.0
    %v2028 = vmax.f32 %v2009, 0.0
    %v2029 = vmax.f32 %v2010, 0.0
    %v2030 = vsel %vm2013, 1000000.0, %v2014
    %v2031 = vsel %vm2013, 1000000.0, %v2015
    %v2032 = vsel %vm2013, 1000000.0, %v2016
    %v2033 = vsel %vm2013, 1000000.0, %v2017
    %v2034 = vsel %vm2013, 1000000.0, %v2018
    %v2035 = vsel %vm2013, 1000000.0, %v2019
    %v2036 = vsel %vm2013, 1000000.0, %v2020
    %v2037 = vsel %vm2013, 1000000.0, %v2021
    %v2038 = vsel %vm2013, 1000000.0, %v2022
    %v2039 = vsel %vm2013, 1000000.0, %v2023
    %v2040 = vsel %vm2013, 1000000.0, %v2024
    %v2041 = vsel %vm2013, 1000000.0, %v2025
    %v2042 = vsel %vm2013, 1000000.0, %v2026
    %v2043 = vsel %vm2013, 1000000.0, %v2027
    %v2044 = vsel %vm2013, 1000000.0, %v2028
    %v2045 = vsel %vm2013, 1000000.0, %v2029
    %vm2046 = vcmask 46080
    %v2047 = vsel %vm2046, %v2030, inf
    %2048 = vmin.xlane.f32.xlu0 %v2047
    %v2049 = vpop.xlane.xlu0 %2048
    %v2050 = vsel %vm2046, %v2031, inf
    %2051 = vmin.xlane.f32.xlu0 %v2050
    %v2052 = vpop.xlane.xlu0 %2051
    %v2053 = vsel %vm2046, %v2032, inf
    %2054 = vmin.xlane.f32.xlu0 %v2053
    %v2055 = vpop.xlane.xlu0 %2054
    %v2056 = vsel %vm2046, %v2033, inf
    %2057 = vmin.xlane.f32.xlu0 %v2056
    %v2058 = vpop.xlane.xlu0 %2057
    %v2059 = vsel %vm2046, %v2034, inf
    %2060 = vmin.xlane.f32.xlu0 %v2059
    %v2061 = vpop.xlane.xlu0 %2060
    %v2062 = vsel %vm2046, %v2035, inf
    %2063 = vmin.xlane.f32.xlu0 %v2062
    %v2064 = vpop.xlane.xlu0 %2063
    %v2065 = vsel %vm2046, %v2036, inf
    %2066 = vmin.xlane.f32.xlu0 %v2065
    %v2067 = vpop.xlane.xlu0 %2066
    %v2068 = vsel %vm2046, %v2037, inf
    %2069 = vmin.xlane.f32.xlu0 %v2068
    %v2070 = vpop.xlane.xlu0 %2069
    %v2071 = vsel %vm2046, %v2038, inf
    %2072 = vmin.xlane.f32.xlu0 %v2071
    %v2073 = vpop.xlane.xlu0 %2072
    %v2074 = vsel %vm2046, %v2039, inf
    %2075 = vmin.xlane.f32.xlu0 %v2074
    %v2076 = vpop.xlane.xlu0 %2075
    %v2077 = vsel %vm2046, %v2040, inf
    %2078 = vmin.xlane.f32.xlu0 %v2077
    %v2079 = vpop.xlane.xlu0 %2078
    %v2080 = vsel %vm2046, %v2041, inf
    %2081 = vmin.xlane.f32.xlu0 %v2080
    %v2082 = vpop.xlane.xlu0 %2081
    %v2083 = vsel %vm2046, %v2042, inf
    %2084 = vmin.xlane.f32.xlu0 %v2083
    %v2085 = vpop.xlane.xlu0 %2084
    %v2086 = vsel %vm2046, %v2043, inf
    %2087 = vmin.xlane.f32.xlu0 %v2086
    %v2088 = vpop.xlane.xlu0 %2087
    %v2089 = vsel %vm2046, %v2044, inf
    %2090 = vmin.xlane.f32.xlu0 %v2089
    %v2091 = vpop.xlane.xlu0 %2090
    %v2092 = vsel %vm2046, %v2045, inf
    %2093 = vmin.xlane.f32.xlu0 %v2092
    %v2094 = vpop.xlane.xlu0 %2093
    %v2095 = vrsqrt.pop %v2049
    %v2096 = vmul.f32 %v2049, %v2095
    %vm2097 = vcmp.eq.f32.partialorder %v2049, inf
    %v2098 = vsel %vm2097, %v2049, %v2096
    %vm2099 = vcmp.eq.f32.partialorder %v2049, 0.0
    %v2100 = vand.u32 %v2049, 2147483648
    %v2101 = vsel %vm2099, %v2100, %v2098
    %v2102 = vrsqrt.pop %v2052
    %v2103 = vmul.f32 %v2052, %v2102
    %vm2104 = vcmp.eq.f32.partialorder %v2052, inf
    %v2105 = vsel %vm2104, %v2052, %v2103
    %vm2106 = vcmp.eq.f32.partialorder %v2052, 0.0
    %v2107 = vand.u32 %v2052, 2147483648
    %v2108 = vsel %vm2106, %v2107, %v2105
    %v2109 = vrsqrt.pop %v2055
    %v2110 = vmul.f32 %v2055, %v2109
    %vm2111 = vcmp.eq.f32.partialorder %v2055, inf
    %v2112 = vsel %vm2111, %v2055, %v2110
    %vm2113 = vcmp.eq.f32.partialorder %v2055, 0.0
    %v2114 = vand.u32 %v2055, 2147483648
    %v2115 = vsel %vm2113, %v2114, %v2112
    %v2116 = vrsqrt.pop %v2058
    %v2117 = vmul.f32 %v2058, %v2116
    %vm2118 = vcmp.eq.f32.partialorder %v2058, inf
    %v2119 = vsel %vm2118, %v2058, %v2117
    %vm2120 = vcmp.eq.f32.partialorder %v2058, 0.0
    %v2121 = vand.u32 %v2058, 2147483648
    %v2122 = vsel %vm2120, %v2121, %v2119
    %v2123 = vrsqrt.pop %v2061
    %v2124 = vmul.f32 %v2061, %v2123
    %vm2125 = vcmp.eq.f32.partialorder %v2061, inf
    %v2126 = vsel %vm2125, %v2061, %v2124
    %vm2127 = vcmp.eq.f32.partialorder %v2061, 0.0
    %v2128 = vand.u32 %v2061, 2147483648
    %v2129 = vsel %vm2127, %v2128, %v2126
    %v2130 = vrsqrt.pop %v2064
    %v2131 = vmul.f32 %v2064, %v2130
    %vm2132 = vcmp.eq.f32.partialorder %v2064, inf
    %v2133 = vsel %vm2132, %v2064, %v2131
    %vm2134 = vcmp.eq.f32.partialorder %v2064, 0.0
    %v2135 = vand.u32 %v2064, 2147483648
    %v2136 = vsel %vm2134, %v2135, %v2133
    %v2137 = vrsqrt.pop %v2067
    %v2138 = vmul.f32 %v2067, %v2137
    %vm2139 = vcmp.eq.f32.partialorder %v2067, inf
    %v2140 = vsel %vm2139, %v2067, %v2138
    %vm2141 = vcmp.eq.f32.partialorder %v2067, 0.0
    %v2142 = vand.u32 %v2067, 2147483648
    %v2143 = vsel %vm2141, %v2142, %v2140
    %v2144 = vrsqrt.pop %v2070
    %v2145 = vmul.f32 %v2070, %v2144
    %vm2146 = vcmp.eq.f32.partialorder %v2070, inf
    %v2147 = vsel %vm2146, %v2070, %v2145
    %vm2148 = vcmp.eq.f32.partialorder %v2070, 0.0
    %v2149 = vand.u32 %v2070, 2147483648
    %v2150 = vsel %vm2148, %v2149, %v2147
    %v2151 = vrsqrt.pop %v2073
    %v2152 = vmul.f32 %v2073, %v2151
    %vm2153 = vcmp.eq.f32.partialorder %v2073, inf
    %v2154 = vsel %vm2153, %v2073, %v2152
    %vm2155 = vcmp.eq.f32.partialorder %v2073, 0.0
    %v2156 = vand.u32 %v2073, 2147483648
    %v2157 = vsel %vm2155, %v2156, %v2154
    %v2158 = vrsqrt.pop %v2076
    %v2159 = vmul.f32 %v2076, %v2158
    %vm2160 = vcmp.eq.f32.partialorder %v2076, inf
    %v2161 = vsel %vm2160, %v2076, %v2159
    %vm2162 = vcmp.eq.f32.partialorder %v2076, 0.0
    %v2163 = vand.u32 %v2076, 2147483648
    %v2164 = vsel %vm2162, %v2163, %v2161
    %v2165 = vrsqrt.pop %v2079
    %v2166 = vmul.f32 %v2079, %v2165
    %vm2167 = vcmp.eq.f32.partialorder %v2079, inf
    %v2168 = vsel %vm2167, %v2079, %v2166
    %vm2169 = vcmp.eq.f32.partialorder %v2079, 0.0
    %v2170 = vand.u32 %v2079, 2147483648
    %v2171 = vsel %vm2169, %v2170, %v2168
    %v2172 = vrsqrt.pop %v2082
    %v2173 = vmul.f32 %v2082, %v2172
    %vm2174 = vcmp.eq.f32.partialorder %v2082, inf
    %v2175 = vsel %vm2174, %v2082, %v2173
    %vm2176 = vcmp.eq.f32.partialorder %v2082, 0.0
    %v2177 = vand.u32 %v2082, 2147483648
    %v2178 = vsel %vm2176, %v2177, %v2175
    %v2179 = vrsqrt.pop %v2085
    %v2180 = vmul.f32 %v2085, %v2179
    %vm2181 = vcmp.eq.f32.partialorder %v2085, inf
    %v2182 = vsel %vm2181, %v2085, %v2180
    %vm2183 = vcmp.eq.f32.partialorder %v2085, 0.0
    %v2184 = vand.u32 %v2085, 2147483648
    %v2185 = vsel %vm2183, %v2184, %v2182
    %v2186 = vrsqrt.pop %v2088
    %v2187 = vmul.f32 %v2088, %v2186
    %vm2188 = vcmp.eq.f32.partialorder %v2088, inf
    %v2189 = vsel %vm2188, %v2088, %v2187
    %vm2190 = vcmp.eq.f32.partialorder %v2088, 0.0
    %v2191 = vand.u32 %v2088, 2147483648
    %v2192 = vsel %vm2190, %v2191, %v2189
    %v2193 = vrsqrt.pop %v2091
    %v2194 = vmul.f32 %v2091, %v2193
    %vm2195 = vcmp.eq.f32.partialorder %v2091, inf
    %v2196 = vsel %vm2195, %v2091, %v2194
    %vm2197 = vcmp.eq.f32.partialorder %v2091, 0.0
    %v2198 = vand.u32 %v2091, 2147483648
    %v2199 = vsel %vm2197, %v2198, %v2196
    %v2200 = vrsqrt.pop %v2094
    %v2201 = vmul.f32 %v2094, %v2200
    %vm2202 = vcmp.eq.f32.partialorder %v2094, inf
    %v2203 = vsel %vm2202, %v2094, %v2201
    %vm2204 = vcmp.eq.f32.partialorder %v2094, 0.0
    %v2205 = vand.u32 %v2094, 2147483648
    %v2206 = vsel %vm2204, %v2205, %v2203
    %v2207 = vlaneseq
    %v2208 = vshrl.u32 %v2207, 7
    %v2209 = vsub.s32 0, %v2208
    %v2210 = vrot.slane %v1780, %v2209
    %v2211 = vlaneseq
    %v2212 = vshrl.u32 %v2211, 7
    %v2213 = vsub.s32 0, %v2212
    %v2214 = vrot.slane %v1781, %v2213
    %v2215 = vlaneseq
    %v2216 = vshrl.u32 %v2215, 7
    %v2217 = vsub.s32 0, %v2216
    %v2218 = vrot.slane %v1782, %v2217
    %v2219 = vlaneseq
    %v2220 = vshrl.u32 %v2219, 7
    %v2221 = vsub.s32 0, %v2220
    %v2222 = vrot.slane %v1783, %v2221
    %v2223 = vlaneseq
    %v2224 = vshrl.u32 %v2223, 7
    %v2225 = vsub.s32 0, %v2224
    %v2226 = vrot.slane %v1784, %v2225
    %v2227 = vlaneseq
    %v2228 = vshrl.u32 %v2227, 7
    %v2229 = vsub.s32 0, %v2228
    %v2230 = vrot.slane %v1785, %v2229
    %v2231 = vlaneseq
    %v2232 = vshrl.u32 %v2231, 7
    %v2233 = vsub.s32 0, %v2232
    %v2234 = vrot.slane %v1786, %v2233
    %v2235 = vlaneseq
    %v2236 = vshrl.u32 %v2235, 7
    %v2237 = vsub.s32 0, %v2236
    %v2238 = vrot.slane %v1787, %v2237
    %v2239 = vlaneseq
    %v2240 = vshrl.u32 %v2239, 7
    %v2241 = vsub.s32 0, %v2240
    %v2242 = vrot.slane %v1788, %v2241
    %v2243 = vlaneseq
    %v2244 = vshrl.u32 %v2243, 7
    %v2245 = vsub.s32 0, %v2244
    %v2246 = vrot.slane %v1789, %v2245
    %v2247 = vlaneseq
    %v2248 = vshrl.u32 %v2247, 7
    %v2249 = vsub.s32 0, %v2248
    %v2250 = vrot.slane %v1790, %v2249
    %v2251 = vlaneseq
    %v2252 = vshrl.u32 %v2251, 7
    %v2253 = vsub.s32 0, %v2252
    %v2254 = vrot.slane %v1791, %v2253
    %v2255 = vlaneseq
    %v2256 = vshrl.u32 %v2255, 7
    %v2257 = vsub.s32 0, %v2256
    %v2258 = vrot.slane %v1792, %v2257
    %v2259 = vlaneseq
    %v2260 = vshrl.u32 %v2259, 7
    %v2261 = vsub.s32 0, %v2260
    %v2262 = vrot.slane %v1793, %v2261
    %v2263 = vlaneseq
    %v2264 = vshrl.u32 %v2263, 7
    %v2265 = vsub.s32 0, %v2264
    %v2266 = vrot.slane %v1794, %v2265
    %v2267 = vlaneseq
    %v2268 = vshrl.u32 %v2267, 7
    %v2269 = vsub.s32 0, %v2268
    %v2270 = vrot.slane %v1795, %v2269
    %v2271 = vmul.f32 %v2210, %v1780
    %v2272 = vmul.f32 %v2214, %v1781
    %v2273 = vmul.f32 %v2218, %v1782
    %v2274 = vmul.f32 %v2222, %v1783
    %v2275 = vmul.f32 %v2226, %v1784
    %v2276 = vmul.f32 %v2230, %v1785
    %v2277 = vmul.f32 %v2234, %v1786
    %v2278 = vmul.f32 %v2238, %v1787
    %v2279 = vmul.f32 %v2242, %v1788
    %v2280 = vmul.f32 %v2246, %v1789
    %v2281 = vmul.f32 %v2250, %v1790
    %v2282 = vmul.f32 %v2254, %v1791
    %v2283 = vmul.f32 %v2258, %v1792
    %v2284 = vmul.f32 %v2262, %v1793
    %v2285 = vmul.f32 %v2266, %v1794
    %v2286 = vmul.f32 %v2270, %v1795
    %v2303 = vlaneseq
    %v2304 = vshrl.u32 %v2303, 7
    %v2305 = vsub.s32 %v1813, %v2304
    %v2306 = vrot.slane %v2271, %v2305
    %v2307 = vlaneseq
    %v2308 = vshrl.u32 %v2307, 7
    %v2309 = vsub.s32 %v1813, %v2308
    %v2310 = vrot.slane %v2272, %v2309
    %v2311 = vlaneseq
    %v2312 = vshrl.u32 %v2311, 7
    %v2313 = vsub.s32 %v1813, %v2312
    %v2314 = vrot.slane %v2273, %v2313
    %v2315 = vlaneseq
    %v2316 = vshrl.u32 %v2315, 7
    %v2317 = vsub.s32 %v1813, %v2316
    %v2318 = vrot.slane %v2274, %v2317
    %v2319 = vlaneseq
    %v2320 = vshrl.u32 %v2319, 7
    %v2321 = vsub.s32 %v1813, %v2320
    %v2322 = vrot.slane %v2275, %v2321
    %v2323 = vlaneseq
    %v2324 = vshrl.u32 %v2323, 7
    %v2325 = vsub.s32 %v1813, %v2324
    %v2326 = vrot.slane %v2276, %v2325
    %v2327 = vlaneseq
    %v2328 = vshrl.u32 %v2327, 7
    %v2329 = vsub.s32 %v1813, %v2328
    %v2330 = vrot.slane %v2277, %v2329
    %v2331 = vlaneseq
    %v2332 = vshrl.u32 %v2331, 7
    %v2333 = vsub.s32 %v1813, %v2332
    %v2334 = vrot.slane %v2278, %v2333
    %v2335 = vlaneseq
    %v2336 = vshrl.u32 %v2335, 7
    %v2337 = vsub.s32 %v1813, %v2336
    %v2338 = vrot.slane %v2279, %v2337
    %v2339 = vlaneseq
    %v2340 = vshrl.u32 %v2339, 7
    %v2341 = vsub.s32 %v1813, %v2340
    %v2342 = vrot.slane %v2280, %v2341
    %v2343 = vlaneseq
    %v2344 = vshrl.u32 %v2343, 7
    %v2345 = vsub.s32 %v1813, %v2344
    %v2346 = vrot.slane %v2281, %v2345
    %v2347 = vlaneseq
    %v2348 = vshrl.u32 %v2347, 7
    %v2349 = vsub.s32 %v1813, %v2348
    %v2350 = vrot.slane %v2282, %v2349
    %v2351 = vlaneseq
    %v2352 = vshrl.u32 %v2351, 7
    %v2353 = vsub.s32 %v1813, %v2352
    %v2354 = vrot.slane %v2283, %v2353
    %v2355 = vlaneseq
    %v2356 = vshrl.u32 %v2355, 7
    %v2357 = vsub.s32 %v1813, %v2356
    %v2358 = vrot.slane %v2284, %v2357
    %v2359 = vlaneseq
    %v2360 = vshrl.u32 %v2359, 7
    %v2361 = vsub.s32 %v1813, %v2360
    %v2362 = vrot.slane %v2285, %v2361
    %v2363 = vlaneseq
    %v2364 = vshrl.u32 %v2363, 7
    %v2365 = vsub.s32 %v1813, %v2364
    %v2366 = vrot.slane %v2286, %v2365
    %v2383 = vrcp.pop %v2306
    %v2384 = vmul.f32 %v505, %v2383
    %v2385 = vrcp.pop %v2310
    %v2386 = vmul.f32 %v578, %v2385
    %v2387 = vrcp.pop %v2314
    %v2388 = vmul.f32 %v651, %v2387
    %v2389 = vrcp.pop %v2318
    %v2390 = vmul.f32 %v724, %v2389
    %v2391 = vrcp.pop %v2322
    %v2392 = vmul.f32 %v797, %v2391
    %v2393 = vrcp.pop %v2326
    %v2394 = vmul.f32 %v870, %v2393
    %v2395 = vrcp.pop %v2330
    %v2396 = vmul.f32 %v943, %v2395
    %v2397 = vrcp.pop %v2334
    %v2398 = vmul.f32 %v1016, %v2397
    %v2399 = vrcp.pop %v2338
    %v2400 = vmul.f32 %v1089, %v2399
    %v2401 = vrcp.pop %v2342
    %v2402 = vmul.f32 %v1162, %v2401
    %v2403 = vrcp.pop %v2346
    %v2404 = vmul.f32 %v1235, %v2403
    %v2405 = vrcp.pop %v2350
    %v2406 = vmul.f32 %v1308, %v2405
    %v2407 = vrcp.pop %v2354
    %v2408 = vmul.f32 %v1381, %v2407
    %v2409 = vrcp.pop %v2358
    %v2410 = vmul.f32 %v1454, %v2409
    %v2411 = vrcp.pop %v2362
    %v2412 = vmul.f32 %v1527, %v2411
    %v2413 = vrcp.pop %v2366
    %v2414 = vmul.f32 %v1600, %v2413
    %vm2415 = vcmp.eq.s32.totalorder %v1813, 0
    %v2432 = vrot.slane %v2386, 7
    %v2433 = vsel %vm1878, %v2432, %v2384
    %v2434 = vrot.slane %v2388, 6
    %v2435 = vsel %vm1879, %v2434, %v2433
    %v2436 = vrot.slane %v2390, 5
    %v2437 = vsel %vm1881, %v2436, %v2435
    %v2438 = vrot.slane %v2392, 4
    %v2439 = vsel %vm1883, %v2438, %v2437
    %v2440 = vrot.slane %v2394, 3
    %v2441 = vsel %vm1885, %v2440, %v2439
    %v2442 = vrot.slane %v2396, 2
    %vm2443 = vcmask 1046534
    %v2444 = vsel %vm2443, %v2442, %v2441
    %v2445 = vrot.slane %v2398, 1
    %vm2446 = vcmask 1047559
    %v2447 = vsel %vm2446, %v2445, %v2444
    %v2448 = vrot.slane %v2402, 7
    %v2449 = vsel %vm1878, %v2448, %v2400
    %v2450 = vrot.slane %v2404, 6
    %v2451 = vsel %vm1879, %v2450, %v2449
    %v2452 = vrot.slane %v2406, 5
    %v2453 = vsel %vm1881, %v2452, %v2451
    %v2454 = vrot.slane %v2408, 4
    %v2455 = vsel %vm1883, %v2454, %v2453
    %v2456 = vrot.slane %v2410, 3
    %v2457 = vsel %vm1885, %v2456, %v2455
    %v2458 = vrot.slane %v2412, 2
    %v2459 = vsel %vm2443, %v2458, %v2457
    %v2460 = vrot.slane %v2414, 1
    %v2461 = vsel %vm2446, %v2460, %v2459
    %v2464 = vsel %vm2415, 0.0, %v2447
    %v2465 = vsel %vm2415, 0.0, %v2461
    %v2466 = vmul.f32 %v430, %v430
    %v2467 = vmul.f32 %v431, %v431
    %v2468 = vsel %vm434, %v2466, 0.0
    %2469 = vadd.xlane.f32.xlu0 %v2468
    %v2470 = vpop.xlane.xlu0 %2469
    %v2471 = vsel %vm434, %v2467, 0.0
    %2472 = vadd.xlane.f32.xlu0 %v2471
    %v2473 = vpop.xlane.xlu0 %2472
    %v2474 = vrsqrt.pop %v2470
    %v2475 = vmul.f32 %v2470, %v2474
    %vm2476 = vcmp.eq.f32.partialorder %v2470, inf
    %v2477 = vsel %vm2476, %v2470, %v2475
    %vm2478 = vcmp.eq.f32.partialorder %v2470, 0.0
    %v2479 = vand.u32 %v2470, 2147483648
    %v2480 = vsel %vm2478, %v2479, %v2477
    %v2481 = vrsqrt.pop %v2473
    %v2482 = vmul.f32 %v2473, %v2481
    %vm2483 = vcmp.eq.f32.partialorder %v2473, inf
    %v2484 = vsel %vm2483, %v2473, %v2482
    %vm2485 = vcmp.eq.f32.partialorder %v2473, 0.0
    %v2486 = vand.u32 %v2473, 2147483648
    %v2487 = vsel %vm2485, %v2486, %v2484
    %v2488 = vmax.f32 %v2480, 1e-08
    %v2489 = vmax.f32 %v2487, 1e-08
    %v2492 = vcombine.high %v430, %v430
    %v2494 = vunpack.c.l.s4 1966171168
    %v2495 = vunpack.c.0.s8 %v2494
    %v2496 = vlaneseq
    %v2497 = vshrl.u32 %v2496, 7
    %v2498 = vsub.s32 %v2495, %v2497
    %v2499 = vrot.slane %v430, %v2498
    %v2501 = vunpack.c.l.s4 1966171168
    %v2502 = vunpack.c.0.s8 %v2501
    %v2503 = vlaneseq
    %v2504 = vshrl.u32 %v2503, 7
    %v2505 = vsub.s32 %v2502, %v2504
    %v2506 = vrot.slane %v2492, %v2505
    %v2507 = vcombine.high %v2499, %v2499
    %v2508 = vcombine.high %v2506, %v2506
    %v2510 = vunpack.c.l.s4 1966171168
    %v2511 = vunpack.c.0.s8 %v2510
    %v2512 = vlaneseq
    %v2513 = vshrl.u32 %v2512, 7
    %v2514 = vsub.s32 %v2511, %v2513
    %v2515 = vrot.slane %v2499, %v2514
    %v2517 = vunpack.c.l.s4 1966171168
    %v2518 = vunpack.c.0.s8 %v2517
    %v2519 = vlaneseq
    %v2520 = vshrl.u32 %v2519, 7
    %v2521 = vsub.s32 %v2518, %v2520
    %v2522 = vrot.slane %v2506, %v2521
    %v2524 = vunpack.c.l.s4 1966171168
    %v2525 = vunpack.c.0.s8 %v2524
    %v2526 = vlaneseq
    %v2527 = vshrl.u32 %v2526, 7
    %v2528 = vsub.s32 %v2525, %v2527
    %v2529 = vrot.slane %v2507, %v2528
    %v2531 = vunpack.c.l.s4 1966171168
    %v2532 = vunpack.c.0.s8 %v2531
    %v2533 = vlaneseq
    %v2534 = vshrl.u32 %v2533, 7
    %v2535 = vsub.s32 %v2532, %v2534
    %v2536 = vrot.slane %v2508, %v2535
    %v2537 = vcombine.high %v2515, %v2515
    %v2538 = vcombine.high %v2522, %v2522
    %v2539 = vcombine.high %v2529, %v2529
    %v2540 = vcombine.high %v2536, %v2536
    %v2541 = vcombine.high %v431, %v431
    %v2543 = vunpack.c.l.s4 1966171168
    %v2544 = vunpack.c.0.s8 %v2543
    %v2545 = vlaneseq
    %v2546 = vshrl.u32 %v2545, 7
    %v2547 = vsub.s32 %v2544, %v2546
    %v2548 = vrot.slane %v431, %v2547
    %v2550 = vunpack.c.l.s4 1966171168
    %v2551 = vunpack.c.0.s8 %v2550
    %v2552 = vlaneseq
    %v2553 = vshrl.u32 %v2552, 7
    %v2554 = vsub.s32 %v2551, %v2553
    %v2555 = vrot.slane %v2541, %v2554
    %v2556 = vcombine.high %v2548, %v2548
    %v2557 = vcombine.high %v2555, %v2555
    %v2559 = vunpack.c.l.s4 1966171168
    %v2560 = vunpack.c.0.s8 %v2559
    %v2561 = vlaneseq
    %v2562 = vshrl.u32 %v2561, 7
    %v2563 = vsub.s32 %v2560, %v2562
    %v2564 = vrot.slane %v2548, %v2563
    %v2566 = vunpack.c.l.s4 1966171168
    %v2567 = vunpack.c.0.s8 %v2566
    %v2568 = vlaneseq
    %v2569 = vshrl.u32 %v2568, 7
    %v2570 = vsub.s32 %v2567, %v2569
    %v2571 = vrot.slane %v2555, %v2570
    %v2573 = vunpack.c.l.s4 1966171168
    %v2574 = vunpack.c.0.s8 %v2573
    %v2575 = vlaneseq
    %v2576 = vshrl.u32 %v2575, 7
    %v2577 = vsub.s32 %v2574, %v2576
    %v2578 = vrot.slane %v2556, %v2577
    %v2580 = vunpack.c.l.s4 1966171168
    %v2581 = vunpack.c.0.s8 %v2580
    %v2582 = vlaneseq
    %v2583 = vshrl.u32 %v2582, 7
    %v2584 = vsub.s32 %v2581, %v2583
    %v2585 = vrot.slane %v2557, %v2584
    %v2586 = vcombine.high %v2564, %v2564
    %v2587 = vcombine.high %v2571, %v2571
    %v2588 = vcombine.high %v2578, %v2578
    %v2589 = vcombine.high %v2585, %v2585
    %v2590 = vlaneseq
    %v2591 = vshrl.u32 %v2590, 7
    %v2592 = vsub.s32 0, %v2591
    %v2593 = vrot.slane %v2515, %v2592
    %v2594 = vlaneseq
    %v2595 = vshrl.u32 %v2594, 7
    %v2596 = vsub.s32 0, %v2595
    %v2597 = vrot.slane %v2529, %v2596
    %v2598 = vlaneseq
    %v2599 = vshrl.u32 %v2598, 7
    %v2600 = vsub.s32 0, %v2599
    %v2601 = vrot.slane %v2537, %v2600
    %v2602 = vlaneseq
    %v2603 = vshrl.u32 %v2602, 7
    %v2604 = vsub.s32 0, %v2603
    %v2605 = vrot.slane %v2539, %v2604
    %v2606 = vlaneseq
    %v2607 = vshrl.u32 %v2606, 7
    %v2608 = vsub.s32 0, %v2607
    %v2609 = vrot.slane %v2522, %v2608
    %v2610 = vlaneseq
    %v2611 = vshrl.u32 %v2610, 7
    %v2612 = vsub.s32 0, %v2611
    %v2613 = vrot.slane %v2536, %v2612
    %v2614 = vlaneseq
    %v2615 = vshrl.u32 %v2614, 7
    %v2616 = vsub.s32 0, %v2615
    %v2617 = vrot.slane %v2538, %v2616
    %v2618 = vlaneseq
    %v2619 = vshrl.u32 %v2618, 7
    %v2620 = vsub.s32 0, %v2619
    %v2621 = vrot.slane %v2540, %v2620
    %v2622 = vlaneseq
    %v2623 = vshrl.u32 %v2622, 7
    %v2624 = vsub.s32 0, %v2623
    %v2625 = vrot.slane %v2564, %v2624
    %v2626 = vlaneseq
    %v2627 = vshrl.u32 %v2626, 7
    %v2628 = vsub.s32 0, %v2627
    %v2629 = vrot.slane %v2578, %v2628
    %v2630 = vlaneseq
    %v2631 = vshrl.u32 %v2630, 7
    %v2632 = vsub.s32 0, %v2631
    %v2633 = vrot.slane %v2586, %v2632
    %v2634 = vlaneseq
    %v2635 = vshrl.u32 %v2634, 7
    %v2636 = vsub.s32 0, %v2635
    %v2637 = vrot.slane %v2588, %v2636
    %v2638 = vlaneseq
    %v2639 = vshrl.u32 %v2638, 7
    %v2640 = vsub.s32 0, %v2639
    %v2641 = vrot.slane %v2571, %v2640
    %v2642 = vlaneseq
    %v2643 = vshrl.u32 %v2642, 7
    %v2644 = vsub.s32 0, %v2643
    %v2645 = vrot.slane %v2585, %v2644
    %v2646 = vlaneseq
    %v2647 = vshrl.u32 %v2646, 7
    %v2648 = vsub.s32 0, %v2647
    %v2649 = vrot.slane %v2587, %v2648
    %v2650 = vlaneseq
    %v2651 = vshrl.u32 %v2650, 7
    %v2652 = vsub.s32 0, %v2651
    %v2653 = vrot.slane %v2589, %v2652
    %v2670 = vmul.f32 %v2593, %v414
    %v2671 = vmul.f32 %v2597, %v415
    %v2672 = vmul.f32 %v2601, %v416
    %v2673 = vmul.f32 %v2605, %v417
    %v2674 = vmul.f32 %v2609, %v418
    %v2675 = vmul.f32 %v2613, %v419
    %v2676 = vmul.f32 %v2617, %v420
    %v2677 = vmul.f32 %v2621, %v421
    %v2678 = vmul.f32 %v2625, %v422
    %v2679 = vmul.f32 %v2629, %v423
    %v2680 = vmul.f32 %v2633, %v424
    %v2681 = vmul.f32 %v2637, %v425
    %v2682 = vmul.f32 %v2641, %v426
    %v2683 = vmul.f32 %v2645, %v427
    %v2684 = vmul.f32 %v2649, %v428
    %v2685 = vmul.f32 %v2653, %v429
    %v2686 = vsel %vm1619, %v2670, 0.0
    %2687 = vadd.xlane.f32.xlu0 %v2686
    %v2688 = vpop.xlane.xlu0 %2687
    %v2689 = vsel %vm1619, %v2671, 0.0
    %2690 = vadd.xlane.f32.xlu0 %v2689
    %v2691 = vpop.xlane.xlu0 %2690
    %v2692 = vsel %vm1619, %v2672, 0.0
    %2693 = vadd.xlane.f32.xlu0 %v2692
    %v2694 = vpop.xlane.xlu0 %2693
    %v2695 = vsel %vm1619, %v2673, 0.0
    %2696 = vadd.xlane.f32.xlu0 %v2695
    %v2697 = vpop.xlane.xlu0 %2696
    %v2698 = vsel %vm1619, %v2674, 0.0
    %2699 = vadd.xlane.f32.xlu0 %v2698
    %v2700 = vpop.xlane.xlu0 %2699
    %v2701 = vsel %vm1619, %v2675, 0.0
    %2702 = vadd.xlane.f32.xlu0 %v2701
    %v2703 = vpop.xlane.xlu0 %2702
    %v2704 = vsel %vm1619, %v2676, 0.0
    %2705 = vadd.xlane.f32.xlu0 %v2704
    %v2706 = vpop.xlane.xlu0 %2705
    %v2707 = vsel %vm1619, %v2677, 0.0
    %2708 = vadd.xlane.f32.xlu0 %v2707
    %v2709 = vpop.xlane.xlu0 %2708
    %v2710 = vsel %vm1619, %v2678, 0.0
    %2711 = vadd.xlane.f32.xlu0 %v2710
    %v2712 = vpop.xlane.xlu0 %2711
    %v2713 = vsel %vm1619, %v2679, 0.0
    %2714 = vadd.xlane.f32.xlu0 %v2713
    %v2715 = vpop.xlane.xlu0 %2714
    %v2716 = vsel %vm1619, %v2680, 0.0
    %2717 = vadd.xlane.f32.xlu0 %v2716
    %v2718 = vpop.xlane.xlu0 %2717
    %v2719 = vsel %vm1619, %v2681, 0.0
    %2720 = vadd.xlane.f32.xlu0 %v2719
    %v2721 = vpop.xlane.xlu0 %2720
    %v2722 = vsel %vm1619, %v2682, 0.0
    %2723 = vadd.xlane.f32.xlu0 %v2722
    %v2724 = vpop.xlane.xlu0 %2723
    %v2725 = vsel %vm1619, %v2683, 0.0
    %2726 = vadd.xlane.f32.xlu0 %v2725
    %v2727 = vpop.xlane.xlu0 %2726
    %v2728 = vsel %vm1619, %v2684, 0.0
    %2729 = vadd.xlane.f32.xlu0 %v2728
    %v2730 = vpop.xlane.xlu0 %2729
    %v2731 = vsel %vm1619, %v2685, 0.0
    %2732 = vadd.xlane.f32.xlu0 %v2731
    %v2733 = vpop.xlane.xlu0 %2732
    %v2750 = vlaneseq
    %v2751 = vshrl.u32 %v2750, 7
    %v2752 = vsub.s32 %v1813, %v2751
    %v2753 = vrot.slane %v1780, %v2752
    %v2754 = vlaneseq
    %v2755 = vshrl.u32 %v2754, 7
    %v2756 = vsub.s32 %v1813, %v2755
    %v2757 = vrot.slane %v1781, %v2756
    %v2758 = vlaneseq
    %v2759 = vshrl.u32 %v2758, 7
    %v2760 = vsub.s32 %v1813, %v2759
    %v2761 = vrot.slane %v1782, %v2760
    %v2762 = vlaneseq
    %v2763 = vshrl.u32 %v2762, 7
    %v2764 = vsub.s32 %v1813, %v2763
    %v2765 = vrot.slane %v1783, %v2764
    %v2766 = vlaneseq
    %v2767 = vshrl.u32 %v2766, 7
    %v2768 = vsub.s32 %v1813, %v2767
    %v2769 = vrot.slane %v1784, %v2768
    %v2770 = vlaneseq
    %v2771 = vshrl.u32 %v2770, 7
    %v2772 = vsub.s32 %v1813, %v2771
    %v2773 = vrot.slane %v1785, %v2772
    %v2774 = vlaneseq
    %v2775 = vshrl.u32 %v2774, 7
    %v2776 = vsub.s32 %v1813, %v2775
    %v2777 = vrot.slane %v1786, %v2776
    %v2778 = vlaneseq
    %v2779 = vshrl.u32 %v2778, 7
    %v2780 = vsub.s32 %v1813, %v2779
    %v2781 = vrot.slane %v1787, %v2780
    %v2782 = vlaneseq
    %v2783 = vshrl.u32 %v2782, 7
    %v2784 = vsub.s32 %v1813, %v2783
    %v2785 = vrot.slane %v1788, %v2784
    %v2786 = vlaneseq
    %v2787 = vshrl.u32 %v2786, 7
    %v2788 = vsub.s32 %v1813, %v2787
    %v2789 = vrot.slane %v1789, %v2788
    %v2790 = vlaneseq
    %v2791 = vshrl.u32 %v2790, 7
    %v2792 = vsub.s32 %v1813, %v2791
    %v2793 = vrot.slane %v1790, %v2792
    %v2794 = vlaneseq
    %v2795 = vshrl.u32 %v2794, 7
    %v2796 = vsub.s32 %v1813, %v2795
    %v2797 = vrot.slane %v1791, %v2796
    %v2798 = vlaneseq
    %v2799 = vshrl.u32 %v2798, 7
    %v2800 = vsub.s32 %v1813, %v2799
    %v2801 = vrot.slane %v1792, %v2800
    %v2802 = vlaneseq
    %v2803 = vshrl.u32 %v2802, 7
    %v2804 = vsub.s32 %v1813, %v2803
    %v2805 = vrot.slane %v1793, %v2804
    %v2806 = vlaneseq
    %v2807 = vshrl.u32 %v2806, 7
    %v2808 = vsub.s32 %v1813, %v2807
    %v2809 = vrot.slane %v1794, %v2808
    %v2810 = vlaneseq
    %v2811 = vshrl.u32 %v2810, 7
    %v2812 = vsub.s32 %v1813, %v2811
    %v2813 = vrot.slane %v1795, %v2812
    %v2814 = vsel %vm1878, %v2757, %v2753
    %v2815 = vsel %vm1879, %v2761, %v2814
    %v2816 = vsel %vm1881, %v2765, %v2815
    %v2817 = vsel %vm1883, %v2769, %v2816
    %v2818 = vsel %vm1885, %v2773, %v2817
    %v2819 = vsel %vm2443, %v2777, %v2818
    %v2820 = vsel %vm2446, %v2781, %v2819
    %v2821 = vsel %vm1878, %v2789, %v2785
    %v2822 = vsel %vm1879, %v2793, %v2821
    %v2823 = vsel %vm1881, %v2797, %v2822
    %v2824 = vsel %vm1883, %v2801, %v2823
    %v2825 = vsel %vm1885, %v2805, %v2824
    %v2826 = vsel %vm2443, %v2809, %v2825
    %v2827 = vsel %vm2446, %v2813, %v2826
    %v2830 = vmul.f32 %v2488, %v2820
    %v2831 = vmul.f32 %v2489, %v2827
    %v2834 = vlaneseq
    %v2835 = vshrl.u32 %v2834, 7
    %v2836 = vsub.s32 0, %v2835
    %v2837 = vrot.slane %v2830, %v2836
    %2839 = vbcast.lane.b32.xlu0 %v2837, 256
    %v2840 = vpop.permute.xlu0 %2839
    %v2841 = vlaneseq
    %v2842 = vshrl.u32 %v2841, 7
    %v2843 = vsub.s32 1, %v2842
    %v2844 = vrot.slane %v2830, %v2843
    %2846 = vbcast.lane.b32.xlu0 %v2844, 256
    %v2847 = vpop.permute.xlu0 %2846
    %v2848 = vlaneseq
    %v2849 = vshrl.u32 %v2848, 7
    %v2850 = vsub.s32 2, %v2849
    %v2851 = vrot.slane %v2830, %v2850
    %2853 = vbcast.lane.b32.xlu0 %v2851, 256
    %v2854 = vpop.permute.xlu0 %2853
    %v2855 = vlaneseq
    %v2856 = vshrl.u32 %v2855, 7
    %v2857 = vsub.s32 3, %v2856
    %v2858 = vrot.slane %v2830, %v2857
    %2860 = vbcast.lane.b32.xlu0 %v2858, 256
    %v2861 = vpop.permute.xlu0 %2860
    %v2862 = vlaneseq
    %v2863 = vshrl.u32 %v2862, 7
    %v2864 = vsub.s32 4, %v2863
    %v2865 = vrot.slane %v2830, %v2864
    %2867 = vbcast.lane.b32.xlu0 %v2865, 256
    %v2868 = vpop.permute.xlu0 %2867
    %v2869 = vlaneseq
    %v2870 = vshrl.u32 %v2869, 7
    %v2871 = vsub.s32 5, %v2870
    %v2872 = vrot.slane %v2830, %v2871
    %2874 = vbcast.lane.b32.xlu0 %v2872, 256
    %v2875 = vpop.permute.xlu0 %2874
    %v2876 = vlaneseq
    %v2877 = vshrl.u32 %v2876, 7
    %v2878 = vsub.s32 6, %v2877
    %v2879 = vrot.slane %v2830, %v2878
    %2881 = vbcast.lane.b32.xlu0 %v2879, 256
    %v2882 = vpop.permute.xlu0 %2881
    %v2883 = vlaneseq
    %v2884 = vshrl.u32 %v2883, 7
    %v2885 = vsub.s32 7, %v2884
    %v2886 = vrot.slane %v2830, %v2885
    %2888 = vbcast.lane.b32.xlu0 %v2886, 256
    %v2889 = vpop.permute.xlu0 %2888
    %v2890 = vlaneseq
    %v2891 = vshrl.u32 %v2890, 7
    %v2892 = vsub.s32 0, %v2891
    %v2893 = vrot.slane %v2831, %v2892
    %2895 = vbcast.lane.b32.xlu0 %v2893, 256
    %v2896 = vpop.permute.xlu0 %2895
    %v2897 = vlaneseq
    %v2898 = vshrl.u32 %v2897, 7
    %v2899 = vsub.s32 1, %v2898
    %v2900 = vrot.slane %v2831, %v2899
    %2902 = vbcast.lane.b32.xlu0 %v2900, 256
    %v2903 = vpop.permute.xlu0 %2902
    %v2904 = vlaneseq
    %v2905 = vshrl.u32 %v2904, 7
    %v2906 = vsub.s32 2, %v2905
    %v2907 = vrot.slane %v2831, %v2906
    %2909 = vbcast.lane.b32.xlu0 %v2907, 256
    %v2910 = vpop.permute.xlu0 %2909
    %v2911 = vlaneseq
    %v2912 = vshrl.u32 %v2911, 7
    %v2913 = vsub.s32 3, %v2912
    %v2914 = vrot.slane %v2831, %v2913
    %2916 = vbcast.lane.b32.xlu0 %v2914, 256
    %v2917 = vpop.permute.xlu0 %2916
    %v2918 = vlaneseq
    %v2919 = vshrl.u32 %v2918, 7
    %v2920 = vsub.s32 4, %v2919
    %v2921 = vrot.slane %v2831, %v2920
    %2923 = vbcast.lane.b32.xlu0 %v2921, 256
    %v2924 = vpop.permute.xlu0 %2923
    %v2925 = vlaneseq
    %v2926 = vshrl.u32 %v2925, 7
    %v2927 = vsub.s32 5, %v2926
    %v2928 = vrot.slane %v2831, %v2927
    %2930 = vbcast.lane.b32.xlu0 %v2928, 256
    %v2931 = vpop.permute.xlu0 %2930
    %v2932 = vlaneseq
    %v2933 = vshrl.u32 %v2932, 7
    %v2934 = vsub.s32 6, %v2933
    %v2935 = vrot.slane %v2831, %v2934
    %2937 = vbcast.lane.b32.xlu0 %v2935, 256
    %v2938 = vpop.permute.xlu0 %2937
    %v2939 = vlaneseq
    %v2940 = vshrl.u32 %v2939, 7
    %v2941 = vsub.s32 7, %v2940
    %v2942 = vrot.slane %v2831, %v2941
    %2944 = vbcast.lane.b32.xlu0 %v2942, 256
    %v2945 = vpop.permute.xlu0 %2944
    %v2962 = vrcp.pop %v2840
    %v2963 = vmul.f32 %v2688, %v2962
    %v2964 = vrcp.pop %v2847
    %v2965 = vmul.f32 %v2691, %v2964
    %v2966 = vrcp.pop %v2854
    %v2967 = vmul.f32 %v2694, %v2966
    %v2968 = vrcp.pop %v2861
    %v2969 = vmul.f32 %v2697, %v2968
    %v2970 = vrcp.pop %v2868
    %v2971 = vmul.f32 %v2700, %v2970
    %v2972 = vrcp.pop %v2875
    %v2973 = vmul.f32 %v2703, %v2972
    %v2974 = vrcp.pop %v2882
    %v2975 = vmul.f32 %v2706, %v2974
    %v2976 = vrcp.pop %v2889
    %v2977 = vmul.f32 %v2709, %v2976
    %v2978 = vrcp.pop %v2896
    %v2979 = vmul.f32 %v2712, %v2978
    %v2980 = vrcp.pop %v2903
    %v2981 = vmul.f32 %v2715, %v2980
    %v2982 = vrcp.pop %v2910
    %v2983 = vmul.f32 %v2718, %v2982
    %v2984 = vrcp.pop %v2917
    %v2985 = vmul.f32 %v2721, %v2984
    %v2986 = vrcp.pop %v2924
    %v2987 = vmul.f32 %v2724, %v2986
    %v2988 = vrcp.pop %v2931
    %v2989 = vmul.f32 %v2727, %v2988
    %v2990 = vrcp.pop %v2938
    %v2991 = vmul.f32 %v2730, %v2990
    %v2992 = vrcp.pop %v2945
    %v2993 = vmul.f32 %v2733, %v2992
    %v3010 = vlaneseq
    %v3011 = vshrl.u32 %v3010, 7
    %v3012 = vsub.s32 %v1813, %v3011
    %v3013 = vrot.slane %v2101, %v3012
    %v3014 = vlaneseq
    %v3015 = vshrl.u32 %v3014, 7
    %v3016 = vsub.s32 %v1813, %v3015
    %v3017 = vrot.slane %v2108, %v3016
    %v3018 = vlaneseq
    %v3019 = vshrl.u32 %v3018, 7
    %v3020 = vsub.s32 %v1813, %v3019
    %v3021 = vrot.slane %v2115, %v3020
    %v3022 = vlaneseq
    %v3023 = vshrl.u32 %v3022, 7
    %v3024 = vsub.s32 %v1813, %v3023
    %v3025 = vrot.slane %v2122, %v3024
    %v3026 = vlaneseq
    %v3027 = vshrl.u32 %v3026, 7
    %v3028 = vsub.s32 %v1813, %v3027
    %v3029 = vrot.slane %v2129, %v3028
    %v3030 = vlaneseq
    %v3031 = vshrl.u32 %v3030, 7
    %v3032 = vsub.s32 %v1813, %v3031
    %v3033 = vrot.slane %v2136, %v3032
    %v3034 = vlaneseq
    %v3035 = vshrl.u32 %v3034, 7
    %v3036 = vsub.s32 %v1813, %v3035
    %v3037 = vrot.slane %v2143, %v3036
    %v3038 = vlaneseq
    %v3039 = vshrl.u32 %v3038, 7
    %v3040 = vsub.s32 %v1813, %v3039
    %v3041 = vrot.slane %v2150, %v3040
    %v3042 = vlaneseq
    %v3043 = vshrl.u32 %v3042, 7
    %v3044 = vsub.s32 %v1813, %v3043
    %v3045 = vrot.slane %v2157, %v3044
    %v3046 = vlaneseq
    %v3047 = vshrl.u32 %v3046, 7
    %v3048 = vsub.s32 %v1813, %v3047
    %v3049 = vrot.slane %v2164, %v3048
    %v3050 = vlaneseq
    %v3051 = vshrl.u32 %v3050, 7
    %v3052 = vsub.s32 %v1813, %v3051
    %v3053 = vrot.slane %v2171, %v3052
    %v3054 = vlaneseq
    %v3055 = vshrl.u32 %v3054, 7
    %v3056 = vsub.s32 %v1813, %v3055
    %v3057 = vrot.slane %v2178, %v3056
    %v3058 = vlaneseq
    %v3059 = vshrl.u32 %v3058, 7
    %v3060 = vsub.s32 %v1813, %v3059
    %v3061 = vrot.slane %v2185, %v3060
    %v3062 = vlaneseq
    %v3063 = vshrl.u32 %v3062, 7
    %v3064 = vsub.s32 %v1813, %v3063
    %v3065 = vrot.slane %v2192, %v3064
    %v3066 = vlaneseq
    %v3067 = vshrl.u32 %v3066, 7
    %v3068 = vsub.s32 %v1813, %v3067
    %v3069 = vrot.slane %v2199, %v3068
    %v3070 = vlaneseq
    %v3071 = vshrl.u32 %v3070, 7
    %v3072 = vsub.s32 %v1813, %v3071
    %v3073 = vrot.slane %v2206, %v3072
    %v3074 = vsel %vm1878, %v3017, %v3013
    %v3075 = vsel %vm1879, %v3021, %v3074
    %v3076 = vsel %vm1881, %v3025, %v3075
    %v3077 = vsel %vm1883, %v3029, %v3076
    %v3078 = vsel %vm1885, %v3033, %v3077
    %v3079 = vsel %vm2443, %v3037, %v3078
    %v3080 = vsel %vm2446, %v3041, %v3079
    %v3081 = vsel %vm1878, %v3049, %v3045
    %v3082 = vsel %vm1879, %v3053, %v3081
    %v3083 = vsel %vm1881, %v3057, %v3082
    %v3084 = vsel %vm1883, %v3061, %v3083
    %v3085 = vsel %vm1885, %v3065, %v3084
    %v3086 = vsel %vm2443, %v3069, %v3085
    %v3087 = vsel %vm2446, %v3073, %v3086
    %3092 = vrot.lane.b32.xlu0 %v2464, 6
    %v3093 = vpop.permute.xlu0 %3092
    %3094 = vrot.lane.b32.xlu0 %v2465, 6
    %v3095 = vpop.permute.xlu0 %3094
    %3114 = vset.pattern.permute.xlu0 0
    %3115 = vperm.xlu0 %3114, %v2963
    %v3116 = vpop.permute.xlu0 %3115
    %3117 = vset.pattern.permute.xlu0 0
    %3118 = vperm.xlu0 %3117, %v2965
    %v3119 = vpop.permute.xlu0 %3118
    %3120 = vset.pattern.permute.xlu0 0
    %3121 = vperm.xlu0 %3120, %v2967
    %v3122 = vpop.permute.xlu0 %3121
    %3123 = vset.pattern.permute.xlu0 0
    %3124 = vperm.xlu0 %3123, %v2969
    %v3125 = vpop.permute.xlu0 %3124
    %3126 = vset.pattern.permute.xlu0 0
    %3127 = vperm.xlu0 %3126, %v2971
    %v3128 = vpop.permute.xlu0 %3127
    %3129 = vset.pattern.permute.xlu0 0
    %3130 = vperm.xlu0 %3129, %v2973
    %v3131 = vpop.permute.xlu0 %3130
    %3132 = vset.pattern.permute.xlu0 0
    %3133 = vperm.xlu0 %3132, %v2975
    %v3134 = vpop.permute.xlu0 %3133
    %3135 = vset.pattern.permute.xlu0 0
    %3136 = vperm.xlu0 %3135, %v2977
    %v3137 = vpop.permute.xlu0 %3136
    %3138 = vset.pattern.permute.xlu0 0
    %3139 = vperm.xlu0 %3138, %v2979
    %v3140 = vpop.permute.xlu0 %3139
    %3141 = vset.pattern.permute.xlu0 0
    %3142 = vperm.xlu0 %3141, %v2981
    %v3143 = vpop.permute.xlu0 %3142
    %3144 = vset.pattern.permute.xlu0 0
    %3145 = vperm.xlu0 %3144, %v2983
    %v3146 = vpop.permute.xlu0 %3145
    %3147 = vset.pattern.permute.xlu0 0
    %3148 = vperm.xlu0 %3147, %v2985
    %v3149 = vpop.permute.xlu0 %3148
    %3150 = vset.pattern.permute.xlu0 0
    %3151 = vperm.xlu0 %3150, %v2987
    %v3152 = vpop.permute.xlu0 %3151
    %3153 = vset.pattern.permute.xlu0 0
    %3154 = vperm.xlu0 %3153, %v2989
    %v3155 = vpop.permute.xlu0 %3154
    %3156 = vset.pattern.permute.xlu0 0
    %3157 = vperm.xlu0 %3156, %v2991
    %v3158 = vpop.permute.xlu0 %3157
    %3159 = vset.pattern.permute.xlu0 0
    %3160 = vperm.xlu0 %3159, %v2993
    %v3161 = vpop.permute.xlu0 %3160
    %v3162 = vadd.s32 %v1813, 4294967284
    %v3163 = vlaneseq
    %v3164 = vshrl.u32 %v3163, 7
    %v3165 = vsub.s32 %v3162, %v3164
    %v3166 = vrot.slane %v3116, %v3165
    %v3167 = vlaneseq
    %v3168 = vshrl.u32 %v3167, 7
    %v3169 = vsub.s32 %v3162, %v3168
    %v3170 = vrot.slane %v3119, %v3169
    %v3171 = vlaneseq
    %v3172 = vshrl.u32 %v3171, 7
    %v3173 = vsub.s32 %v3162, %v3172
    %v3174 = vrot.slane %v3122, %v3173
    %v3175 = vlaneseq
    %v3176 = vshrl.u32 %v3175, 7
    %v3177 = vsub.s32 %v3162, %v3176
    %v3178 = vrot.slane %v3125, %v3177
    %v3179 = vlaneseq
    %v3180 = vshrl.u32 %v3179, 7
    %v3181 = vsub.s32 %v3162, %v3180
    %v3182 = vrot.slane %v3128, %v3181
    %v3183 = vlaneseq
    %v3184 = vshrl.u32 %v3183, 7
    %v3185 = vsub.s32 %v3162, %v3184
    %v3186 = vrot.slane %v3131, %v3185
    %v3187 = vlaneseq
    %v3188 = vshrl.u32 %v3187, 7
    %v3189 = vsub.s32 %v3162, %v3188
    %v3190 = vrot.slane %v3134, %v3189
    %v3191 = vlaneseq
    %v3192 = vshrl.u32 %v3191, 7
    %v3193 = vsub.s32 %v3162, %v3192
    %v3194 = vrot.slane %v3137, %v3193
    %v3195 = vlaneseq
    %v3196 = vshrl.u32 %v3195, 7
    %v3197 = vsub.s32 %v3162, %v3196
    %v3198 = vrot.slane %v3140, %v3197
    %v3199 = vlaneseq
    %v3200 = vshrl.u32 %v3199, 7
    %v3201 = vsub.s32 %v3162, %v3200
    %v3202 = vrot.slane %v3143, %v3201
    %v3203 = vlaneseq
    %v3204 = vshrl.u32 %v3203, 7
    %v3205 = vsub.s32 %v3162, %v3204
    %v3206 = vrot.slane %v3146, %v3205
    %v3207 = vlaneseq
    %v3208 = vshrl.u32 %v3207, 7
    %v3209 = vsub.s32 %v3162, %v3208
    %v3210 = vrot.slane %v3149, %v3209
    %v3211 = vlaneseq
    %v3212 = vshrl.u32 %v3211, 7
    %v3213 = vsub.s32 %v3162, %v3212
    %v3214 = vrot.slane %v3152, %v3213
    %v3215 = vlaneseq
    %v3216 = vshrl.u32 %v3215, 7
    %v3217 = vsub.s32 %v3162, %v3216
    %v3218 = vrot.slane %v3155, %v3217
    %v3219 = vlaneseq
    %v3220 = vshrl.u32 %v3219, 7
    %v3221 = vsub.s32 %v3162, %v3220
    %v3222 = vrot.slane %v3158, %v3221
    %v3223 = vlaneseq
    %v3224 = vshrl.u32 %v3223, 7
    %v3225 = vsub.s32 %v3162, %v3224
    %v3226 = vrot.slane %v3161, %v3225
    %v3227 = vsel %vm1878, %v3170, %v3166
    %v3228 = vsel %vm1879, %v3174, %v3227
    %v3229 = vsel %vm1881, %v3178, %v3228
    %v3230 = vsel %vm1883, %v3182, %v3229
    %v3231 = vsel %vm1885, %v3186, %v3230
    %v3232 = vsel %vm2443, %v3190, %v3231
    %v3233 = vsel %vm2446, %v3194, %v3232
    %v3234 = vsel %vm1878, %v3202, %v3198
    %v3235 = vsel %vm1879, %v3206, %v3234
    %v3236 = vsel %vm1881, %v3210, %v3235
    %v3237 = vsel %vm1883, %v3214, %v3236
    %v3238 = vsel %vm1885, %v3218, %v3237
    %v3239 = vsel %vm2443, %v3222, %v3238
    %v3240 = vsel %vm2446, %v3226, %v3239
    %3245 = vrot.lane.b32.xlu0 %v432, 18
    %v3246 = vpop.permute.xlu0 %3245
    %3247 = vrot.lane.b32.xlu0 %v433, 18
    %v3248 = vpop.permute.xlu0 %3247
    %vm3251 = vcmask 48128
    %v3252 = vsel %vm3251, %v3080, %v3093
    %v3253 = vsel %vm3251, %v3087, %v3095
    %vm3254 = vcmask 97280
    %v3255 = vsel %vm3254, %v3252, %v3233
    %v3256 = vsel %vm3254, %v3253, %v3240
    %vm3257 = vcmask 146432
    %v3258 = vsel %vm3257, %v3255, %v3246
    %v3259 = vsel %vm3257, %v3256, %v3248
    %v3260 = vld [vmem:[#allocation11] sm:$0xff]
    %v3261 = vld [vmem:[#allocation11 + $0x8] sm:$0xff]
    %v3262 = vld [vmem:[#allocation11 + $0x10] sm:$0xff]
    %v3263 = vld [vmem:[#allocation13] sm:$0x1]
    %v3265 = vlaneseq
    %v3266 = vshrl.u32 %v3265, 7
    %v3267 = vsub.s32 0, %v3266
    %v3268 = vrot.slane %v3263, %v3267
    %vm3270 = vcmask 195584
    %v3272 = vsel %vm3270, %v3258, 0
    %v3275 = vsel %vm3270, %v3259, 0
    %3277 = vmatprep.subr.mxu0 0.0
    %3278 = vmatpush1.msra.mxu0 %v3260
    %3279 = vmatprep.subr.mxu0 0.0
    %3280 = vmatpush1.msra.mxu0 %v3261
    %3281 = vmatprep.subr.mxu0 0.0
    %3282 = vmatpush1.msra.mxu0 %v3262
    %3283 = vmatprep.subr.mxu0 0.0
    %3284 = vmatpush1.msra.mxu0 0.0
    %3285 = vmatprep.subr.mxu0 0.0
    %3286 = vmatpush1.msra.mxu0 0.0
    %3287 = vmatprep.subr.mxu0 0.0
    %3288 = vmatpush1.msra.mxu0 0.0
    %3289 = vmatprep.subr.mxu0 0.0
    %3290 = vmatpush1.msra.mxu0 0.0
    %3291 = vmatprep.subr.mxu0 0.0
    %3292 = vmatpush1.msra.mxu0 0.0
    %3293 = vmatprep.subr.mxu0 0.0
    %3294 = vmatpush1.msra.mxu0 0.0
    %3295 = vmatprep.subr.mxu0 0.0
    %3296 = vmatpush1.msra.mxu0 0.0
    %3297 = vmatprep.subr.mxu0 0.0
    %3298 = vmatpush1.msra.mxu0 0.0
    %3299 = vmatprep.subr.mxu0 0.0
    %3300 = vmatpush1.msra.mxu0 0.0
    %3301 = vmatprep.subr.mxu0 0.0
    %3302 = vmatpush1.msra.mxu0 0.0
    %3303 = vmatprep.subr.mxu0 0.0
    %3304 = vmatpush1.msra.mxu0 0.0
    %3305 = vmatprep.subr.mxu0 0.0
    %3306 = vmatpush1.msra.mxu0 0.0
    %3307 = vmatprep.subr.mxu0 0.0
    %3308 = vmatpush1.msra.mxu0 0.0
    %3309 = vmatprep.subr.mxu0 0.0
    %3310 = vmatpush1.msra.mxu0 0.0
    %3311 = vmatprep.subr.mxu0 0.0
    %3312 = vmatpush1.msra.mxu0 0.0
    %3313 = vmatprep.subr.mxu0 0.0
    %3314 = vmatpush1.msra.mxu0 0.0
    %3315 = vmatprep.subr.mxu0 0.0
    %3316 = vmatpush1.msra.mxu0 0.0
    %3317 = vmatprep.subr.mxu0 0.0
    %3318 = vmatpush1.msra.mxu0 0.0
    %3319 = vmatprep.subr.mxu0 0.0
    %3320 = vmatpush1.msra.mxu0 0.0
    %3321 = vmatprep.subr.mxu0 0.0
    %3322 = vmatpush1.msra.mxu0 0.0
    %3323 = vmatprep.subr.mxu0 0.0
    %3324 = vmatpush1.msra.mxu0 0.0
    %3325 = vmatprep.subr.mxu0 0.0
    %3326 = vmatpush1.msra.mxu0 0.0
    %3327 = vmatprep.subr.mxu0 0.0
    %3328 = vmatpush1.msra.mxu0 0.0
    %3329 = vmatprep.subr.mxu0 0.0
    %3330 = vmatpush1.msra.mxu0 0.0
    %3331 = vmatprep.subr.mxu0 0.0
    %3332 = vmatpush1.msra.mxu0 0.0
    %3333 = vmatprep.subr.mxu0 0.0
    %3334 = vmatpush1.msra.mxu0 0.0
    %3335 = vmatprep.subr.mxu0 0.0
    %3336 = vmatpush1.msra.mxu0 0.0
    %3337 = vmatprep.subr.mxu0 0.0
    %3338 = vmatpush1.msra.mxu0 0.0
    %3339 = vmatprep.subr.mxu0 0.0
    %3340 = vmatpush1.msra.mxu0 0.0
    %3341 = vmatprep.mubr.f32.mxu0 0.0
    %3342 = vmatmul.mubr.f32.gmra.mrb[0].mxu0 %v3272
    %v3343 = vpop.f32.mrb[0].mxu0
    %v3344 = vadd.f32 %v3268, %v3343
    %v3345 = vpop.f32.mrb[0].mxu0
    %3346 = vmatprep.mubr.f32.mxu0 0.0
    %3347 = vmatmul.mubr.f32.gmra.mrb[0].mxu0 %v3275
    %v3348 = vpop.f32.mrb[0].mxu0
    %v3349 = vadd.f32 %v3268, %v3348
    %v3350 = vpop.f32.mrb[0].mxu0
    %3351 = vdwg.mxu0
    %vm3352 = vcmp.ge.f32.partialorder %v3344, 0.0
    %vm3353 = vcmp.ge.f32.partialorder %v3349, 0.0
    %v3354 = vmul.f32 %v3344, 0.25
    %v3355 = vmul.f32 %v3349, 0.25
    %v3356 = vsel %vm3352, %v3344, %v3354
    %v3357 = vsel %vm3353, %v3349, %v3355
    %v3358 = vld [vmem:[#allocation14] sm:$0xff]
    %v3359 = vld [vmem:[#allocation14 + $0x8] sm:$0xff]
    %v3360 = vld [vmem:[#allocation14 + $0x10] sm:$0xff]
    %v3361 = vld [vmem:[#allocation14 + $0x18] sm:$0xff]
    %v3362 = vld [vmem:[#allocation14 + $0x20] sm:$0xff]
    %v3363 = vld [vmem:[#allocation14 + $0x28] sm:$0xff]
    %v3364 = vld [vmem:[#allocation14 + $0x30] sm:$0xff]
    %v3365 = vld [vmem:[#allocation14 + $0x38] sm:$0xff]
    %v3366 = vld [vmem:[#allocation16] sm:$0x1]
    %v3368 = vlaneseq
    %v3369 = vshrl.u32 %v3368, 7
    %v3370 = vsub.s32 0, %v3369
    %v3371 = vrot.slane %v3366, %v3370
    %vm3373 = vcmask 523264
    %v3375 = vsel %vm3373, %v3356, 0
    %v3378 = vsel %vm3373, %v3357, 0
    %3380 = vmatprep.subr.mxu0 0.0
    %3381 = vmatpush1.msra.mxu0 %v3358
    %3382 = vmatprep.subr.mxu0 0.0
    %3383 = vmatpush1.msra.mxu0 %v3359
    %3384 = vmatprep.subr.mxu0 0.0
    %3385 = vmatpush1.msra.mxu0 %v3360
    %3386 = vmatprep.subr.mxu0 0.0
    %3387 = vmatpush1.msra.mxu0 %v3361
    %3388 = vmatprep.subr.mxu0 0.0
    %3389 = vmatpush1.msra.mxu0 %v3362
    %3390 = vmatprep.subr.mxu0 0.0
    %3391 = vmatpush1.msra.mxu0 %v3363
    %3392 = vmatprep.subr.mxu0 0.0
    %3393 = vmatpush1.msra.mxu0 %v3364
    %3394 = vmatprep.subr.mxu0 0.0
    %3395 = vmatpush1.msra.mxu0 %v3365
    %3396 = vmatprep.subr.mxu0 0.0
    %3397 = vmatpush1.msra.mxu0 0.0
    %3398 = vmatprep.subr.mxu0 0.0
    %3399 = vmatpush1.msra.mxu0 0.0
    %3400 = vmatprep.subr.mxu0 0.0
    %3401 = vmatpush1.msra.mxu0 0.0
    %3402 = vmatprep.subr.mxu0 0.0
    %3403 = vmatpush1.msra.mxu0 0.0
    %3404 = vmatprep.subr.mxu0 0.0
    %3405 = vmatpush1.msra.mxu0 0.0
    %3406 = vmatprep.subr.mxu0 0.0
    %3407 = vmatpush1.msra.mxu0 0.0
    %3408 = vmatprep.subr.mxu0 0.0
    %3409 = vmatpush1.msra.mxu0 0.0
    %3410 = vmatprep.subr.mxu0 0.0
    %3411 = vmatpush1.msra.mxu0 0.0
    %3412 = vmatprep.subr.mxu0 0.0
    %3413 = vmatpush1.msra.mxu0 0.0
    %3414 = vmatprep.subr.mxu0 0.0
    %3415 = vmatpush1.msra.mxu0 0.0
    %3416 = vmatprep.subr.mxu0 0.0
    %3417 = vmatpush1.msra.mxu0 0.0
    %3418 = vmatprep.subr.mxu0 0.0
    %3419 = vmatpush1.msra.mxu0 0.0
    %3420 = vmatprep.subr.mxu0 0.0
    %3421 = vmatpush1.msra.mxu0 0.0
    %3422 = vmatprep.subr.mxu0 0.0
    %3423 = vmatpush1.msra.mxu0 0.0
    %3424 = vmatprep.subr.mxu0 0.0
    %3425 = vmatpush1.msra.mxu0 0.0
    %3426 = vmatprep.subr.mxu0 0.0
    %3427 = vmatpush1.msra.mxu0 0.0
    %3428 = vmatprep.subr.mxu0 0.0
    %3429 = vmatpush1.msra.mxu0 0.0
    %3430 = vmatprep.subr.mxu0 0.0
    %3431 = vmatpush1.msra.mxu0 0.0
    %3432 = vmatprep.subr.mxu0 0.0
    %3433 = vmatpush1.msra.mxu0 0.0
    %3434 = vmatprep.subr.mxu0 0.0
    %3435 = vmatpush1.msra.mxu0 0.0
    %3436 = vmatprep.subr.mxu0 0.0
    %3437 = vmatpush1.msra.mxu0 0.0
    %3438 = vmatprep.subr.mxu0 0.0
    %3439 = vmatpush1.msra.mxu0 0.0
    %3440 = vmatprep.subr.mxu0 0.0
    %3441 = vmatpush1.msra.mxu0 0.0
    %3442 = vmatprep.subr.mxu0 0.0
    %3443 = vmatpush1.msra.mxu0 0.0
    %3444 = vmatprep.mubr.f32.mxu0 0.0
    %3445 = vmatmul.mubr.f32.gmra.mrb[0].mxu0 %v3375
    %v3446 = vpop.f32.mrb[0].mxu0
    %v3447 = vadd.f32 %v3371, %v3446
    %v3448 = vpop.f32.mrb[0].mxu0
    %3449 = vmatprep.mubr.f32.mxu0 0.0
    %3450 = vmatmul.mubr.f32.gmra.mrb[0].mxu0 %v3378
    %v3451 = vpop.f32.mrb[0].mxu0
    %v3452 = vadd.f32 %v3371, %v3451
    %v3453 = vpop.f32.mrb[0].mxu0
    %3454 = vdwg.mxu0
    %vm3455 = vcmp.ge.f32.partialorder %v3447, 0.0
    %vm3456 = vcmp.ge.f32.partialorder %v3452, 0.0
    %v3457 = vmul.f32 %v3447, 0.25
    %v3458 = vmul.f32 %v3452, 0.25
    %v3459 = vsel %vm3455, %v3447, %v3457
    %v3460 = vsel %vm3456, %v3452, %v3458
    %v3461 = vld [vmem:[#allocation17] sm:$0xff]
    %v3462 = vld [vmem:[#allocation17 + $0x8] sm:$0xff]
    %v3463 = vld [vmem:[#allocation17 + $0x10] sm:$0xff]
    %v3464 = vld [vmem:[#allocation17 + $0x18] sm:$0xff]
    %v3465 = vld [vmem:[#allocation17 + $0x20] sm:$0xff]
    %v3466 = vld [vmem:[#allocation17 + $0x28] sm:$0xff]
    %v3467 = vld [vmem:[#allocation17 + $0x30] sm:$0xff]
    %v3468 = vld [vmem:[#allocation17 + $0x38] sm:$0xff]
    %v3469 = vld [vmem:[#allocation19] sm:$0x1]
    %v3471 = vlaneseq
    %v3472 = vshrl.u32 %v3471, 7
    %v3473 = vsub.s32 0, %v3472
    %v3474 = vrot.slane %v3469, %v3473
    %v3477 = vsel %vm3373, %v3459, 0
    %v3480 = vsel %vm3373, %v3460, 0
    %3482 = vmatprep.subr.mxu0 0.0
    %3483 = vmatpush1.msra.mxu0 %v3461
    %3484 = vmatprep.subr.mxu0 0.0
    %3485 = vmatpush1.msra.mxu0 %v3462
    %3486 = vmatprep.subr.mxu0 0.0
    %3487 = vmatpush1.msra.mxu0 %v3463
    %3488 = vmatprep.subr.mxu0 0.0
    %3489 = vmatpush1.msra.mxu0 %v3464
    %3490 = vmatprep.subr.mxu0 0.0
    %3491 = vmatpush1.msra.mxu0 %v3465
    %3492 = vmatprep.subr.mxu0 0.0
    %3493 = vmatpush1.msra.mxu0 %v3466
    %3494 = vmatprep.subr.mxu0 0.0
    %3495 = vmatpush1.msra.mxu0 %v3467
    %3496 = vmatprep.subr.mxu0 0.0
    %3497 = vmatpush1.msra.mxu0 %v3468
    %3498 = vmatprep.subr.mxu0 0.0
    %3499 = vmatpush1.msra.mxu0 0.0
    %3500 = vmatprep.subr.mxu0 0.0
    %3501 = vmatpush1.msra.mxu0 0.0
    %3502 = vmatprep.subr.mxu0 0.0
    %3503 = vmatpush1.msra.mxu0 0.0
    %3504 = vmatprep.subr.mxu0 0.0
    %3505 = vmatpush1.msra.mxu0 0.0
    %3506 = vmatprep.subr.mxu0 0.0
    %3507 = vmatpush1.msra.mxu0 0.0
    %3508 = vmatprep.subr.mxu0 0.0
    %3509 = vmatpush1.msra.mxu0 0.0
    %3510 = vmatprep.subr.mxu0 0.0
    %3511 = vmatpush1.msra.mxu0 0.0
    %3512 = vmatprep.subr.mxu0 0.0
    %3513 = vmatpush1.msra.mxu0 0.0
    %3514 = vmatprep.subr.mxu0 0.0
    %3515 = vmatpush1.msra.mxu0 0.0
    %3516 = vmatprep.subr.mxu0 0.0
    %3517 = vmatpush1.msra.mxu0 0.0
    %3518 = vmatprep.subr.mxu0 0.0
    %3519 = vmatpush1.msra.mxu0 0.0
    %3520 = vmatprep.subr.mxu0 0.0
    %3521 = vmatpush1.msra.mxu0 0.0
    %3522 = vmatprep.subr.mxu0 0.0
    %3523 = vmatpush1.msra.mxu0 0.0
    %3524 = vmatprep.subr.mxu0 0.0
    %3525 = vmatpush1.msra.mxu0 0.0
    %3526 = vmatprep.subr.mxu0 0.0
    %3527 = vmatpush1.msra.mxu0 0.0
    %3528 = vmatprep.subr.mxu0 0.0
    %3529 = vmatpush1.msra.mxu0 0.0
    %3530 = vmatprep.subr.mxu0 0.0
    %3531 = vmatpush1.msra.mxu0 0.0
    %3532 = vmatprep.subr.mxu0 0.0
    %3533 = vmatpush1.msra.mxu0 0.0
    %3534 = vmatprep.subr.mxu0 0.0
    %3535 = vmatpush1.msra.mxu0 0.0
    %3536 = vmatprep.subr.mxu0 0.0
    %3537 = vmatpush1.msra.mxu0 0.0
    %3538 = vmatprep.subr.mxu0 0.0
    %3539 = vmatpush1.msra.mxu0 0.0
    %3540 = vmatprep.subr.mxu0 0.0
    %3541 = vmatpush1.msra.mxu0 0.0
    %3542 = vmatprep.subr.mxu0 0.0
    %3543 = vmatpush1.msra.mxu0 0.0
    %3544 = vmatprep.subr.mxu0 0.0
    %3545 = vmatpush1.msra.mxu0 0.0
    %3546 = vmatprep.mubr.f32.mxu0 0.0
    %3547 = vmatmul.mubr.f32.gmra.mrb[0].mxu0 %v3477
    %v3548 = vpop.f32.mrb[0].mxu0
    %v3549 = vadd.f32 %v3474, %v3548
    %v3550 = vpop.f32.mrb[0].mxu0
    %3551 = vmatprep.mubr.f32.mxu0 0.0
    %3552 = vmatmul.mubr.f32.gmra.mrb[0].mxu0 %v3480
    %v3553 = vpop.f32.mrb[0].mxu0
    %v3554 = vadd.f32 %v3474, %v3553
    %v3555 = vpop.f32.mrb[0].mxu0
    %3556 = vdwg.mxu0
    %vm3557 = vcmp.ge.f32.partialorder %v3549, 0.0
    %vm3558 = vcmp.ge.f32.partialorder %v3554, 0.0
    %v3559 = vmul.f32 %v3549, 0.25
    %v3560 = vmul.f32 %v3554, 0.25
    %v3561 = vsel %vm3557, %v3549, %v3559
    %v3562 = vsel %vm3558, %v3554, %v3560
    %v3563 = vld [vmem:[%s7] sm:$0xff]
    %v3564 = vld [vmem:[%s7 + $0x8] sm:$0xff]
    %v3565 = vld [vmem:[%s19] sm:$0xff]
    %v3566 = vld [vmem:[%s19 + $0x8] sm:$0xff]
    %v3567 = vld [vmem:[%s19 + $0x10] sm:$0xff]
    %v3568 = vld [vmem:[%s19 + $0x18] sm:$0xff]
    %v3569 = vld [vmem:[%s23] sm:$0x1]
    %v3571 = vlaneseq
    %v3572 = vshrl.u32 %v3571, 7
    %v3573 = vsub.s32 0, %v3572
    %v3574 = vrot.slane %v3569, %v3573
    %v3577 = vsel %vm434, %v3563, 0
    %v3580 = vsel %vm434, %v3564, 0
    %3582 = vmatprep.subr.mxu0 0.0
    %3583 = vmatpush1.msra.mxu0 %v3565
    %3584 = vmatprep.subr.mxu0 0.0
    %3585 = vmatpush1.msra.mxu0 %v3566
    %3586 = vmatprep.subr.mxu0 0.0
    %3587 = vmatpush1.msra.mxu0 %v3567
    %3588 = vmatprep.subr.mxu0 0.0
    %3589 = vmatpush1.msra.mxu0 %v3568
    %3590 = vmatprep.subr.mxu0 0.0
    %3591 = vmatpush1.msra.mxu0 0.0
    %3592 = vmatprep.subr.mxu0 0.0
    %3593 = vmatpush1.msra.mxu0 0.0
    %3594 = vmatprep.subr.mxu0 0.0
    %3595 = vmatpush1.msra.mxu0 0.0
    %3596 = vmatprep.subr.mxu0 0.0
    %3597 = vmatpush1.msra.mxu0 0.0
    %3598 = vmatprep.subr.mxu0 0.0
    %3599 = vmatpush1.msra.mxu0 0.0
    %3600 = vmatprep.subr.mxu0 0.0
    %3601 = vmatpush1.msra.mxu0 0.0
    %3602 = vmatprep.subr.mxu0 0.0
    %3603 = vmatpush1.msra.mxu0 0.0
    %3604 = vmatprep.subr.mxu0 0.0
    %3605 = vmatpush1.msra.mxu0 0.0
    %3606 = vmatprep.subr.mxu0 0.0
    %3607 = vmatpush1.msra.mxu0 0.0
    %3608 = vmatprep.subr.mxu0 0.0
    %3609 = vmatpush1.msra.mxu0 0.0
    %3610 = vmatprep.subr.mxu0 0.0
    %3611 = vmatpush1.msra.mxu0 0.0
    %3612 = vmatprep.subr.mxu0 0.0
    %3613 = vmatpush1.msra.mxu0 0.0
    %3614 = vmatprep.subr.mxu0 0.0
    %3615 = vmatpush1.msra.mxu0 0.0
    %3616 = vmatprep.subr.mxu0 0.0
    %3617 = vmatpush1.msra.mxu0 0.0
    %3618 = vmatprep.subr.mxu0 0.0
    %3619 = vmatpush1.msra.mxu0 0.0
    %3620 = vmatprep.subr.mxu0 0.0
    %3621 = vmatpush1.msra.mxu0 0.0
    %3622 = vmatprep.subr.mxu0 0.0
    %3623 = vmatpush1.msra.mxu0 0.0
    %3624 = vmatprep.subr.mxu0 0.0
    %3625 = vmatpush1.msra.mxu0 0.0
    %3626 = vmatprep.subr.mxu0 0.0
    %3627 = vmatpush1.msra.mxu0 0.0
    %3628 = vmatprep.subr.mxu0 0.0
    %3629 = vmatpush1.msra.mxu0 0.0
    %3630 = vmatprep.subr.mxu0 0.0
    %3631 = vmatpush1.msra.mxu0 0.0
    %3632 = vmatprep.subr.mxu0 0.0
    %3633 = vmatpush1.msra.mxu0 0.0
    %3634 = vmatprep.subr.mxu0 0.0
    %3635 = vmatpush1.msra.mxu0 0.0
    %3636 = vmatprep.subr.mxu0 0.0
    %3637 = vmatpush1.msra.mxu0 0.0
    %3638 = vmatprep.subr.mxu0 0.0
    %3639 = vmatpush1.msra.mxu0 0.0
    %3640 = vmatprep.subr.mxu0 0.0
    %3641 = vmatpush1.msra.mxu0 0.0
    %3642 = vmatprep.subr.mxu0 0.0
    %3643 = vmatpush1.msra.mxu0 0.0
    %3644 = vmatprep.subr.mxu0 0.0
    %3645 = vmatpush1.msra.mxu0 0.0
    %3646 = vmatprep.mubr.f32.mxu0 0.0
    %3647 = vmatmul.mubr.f32.gmra.mrb[0].mxu0 %v3577
    %v3648 = vpop.f32.mrb[0].mxu0
    %v3649 = vadd.f32 %v3574, %v3648
    %v3650 = vpop.f32.mrb[0].mxu0
    %3651 = vmatprep.mubr.f32.mxu0 0.0
    %3652 = vmatmul.mubr.f32.gmra.mrb[0].mxu0 %v3580
    %v3653 = vpop.f32.mrb[0].mxu0
    %v3654 = vadd.f32 %v3574, %v3653
    %v3655 = vpop.f32.mrb[0].mxu0
    %3656 = vdwg.mxu0
    %v3657 = vld [vmem:[%s9] sm:$0xff]
    %v3658 = vld [vmem:[%s9 + $0x8] sm:$0xff]
    %v3659 = vld [vmem:[%s21] sm:$0xff]
    %v3660 = vld [vmem:[%s21 + $0x8] sm:$0xff]
    %v3661 = vld [vmem:[%s21 + $0x10] sm:$0xff]
    %v3662 = vld [vmem:[%s21 + $0x18] sm:$0xff]
    %v3663 = vld [vmem:[#allocation7] sm:$0x1]
    %v3665 = vlaneseq
    %v3666 = vshrl.u32 %v3665, 7
    %v3667 = vsub.s32 0, %v3666
    %v3668 = vrot.slane %v3663, %v3667
    %v3671 = vsel %vm434, %v3657, 0
    %v3674 = vsel %vm434, %v3658, 0
    %3676 = vmatprep.subr.mxu0 0.0
    %3677 = vmatpush1.msra.mxu0 %v3659
    %3678 = vmatprep.subr.mxu0 0.0
    %3679 = vmatpush1.msra.mxu0 %v3660
    %3680 = vmatprep.subr.mxu0 0.0
    %3681 = vmatpush1.msra.mxu0 %v3661
    %3682 = vmatprep.subr.mxu0 0.0
    %3683 = vmatpush1.msra.mxu0 %v3662
    %3684 = vmatprep.subr.mxu0 0.0
    %3685 = vmatpush1.msra.mxu0 0.0
    %3686 = vmatprep.subr.mxu0 0.0
    %3687 = vmatpush1.msra.mxu0 0.0
    %3688 = vmatprep.subr.mxu0 0.0
    %3689 = vmatpush1.msra.mxu0 0.0
    %3690 = vmatprep.subr.mxu0 0.0
    %3691 = vmatpush1.msra.mxu0 0.0
    %3692 = vmatprep.subr.mxu0 0.0
    %3693 = vmatpush1.msra.mxu0 0.0
    %3694 = vmatprep.subr.mxu0 0.0
    %3695 = vmatpush1.msra.mxu0 0.0
    %3696 = vmatprep.subr.mxu0 0.0
    %3697 = vmatpush1.msra.mxu0 0.0
    %3698 = vmatprep.subr.mxu0 0.0
    %3699 = vmatpush1.msra.mxu0 0.0
    %3700 = vmatprep.subr.mxu0 0.0
    %3701 = vmatpush1.msra.mxu0 0.0
    %3702 = vmatprep.subr.mxu0 0.0
    %3703 = vmatpush1.msra.mxu0 0.0
    %3704 = vmatprep.subr.mxu0 0.0
    %3705 = vmatpush1.msra.mxu0 0.0
    %3706 = vmatprep.subr.mxu0 0.0
    %3707 = vmatpush1.msra.mxu0 0.0
    %3708 = vmatprep.subr.mxu0 0.0
    %3709 = vmatpush1.msra.mxu0 0.0
    %3710 = vmatprep.subr.mxu0 0.0
    %3711 = vmatpush1.msra.mxu0 0.0
    %3712 = vmatprep.subr.mxu0 0.0
    %3713 = vmatpush1.msra.mxu0 0.0
    %3714 = vmatprep.subr.mxu0 0.0
    %3715 = vmatpush1.msra.mxu0 0.0
    %3716 = vmatprep.subr.mxu0 0.0
    %3717 = vmatpush1.msra.mxu0 0.0
    %3718 = vmatprep.subr.mxu0 0.0
    %3719 = vmatpush1.msra.mxu0 0.0
    %3720 = vmatprep.subr.mxu0 0.0
    %3721 = vmatpush1.msra.mxu0 0.0
    %3722 = vmatprep.subr.mxu0 0.0
    %3723 = vmatpush1.msra.mxu0 0.0
    %3724 = vmatprep.subr.mxu0 0.0
    %3725 = vmatpush1.msra.mxu0 0.0
    %3726 = vmatprep.subr.mxu0 0.0
    %3727 = vmatpush1.msra.mxu0 0.0
    %3728 = vmatprep.subr.mxu0 0.0
    %3729 = vmatpush1.msra.mxu0 0.0
    %3730 = vmatprep.subr.mxu0 0.0
    %3731 = vmatpush1.msra.mxu0 0.0
    %3732 = vmatprep.subr.mxu0 0.0
    %3733 = vmatpush1.msra.mxu0 0.0
    %3734 = vmatprep.subr.mxu0 0.0
    %3735 = vmatpush1.msra.mxu0 0.0
    %3736 = vmatprep.subr.mxu0 0.0
    %3737 = vmatpush1.msra.mxu0 0.0
    %3738 = vmatprep.subr.mxu0 0.0
    %3739 = vmatpush1.msra.mxu0 0.0
    %3740 = vmatprep.mubr.f32.mxu0 0.0
    %3741 = vmatmul.mubr.f32.gmra.mrb[0].mxu0 %v3671
    %v3742 = vpop.f32.mrb[0].mxu0
    %v3743 = vadd.f32 %v3668, %v3742
    %v3744 = vpop.f32.mrb[0].mxu0
    %3745 = vmatprep.mubr.f32.mxu0 0.0
    %3746 = vmatmul.mubr.f32.gmra.mrb[0].mxu0 %v3674
    %v3747 = vpop.f32.mrb[0].mxu0
    %v3748 = vadd.f32 %v3668, %v3747
    %v3749 = vpop.f32.mrb[0].mxu0
    %3750 = vdwg.mxu0
    %v3751 = vld [vmem:[#allocation8] sm:$0xff]
    %v3752 = vld [vmem:[#allocation8 + $0x8] sm:$0xff]
    %v3753 = vld [vmem:[#allocation8 + $0x10] sm:$0xff]
    %v3754 = vld [vmem:[#allocation8 + $0x18] sm:$0xff]
    %v3755 = vld [vmem:[#allocation8 + $0x20] sm:$0xff]
    %v3756 = vld [vmem:[#allocation8 + $0x28] sm:$0xff]
    %v3757 = vld [vmem:[#allocation8 + $0x30] sm:$0xff]
    %v3758 = vld [vmem:[#allocation8 + $0x38] sm:$0xff]
    %v3759 = vld [vmem:[#allocation10] sm:$0xf]
    %vm3760 = vcmp.lt.s32.totalorder %v2012, 2
    %v3761 = vsel %vm3760, 1, 0
    %v3762 = vcvt.s32.f32 %v3761
    %v3764 = vrot.slane %v3743, 6
    %vm3766 = vcmask 1041408
    %v3767 = vsel %vm3766, %v3649, %v3764
    %v3768 = vmul.f32 %v3762, 0.0
    %v3769 = vsub.f32 1.0, %v3762
    %v3770 = vmul.f32 %v3769, 0.0
    %v3771 = vsel %vm434, %v3768, %v3770
    %v3773 = vsel %vm3373, %v3771, 0
    %3775 = vmatprep.subr.mxu0 0.0
    %3776 = vmatpush1.msra.mxu0 %v3751
    %3777 = vmatprep.subr.mxu0 0.0
    %3778 = vmatpush1.msra.mxu0 %v3752
    %3779 = vmatprep.subr.mxu0 0.0
    %3780 = vmatpush1.msra.mxu0 %v3753
    %3781 = vmatprep.subr.mxu0 0.0
    %3782 = vmatpush1.msra.mxu0 %v3754
    %3783 = vmatprep.subr.mxu0 0.0
    %3784 = vmatpush1.msra.mxu0 %v3755
    %3785 = vmatprep.subr.mxu0 0.0
    %3786 = vmatpush1.msra.mxu0 %v3756
    %3787 = vmatprep.subr.mxu0 0.0
    %3788 = vmatpush1.msra.mxu0 %v3757
    %3789 = vmatprep.subr.mxu0 0.0
    %3790 = vmatpush1.msra.mxu0 %v3758
    %3791 = vmatprep.subr.mxu0 0.0
    %3792 = vmatpush1.msra.mxu0 0.0
    %3793 = vmatprep.subr.mxu0 0.0
    %3794 = vmatpush1.msra.mxu0 0.0
    %3795 = vmatprep.subr.mxu0 0.0
    %3796 = vmatpush1.msra.mxu0 0.0
    %3797 = vmatprep.subr.mxu0 0.0
    %3798 = vmatpush1.msra.mxu0 0.0
    %3799 = vmatprep.subr.mxu0 0.0
    %3800 = vmatpush1.msra.mxu0 0.0
    %3801 = vmatprep.subr.mxu0 0.0
    %3802 = vmatpush1.msra.mxu0 0.0
    %3803 = vmatprep.subr.mxu0 0.0
    %3804 = vmatpush1.msra.mxu0 0.0
    %3805 = vmatprep.subr.mxu0 0.0
    %3806 = vmatpush1.msra.mxu0 0.0
    %3807 = vmatprep.subr.mxu0 0.0
    %3808 = vmatpush1.msra.mxu0 0.0
    %3809 = vmatprep.subr.mxu0 0.0
    %3810 = vmatpush1.msra.mxu0 0.0
    %3811 = vmatprep.subr.mxu0 0.0
    %3812 = vmatpush1.msra.mxu0 0.0
    %3813 = vmatprep.subr.mxu0 0.0
    %3814 = vmatpush1.msra.mxu0 0.0
    %3815 = vmatprep.subr.mxu0 0.0
    %3816 = vmatpush1.msra.mxu0 0.0
    %3817 = vmatprep.subr.mxu0 0.0
    %3818 = vmatpush1.msra.mxu0 0.0
    %3819 = vmatprep.subr.mxu0 0.0
    %3820 = vmatpush1.msra.mxu0 0.0
    %3821 = vmatprep.subr.mxu0 0.0
    %3822 = vmatpush1.msra.mxu0 0.0
    %3823 = vmatprep.subr.mxu0 0.0
    %3824 = vmatpush1.msra.mxu0 0.0
    %3825 = vmatprep.subr.mxu0 0.0
    %3826 = vmatpush1.msra.mxu0 0.0
    %3827 = vmatprep.subr.mxu0 0.0
    %3828 = vmatpush1.msra.mxu0 0.0
    %3829 = vmatprep.subr.mxu0 0.0
    %3830 = vmatpush1.msra.mxu0 0.0
    %3831 = vmatprep.subr.mxu0 0.0
    %3832 = vmatpush1.msra.mxu0 0.0
    %3833 = vmatprep.subr.mxu0 0.0
    %3834 = vmatpush1.msra.mxu0 0.0
    %3835 = vmatprep.subr.mxu0 0.0
    %3836 = vmatpush1.msra.mxu0 0.0
    %3837 = vmatprep.subr.mxu0 0.0
    %3838 = vmatpush1.msra.mxu0 0.0
    %3839 = vmatprep.mubr.f32.mxu0 0.0
    %3840 = vmatmul.mubr.f32.gmra.mrb[0].mxu0 %v3773
    %v3841 = vpop.f32.mrb[0].mxu0
    %v3842 = vadd.f32 %v3759, %v3841
    %v3843 = vpop.f32.mrb[0].mxu0
    %3844 = vdwg.mxu0
    %v3845 = vadd.f32 %v3767, %v3842
    %v3846 = vxor.u32 %v3845, 2147483648
    %v3847 = vmul.f32 %v3846, 1.442695
    %v3848 = vpow.pop %v3847
    %v3849 = vadd.f32 %v3848, 1.0
    %v3850 = vrcp.pop %v3849
    %v3851 = vmul.f32 1.0, %v3850
    %3853 = vrot.lane.b32.xlu0 %v3842, 64
    %v3854 = vpop.permute.xlu0 %3853
    %v3856 = vmul.f32 %v3851, %v3854
    %3858 = vrot.lane.b32.xlu0 %v3856, 64
    %v3859 = vpop.permute.xlu0 %3858
    %v3861 = vadd.f32 %v3767, %v3859
    %v3862 = vtanh.pop %v3861
    %v3863 = vsub.f32 1.0, %v3851
    %3865 = vrot.lane.b32.xlu0 %v3862, 96
    %v3866 = vpop.permute.xlu0 %3865
    %v3868 = vmul.f32 %v3863, %v3866
    %v3869 = vmul.f32 %v3851, 0.0
    %v3870 = vadd.f32 %v3868, %v3869
    %v3872 = vrot.slane %v3649, 2
    %v3874 = vsel %vm3766, %v3872, %v3743
    %v3875 = vmul.f32 %v3870, %v3762
    %v3876 = vmul.f32 %v3870, %v3769
    %3878 = vrot.lane.b32.xlu0 %v3875, 96
    %v3879 = vpop.permute.xlu0 %3878
    %v3881 = vsel %vm434, %v3879, %v3876
    %v3883 = vsel %vm3373, %v3881, 0
    %3885 = vmatprep.subr.mxu0 0.0
    %3886 = vmatpush1.msra.mxu0 %v3751
    %3887 = vmatprep.subr.mxu0 0.0
    %3888 = vmatpush1.msra.mxu0 %v3752
    %3889 = vmatprep.subr.mxu0 0.0
    %3890 = vmatpush1.msra.mxu0 %v3753
    %3891 = vmatprep.subr.mxu0 0.0
    %3892 = vmatpush1.msra.mxu0 %v3754
    %3893 = vmatprep.subr.mxu0 0.0
    %3894 = vmatpush1.msra.mxu0 %v3755
    %3895 = vmatprep.subr.mxu0 0.0
    %3896 = vmatpush1.msra.mxu0 %v3756
    %3897 = vmatprep.subr.mxu0 0.0
    %3898 = vmatpush1.msra.mxu0 %v3757
    %3899 = vmatprep.subr.mxu0 0.0
    %3900 = vmatpush1.msra.mxu0 %v3758
    %3901 = vmatprep.subr.mxu0 0.0
    %3902 = vmatpush1.msra.mxu0 0.0
    %3903 = vmatprep.subr.mxu0 0.0
    %3904 = vmatpush1.msra.mxu0 0.0
    %3905 = vmatprep.subr.mxu0 0.0
    %3906 = vmatpush1.msra.mxu0 0.0
    %3907 = vmatprep.subr.mxu0 0.0
    %3908 = vmatpush1.msra.mxu0 0.0
    %3909 = vmatprep.subr.mxu0 0.0
    %3910 = vmatpush1.msra.mxu0 0.0
    %3911 = vmatprep.subr.mxu0 0.0
    %3912 = vmatpush1.msra.mxu0 0.0
    %3913 = vmatprep.subr.mxu0 0.0
    %3914 = vmatpush1.msra.mxu0 0.0
    %3915 = vmatprep.subr.mxu0 0.0
    %3916 = vmatpush1.msra.mxu0 0.0
    %3917 = vmatprep.subr.mxu0 0.0
    %3918 = vmatpush1.msra.mxu0 0.0
    %3919 = vmatprep.subr.mxu0 0.0
    %3920 = vmatpush1.msra.mxu0 0.0
    %3921 = vmatprep.subr.mxu0 0.0
    %3922 = vmatpush1.msra.mxu0 0.0
    %3923 = vmatprep.subr.mxu0 0.0
    %3924 = vmatpush1.msra.mxu0 0.0
    %3925 = vmatprep.subr.mxu0 0.0
    %3926 = vmatpush1.msra.mxu0 0.0
    %3927 = vmatprep.subr.mxu0 0.0
    %3928 = vmatpush1.msra.mxu0 0.0
    %3929 = vmatprep.subr.mxu0 0.0
    %3930 = vmatpush1.msra.mxu0 0.0
    %3931 = vmatprep.subr.mxu0 0.0
    %3932 = vmatpush1.msra.mxu0 0.0
    %3933 = vmatprep.subr.mxu0 0.0
    %3934 = vmatpush1.msra.mxu0 0.0
    %3935 = vmatprep.subr.mxu0 0.0
    %3936 = vmatpush1.msra.mxu0 0.0
    %3937 = vmatprep.subr.mxu0 0.0
    %3938 = vmatpush1.msra.mxu0 0.0
    %3939 = vmatprep.subr.mxu0 0.0
    %3940 = vmatpush1.msra.mxu0 0.0
    %3941 = vmatprep.subr.mxu0 0.0
    %3942 = vmatpush1.msra.mxu0 0.0
    %3943 = vmatprep.subr.mxu0 0.0
    %3944 = vmatpush1.msra.mxu0 0.0
    %3945 = vmatprep.subr.mxu0 0.0
    %3946 = vmatpush1.msra.mxu0 0.0
    %3947 = vmatprep.subr.mxu0 0.0
    %3948 = vmatpush1.msra.mxu0 0.0
    %3949 = vmatprep.mubr.f32.mxu0 0.0
    %3950 = vmatmul.mubr.f32.gmra.mrb[0].mxu0 %v3883
    %v3951 = vpop.f32.mrb[0].mxu0
    %v3952 = vadd.f32 %v3759, %v3951
    %v3953 = vpop.f32.mrb[0].mxu0
    %3954 = vdwg.mxu0
    %v3955 = vadd.f32 %v3874, %v3952
    %v3956 = vxor.u32 %v3955, 2147483648
    %v3957 = vmul.f32 %v3956, 1.442695
    %v3958 = vpow.pop %v3957
    %v3959 = vadd.f32 %v3958, 1.0
    %v3960 = vrcp.pop %v3959
    %v3961 = vmul.f32 1.0, %v3960
    %3963 = vrot.lane.b32.xlu0 %v3952, 64
    %v3964 = vpop.permute.xlu0 %3963
    %v3966 = vmul.f32 %v3961, %v3964
    %3968 = vrot.lane.b32.xlu0 %v3966, 64
    %v3969 = vpop.permute.xlu0 %3968
    %v3971 = vadd.f32 %v3874, %v3969
    %v3972 = vtanh.pop %v3971
    %v3973 = vsub.f32 1.0, %v3961
    %3975 = vrot.lane.b32.xlu0 %v3972, 96
    %v3976 = vpop.permute.xlu0 %3975
    %v3978 = vmul.f32 %v3973, %v3976
    %v3979 = vmul.f32 %v3961, %v3870
    %v3980 = vadd.f32 %v3978, %v3979
    %v3981 = vrot.slane %v3649, 4
    %v3983 = vrot.slane %v3743, 2
    %v3985 = vsel %vm3766, %v3981, %v3983
    %v3986 = vmul.f32 %v3980, %v3762
    %v3987 = vmul.f32 %v3980, %v3769
    %3989 = vrot.lane.b32.xlu0 %v3986, 96
    %v3990 = vpop.permute.xlu0 %3989
    %v3992 = vsel %vm434, %v3990, %v3987
    %v3994 = vsel %vm3373, %v3992, 0
    %3996 = vmatprep.subr.mxu0 0.0
    %3997 = vmatpush1.msra.mxu0 %v3751
    %3998 = vmatprep.subr.mxu0 0.0
    %3999 = vmatpush1.msra.mxu0 %v3752
    %4000 = vmatprep.subr.mxu0 0.0
    %4001 = vmatpush1.msra.mxu0 %v3753
    %4002 = vmatprep.subr.mxu0 0.0
    %4003 = vmatpush1.msra.mxu0 %v3754
    %4004 = vmatprep.subr.mxu0 0.0
    %4005 = vmatpush1.msra.mxu0 %v3755
    %4006 = vmatprep.subr.mxu0 0.0
    %4007 = vmatpush1.msra.mxu0 %v3756
    %4008 = vmatprep.subr.mxu0 0.0
    %4009 = vmatpush1.msra.mxu0 %v3757
    %4010 = vmatprep.subr.mxu0 0.0
    %4011 = vmatpush1.msra.mxu0 %v3758
    %4012 = vmatprep.subr.mxu0 0.0
    %4013 = vmatpush1.msra.mxu0 0.0
    %4014 = vmatprep.subr.mxu0 0.0
    %4015 = vmatpush1.msra.mxu0 0.0
    %4016 = vmatprep.subr.mxu0 0.0
    %4017 = vmatpush1.msra.mxu0 0.0
    %4018 = vmatprep.subr.mxu0 0.0
    %4019 = vmatpush1.msra.mxu0 0.0
    %4020 = vmatprep.subr.mxu0 0.0
    %4021 = vmatpush1.msra.mxu0 0.0
    %4022 = vmatprep.subr.mxu0 0.0
    %4023 = vmatpush1.msra.mxu0 0.0
    %4024 = vmatprep.subr.mxu0 0.0
    %4025 = vmatpush1.msra.mxu0 0.0
    %4026 = vmatprep.subr.mxu0 0.0
    %4027 = vmatpush1.msra.mxu0 0.0
    %4028 = vmatprep.subr.mxu0 0.0
    %4029 = vmatpush1.msra.mxu0 0.0
    %4030 = vmatprep.subr.mxu0 0.0
    %4031 = vmatpush1.msra.mxu0 0.0
    %4032 = vmatprep.subr.mxu0 0.0
    %4033 = vmatpush1.msra.mxu0 0.0
    %4034 = vmatprep.subr.mxu0 0.0
    %4035 = vmatpush1.msra.mxu0 0.0
    %4036 = vmatprep.subr.mxu0 0.0
    %4037 = vmatpush1.msra.mxu0 0.0
    %4038 = vmatprep.subr.mxu0 0.0
    %4039 = vmatpush1.msra.mxu0 0.0
    %4040 = vmatprep.subr.mxu0 0.0
    %4041 = vmatpush1.msra.mxu0 0.0
    %4042 = vmatprep.subr.mxu0 0.0
    %4043 = vmatpush1.msra.mxu0 0.0
    %4044 = vmatprep.subr.mxu0 0.0
    %4045 = vmatpush1.msra.mxu0 0.0
    %4046 = vmatprep.subr.mxu0 0.0
    %4047 = vmatpush1.msra.mxu0 0.0
    %4048 = vmatprep.subr.mxu0 0.0
    %4049 = vmatpush1.msra.mxu0 0.0
    %4050 = vmatprep.subr.mxu0 0.0
    %4051 = vmatpush1.msra.mxu0 0.0
    %4052 = vmatprep.subr.mxu0 0.0
    %4053 = vmatpush1.msra.mxu0 0.0
    %4054 = vmatprep.subr.mxu0 0.0
    %4055 = vmatpush1.msra.mxu0 0.0
    %4056 = vmatprep.subr.mxu0 0.0
    %4057 = vmatpush1.msra.mxu0 0.0
    %4058 = vmatprep.subr.mxu0 0.0
    %4059 = vmatpush1.msra.mxu0 0.0
    %4060 = vmatprep.mubr.f32.mxu0 0.0
    %4061 = vmatmul.mubr.f32.gmra.mrb[0].mxu0 %v3994
    %v4062 = vpop.f32.mrb[0].mxu0
    %v4063 = vadd.f32 %v3759, %v4062
    %v4064 = vpop.f32.mrb[0].mxu0
    %4065 = vdwg.mxu0
    %v4066 = vadd.f32 %v3985, %v4063
    %v4067 = vxor.u32 %v4066, 2147483648
    %v4068 = vmul.f32 %v4067, 1.442695
    %v4069 = vpow.pop %v4068
    %v4070 = vadd.f32 %v4069, 1.0
    %v4071 = vrcp.pop %v4070
    %v4072 = vmul.f32 1.0, %v4071
    %4074 = vrot.lane.b32.xlu0 %v4063, 64
    %v4075 = vpop.permute.xlu0 %4074
    %v4077 = vmul.f32 %v4072, %v4075
    %4079 = vrot.lane.b32.xlu0 %v4077, 64
    %v4080 = vpop.permute.xlu0 %4079
    %v4082 = vadd.f32 %v3985, %v4080
    %v4083 = vtanh.pop %v4082
    %v4084 = vsub.f32 1.0, %v4072
    %4086 = vrot.lane.b32.xlu0 %v4083, 96
    %v4087 = vpop.permute.xlu0 %4086
    %v4089 = vmul.f32 %v4084, %v4087
    %v4090 = vmul.f32 %v4072, %v3980
    %v4091 = vadd.f32 %v4089, %v4090
    %v4092 = vrot.slane %v3649, 6
    %v4094 = vrot.slane %v3743, 4
    %v4096 = vsel %vm3766, %v4092, %v4094
    %v4097 = vmul.f32 %v4091, %v3762
    %v4098 = vmul.f32 %v4091, %v3769
    %4100 = vrot.lane.b32.xlu0 %v4097, 96
    %v4101 = vpop.permute.xlu0 %4100
    %v4103 = vsel %vm434, %v4101, %v4098
    %v4105 = vsel %vm3373, %v4103, 0
    %4107 = vmatprep.subr.mxu0 0.0
    %4108 = vmatpush1.msra.mxu0 %v3751
    %4109 = vmatprep.subr.mxu0 0.0
    %4110 = vmatpush1.msra.mxu0 %v3752
    %4111 = vmatprep.subr.mxu0 0.0
    %4112 = vmatpush1.msra.mxu0 %v3753
    %4113 = vmatprep.subr.mxu0 0.0
    %4114 = vmatpush1.msra.mxu0 %v3754
    %4115 = vmatprep.subr.mxu0 0.0
    %4116 = vmatpush1.msra.mxu0 %v3755
    %4117 = vmatprep.subr.mxu0 0.0
    %4118 = vmatpush1.msra.mxu0 %v3756
    %4119 = vmatprep.subr.mxu0 0.0
    %4120 = vmatpush1.msra.mxu0 %v3757
    %4121 = vmatprep.subr.mxu0 0.0
    %4122 = vmatpush1.msra.mxu0 %v3758
    %4123 = vmatprep.subr.mxu0 0.0
    %4124 = vmatpush1.msra.mxu0 0.0
    %4125 = vmatprep.subr.mxu0 0.0
    %4126 = vmatpush1.msra.mxu0 0.0
    %4127 = vmatprep.subr.mxu0 0.0
    %4128 = vmatpush1.msra.mxu0 0.0
    %4129 = vmatprep.subr.mxu0 0.0
    %4130 = vmatpush1.msra.mxu0 0.0
    %4131 = vmatprep.subr.mxu0 0.0
    %4132 = vmatpush1.msra.mxu0 0.0
    %4133 = vmatprep.subr.mxu0 0.0
    %4134 = vmatpush1.msra.mxu0 0.0
    %4135 = vmatprep.subr.mxu0 0.0
    %4136 = vmatpush1.msra.mxu0 0.0
    %4137 = vmatprep.subr.mxu0 0.0
    %4138 = vmatpush1.msra.mxu0 0.0
    %4139 = vmatprep.subr.mxu0 0.0
    %4140 = vmatpush1.msra.mxu0 0.0
    %4141 = vmatprep.subr.mxu0 0.0
    %4142 = vmatpush1.msra.mxu0 0.0
    %4143 = vmatprep.subr.mxu0 0.0
    %4144 = vmatpush1.msra.mxu0 0.0
    %4145 = vmatprep.subr.mxu0 0.0
    %4146 = vmatpush1.msra.mxu0 0.0
    %4147 = vmatprep.subr.mxu0 0.0
    %4148 = vmatpush1.msra.mxu0 0.0
    %4149 = vmatprep.subr.mxu0 0.0
    %4150 = vmatpush1.msra.mxu0 0.0
    %4151 = vmatprep.subr.mxu0 0.0
    %4152 = vmatpush1.msra.mxu0 0.0
    %4153 = vmatprep.subr.mxu0 0.0
    %4154 = vmatpush1.msra.mxu0 0.0
    %4155 = vmatprep.subr.mxu0 0.0
    %4156 = vmatpush1.msra.mxu0 0.0
    %4157 = vmatprep.subr.mxu0 0.0
    %4158 = vmatpush1.msra.mxu0 0.0
    %4159 = vmatprep.subr.mxu0 0.0
    %4160 = vmatpush1.msra.mxu0 0.0
    %4161 = vmatprep.subr.mxu0 0.0
    %4162 = vmatpush1.msra.mxu0 0.0
    %4163 = vmatprep.subr.mxu0 0.0
    %4164 = vmatpush1.msra.mxu0 0.0
    %4165 = vmatprep.subr.mxu0 0.0
    %4166 = vmatpush1.msra.mxu0 0.0
    %4167 = vmatprep.subr.mxu0 0.0
    %4168 = vmatpush1.msra.mxu0 0.0
    %4169 = vmatprep.subr.mxu0 0.0
    %4170 = vmatpush1.msra.mxu0 0.0
    %4171 = vmatprep.mubr.f32.mxu0 0.0
    %4172 = vmatmul.mubr.f32.gmra.mrb[0].mxu0 %v4105
    %v4173 = vpop.f32.mrb[0].mxu0
    %v4174 = vadd.f32 %v3759, %v4173
    %v4175 = vpop.f32.mrb[0].mxu0
    %4176 = vdwg.mxu0
    %v4177 = vadd.f32 %v4096, %v4174
    %v4178 = vxor.u32 %v4177, 2147483648
    %v4179 = vmul.f32 %v4178, 1.442695
    %v4180 = vpow.pop %v4179
    %v4181 = vadd.f32 %v4180, 1.0
    %v4182 = vrcp.pop %v4181
    %v4183 = vmul.f32 1.0, %v4182
    %4185 = vrot.lane.b32.xlu0 %v4174, 64
    %v4186 = vpop.permute.xlu0 %4185
    %v4188 = vmul.f32 %v4183, %v4186
    %4190 = vrot.lane.b32.xlu0 %v4188, 64
    %v4191 = vpop.permute.xlu0 %4190
    %v4193 = vadd.f32 %v4096, %v4191
    %v4194 = vtanh.pop %v4193
    %v4195 = vsub.f32 1.0, %v4183
    %4197 = vrot.lane.b32.xlu0 %v4194, 96
    %v4198 = vpop.permute.xlu0 %4197
    %v4200 = vmul.f32 %v4195, %v4198
    %v4201 = vmul.f32 %v4183, %v4091
    %v4202 = vadd.f32 %v4200, %v4201
    %v4204 = vrot.slane %v3748, 6
    %v4206 = vsel %vm3766, %v3654, %v4204
    %v4207 = vmul.f32 %v4202, %v3762
    %v4208 = vmul.f32 %v4202, %v3769
    %4210 = vrot.lane.b32.xlu0 %v4207, 96
    %v4211 = vpop.permute.xlu0 %4210
    %v4213 = vsel %vm434, %v4211, %v4208
    %v4215 = vsel %vm3373, %v4213, 0
    %4217 = vmatprep.subr.mxu0 0.0
    %4218 = vmatpush1.msra.mxu0 %v3751
    %4219 = vmatprep.subr.mxu0 0.0
    %4220 = vmatpush1.msra.mxu0 %v3752
    %4221 = vmatprep.subr.mxu0 0.0
    %4222 = vmatpush1.msra.mxu0 %v3753
    %4223 = vmatprep.subr.mxu0 0.0
    %4224 = vmatpush1.msra.mxu0 %v3754
    %4225 = vmatprep.subr.mxu0 0.0
    %4226 = vmatpush1.msra.mxu0 %v3755
    %4227 = vmatprep.subr.mxu0 0.0
    %4228 = vmatpush1.msra.mxu0 %v3756
    %4229 = vmatprep.subr.mxu0 0.0
    %4230 = vmatpush1.msra.mxu0 %v3757
    %4231 = vmatprep.subr.mxu0 0.0
    %4232 = vmatpush1.msra.mxu0 %v3758
    %4233 = vmatprep.subr.mxu0 0.0
    %4234 = vmatpush1.msra.mxu0 0.0
    %4235 = vmatprep.subr.mxu0 0.0
    %4236 = vmatpush1.msra.mxu0 0.0
    %4237 = vmatprep.subr.mxu0 0.0
    %4238 = vmatpush1.msra.mxu0 0.0
    %4239 = vmatprep.subr.mxu0 0.0
    %4240 = vmatpush1.msra.mxu0 0.0
    %4241 = vmatprep.subr.mxu0 0.0
    %4242 = vmatpush1.msra.mxu0 0.0
    %4243 = vmatprep.subr.mxu0 0.0
    %4244 = vmatpush1.msra.mxu0 0.0
    %4245 = vmatprep.subr.mxu0 0.0
    %4246 = vmatpush1.msra.mxu0 0.0
    %4247 = vmatprep.subr.mxu0 0.0
    %4248 = vmatpush1.msra.mxu0 0.0
    %4249 = vmatprep.subr.mxu0 0.0
    %4250 = vmatpush1.msra.mxu0 0.0
    %4251 = vmatprep.subr.mxu0 0.0
    %4252 = vmatpush1.msra.mxu0 0.0
    %4253 = vmatprep.subr.mxu0 0.0
    %4254 = vmatpush1.msra.mxu0 0.0
    %4255 = vmatprep.subr.mxu0 0.0
    %4256 = vmatpush1.msra.mxu0 0.0
    %4257 = vmatprep.subr.mxu0 0.0
    %4258 = vmatpush1.msra.mxu0 0.0
    %4259 = vmatprep.subr.mxu0 0.0
    %4260 = vmatpush1.msra.mxu0 0.0
    %4261 = vmatprep.subr.mxu0 0.0
    %4262 = vmatpush1.msra.mxu0 0.0
    %4263 = vmatprep.subr.mxu0 0.0
    %4264 = vmatpush1.msra.mxu0 0.0
    %4265 = vmatprep.subr.mxu0 0.0
    %4266 = vmatpush1.msra.mxu0 0.0
    %4267 = vmatprep.subr.mxu0 0.0
    %4268 = vmatpush1.msra.mxu0 0.0
    %4269 = vmatprep.subr.mxu0 0.0
    %4270 = vmatpush1.msra.mxu0 0.0
    %4271 = vmatprep.subr.mxu0 0.0
    %4272 = vmatpush1.msra.mxu0 0.0
    %4273 = vmatprep.subr.mxu0 0.0
    %4274 = vmatpush1.msra.mxu0 0.0
    %4275 = vmatprep.subr.mxu0 0.0
    %4276 = vmatpush1.msra.mxu0 0.0
    %4277 = vmatprep.subr.mxu0 0.0
    %4278 = vmatpush1.msra.mxu0 0.0
    %4279 = vmatprep.subr.mxu0 0.0
    %4280 = vmatpush1.msra.mxu0 0.0
    %4281 = vmatprep.mubr.f32.mxu0 0.0
    %4282 = vmatmul.mubr.f32.gmra.mrb[0].mxu0 %v4215
    %v4283 = vpop.f32.mrb[0].mxu0
    %v4284 = vadd.f32 %v3759, %v4283
    %v4285 = vpop.f32.mrb[0].mxu0
    %4286 = vdwg.mxu0
    %v4287 = vadd.f32 %v4206, %v4284
    %v4288 = vxor.u32 %v4287, 2147483648
    %v4289 = vmul.f32 %v4288, 1.442695
    %v4290 = vpow.pop %v4289
    %v4291 = vadd.f32 %v4290, 1.0
    %v4292 = vrcp.pop %v4291
    %v4293 = vmul.f32 1.0, %v4292
    %4295 = vrot.lane.b32.xlu0 %v4284, 64
    %v4296 = vpop.permute.xlu0 %4295
    %v4298 = vmul.f32 %v4293, %v4296
    %4300 = vrot.lane.b32.xlu0 %v4298, 64
    %v4301 = vpop.permute.xlu0 %4300
    %v4303 = vadd.f32 %v4206, %v4301
    %v4304 = vtanh.pop %v4303
    %v4305 = vsub.f32 1.0, %v4293
    %4307 = vrot.lane.b32.xlu0 %v4304, 96
    %v4308 = vpop.permute.xlu0 %4307
    %v4310 = vmul.f32 %v4305, %v4308
    %v4311 = vmul.f32 %v4293, %v4202
    %v4312 = vadd.f32 %v4310, %v4311
    %v4314 = vrot.slane %v3654, 2
    %v4316 = vsel %vm3766, %v4314, %v3748
    %v4317 = vmul.f32 %v4312, %v3762
    %v4318 = vmul.f32 %v4312, %v3769
    %4320 = vrot.lane.b32.xlu0 %v4317, 96
    %v4321 = vpop.permute.xlu0 %4320
    %v4323 = vsel %vm434, %v4321, %v4318
    %v4325 = vsel %vm3373, %v4323, 0
    %4327 = vmatprep.subr.mxu0 0.0
    %4328 = vmatpush1.msra.mxu0 %v3751
    %4329 = vmatprep.subr.mxu0 0.0
    %4330 = vmatpush1.msra.mxu0 %v3752
    %4331 = vmatprep.subr.mxu0 0.0
    %4332 = vmatpush1.msra.mxu0 %v3753
    %4333 = vmatprep.subr.mxu0 0.0
    %4334 = vmatpush1.msra.mxu0 %v3754
    %4335 = vmatprep.subr.mxu0 0.0
    %4336 = vmatpush1.msra.mxu0 %v3755
    %4337 = vmatprep.subr.mxu0 0.0
    %4338 = vmatpush1.msra.mxu0 %v3756
    %4339 = vmatprep.subr.mxu0 0.0
    %4340 = vmatpush1.msra.mxu0 %v3757
    %4341 = vmatprep.subr.mxu0 0.0
    %4342 = vmatpush1.msra.mxu0 %v3758
    %4343 = vmatprep.subr.mxu0 0.0
    %4344 = vmatpush1.msra.mxu0 0.0
    %4345 = vmatprep.subr.mxu0 0.0
    %4346 = vmatpush1.msra.mxu0 0.0
    %4347 = vmatprep.subr.mxu0 0.0
    %4348 = vmatpush1.msra.mxu0 0.0
    %4349 = vmatprep.subr.mxu0 0.0
    %4350 = vmatpush1.msra.mxu0 0.0
    %4351 = vmatprep.subr.mxu0 0.0
    %4352 = vmatpush1.msra.mxu0 0.0
    %4353 = vmatprep.subr.mxu0 0.0
    %4354 = vmatpush1.msra.mxu0 0.0
    %4355 = vmatprep.subr.mxu0 0.0
    %4356 = vmatpush1.msra.mxu0 0.0
    %4357 = vmatprep.subr.mxu0 0.0
    %4358 = vmatpush1.msra.mxu0 0.0
    %4359 = vmatprep.subr.mxu0 0.0
    %4360 = vmatpush1.msra.mxu0 0.0
    %4361 = vmatprep.subr.mxu0 0.0
    %4362 = vmatpush1.msra.mxu0 0.0
    %4363 = vmatprep.subr.mxu0 0.0
    %4364 = vmatpush1.msra.mxu0 0.0
    %4365 = vmatprep.subr.mxu0 0.0
    %4366 = vmatpush1.msra.mxu0 0.0
    %4367 = vmatprep.subr.mxu0 0.0
    %4368 = vmatpush1.msra.mxu0 0.0
    %4369 = vmatprep.subr.mxu0 0.0
    %4370 = vmatpush1.msra.mxu0 0.0
    %4371 = vmatprep.subr.mxu0 0.0
    %4372 = vmatpush1.msra.mxu0 0.0
    %4373 = vmatprep.subr.mxu0 0.0
    %4374 = vmatpush1.msra.mxu0 0.0
    %4375 = vmatprep.subr.mxu0 0.0
    %4376 = vmatpush1.msra.mxu0 0.0
    %4377 = vmatprep.subr.mxu0 0.0
    %4378 = vmatpush1.msra.mxu0 0.0
    %4379 = vmatprep.subr.mxu0 0.0
    %4380 = vmatpush1.msra.mxu0 0.0
    %4381 = vmatprep.subr.mxu0 0.0
    %4382 = vmatpush1.msra.mxu0 0.0
    %4383 = vmatprep.subr.mxu0 0.0
    %4384 = vmatpush1.msra.mxu0 0.0
    %4385 = vmatprep.subr.mxu0 0.0
    %4386 = vmatpush1.msra.mxu0 0.0
    %4387 = vmatprep.subr.mxu0 0.0
    %4388 = vmatpush1.msra.mxu0 0.0
    %4389 = vmatprep.subr.mxu0 0.0
    %4390 = vmatpush1.msra.mxu0 0.0
    %4391 = vmatprep.mubr.f32.mxu0 0.0
    %4392 = vmatmul.mubr.f32.gmra.mrb[0].mxu0 %v4325
    %v4393 = vpop.f32.mrb[0].mxu0
    %v4394 = vadd.f32 %v3759, %v4393
    %v4395 = vpop.f32.mrb[0].mxu0
    %4396 = vdwg.mxu0
    %v4397 = vadd.f32 %v4316, %v4394
    %v4398 = vxor.u32 %v4397, 2147483648
    %v4399 = vmul.f32 %v4398, 1.442695
    %v4400 = vpow.pop %v4399
    %v4401 = vadd.f32 %v4400, 1.0
    %v4402 = vrcp.pop %v4401
    %v4403 = vmul.f32 1.0, %v4402
    %4405 = vrot.lane.b32.xlu0 %v4394, 64
    %v4406 = vpop.permute.xlu0 %4405
    %v4408 = vmul.f32 %v4403, %v4406
    %4410 = vrot.lane.b32.xlu0 %v4408, 64
    %v4411 = vpop.permute.xlu0 %4410
    %v4413 = vadd.f32 %v4316, %v4411
    %v4414 = vtanh.pop %v4413
    %v4415 = vsub.f32 1.0, %v4403
    %4417 = vrot.lane.b32.xlu0 %v4414, 96
    %v4418 = vpop.permute.xlu0 %4417
    %v4420 = vmul.f32 %v4415, %v4418
    %v4421 = vmul.f32 %v4403, %v4312
    %v4422 = vadd.f32 %v4420, %v4421
    %v4423 = vrot.slane %v3654, 4
    %v4425 = vrot.slane %v3748, 2
    %v4427 = vsel %vm3766, %v4423, %v4425
    %v4428 = vmul.f32 %v4422, %v3762
    %v4429 = vmul.f32 %v4422, %v3769
    %4431 = vrot.lane.b32.xlu0 %v4428, 96
    %v4432 = vpop.permute.xlu0 %4431
    %v4434 = vsel %vm434, %v4432, %v4429
    %v4436 = vsel %vm3373, %v4434, 0
    %4438 = vmatprep.subr.mxu0 0.0
    %4439 = vmatpush1.msra.mxu0 %v3751
    %4440 = vmatprep.subr.mxu0 0.0
    %4441 = vmatpush1.msra.mxu0 %v3752
    %4442 = vmatprep.subr.mxu0 0.0
    %4443 = vmatpush1.msra.mxu0 %v3753
    %4444 = vmatprep.subr.mxu0 0.0
    %4445 = vmatpush1.msra.mxu0 %v3754
    %4446 = vmatprep.subr.mxu0 0.0
    %4447 = vmatpush1.msra.mxu0 %v3755
    %4448 = vmatprep.subr.mxu0 0.0
    %4449 = vmatpush1.msra.mxu0 %v3756
    %4450 = vmatprep.subr.mxu0 0.0
    %4451 = vmatpush1.msra.mxu0 %v3757
    %4452 = vmatprep.subr.mxu0 0.0
    %4453 = vmatpush1.msra.mxu0 %v3758
    %4454 = vmatprep.subr.mxu0 0.0
    %4455 = vmatpush1.msra.mxu0 0.0
    %4456 = vmatprep.subr.mxu0 0.0
    %4457 = vmatpush1.msra.mxu0 0.0
    %4458 = vmatprep.subr.mxu0 0.0
    %4459 = vmatpush1.msra.mxu0 0.0
    %4460 = vmatprep.subr.mxu0 0.0
    %4461 = vmatpush1.msra.mxu0 0.0
    %4462 = vmatprep.subr.mxu0 0.0
    %4463 = vmatpush1.msra.mxu0 0.0
    %4464 = vmatprep.subr.mxu0 0.0
    %4465 = vmatpush1.msra.mxu0 0.0
    %4466 = vmatprep.subr.mxu0 0.0
    %4467 = vmatpush1.msra.mxu0 0.0
    %4468 = vmatprep.subr.mxu0 0.0
    %4469 = vmatpush1.msra.mxu0 0.0
    %4470 = vmatprep.subr.mxu0 0.0
    %4471 = vmatpush1.msra.mxu0 0.0
    %4472 = vmatprep.subr.mxu0 0.0
    %4473 = vmatpush1.msra.mxu0 0.0
    %4474 = vmatprep.subr.mxu0 0.0
    %4475 = vmatpush1.msra.mxu0 0.0
    %4476 = vmatprep.subr.mxu0 0.0
    %4477 = vmatpush1.msra.mxu0 0.0
    %4478 = vmatprep.subr.mxu0 0.0
    %4479 = vmatpush1.msra.mxu0 0.0
    %4480 = vmatprep.subr.mxu0 0.0
    %4481 = vmatpush1.msra.mxu0 0.0
    %4482 = vmatprep.subr.mxu0 0.0
    %4483 = vmatpush1.msra.mxu0 0.0
    %4484 = vmatprep.subr.mxu0 0.0
    %4485 = vmatpush1.msra.mxu0 0.0
    %4486 = vmatprep.subr.mxu0 0.0
    %4487 = vmatpush1.msra.mxu0 0.0
    %4488 = vmatprep.subr.mxu0 0.0
    %4489 = vmatpush1.msra.mxu0 0.0
    %4490 = vmatprep.subr.mxu0 0.0
    %4491 = vmatpush1.msra.mxu0 0.0
    %4492 = vmatprep.subr.mxu0 0.0
    %4493 = vmatpush1.msra.mxu0 0.0
    %4494 = vmatprep.subr.mxu0 0.0
    %4495 = vmatpush1.msra.mxu0 0.0
    %4496 = vmatprep.subr.mxu0 0.0
    %4497 = vmatpush1.msra.mxu0 0.0
    %4498 = vmatprep.subr.mxu0 0.0
    %4499 = vmatpush1.msra.mxu0 0.0
    %4500 = vmatprep.subr.mxu0 0.0
    %4501 = vmatpush1.msra.mxu0 0.0
    %4502 = vmatprep.mubr.f32.mxu0 0.0
    %4503 = vmatmul.mubr.f32.gmra.mrb[0].mxu0 %v4436
    %v4504 = vpop.f32.mrb[0].mxu0
    %v4505 = vadd.f32 %v3759, %v4504
    %v4506 = vpop.f32.mrb[0].mxu0
    %4507 = vdwg.mxu0
    %v4508 = vadd.f32 %v4427, %v4505
    %v4509 = vxor.u32 %v4508, 2147483648
    %v4510 = vmul.f32 %v4509, 1.442695
    %v4511 = vpow.pop %v4510
    %v4512 = vadd.f32 %v4511, 1.0
    %v4513 = vrcp.pop %v4512
    %v4514 = vmul.f32 1.0, %v4513
    %4516 = vrot.lane.b32.xlu0 %v4505, 64
    %v4517 = vpop.permute.xlu0 %4516
    %v4519 = vmul.f32 %v4514, %v4517
    %4521 = vrot.lane.b32.xlu0 %v4519, 64
    %v4522 = vpop.permute.xlu0 %4521
    %v4524 = vadd.f32 %v4427, %v4522
    %v4525 = vtanh.pop %v4524
    %v4526 = vsub.f32 1.0, %v4514
    %4528 = vrot.lane.b32.xlu0 %v4525, 96
    %v4529 = vpop.permute.xlu0 %4528
    %v4531 = vmul.f32 %v4526, %v4529
    %v4532 = vmul.f32 %v4514, %v4422
    %v4533 = vadd.f32 %v4531, %v4532
    %v4534 = vrot.slane %v3654, 6
    %v4536 = vrot.slane %v3748, 4
    %v4538 = vsel %vm3766, %v4534, %v4536
    %v4539 = vmul.f32 %v4533, %v3762
    %v4540 = vmul.f32 %v4533, %v3769
    %4542 = vrot.lane.b32.xlu0 %v4539, 96
    %v4543 = vpop.permute.xlu0 %4542
    %v4545 = vsel %vm434, %v4543, %v4540
    %v4547 = vsel %vm3373, %v4545, 0
    %4549 = vmatprep.subr.mxu0 0.0
    %4550 = vmatpush1.msra.mxu0 %v3751
    %4551 = vmatprep.subr.mxu0 0.0
    %4552 = vmatpush1.msra.mxu0 %v3752
    %4553 = vmatprep.subr.mxu0 0.0
    %4554 = vmatpush1.msra.mxu0 %v3753
    %4555 = vmatprep.subr.mxu0 0.0
    %4556 = vmatpush1.msra.mxu0 %v3754
    %4557 = vmatprep.subr.mxu0 0.0
    %4558 = vmatpush1.msra.mxu0 %v3755
    %4559 = vmatprep.subr.mxu0 0.0
    %4560 = vmatpush1.msra.mxu0 %v3756
    %4561 = vmatprep.subr.mxu0 0.0
    %4562 = vmatpush1.msra.mxu0 %v3757
    %4563 = vmatprep.subr.mxu0 0.0
    %4564 = vmatpush1.msra.mxu0 %v3758
    %4565 = vmatprep.subr.mxu0 0.0
    %4566 = vmatpush1.msra.mxu0 0.0
    %4567 = vmatprep.subr.mxu0 0.0
    %4568 = vmatpush1.msra.mxu0 0.0
    %4569 = vmatprep.subr.mxu0 0.0
    %4570 = vmatpush1.msra.mxu0 0.0
    %4571 = vmatprep.subr.mxu0 0.0
    %4572 = vmatpush1.msra.mxu0 0.0
    %4573 = vmatprep.subr.mxu0 0.0
    %4574 = vmatpush1.msra.mxu0 0.0
    %4575 = vmatprep.subr.mxu0 0.0
    %4576 = vmatpush1.msra.mxu0 0.0
    %4577 = vmatprep.subr.mxu0 0.0
    %4578 = vmatpush1.msra.mxu0 0.0
    %4579 = vmatprep.subr.mxu0 0.0
    %4580 = vmatpush1.msra.mxu0 0.0
    %4581 = vmatprep.subr.mxu0 0.0
    %4582 = vmatpush1.msra.mxu0 0.0
    %4583 = vmatprep.subr.mxu0 0.0
    %4584 = vmatpush1.msra.mxu0 0.0
    %4585 = vmatprep.subr.mxu0 0.0
    %4586 = vmatpush1.msra.mxu0 0.0
    %4587 = vmatprep.subr.mxu0 0.0
    %4588 = vmatpush1.msra.mxu0 0.0
    %4589 = vmatprep.subr.mxu0 0.0
    %4590 = vmatpush1.msra.mxu0 0.0
    %4591 = vmatprep.subr.mxu0 0.0
    %4592 = vmatpush1.msra.mxu0 0.0
    %4593 = vmatprep.subr.mxu0 0.0
    %4594 = vmatpush1.msra.mxu0 0.0
    %4595 = vmatprep.subr.mxu0 0.0
    %4596 = vmatpush1.msra.mxu0 0.0
    %4597 = vmatprep.subr.mxu0 0.0
    %4598 = vmatpush1.msra.mxu0 0.0
    %4599 = vmatprep.subr.mxu0 0.0
    %4600 = vmatpush1.msra.mxu0 0.0
    %4601 = vmatprep.subr.mxu0 0.0
    %4602 = vmatpush1.msra.mxu0 0.0
    %4603 = vmatprep.subr.mxu0 0.0
    %4604 = vmatpush1.msra.mxu0 0.0
    %4605 = vmatprep.subr.mxu0 0.0
    %4606 = vmatpush1.msra.mxu0 0.0
    %4607 = vmatprep.subr.mxu0 0.0
    %4608 = vmatpush1.msra.mxu0 0.0
    %4609 = vmatprep.subr.mxu0 0.0
    %4610 = vmatpush1.msra.mxu0 0.0
    %4611 = vmatprep.subr.mxu0 0.0
    %4612 = vmatpush1.msra.mxu0 0.0
    %4613 = vmatprep.mubr.f32.mxu0 0.0
    %4614 = vmatmul.mubr.f32.gmra.mrb[0].mxu0 %v4547
    %v4615 = vpop.f32.mrb[0].mxu0
    %v4616 = vadd.f32 %v3759, %v4615
    %v4617 = vpop.f32.mrb[0].mxu0
    %4618 = vdwg.mxu0
    %v4619 = vadd.f32 %v4538, %v4616
    %v4620 = vxor.u32 %v4619, 2147483648
    %v4621 = vmul.f32 %v4620, 1.442695
    %v4622 = vpow.pop %v4621
    %v4623 = vadd.f32 %v4622, 1.0
    %v4624 = vrcp.pop %v4623
    %v4625 = vmul.f32 1.0, %v4624
    %4627 = vrot.lane.b32.xlu0 %v4616, 64
    %v4628 = vpop.permute.xlu0 %4627
    %v4630 = vmul.f32 %v4625, %v4628
    %4632 = vrot.lane.b32.xlu0 %v4630, 64
    %v4633 = vpop.permute.xlu0 %4632
    %v4635 = vadd.f32 %v4538, %v4633
    %v4636 = vtanh.pop %v4635
    %v4637 = vsub.f32 1.0, %v4625
    %4639 = vrot.lane.b32.xlu0 %v4636, 96
    %v4640 = vpop.permute.xlu0 %4639
    %v4642 = vmul.f32 %v4637, %v4640
    %v4643 = vmul.f32 %v4625, %v4533
    %v4644 = vadd.f32 %v4642, %v4643
    %4646 = vrot.lane.b32.xlu0 %v4644, 96
    %v4647 = vpop.permute.xlu0 %4646
    %v4649 = vrot.slane %v4644, 2
    %v4651 = vsel %vm434, %v4647, %v4649
    %v4652 = vld [vmem:[%s11] sm:$0xff]
    %v4653 = vld [vmem:[%s11 + $0x8] sm:$0xff]
    %v4654 = vld [vmem:[#allocation20] sm:$0xff]
    %v4655 = vld [vmem:[#allocation20 + $0x8] sm:$0xff]
    %v4656 = vld [vmem:[#allocation20 + $0x10] sm:$0x1f]
    %v4657 = vld [vmem:[#allocation20 + $0x18] sm:$0x1f]
    %v4658 = vld [vmem:[#allocation22] sm:$0x3]
    %v4660 = vlaneseq
    %v4661 = vshrl.u32 %v4660, 7
    %v4662 = vsub.s32 0, %v4661
    %v4663 = vrot.slane %v4658, %v4662
    %v4664 = vlaneseq
    %v4665 = vshrl.u32 %v4664, 7
    %v4666 = vsub.s32 1, %v4665
    %v4667 = vrot.slane %v4658, %v4666
    %vm4670 = vcmask 105472
    %v4672 = vsel %vm4670, %v4652, 0
    %v4675 = vsel %vm4670, %v4653, 0
    %vm4677 = vcmask 1044480
    %v4679 = vsel %vm4677, %v4656, 0
    %v4682 = vsel %vm4677, %v4657, 0
    %4684 = vmatprep.subr.mxu0 %v4655
    %4685 = vmatpush1.msra.mxu0 %v4654
    %4686 = vmatprep.subr.mxu0 %v4682
    %4687 = vmatpush1.msra.mxu0 %v4679
    %4688 = vmatprep.subr.mxu0 0.0
    %4689 = vmatpush1.msra.mxu0 0.0
    %4690 = vmatprep.subr.mxu0 0.0
    %4691 = vmatpush1.msra.mxu0 0.0
    %4692 = vmatprep.subr.mxu0 0.0
    %4693 = vmatpush1.msra.mxu0 0.0
    %4694 = vmatprep.subr.mxu0 0.0
    %4695 = vmatpush1.msra.mxu0 0.0
    %4696 = vmatprep.subr.mxu0 0.0
    %4697 = vmatpush1.msra.mxu0 0.0
    %4698 = vmatprep.subr.mxu0 0.0
    %4699 = vmatpush1.msra.mxu0 0.0
    %4700 = vmatprep.subr.mxu0 0.0
    %4701 = vmatpush1.msra.mxu0 0.0
    %4702 = vmatprep.subr.mxu0 0.0
    %4703 = vmatpush1.msra.mxu0 0.0
    %4704 = vmatprep.subr.mxu0 0.0
    %4705 = vmatpush1.msra.mxu0 0.0
    %4706 = vmatprep.subr.mxu0 0.0
    %4707 = vmatpush1.msra.mxu0 0.0
    %4708 = vmatprep.subr.mxu0 0.0
    %4709 = vmatpush1.msra.mxu0 0.0
    %4710 = vmatprep.subr.mxu0 0.0
    %4711 = vmatpush1.msra.mxu0 0.0
    %4712 = vmatprep.subr.mxu0 0.0
    %4713 = vmatpush1.msra.mxu0 0.0
    %4714 = vmatprep.subr.mxu0 0.0
    %4715 = vmatpush1.msra.mxu0 0.0
    %4716 = vmatprep.subr.mxu0 0.0
    %4717 = vmatpush1.msra.mxu0 0.0
    %4718 = vmatprep.subr.mxu0 0.0
    %4719 = vmatpush1.msra.mxu0 0.0
    %4720 = vmatprep.subr.mxu0 0.0
    %4721 = vmatpush1.msra.mxu0 0.0
    %4722 = vmatprep.subr.mxu0 0.0
    %4723 = vmatpush1.msra.mxu0 0.0
    %4724 = vmatprep.subr.mxu0 0.0
    %4725 = vmatpush1.msra.mxu0 0.0
    %4726 = vmatprep.subr.mxu0 0.0
    %4727 = vmatpush1.msra.mxu0 0.0
    %4728 = vmatprep.subr.mxu0 0.0
    %4729 = vmatpush1.msra.mxu0 0.0
    %4730 = vmatprep.subr.mxu0 0.0
    %4731 = vmatpush1.msra.mxu0 0.0
    %4732 = vmatprep.subr.mxu0 0.0
    %4733 = vmatpush1.msra.mxu0 0.0
    %4734 = vmatprep.subr.mxu0 0.0
    %4735 = vmatpush1.msra.mxu0 0.0
    %4736 = vmatprep.subr.mxu0 0.0
    %4737 = vmatpush1.msra.mxu0 0.0
    %4738 = vmatprep.subr.mxu0 0.0
    %4739 = vmatpush1.msra.mxu0 0.0
    %4740 = vmatprep.subr.mxu0 0.0
    %4741 = vmatpush1.msra.mxu0 0.0
    %4742 = vmatprep.subr.mxu0 0.0
    %4743 = vmatpush1.msra.mxu0 0.0
    %4744 = vmatprep.subr.mxu0 0.0
    %4745 = vmatpush1.msra.mxu0 0.0
    %4746 = vmatprep.subr.mxu0 0.0
    %4747 = vmatpush1.msra.mxu0 0.0
    %4748 = vmatprep.mubr.f32.mxu0 0.0
    %4749 = vmatmul.mubr.f32.gmra.mrb[0].mxu0 %v4672
    %v4750 = vpop.f32.mrb[0].mxu0
    %v4751 = vadd.f32 %v4663, %v4750
    %v4752 = vpop.f32.mrb[0].mxu0
    %v4753 = vadd.f32 %v4667, %v4752
    %4754 = vmatprep.mubr.f32.mxu0 0.0
    %4755 = vmatmul.mubr.f32.gmra.mrb[0].mxu0 %v4675
    %v4756 = vpop.f32.mrb[0].mxu0
    %v4757 = vadd.f32 %v4663, %v4756
    %v4758 = vpop.f32.mrb[0].mxu0
    %v4759 = vadd.f32 %v4667, %v4758
    %4760 = vdwg.mxu0
    %vm4761 = vcmp.ge.f32.partialorder %v4751, 0.0
    %vm4762 = vcmp.ge.f32.partialorder %v4753, 0.0
    %vm4763 = vcmp.ge.f32.partialorder %v4757, 0.0
    %vm4764 = vcmp.ge.f32.partialorder %v4759, 0.0
    %v4765 = vmul.f32 %v4751, 0.25
    %v4766 = vmul.f32 %v4753, 0.25
    %v4767 = vmul.f32 %v4757, 0.25
    %v4768 = vmul.f32 %v4759, 0.25
    %v4769 = vsel %vm4761, %v4751, %v4765
    %v4770 = vsel %vm4762, %v4753, %v4766
    %v4771 = vsel %vm4763, %v4757, %v4767
    %v4772 = vsel %vm4764, %v4759, %v4768
    %v4773 = vld [vmem:[#allocation3] sm:$0xff]
    %v4774 = vld [vmem:[#allocation3 + $0x8] sm:$0xff]
    %v4775 = vld [vmem:[#allocation23] sm:$0xff]
    %v4776 = vld [vmem:[#allocation23 + $0x8] sm:$0xff]
    %v4777 = vld [vmem:[#allocation23 + $0x10] sm:$0xff]
    %v4778 = vld [vmem:[#allocation23 + $0x18] sm:$0xff]
    %v4779 = vld [vmem:[#allocation23 + $0x20] sm:$0xff]
    %v4780 = vld [vmem:[#allocation23 + $0x28] sm:$0xff]
    %v4781 = vld [vmem:[#allocation23 + $0x30] sm:$0xff]
    %v4782 = vld [vmem:[#allocation23 + $0x38] sm:$0xff]
    %v4783 = vld [vmem:[#allocation23 + $0x40] sm:$0xff]
    %v4784 = vld [vmem:[#allocation23 + $0x48] sm:$0xff]
    %v4785 = vld [vmem:[#allocation23 + $0x50] sm:$0xff]
    %v4786 = vld [vmem:[#allocation23 + $0x58] sm:$0xff]
    %v4787 = vld [vmem:[#allocation25] sm:$0xf]
    %v4789 = vlaneseq
    %v4790 = vshrl.u32 %v4789, 7
    %v4791 = vsub.s32 0, %v4790
    %v4792 = vrot.slane %v4787, %v4791
    %v4793 = vlaneseq
    %v4794 = vshrl.u32 %v4793, 7
    %v4795 = vsub.s32 1, %v4794
    %v4796 = vrot.slane %v4787, %v4795
    %v4797 = vlaneseq
    %v4798 = vshrl.u32 %v4797, 7
    %v4799 = vsub.s32 2, %v4798
    %v4800 = vrot.slane %v4787, %v4799
    %v4801 = vlaneseq
    %v4802 = vshrl.u32 %v4801, 7
    %v4803 = vsub.s32 3, %v4802
    %v4804 = vrot.slane %v4787, %v4803
    %v4810 = vsel %vm3270, %v4773, 0
    %v4813 = vsel %vm3270, %v4774, 0
    %4815 = vmatprep.subr.mxu0 %v4776
    %4816 = vmatpush1.msra.mxu0 %v4775
    %4817 = vmatprep.subr.mxu0 %v4780
    %4818 = vmatpush1.msra.mxu0 %v4779
    %4819 = vmatprep.subr.mxu0 %v4784
    %4820 = vmatpush1.msra.mxu0 %v4783
    %4821 = vmatprep.subr.mxu0 0.0
    %4822 = vmatpush1.msra.mxu0 0.0
    %4823 = vmatprep.subr.mxu0 0.0
    %4824 = vmatpush1.msra.mxu0 0.0
    %4825 = vmatprep.subr.mxu0 0.0
    %4826 = vmatpush1.msra.mxu0 0.0
    %4827 = vmatprep.subr.mxu0 0.0
    %4828 = vmatpush1.msra.mxu0 0.0
    %4829 = vmatprep.subr.mxu0 0.0
    %4830 = vmatpush1.msra.mxu0 0.0
    %4831 = vmatprep.subr.mxu0 0.0
    %4832 = vmatpush1.msra.mxu0 0.0
    %4833 = vmatprep.subr.mxu0 0.0
    %4834 = vmatpush1.msra.mxu0 0.0
    %4835 = vmatprep.subr.mxu0 0.0
    %4836 = vmatpush1.msra.mxu0 0.0
    %4837 = vmatprep.subr.mxu0 0.0
    %4838 = vmatpush1.msra.mxu0 0.0
    %4839 = vmatprep.subr.mxu0 0.0
    %4840 = vmatpush1.msra.mxu0 0.0
    %4841 = vmatprep.subr.mxu0 0.0
    %4842 = vmatpush1.msra.mxu0 0.0
    %4843 = vmatprep.subr.mxu0 0.0
    %4844 = vmatpush1.msra.mxu0 0.0
    %4845 = vmatprep.subr.mxu0 0.0
    %4846 = vmatpush1.msra.mxu0 0.0
    %4847 = vmatprep.subr.mxu0 0.0
    %4848 = vmatpush1.msra.mxu0 0.0
    %4849 = vmatprep.subr.mxu0 0.0
    %4850 = vmatpush1.msra.mxu0 0.0
    %4851 = vmatprep.subr.mxu0 0.0
    %4852 = vmatpush1.msra.mxu0 0.0
    %4853 = vmatprep.subr.mxu0 0.0
    %4854 = vmatpush1.msra.mxu0 0.0
    %4855 = vmatprep.subr.mxu0 0.0
    %4856 = vmatpush1.msra.mxu0 0.0
    %4857 = vmatprep.subr.mxu0 0.0
    %4858 = vmatpush1.msra.mxu0 0.0
    %4859 = vmatprep.subr.mxu0 0.0
    %4860 = vmatpush1.msra.mxu0 0.0
    %4861 = vmatprep.subr.mxu0 0.0
    %4862 = vmatpush1.msra.mxu0 0.0
    %4863 = vmatprep.subr.mxu0 0.0
    %4864 = vmatpush1.msra.mxu0 0.0
    %4865 = vmatprep.subr.mxu0 0.0
    %4866 = vmatpush1.msra.mxu0 0.0
    %4867 = vmatprep.subr.mxu0 0.0
    %4868 = vmatpush1.msra.mxu0 0.0
    %4869 = vmatprep.subr.mxu0 0.0
    %4870 = vmatpush1.msra.mxu0 0.0
    %4871 = vmatprep.subr.mxu0 0.0
    %4872 = vmatpush1.msra.mxu0 0.0
    %4873 = vmatprep.subr.mxu0 0.0
    %4874 = vmatpush1.msra.mxu0 0.0
    %4875 = vmatprep.subr.mxu0 0.0
    %4876 = vmatpush1.msra.mxu0 0.0
    %4877 = vmatprep.subr.mxu0 0.0
    %4878 = vmatpush1.msra.mxu0 0.0
    %4879 = vmatprep.mubr.f32.mxu0 0.0
    %4880 = vmatmul.mubr.f32.gmra.mrb[0].mxu0 %v4810
    %v4881 = vpop.f32.mrb[0].mxu0
    %v4882 = vadd.f32 %v4792, %v4881
    %v4883 = vpop.f32.mrb[0].mxu0
    %v4884 = vadd.f32 %v4796, %v4883
    %4885 = vmatprep.mubr.f32.mxu0 0.0
    %4886 = vmatmul.mubr.f32.gmra.mrb[0].mxu0 %v4813
    %v4887 = vpop.f32.mrb[0].mxu0
    %v4888 = vadd.f32 %v4792, %v4887
    %v4889 = vpop.f32.mrb[0].mxu0
    %v4890 = vadd.f32 %v4796, %v4889
    %4891 = vdwg.mxu0
    %4892 = vmatprep.subr.mxu0 %v4778
    %4893 = vmatpush1.msra.mxu0 %v4777
    %4894 = vmatprep.subr.mxu0 %v4782
    %4895 = vmatpush1.msra.mxu0 %v4781
    %4896 = vmatprep.subr.mxu0 %v4786
    %4897 = vmatpush1.msra.mxu0 %v4785
    %4898 = vmatprep.subr.mxu0 0.0
    %4899 = vmatpush1.msra.mxu0 0.0
    %4900 = vmatprep.subr.mxu0 0.0
    %4901 = vmatpush1.msra.mxu0 0.0
    %4902 = vmatprep.subr.mxu0 0.0
    %4903 = vmatpush1.msra.mxu0 0.0
    %4904 = vmatprep.subr.mxu0 0.0
    %4905 = vmatpush1.msra.mxu0 0.0
    %4906 = vmatprep.subr.mxu0 0.0
    %4907 = vmatpush1.msra.mxu0 0.0
    %4908 = vmatprep.subr.mxu0 0.0
    %4909 = vmatpush1.msra.mxu0 0.0
    %4910 = vmatprep.subr.mxu0 0.0
    %4911 = vmatpush1.msra.mxu0 0.0
    %4912 = vmatprep.subr.mxu0 0.0
    %4913 = vmatpush1.msra.mxu0 0.0
    %4914 = vmatprep.subr.mxu0 0.0
    %4915 = vmatpush1.msra.mxu0 0.0
    %4916 = vmatprep.subr.mxu0 0.0
    %4917 = vmatpush1.msra.mxu0 0.0
    %4918 = vmatprep.subr.mxu0 0.0
    %4919 = vmatpush1.msra.mxu0 0.0
    %4920 = vmatprep.subr.mxu0 0.0
    %4921 = vmatpush1.msra.mxu0 0.0
    %4922 = vmatprep.subr.mxu0 0.0
    %4923 = vmatpush1.msra.mxu0 0.0
    %4924 = vmatprep.subr.mxu0 0.0
    %4925 = vmatpush1.msra.mxu0 0.0
    %4926 = vmatprep.subr.mxu0 0.0
    %4927 = vmatpush1.msra.mxu0 0.0
    %4928 = vmatprep.subr.mxu0 0.0
    %4929 = vmatpush1.msra.mxu0 0.0
    %4930 = vmatprep.subr.mxu0 0.0
    %4931 = vmatpush1.msra.mxu0 0.0
    %4932 = vmatprep.subr.mxu0 0.0
    %4933 = vmatpush1.msra.mxu0 0.0
    %4934 = vmatprep.subr.mxu0 0.0
    %4935 = vmatpush1.msra.mxu0 0.0
    %4936 = vmatprep.subr.mxu0 0.0
    %4937 = vmatpush1.msra.mxu0 0.0
    %4938 = vmatprep.subr.mxu0 0.0
    %4939 = vmatpush1.msra.mxu0 0.0
    %4940 = vmatprep.subr.mxu0 0.0
    %4941 = vmatpush1.msra.mxu0 0.0
    %4942 = vmatprep.subr.mxu0 0.0
    %4943 = vmatpush1.msra.mxu0 0.0
    %4944 = vmatprep.subr.mxu0 0.0
    %4945 = vmatpush1.msra.mxu0 0.0
    %4946 = vmatprep.subr.mxu0 0.0
    %4947 = vmatpush1.msra.mxu0 0.0
    %4948 = vmatprep.subr.mxu0 0.0
    %4949 = vmatpush1.msra.mxu0 0.0
    %4950 = vmatprep.subr.mxu0 0.0
    %4951 = vmatpush1.msra.mxu0 0.0
    %4952 = vmatprep.subr.mxu0 0.0
    %4953 = vmatpush1.msra.mxu0 0.0
    %4954 = vmatprep.subr.mxu0 0.0
    %4955 = vmatpush1.msra.mxu0 0.0
    %4956 = vmatprep.mubr.f32.mxu0 0.0
    %4957 = vmatmul.mubr.f32.gmra.mrb[0].mxu0 %v4810
    %v4958 = vpop.f32.mrb[0].mxu0
    %v4959 = vadd.f32 %v4800, %v4958
    %v4960 = vpop.f32.mrb[0].mxu0
    %v4961 = vadd.f32 %v4804, %v4960
    %4962 = vmatprep.mubr.f32.mxu0 0.0
    %4963 = vmatmul.mubr.f32.gmra.mrb[0].mxu0 %v4813
    %v4964 = vpop.f32.mrb[0].mxu0
    %v4965 = vadd.f32 %v4800, %v4964
    %v4966 = vpop.f32.mrb[0].mxu0
    %v4967 = vadd.f32 %v4804, %v4966
    %4968 = vdwg.mxu0
    %vm4969 = vcmp.ge.f32.partialorder %v4882, 0.0
    %vm4970 = vcmp.ge.f32.partialorder %v4884, 0.0
    %vm4971 = vcmp.ge.f32.partialorder %v4959, 0.0
    %vm4972 = vcmp.ge.f32.partialorder %v4961, 0.0
    %vm4973 = vcmp.ge.f32.partialorder %v4888, 0.0
    %vm4974 = vcmp.ge.f32.partialorder %v4890, 0.0
    %vm4975 = vcmp.ge.f32.partialorder %v4965, 0.0
    %vm4976 = vcmp.ge.f32.partialorder %v4967, 0.0
    %v4977 = vmul.f32 %v4882, 0.25
    %v4978 = vmul.f32 %v4884, 0.25
    %v4979 = vmul.f32 %v4959, 0.25
    %v4980 = vmul.f32 %v4961, 0.25
    %v4981 = vmul.f32 %v4888, 0.25
    %v4982 = vmul.f32 %v4890, 0.25
    %v4983 = vmul.f32 %v4965, 0.25
    %v4984 = vmul.f32 %v4967, 0.25
    %v4985 = vsel %vm4969, %v4882, %v4977
    %v4986 = vsel %vm4970, %v4884, %v4978
    %v4987 = vsel %vm4971, %v4959, %v4979
    %v4988 = vsel %vm4972, %v4961, %v4980
    %v4989 = vsel %vm4973, %v4888, %v4981
    %v4990 = vsel %vm4974, %v4890, %v4982
    %v4991 = vsel %vm4975, %v4965, %v4983
    %v4992 = vsel %vm4976, %v4967, %v4984
    %v4993 = vld [vmem:[#allocation5] sm:$0xff]
    %v4994 = vld [vmem:[#allocation5 + $0x8] sm:$0xff]
    %v4995 = vld [vmem:[#allocation26] sm:$0xff]
    %v4996 = vld [vmem:[#allocation26 + $0x8] sm:$0xff]
    %v4997 = vld [vmem:[#allocation26 + $0x10] sm:$0xff]
    %v4998 = vld [vmem:[#allocation26 + $0x18] sm:$0xff]
    %v4999 = vld [vmem:[#allocation26 + $0x20] sm:$0xff]
    %v5000 = vld [vmem:[#allocation26 + $0x28] sm:$0xff]
    %v5001 = vld [vmem:[#allocation26 + $0x30] sm:$0xff]
    %v5002 = vld [vmem:[#allocation26 + $0x38] sm:$0xff]
    %v5003 = vld [vmem:[#allocation26 + $0x40] sm:$0xff]
    %v5004 = vld [vmem:[#allocation26 + $0x48] sm:$0xff]
    %v5005 = vld [vmem:[#allocation26 + $0x50] sm:$0xff]
    %v5006 = vld [vmem:[#allocation26 + $0x58] sm:$0xff]
    %v5007 = vld [vmem:[#allocation28] sm:$0x3]
    %v5009 = vlaneseq
    %v5010 = vshrl.u32 %v5009, 7
    %v5011 = vsub.s32 0, %v5010
    %v5012 = vrot.slane %v5007, %v5011
    %v5013 = vlaneseq
    %v5014 = vshrl.u32 %v5013, 7
    %v5015 = vsub.s32 1, %v5014
    %v5016 = vrot.slane %v5007, %v5015
    %vm5019 = vcmask 392192
    %v5021 = vsel %vm5019, %v4993, 0
    %v5024 = vsel %vm5019, %v4994, 0
    %5026 = vmatprep.subr.mxu0 %v4996
    %5027 = vmatpush1.msra.mxu0 %v4995
    %5028 = vmatprep.subr.mxu0 %v4998
    %5029 = vmatpush1.msra.mxu0 %v4997
    %5030 = vmatprep.subr.mxu0 %v5000
    %5031 = vmatpush1.msra.mxu0 %v4999
    %5032 = vmatprep.subr.mxu0 %v5002
    %5033 = vmatpush1.msra.mxu0 %v5001
    %5034 = vmatprep.subr.mxu0 %v5004
    %5035 = vmatpush1.msra.mxu0 %v5003
    %5036 = vmatprep.subr.mxu0 %v5006
    %5037 = vmatpush1.msra.mxu0 %v5005
    %5038 = vmatprep.subr.mxu0 0.0
    %5039 = vmatpush1.msra.mxu0 0.0
    %5040 = vmatprep.subr.mxu0 0.0
    %5041 = vmatpush1.msra.mxu0 0.0
    %5042 = vmatprep.subr.mxu0 0.0
    %5043 = vmatpush1.msra.mxu0 0.0
    %5044 = vmatprep.subr.mxu0 0.0
    %5045 = vmatpush1.msra.mxu0 0.0
    %5046 = vmatprep.subr.mxu0 0.0
    %5047 = vmatpush1.msra.mxu0 0.0
    %5048 = vmatprep.subr.mxu0 0.0
    %5049 = vmatpush1.msra.mxu0 0.0
    %5050 = vmatprep.subr.mxu0 0.0
    %5051 = vmatpush1.msra.mxu0 0.0
    %5052 = vmatprep.subr.mxu0 0.0
    %5053 = vmatpush1.msra.mxu0 0.0
    %5054 = vmatprep.subr.mxu0 0.0
    %5055 = vmatpush1.msra.mxu0 0.0
    %5056 = vmatprep.subr.mxu0 0.0
    %5057 = vmatpush1.msra.mxu0 0.0
    %5058 = vmatprep.subr.mxu0 0.0
    %5059 = vmatpush1.msra.mxu0 0.0
    %5060 = vmatprep.subr.mxu0 0.0
    %5061 = vmatpush1.msra.mxu0 0.0
    %5062 = vmatprep.subr.mxu0 0.0
    %5063 = vmatpush1.msra.mxu0 0.0
    %5064 = vmatprep.subr.mxu0 0.0
    %5065 = vmatpush1.msra.mxu0 0.0
    %5066 = vmatprep.subr.mxu0 0.0
    %5067 = vmatpush1.msra.mxu0 0.0
    %5068 = vmatprep.subr.mxu0 0.0
    %5069 = vmatpush1.msra.mxu0 0.0
    %5070 = vmatprep.subr.mxu0 0.0
    %5071 = vmatpush1.msra.mxu0 0.0
    %5072 = vmatprep.subr.mxu0 0.0
    %5073 = vmatpush1.msra.mxu0 0.0
    %5074 = vmatprep.subr.mxu0 0.0
    %5075 = vmatpush1.msra.mxu0 0.0
    %5076 = vmatprep.subr.mxu0 0.0
    %5077 = vmatpush1.msra.mxu0 0.0
    %5078 = vmatprep.subr.mxu0 0.0
    %5079 = vmatpush1.msra.mxu0 0.0
    %5080 = vmatprep.subr.mxu0 0.0
    %5081 = vmatpush1.msra.mxu0 0.0
    %5082 = vmatprep.subr.mxu0 0.0
    %5083 = vmatpush1.msra.mxu0 0.0
    %5084 = vmatprep.subr.mxu0 0.0
    %5085 = vmatpush1.msra.mxu0 0.0
    %5086 = vmatprep.subr.mxu0 0.0
    %5087 = vmatpush1.msra.mxu0 0.0
    %5088 = vmatprep.subr.mxu0 0.0
    %5089 = vmatpush1.msra.mxu0 0.0
    %5090 = vmatprep.mubr.f32.mxu0 0.0
    %5091 = vmatmul.mubr.f32.gmra.mrb[0].mxu0 %v5021
    %v5092 = vpop.f32.mrb[0].mxu0
    %v5093 = vadd.f32 %v5012, %v5092
    %v5094 = vpop.f32.mrb[0].mxu0
    %v5095 = vadd.f32 %v5016, %v5094
    %5096 = vmatprep.mubr.f32.mxu0 0.0
    %5097 = vmatmul.mubr.f32.gmra.mrb[0].mxu0 %v5024
    %v5098 = vpop.f32.mrb[0].mxu0
    %v5099 = vadd.f32 %v5012, %v5098
    %v5100 = vpop.f32.mrb[0].mxu0
    %v5101 = vadd.f32 %v5016, %v5100
    %5102 = vdwg.mxu0
    %vm5103 = vcmp.ge.f32.partialorder %v5093, 0.0
    %vm5104 = vcmp.ge.f32.partialorder %v5095, 0.0
    %vm5105 = vcmp.ge.f32.partialorder %v5099, 0.0
    %vm5106 = vcmp.ge.f32.partialorder %v5101, 0.0
    %v5107 = vmul.f32 %v5093, 0.25
    %v5108 = vmul.f32 %v5095, 0.25
    %v5109 = vmul.f32 %v5099, 0.25
    %v5110 = vmul.f32 %v5101, 0.25
    %v5111 = vsel %vm5103, %v5093, %v5107
    %v5112 = vsel %vm5104, %v5095, %v5108
    %v5113 = vsel %vm5105, %v5099, %v5109
    %v5114 = vsel %vm5106, %v5101, %v5110
    %v5115 = vld [vmem:[%s17] sm:$0xff]
    %v5116 = vld [vmem:[%s17 + $0x8] sm:$0xff]
    %v5117 = vld [vmem:[%s55] sm:$0xff]
    %v5118 = vld [vmem:[%s55 + $0x8] sm:$0xff]
    %v5119 = vld [vmem:[%s55 + $0x10] sm:$0xff]
    %v5120 = vld [vmem:[%s55 + $0x18] sm:$0xff]
    %v5121 = vld [vmem:[%s55 + $0x20] sm:$0xff]
    %v5122 = vld [vmem:[%s55 + $0x28] sm:$0xff]
    %v5123 = vld [vmem:[%s55 + $0x30] sm:$0xff]
    %v5124 = vld [vmem:[%s55 + $0x38] sm:$0xff]
    %v5125 = vld [vmem:[%s55 + $0x40] sm:$0xff]
    %v5126 = vld [vmem:[%s55 + $0x48] sm:$0xff]
    %v5127 = vld [vmem:[%s55 + $0x50] sm:$0xff]
    %v5128 = vld [vmem:[%s55 + $0x58] sm:$0xff]
    %v5129 = vld [vmem:[%s55 + $0x60] sm:$0xff]
    %v5130 = vld [vmem:[%s55 + $0x68] sm:$0xff]
    %v5131 = vld [vmem:[%s55 + $0x70] sm:$0xff]
    %v5132 = vld [vmem:[%s55 + $0x78] sm:$0xff]
    %v5133 = vld [vmem:[%s55 + $0x80] sm:$0xff]
    %v5134 = vld [vmem:[%s55 + $0x88] sm:$0xff]
    %v5135 = vld [vmem:[%s55 + $0x90] sm:$0xff]
    %v5136 = vld [vmem:[%s55 + $0x98] sm:$0xff]
    %v5137 = vld [vmem:[%s55 + $0xa0] sm:$0xff]
    %v5138 = vld [vmem:[%s55 + $0xa8] sm:$0xff]
    %v5139 = vld [vmem:[%s55 + $0xb0] sm:$0xff]
    %v5140 = vld [vmem:[%s55 + $0xb8] sm:$0xff]
    %v5141 = vld [vmem:[%s55 + $0xc0] sm:$0xff]
    %v5142 = vld [vmem:[%s55 + $0xc8] sm:$0xff]
    %v5143 = vld [vmem:[%s55 + $0xd0] sm:$0xff]
    %v5144 = vld [vmem:[%s55 + $0xd8] sm:$0xff]
    %v5145 = vld [vmem:[%s55 + $0xe0] sm:$0xff]
    %v5146 = vld [vmem:[%s55 + $0xe8] sm:$0xff]
    %v5147 = vld [vmem:[%s55 + $0xf0] sm:$0xff]
    %v5148 = vld [vmem:[%s55 + $0xf8] sm:$0xff]
    %v5150 = vsel %vm3373, %v4651, 0
    %5152 = vmatprep.subr.mxu0 %v5118
    %5153 = vmatpush1.msra.mxu0 %v5117
    %5154 = vmatprep.subr.mxu0 %v5122
    %5155 = vmatpush1.msra.mxu0 %v5121
    %5156 = vmatprep.subr.mxu0 %v5126
    %5157 = vmatpush1.msra.mxu0 %v5125
    %5158 = vmatprep.subr.mxu0 %v5130
    %5159 = vmatpush1.msra.mxu0 %v5129
    %5160 = vmatprep.subr.mxu0 %v5134
    %5161 = vmatpush1.msra.mxu0 %v5133
    %5162 = vmatprep.subr.mxu0 %v5138
    %5163 = vmatpush1.msra.mxu0 %v5137
    %5164 = vmatprep.subr.mxu0 %v5142
    %5165 = vmatpush1.msra.mxu0 %v5141
    %5166 = vmatprep.subr.mxu0 %v5146
    %5167 = vmatpush1.msra.mxu0 %v5145
    %5168 = vmatprep.subr.mxu0 0.0
    %5169 = vmatpush1.msra.mxu0 0.0
    %5170 = vmatprep.subr.mxu0 0.0
    %5171 = vmatpush1.msra.mxu0 0.0
    %5172 = vmatprep.subr.mxu0 0.0
    %5173 = vmatpush1.msra.mxu0 0.0
    %5174 = vmatprep.subr.mxu0 0.0
    %5175 = vmatpush1.msra.mxu0 0.0
    %5176 = vmatprep.subr.mxu0 0.0
    %5177 = vmatpush1.msra.mxu0 0.0
    %5178 = vmatprep.subr.mxu0 0.0
    %5179 = vmatpush1.msra.mxu0 0.0
    %5180 = vmatprep.subr.mxu0 0.0
    %5181 = vmatpush1.msra.mxu0 0.0
    %5182 = vmatprep.subr.mxu0 0.0
    %5183 = vmatpush1.msra.mxu0 0.0
    %5184 = vmatprep.subr.mxu0 0.0
    %5185 = vmatpush1.msra.mxu0 0.0
    %5186 = vmatprep.subr.mxu0 0.0
    %5187 = vmatpush1.msra.mxu0 0.0
    %5188 = vmatprep.subr.mxu0 0.0
    %5189 = vmatpush1.msra.mxu0 0.0
    %5190 = vmatprep.subr.mxu0 0.0
    %5191 = vmatpush1.msra.mxu0 0.0
    %5192 = vmatprep.subr.mxu0 0.0
    %5193 = vmatpush1.msra.mxu0 0.0
    %5194 = vmatprep.subr.mxu0 0.0
    %5195 = vmatpush1.msra.mxu0 0.0
    %5196 = vmatprep.subr.mxu0 0.0
    %5197 = vmatpush1.msra.mxu0 0.0
    %5198 = vmatprep.subr.mxu0 0.0
    %5199 = vmatpush1.msra.mxu0 0.0
    %5200 = vmatprep.subr.mxu0 0.0
    %5201 = vmatpush1.msra.mxu0 0.0
    %5202 = vmatprep.subr.mxu0 0.0
    %5203 = vmatpush1.msra.mxu0 0.0
    %5204 = vmatprep.subr.mxu0 0.0
    %5205 = vmatpush1.msra.mxu0 0.0
    %5206 = vmatprep.subr.mxu0 0.0
    %5207 = vmatpush1.msra.mxu0 0.0
    %5208 = vmatprep.subr.mxu0 0.0
    %5209 = vmatpush1.msra.mxu0 0.0
    %5210 = vmatprep.subr.mxu0 0.0
    %5211 = vmatpush1.msra.mxu0 0.0
    %5212 = vmatprep.subr.mxu0 0.0
    %5213 = vmatpush1.msra.mxu0 0.0
    %5214 = vmatprep.subr.mxu0 0.0
    %5215 = vmatpush1.msra.mxu0 0.0
    %5216 = vmatprep.mubr.f32.mxu0 0.0
    %5217 = vmatmul.mubr.f32.gmra.mrb[0].mxu0 %v5150
    %v5218 = vpop.f32.mrb[0].mxu0
    %v5219 = vadd.f32 0.0, %v5218
    %v5220 = vpop.f32.mrb[0].mxu0
    %v5221 = vadd.f32 0.0, %v5220
    %5222 = vdwg.mxu0
    %5223 = vmatprep.subr.mxu0 %v5120
    %5224 = vmatpush1.msra.mxu0 %v5119
    %5225 = vmatprep.subr.mxu0 %v5124
    %5226 = vmatpush1.msra.mxu0 %v5123
    %5227 = vmatprep.subr.mxu0 %v5128
    %5228 = vmatpush1.msra.mxu0 %v5127
    %5229 = vmatprep.subr.mxu0 %v5132
    %5230 = vmatpush1.msra.mxu0 %v5131
    %5231 = vmatprep.subr.mxu0 %v5136
    %5232 = vmatpush1.msra.mxu0 %v5135
    %5233 = vmatprep.subr.mxu0 %v5140
    %5234 = vmatpush1.msra.mxu0 %v5139
    %5235 = vmatprep.subr.mxu0 %v5144
    %5236 = vmatpush1.msra.mxu0 %v5143
    %5237 = vmatprep.subr.mxu0 %v5148
    %5238 = vmatpush1.msra.mxu0 %v5147
    %5239 = vmatprep.subr.mxu0 0.0
    %5240 = vmatpush1.msra.mxu0 0.0
    %5241 = vmatprep.subr.mxu0 0.0
    %5242 = vmatpush1.msra.mxu0 0.0
    %5243 = vmatprep.subr.mxu0 0.0
    %5244 = vmatpush1.msra.mxu0 0.0
    %5245 = vmatprep.subr.mxu0 0.0
    %5246 = vmatpush1.msra.mxu0 0.0
    %5247 = vmatprep.subr.mxu0 0.0
    %5248 = vmatpush1.msra.mxu0 0.0
    %5249 = vmatprep.subr.mxu0 0.0
    %5250 = vmatpush1.msra.mxu0 0.0
    %5251 = vmatprep.subr.mxu0 0.0
    %5252 = vmatpush1.msra.mxu0 0.0
    %5253 = vmatprep.subr.mxu0 0.0
    %5254 = vmatpush1.msra.mxu0 0.0
    %5255 = vmatprep.subr.mxu0 0.0
    %5256 = vmatpush1.msra.mxu0 0.0
    %5257 = vmatprep.subr.mxu0 0.0
    %5258 = vmatpush1.msra.mxu0 0.0
    %5259 = vmatprep.subr.mxu0 0.0
    %5260 = vmatpush1.msra.mxu0 0.0
    %5261 = vmatprep.subr.mxu0 0.0
    %5262 = vmatpush1.msra.mxu0 0.0
    %5263 = vmatprep.subr.mxu0 0.0
    %5264 = vmatpush1.msra.mxu0 0.0
    %5265 = vmatprep.subr.mxu0 0.0
    %5266 = vmatpush1.msra.mxu0 0.0
    %5267 = vmatprep.subr.mxu0 0.0
    %5268 = vmatpush1.msra.mxu0 0.0
    %5269 = vmatprep.subr.mxu0 0.0
    %5270 = vmatpush1.msra.mxu0 0.0
    %5271 = vmatprep.subr.mxu0 0.0
    %5272 = vmatpush1.msra.mxu0 0.0
    %5273 = vmatprep.subr.mxu0 0.0
    %5274 = vmatpush1.msra.mxu0 0.0
    %5275 = vmatprep.subr.mxu0 0.0
    %5276 = vmatpush1.msra.mxu0 0.0
    %5277 = vmatprep.subr.mxu0 0.0
    %5278 = vmatpush1.msra.mxu0 0.0
    %5279 = vmatprep.subr.mxu0 0.0
    %5280 = vmatpush1.msra.mxu0 0.0
    %5281 = vmatprep.subr.mxu0 0.0
    %5282 = vmatpush1.msra.mxu0 0.0
    %5283 = vmatprep.subr.mxu0 0.0
    %5284 = vmatpush1.msra.mxu0 0.0
    %5285 = vmatprep.subr.mxu0 0.0
    %5286 = vmatpush1.msra.mxu0 0.0
    %5287 = vmatprep.mubr.f32.mxu0 0.0
    %5288 = vmatmul.mubr.f32.gmra.mrb[0].mxu0 %v5150
    %v5289 = vpop.f32.mrb[0].mxu0
    %v5290 = vadd.f32 0.0, %v5289
    %v5291 = vpop.f32.mrb[0].mxu0
    %v5292 = vadd.f32 0.0, %v5291
    %5293 = vdwg.mxu0
    %v5294 = vld [vmem:[#allocation29] sm:$0xff]
    %v5295 = vld [vmem:[#allocation29 + $0x8] sm:$0xff]
    %v5296 = vld [vmem:[#allocation29 + $0x10] sm:$0xff]
    %v5297 = vld [vmem:[#allocation29 + $0x18] sm:$0xff]
    %v5298 = vld [vmem:[#allocation29 + $0x20] sm:$0xff]
    %v5299 = vld [vmem:[#allocation29 + $0x28] sm:$0xff]
    %v5300 = vld [vmem:[#allocation29 + $0x30] sm:$0xff]
    %v5301 = vld [vmem:[#allocation29 + $0x38] sm:$0xff]
    %v5302 = vld [vmem:[#allocation29 + $0x40] sm:$0xff]
    %v5303 = vld [vmem:[#allocation29 + $0x48] sm:$0xff]
    %v5304 = vld [vmem:[#allocation29 + $0x50] sm:$0xff]
    %v5305 = vld [vmem:[#allocation29 + $0x58] sm:$0xff]
    %v5306 = vld [vmem:[#allocation29 + $0x60] sm:$0xff]
    %v5307 = vld [vmem:[#allocation29 + $0x68] sm:$0xff]
    %v5308 = vld [vmem:[#allocation29 + $0x70] sm:$0xff]
    %v5309 = vld [vmem:[#allocation29 + $0x78] sm:$0xff]
    %v5310 = vld [vmem:[#allocation29 + $0x80] sm:$0xff]
    %v5311 = vld [vmem:[#allocation29 + $0x88] sm:$0xff]
    %v5312 = vld [vmem:[#allocation29 + $0x90] sm:$0xff]
    %v5313 = vld [vmem:[#allocation29 + $0x98] sm:$0xff]
    %v5314 = vld [vmem:[#allocation29 + $0xa0] sm:$0xff]
    %v5315 = vld [vmem:[#allocation29 + $0xa8] sm:$0xff]
    %v5316 = vld [vmem:[#allocation29 + $0xb0] sm:$0xff]
    %v5317 = vld [vmem:[#allocation29 + $0xb8] sm:$0xff]
    %v5318 = vld [vmem:[#allocation29 + $0xc0] sm:$0xff]
    %v5319 = vld [vmem:[#allocation29 + $0xc8] sm:$0xff]
    %v5320 = vld [vmem:[#allocation29 + $0xd0] sm:$0xff]
    %v5321 = vld [vmem:[#allocation29 + $0xd8] sm:$0xff]
    %v5322 = vld [vmem:[#allocation29 + $0xe0] sm:$0xff]
    %v5323 = vld [vmem:[#allocation29 + $0xe8] sm:$0xff]
    %v5324 = vld [vmem:[#allocation29 + $0xf0] sm:$0xff]
    %v5325 = vld [vmem:[#allocation29 + $0xf8] sm:$0xff]
    %v5326 = vld [vmem:[#allocation29 + $0x100] sm:$0xff]
    %v5327 = vld [vmem:[#allocation29 + $0x108] sm:$0xff]
    %v5328 = vld [vmem:[#allocation29 + $0x110] sm:$0xff]
    %v5329 = vld [vmem:[#allocation29 + $0x118] sm:$0xff]
    %v5330 = vld [vmem:[#allocation29 + $0x120] sm:$0xff]
    %v5331 = vld [vmem:[#allocation29 + $0x128] sm:$0xff]
    %v5332 = vld [vmem:[#allocation29 + $0x130] sm:$0xff]
    %v5333 = vld [vmem:[#allocation29 + $0x138] sm:$0xff]
    %v5334 = vld [vmem:[#allocation29 + $0x140] sm:$0xff]
    %v5335 = vld [vmem:[#allocation29 + $0x148] sm:$0xff]
    %v5336 = vld [vmem:[#allocation29 + $0x150] sm:$0xff]
    %v5337 = vld [vmem:[#allocation29 + $0x158] sm:$0xff]
    %v5338 = vld [vmem:[#allocation29 + $0x160] sm:$0xff]
    %v5339 = vld [vmem:[#allocation29 + $0x168] sm:$0xff]
    %v5340 = vld [vmem:[#allocation29 + $0x170] sm:$0xff]
    %v5341 = vld [vmem:[#allocation29 + $0x178] sm:$0xff]
    %v5342 = vld [vmem:[#allocation29 + $0x180] sm:$0xff]
    %v5343 = vld [vmem:[#allocation29 + $0x188] sm:$0xff]
    %v5344 = vld [vmem:[#allocation29 + $0x190] sm:$0xff]
    %v5345 = vld [vmem:[#allocation29 + $0x198] sm:$0xff]
    %v5346 = vld [vmem:[#allocation29 + $0x1a0] sm:$0xff]
    %v5347 = vld [vmem:[#allocation29 + $0x1a8] sm:$0xff]
    %v5348 = vld [vmem:[#allocation29 + $0x1b0] sm:$0xff]
    %v5349 = vld [vmem:[#allocation29 + $0x1b8] sm:$0xff]
    %v5350 = vld [vmem:[#allocation29 + $0x1c0] sm:$0xff]
    %v5351 = vld [vmem:[#allocation29 + $0x1c8] sm:$0xff]
    %v5352 = vld [vmem:[#allocation29 + $0x1d0] sm:$0xff]
    %v5353 = vld [vmem:[#allocation29 + $0x1d8] sm:$0xff]
    %v5354 = vld [vmem:[#allocation29 + $0x1e0] sm:$0xff]
    %v5355 = vld [vmem:[#allocation29 + $0x1e8] sm:$0xff]
    %v5356 = vld [vmem:[#allocation29 + $0x1f0] sm:$0xff]
    %v5357 = vld [vmem:[#allocation29 + $0x1f8] sm:$0xff]
    %v5358 = vld [vmem:[#allocation29 + $0x200] sm:$0xff]
    %v5359 = vld [vmem:[#allocation29 + $0x208] sm:$0xff]
    %v5360 = vld [vmem:[#allocation29 + $0x210] sm:$0xff]
    %v5361 = vld [vmem:[#allocation29 + $0x218] sm:$0xff]
    %v5362 = vld [vmem:[#allocation29 + $0x220] sm:$0xff]
    %v5363 = vld [vmem:[#allocation29 + $0x228] sm:$0xff]
    %v5364 = vld [vmem:[#allocation29 + $0x230] sm:$0xff]
    %v5365 = vld [vmem:[#allocation29 + $0x238] sm:$0xff]
    %v5366 = vld [vmem:[#allocation29 + $0x240] sm:$0xff]
    %v5367 = vld [vmem:[#allocation29 + $0x248] sm:$0xff]
    %v5368 = vld [vmem:[#allocation29 + $0x250] sm:$0xff]
    %v5369 = vld [vmem:[#allocation29 + $0x258] sm:$0xff]
    %v5370 = vld [vmem:[#allocation29 + $0x260] sm:$0xff]
    %v5371 = vld [vmem:[#allocation29 + $0x268] sm:$0xff]
    %v5372 = vld [vmem:[#allocation29 + $0x270] sm:$0xff]
    %v5373 = vld [vmem:[#allocation29 + $0x278] sm:$0xff]
    %v5374 = vld [vmem:[#allocation29 + $0x280] sm:$0xff]
    %v5375 = vld [vmem:[#allocation29 + $0x288] sm:$0xff]
    %v5376 = vld [vmem:[#allocation29 + $0x290] sm:$0xff]
    %v5377 = vld [vmem:[#allocation29 + $0x298] sm:$0xff]
    %v5378 = vld [vmem:[#allocation29 + $0x2a0] sm:$0xff]
    %v5379 = vld [vmem:[#allocation29 + $0x2a8] sm:$0xff]
    %v5380 = vld [vmem:[#allocation29 + $0x2b0] sm:$0xff]
    %v5381 = vld [vmem:[#allocation29 + $0x2b8] sm:$0xff]
    %v5382 = vld [vmem:[#allocation29 + $0x2c0] sm:$0xff]
    %v5383 = vld [vmem:[#allocation29 + $0x2c8] sm:$0xff]
    %v5384 = vld [vmem:[#allocation29 + $0x2d0] sm:$0xff]
    %v5385 = vld [vmem:[#allocation29 + $0x2d8] sm:$0xff]
    %v5386 = vld [vmem:[#allocation29 + $0x2e0] sm:$0xff]
    %v5387 = vld [vmem:[#allocation29 + $0x2e8] sm:$0xff]
    %v5388 = vld [vmem:[#allocation29 + $0x2f0] sm:$0xff]
    %v5389 = vld [vmem:[#allocation29 + $0x2f8] sm:$0xff]
    %v5390 = vld [vmem:[#allocation29 + $0x300] sm:$0xff]
    %v5391 = vld [vmem:[#allocation29 + $0x308] sm:$0xff]
    %v5392 = vld [vmem:[#allocation29 + $0x310] sm:$0xff]
    %v5393 = vld [vmem:[#allocation29 + $0x318] sm:$0xff]
    %v5394 = vld [vmem:[#allocation29 + $0x320] sm:$0xff]
    %v5395 = vld [vmem:[#allocation29 + $0x328] sm:$0xff]
    %v5396 = vld [vmem:[#allocation29 + $0x330] sm:$0xff]
    %v5397 = vld [vmem:[#allocation29 + $0x338] sm:$0xff]
    %v5398 = vld [vmem:[#allocation29 + $0x340] sm:$0xff]
    %v5399 = vld [vmem:[#allocation29 + $0x348] sm:$0xff]
    %v5400 = vld [vmem:[#allocation29 + $0x350] sm:$0xff]
    %v5401 = vld [vmem:[#allocation29 + $0x358] sm:$0xff]
    %v5402 = vld [vmem:[#allocation29 + $0x360] sm:$0xff]
    %v5403 = vld [vmem:[#allocation29 + $0x368] sm:$0xff]
    %v5404 = vld [vmem:[#allocation29 + $0x370] sm:$0xff]
    %v5405 = vld [vmem:[#allocation29 + $0x378] sm:$0xff]
    %v5406 = vld [vmem:[#allocation29 + $0x380] sm:$0xff]
    %v5407 = vld [vmem:[#allocation29 + $0x388] sm:$0xff]
    %v5408 = vld [vmem:[#allocation29 + $0x390] sm:$0xff]
    %v5409 = vld [vmem:[#allocation29 + $0x398] sm:$0xff]
    %v5410 = vld [vmem:[#allocation29 + $0x3a0] sm:$0xff]
    %v5411 = vld [vmem:[#allocation29 + $0x3a8] sm:$0xff]
    %v5412 = vld [vmem:[#allocation29 + $0x3b0] sm:$0xff]
    %v5413 = vld [vmem:[#allocation29 + $0x3b8] sm:$0xff]
    %v5414 = vld [vmem:[#allocation29 + $0x3c0] sm:$0xff]
    %v5415 = vld [vmem:[#allocation29 + $0x3c8] sm:$0xff]
    %v5416 = vld [vmem:[#allocation29 + $0x3d0] sm:$0xff]
    %v5417 = vld [vmem:[#allocation29 + $0x3d8] sm:$0xff]
    %v5418 = vld [vmem:[#allocation29 + $0x3e0] sm:$0xff]
    %v5419 = vld [vmem:[#allocation29 + $0x3e8] sm:$0xff]
    %v5420 = vld [vmem:[#allocation29 + $0x3f0] sm:$0xff]
    %v5421 = vld [vmem:[#allocation29 + $0x3f8] sm:$0xff]
    %5422 = vmatprep.subr.mxu0 %v5295
    %5423 = vmatpush1.msra.mxu0 %v5294
    %5424 = vmatprep.subr.mxu0 %v5299
    %5425 = vmatpush1.msra.mxu0 %v5298
    %5426 = vmatprep.subr.mxu0 %v5303
    %5427 = vmatpush1.msra.mxu0 %v5302
    %5428 = vmatprep.subr.mxu0 %v5307
    %5429 = vmatpush1.msra.mxu0 %v5306
    %5430 = vmatprep.subr.mxu0 %v5311
    %5431 = vmatpush1.msra.mxu0 %v5310
    %5432 = vmatprep.subr.mxu0 %v5315
    %5433 = vmatpush1.msra.mxu0 %v5314
    %5434 = vmatprep.subr.mxu0 %v5319
    %5435 = vmatpush1.msra.mxu0 %v5318
    %5436 = vmatprep.subr.mxu0 %v5323
    %5437 = vmatpush1.msra.mxu0 %v5322
    %5438 = vmatprep.subr.mxu0 %v5327
    %5439 = vmatpush1.msra.mxu0 %v5326
    %5440 = vmatprep.subr.mxu0 %v5331
    %5441 = vmatpush1.msra.mxu0 %v5330
    %5442 = vmatprep.subr.mxu0 %v5335
    %5443 = vmatpush1.msra.mxu0 %v5334
    %5444 = vmatprep.subr.mxu0 %v5339
    %5445 = vmatpush1.msra.mxu0 %v5338
    %5446 = vmatprep.subr.mxu0 %v5343
    %5447 = vmatpush1.msra.mxu0 %v5342
    %5448 = vmatprep.subr.mxu0 %v5347
    %5449 = vmatpush1.msra.mxu0 %v5346
    %5450 = vmatprep.subr.mxu0 %v5351
    %5451 = vmatpush1.msra.mxu0 %v5350
    %5452 = vmatprep.subr.mxu0 %v5355
    %5453 = vmatpush1.msra.mxu0 %v5354
    %5454 = vmatprep.subr.mxu0 %v5359
    %5455 = vmatpush1.msra.mxu0 %v5358
    %5456 = vmatprep.subr.mxu0 %v5363
    %5457 = vmatpush1.msra.mxu0 %v5362
    %5458 = vmatprep.subr.mxu0 %v5367
    %5459 = vmatpush1.msra.mxu0 %v5366
    %5460 = vmatprep.subr.mxu0 %v5371
    %5461 = vmatpush1.msra.mxu0 %v5370
    %5462 = vmatprep.subr.mxu0 %v5375
    %5463 = vmatpush1.msra.mxu0 %v5374
    %5464 = vmatprep.subr.mxu0 %v5379
    %5465 = vmatpush1.msra.mxu0 %v5378
    %5466 = vmatprep.subr.mxu0 %v5383
    %5467 = vmatpush1.msra.mxu0 %v5382
    %5468 = vmatprep.subr.mxu0 %v5387
    %5469 = vmatpush1.msra.mxu0 %v5386
    %5470 = vmatprep.subr.mxu0 %v5391
    %5471 = vmatpush1.msra.mxu0 %v5390
    %5472 = vmatprep.subr.mxu0 %v5395
    %5473 = vmatpush1.msra.mxu0 %v5394
    %5474 = vmatprep.subr.mxu0 %v5399
    %5475 = vmatpush1.msra.mxu0 %v5398
    %5476 = vmatprep.subr.mxu0 %v5403
    %5477 = vmatpush1.msra.mxu0 %v5402
    %5478 = vmatprep.subr.mxu0 %v5407
    %5479 = vmatpush1.msra.mxu0 %v5406
    %5480 = vmatprep.subr.mxu0 %v5411
    %5481 = vmatpush1.msra.mxu0 %v5410
    %5482 = vmatprep.subr.mxu0 %v5415
    %5483 = vmatpush1.msra.mxu0 %v5414
    %5484 = vmatprep.subr.mxu0 %v5419
    %5485 = vmatpush1.msra.mxu0 %v5418
    %5486 = vmatprep.mubr.f32.mxu0 %v4770
    %5487 = vmatmul.mubr.f32.gmra.mrb[0].mxu0 %v4769
    %v5488 = vpop.f32.mrb[0].mxu0
    %v5489 = vadd.f32 0.0, %v5488
    %v5490 = vpop.f32.mrb[0].mxu0
    %v5491 = vadd.f32 0.0, %v5490
    %5492 = vmatprep.mubr.f32.mxu0 %v4772
    %5493 = vmatmul.mubr.f32.gmra.mrb[0].mxu0 %v4771
    %v5494 = vpop.f32.mrb[0].mxu0
    %v5495 = vadd.f32 0.0, %v5494
    %v5496 = vpop.f32.mrb[0].mxu0
    %v5497 = vadd.f32 0.0, %v5496
    %5498 = vdwg.mxu0
    %5499 = vmatprep.subr.mxu0 %v5297
    %5500 = vmatpush1.msra.mxu0 %v5296
    %5501 = vmatprep.subr.mxu0 %v5301
    %5502 = vmatpush1.msra.mxu0 %v5300
    %5503 = vmatprep.subr.mxu0 %v5305
    %5504 = vmatpush1.msra.mxu0 %v5304
    %5505 = vmatprep.subr.mxu0 %v5309
    %5506 = vmatpush1.msra.mxu0 %v5308
    %5507 = vmatprep.subr.mxu0 %v5313
    %5508 = vmatpush1.msra.mxu0 %v5312
    %5509 = vmatprep.subr.mxu0 %v5317
    %5510 = vmatpush1.msra.mxu0 %v5316
    %5511 = vmatprep.subr.mxu0 %v5321
    %5512 = vmatpush1.msra.mxu0 %v5320
    %5513 = vmatprep.subr.mxu0 %v5325
    %5514 = vmatpush1.msra.mxu0 %v5324
    %5515 = vmatprep.subr.mxu0 %v5329
    %5516 = vmatpush1.msra.mxu0 %v5328
    %5517 = vmatprep.subr.mxu0 %v5333
    %5518 = vmatpush1.msra.mxu0 %v5332
    %5519 = vmatprep.subr.mxu0 %v5337
    %5520 = vmatpush1.msra.mxu0 %v5336
    %5521 = vmatprep.subr.mxu0 %v5341
    %5522 = vmatpush1.msra.mxu0 %v5340
    %5523 = vmatprep.subr.mxu0 %v5345
    %5524 = vmatpush1.msra.mxu0 %v5344
    %5525 = vmatprep.subr.mxu0 %v5349
    %5526 = vmatpush1.msra.mxu0 %v5348
    %5527 = vmatprep.subr.mxu0 %v5353
    %5528 = vmatpush1.msra.mxu0 %v5352
    %5529 = vmatprep.subr.mxu0 %v5357
    %5530 = vmatpush1.msra.mxu0 %v5356
    %5531 = vmatprep.subr.mxu0 %v5361
    %5532 = vmatpush1.msra.mxu0 %v5360
    %5533 = vmatprep.subr.mxu0 %v5365
    %5534 = vmatpush1.msra.mxu0 %v5364
    %5535 = vmatprep.subr.mxu0 %v5369
    %5536 = vmatpush1.msra.mxu0 %v5368
    %5537 = vmatprep.subr.mxu0 %v5373
    %5538 = vmatpush1.msra.mxu0 %v5372
    %5539 = vmatprep.subr.mxu0 %v5377
    %5540 = vmatpush1.msra.mxu0 %v5376
    %5541 = vmatprep.subr.mxu0 %v5381
    %5542 = vmatpush1.msra.mxu0 %v5380
    %5543 = vmatprep.subr.mxu0 %v5385
    %5544 = vmatpush1.msra.mxu0 %v5384
    %5545 = vmatprep.subr.mxu0 %v5389
    %5546 = vmatpush1.msra.mxu0 %v5388
    %5547 = vmatprep.subr.mxu0 %v5393
    %5548 = vmatpush1.msra.mxu0 %v5392
    %5549 = vmatprep.subr.mxu0 %v5397
    %5550 = vmatpush1.msra.mxu0 %v5396
    %5551 = vmatprep.subr.mxu0 %v5401
    %5552 = vmatpush1.msra.mxu0 %v5400
    %5553 = vmatprep.subr.mxu0 %v5405
    %5554 = vmatpush1.msra.mxu0 %v5404
    %5555 = vmatprep.subr.mxu0 %v5409
    %5556 = vmatpush1.msra.mxu0 %v5408
    %5557 = vmatprep.subr.mxu0 %v5413
    %5558 = vmatpush1.msra.mxu0 %v5412
    %5559 = vmatprep.subr.mxu0 %v5417
    %5560 = vmatpush1.msra.mxu0 %v5416
    %5561 = vmatprep.subr.mxu0 %v5421
    %5562 = vmatpush1.msra.mxu0 %v5420
    %5563 = vmatprep.mubr.f32.mxu0 %v4770
    %5564 = vmatmul.mubr.f32.gmra.mrb[0].mxu0 %v4769
    %v5565 = vpop.f32.mrb[0].mxu0
    %v5566 = vadd.f32 0.0, %v5565
    %v5567 = vpop.f32.mrb[0].mxu0
    %v5568 = vadd.f32 0.0, %v5567
    %5569 = vmatprep.mubr.f32.mxu0 %v4772
    %5570 = vmatmul.mubr.f32.gmra.mrb[0].mxu0 %v4771
    %v5571 = vpop.f32.mrb[0].mxu0
    %v5572 = vadd.f32 0.0, %v5571
    %v5573 = vpop.f32.mrb[0].mxu0
    %v5574 = vadd.f32 0.0, %v5573
    %5575 = vdwg.mxu0
    %vm5576 = vcmask 15360
    %v5578 = vsel %vm5576, %v5115, 0
    %v5581 = vsel %vm5576, %v5116, 0
    %v5584 = vsel %vm3766, %v5219, 0
    %v5587 = vsel %vm3766, %v5221, 0
    %v5590 = vsel %vm3766, %v5290, 0
    %v5593 = vsel %vm3766, %v5292, 0
    %5595 = vmatprep.subr.mxu0 %v5587
    %5596 = vmatpush1.msra.mxu0 %v5584
    %5597 = vmatprep.subr.mxu0 0.0
    %5598 = vmatpush1.msra.mxu0 0.0
    %5599 = vmatprep.subr.mxu0 0.0
    %5600 = vmatpush1.msra.mxu0 0.0
    %5601 = vmatprep.subr.mxu0 0.0
    %5602 = vmatpush1.msra.mxu0 0.0
    %5603 = vmatprep.subr.mxu0 0.0
    %5604 = vmatpush1.msra.mxu0 0.0
    %5605 = vmatprep.subr.mxu0 0.0
    %5606 = vmatpush1.msra.mxu0 0.0
    %5607 = vmatprep.subr.mxu0 0.0
    %5608 = vmatpush1.msra.mxu0 0.0
    %5609 = vmatprep.subr.mxu0 0.0
    %5610 = vmatpush1.msra.mxu0 0.0
    %5611 = vmatprep.subr.mxu0 0.0
    %5612 = vmatpush1.msra.mxu0 0.0
    %5613 = vmatprep.subr.mxu0 0.0
    %5614 = vmatpush1.msra.mxu0 0.0
    %5615 = vmatprep.subr.mxu0 0.0
    %5616 = vmatpush1.msra.mxu0 0.0
    %5617 = vmatprep.subr.mxu0 0.0
    %5618 = vmatpush1.msra.mxu0 0.0
    %5619 = vmatprep.subr.mxu0 0.0
    %5620 = vmatpush1.msra.mxu0 0.0
    %5621 = vmatprep.subr.mxu0 0.0
    %5622 = vmatpush1.msra.mxu0 0.0
    %5623 = vmatprep.subr.mxu0 0.0
    %5624 = vmatpush1.msra.mxu0 0.0
    %5625 = vmatprep.subr.mxu0 0.0
    %5626 = vmatpush1.msra.mxu0 0.0
    %5627 = vmatprep.subr.mxu0 0.0
    %5628 = vmatpush1.msra.mxu0 0.0
    %5629 = vmatprep.subr.mxu0 0.0
    %5630 = vmatpush1.msra.mxu0 0.0
    %5631 = vmatprep.subr.mxu0 0.0
    %5632 = vmatpush1.msra.mxu0 0.0
    %5633 = vmatprep.subr.mxu0 0.0
    %5634 = vmatpush1.msra.mxu0 0.0
    %5635 = vmatprep.subr.mxu0 0.0
    %5636 = vmatpush1.msra.mxu0 0.0
    %5637 = vmatprep.subr.mxu0 0.0
    %5638 = vmatpush1.msra.mxu0 0.0
    %5639 = vmatprep.subr.mxu0 0.0
    %5640 = vmatpush1.msra.mxu0 0.0
    %5641 = vmatprep.subr.mxu0 0.0
    %5642 = vmatpush1.msra.mxu0 0.0
    %5643 = vmatprep.subr.mxu0 0.0
    %5644 = vmatpush1.msra.mxu0 0.0
    %5645 = vmatprep.subr.mxu0 0.0
    %5646 = vmatpush1.msra.mxu0 0.0
    %5647 = vmatprep.subr.mxu0 0.0
    %5648 = vmatpush1.msra.mxu0 0.0
    %5649 = vmatprep.subr.mxu0 0.0
    %5650 = vmatpush1.msra.mxu0 0.0
    %5651 = vmatprep.subr.mxu0 0.0
    %5652 = vmatpush1.msra.mxu0 0.0
    %5653 = vmatprep.subr.mxu0 0.0
    %5654 = vmatpush1.msra.mxu0 0.0
    %5655 = vmatprep.subr.mxu0 0.0
    %5656 = vmatpush1.msra.mxu0 0.0
    %5657 = vmatprep.subr.mxu0 0.0
    %5658 = vmatpush1.msra.mxu0 0.0
    %5659 = vmatprep.mubr.f32.mxu0 0.0
    %5660 = vmatmul.mubr.f32.gmra.mrb[0].mxu0 %v5578
    %v5661 = vpop.f32.mrb[0].mxu0
    %v5662 = vadd.f32 %v5489, %v5661
    %v5663 = vpop.f32.mrb[0].mxu0
    %v5664 = vadd.f32 %v5491, %v5663
    %5665 = vmatprep.mubr.f32.mxu0 0.0
    %5666 = vmatmul.mubr.f32.gmra.mrb[0].mxu0 %v5581
    %v5667 = vpop.f32.mrb[0].mxu0
    %v5668 = vadd.f32 %v5495, %v5667
    %v5669 = vpop.f32.mrb[0].mxu0
    %v5670 = vadd.f32 %v5497, %v5669
    %5671 = vdwg.mxu0
    %5672 = vmatprep.subr.mxu0 %v5593
    %5673 = vmatpush1.msra.mxu0 %v5590
    %5674 = vmatprep.subr.mxu0 0.0
    %5675 = vmatpush1.msra.mxu0 0.0
    %5676 = vmatprep.subr.mxu0 0.0
    %5677 = vmatpush1.msra.mxu0 0.0
    %5678 = vmatprep.subr.mxu0 0.0
    %5679 = vmatpush1.msra.mxu0 0.0
    %5680 = vmatprep.subr.mxu0 0.0
    %5681 = vmatpush1.msra.mxu0 0.0
    %5682 = vmatprep.subr.mxu0 0.0
    %5683 = vmatpush1.msra.mxu0 0.0
    %5684 = vmatprep.subr.mxu0 0.0
    %5685 = vmatpush1.msra.mxu0 0.0
    %5686 = vmatprep.subr.mxu0 0.0
    %5687 = vmatpush1.msra.mxu0 0.0
    %5688 = vmatprep.subr.mxu0 0.0
    %5689 = vmatpush1.msra.mxu0 0.0
    %5690 = vmatprep.subr.mxu0 0.0
    %5691 = vmatpush1.msra.mxu0 0.0
    %5692 = vmatprep.subr.mxu0 0.0
    %5693 = vmatpush1.msra.mxu0 0.0
    %5694 = vmatprep.subr.mxu0 0.0
    %5695 = vmatpush1.msra.mxu0 0.0
    %5696 = vmatprep.subr.mxu0 0.0
    %5697 = vmatpush1.msra.mxu0 0.0
    %5698 = vmatprep.subr.mxu0 0.0
    %5699 = vmatpush1.msra.mxu0 0.0
    %5700 = vmatprep.subr.mxu0 0.0
    %5701 = vmatpush1.msra.mxu0 0.0
    %5702 = vmatprep.subr.mxu0 0.0
    %5703 = vmatpush1.msra.mxu0 0.0
    %5704 = vmatprep.subr.mxu0 0.0
    %5705 = vmatpush1.msra.mxu0 0.0
    %5706 = vmatprep.subr.mxu0 0.0
    %5707 = vmatpush1.msra.mxu0 0.0
    %5708 = vmatprep.subr.mxu0 0.0
    %5709 = vmatpush1.msra.mxu0 0.0
    %5710 = vmatprep.subr.mxu0 0.0
    %5711 = vmatpush1.msra.mxu0 0.0
    %5712 = vmatprep.subr.mxu0 0.0
    %5713 = vmatpush1.msra.mxu0 0.0
    %5714 = vmatprep.subr.mxu0 0.0
    %5715 = vmatpush1.msra.mxu0 0.0
    %5716 = vmatprep.subr.mxu0 0.0
    %5717 = vmatpush1.msra.mxu0 0.0
    %5718 = vmatprep.subr.mxu0 0.0
    %5719 = vmatpush1.msra.mxu0 0.0
    %5720 = vmatprep.subr.mxu0 0.0
    %5721 = vmatpush1.msra.mxu0 0.0
    %5722 = vmatprep.subr.mxu0 0.0
    %5723 = vmatpush1.msra.mxu0 0.0
    %5724 = vmatprep.subr.mxu0 0.0
    %5725 = vmatpush1.msra.mxu0 0.0
    %5726 = vmatprep.subr.mxu0 0.0
    %5727 = vmatpush1.msra.mxu0 0.0
    %5728 = vmatprep.subr.mxu0 0.0
    %5729 = vmatpush1.msra.mxu0 0.0
    %5730 = vmatprep.subr.mxu0 0.0
    %5731 = vmatpush1.msra.mxu0 0.0
    %5732 = vmatprep.subr.mxu0 0.0
    %5733 = vmatpush1.msra.mxu0 0.0
    %5734 = vmatprep.subr.mxu0 0.0
    %5735 = vmatpush1.msra.mxu0 0.0
    %5736 = vmatprep.mubr.f32.mxu0 0.0
    %5737 = vmatmul.mubr.f32.gmra.mrb[0].mxu0 %v5578
    %v5738 = vpop.f32.mrb[0].mxu0
    %v5739 = vadd.f32 %v5566, %v5738
    %v5740 = vpop.f32.mrb[0].mxu0
    %v5741 = vadd.f32 %v5568, %v5740
    %5742 = vmatprep.mubr.f32.mxu0 0.0
    %5743 = vmatmul.mubr.f32.gmra.mrb[0].mxu0 %v5581
    %v5744 = vpop.f32.mrb[0].mxu0
    %v5745 = vadd.f32 %v5572, %v5744
    %v5746 = vpop.f32.mrb[0].mxu0
    %v5747 = vadd.f32 %v5574, %v5746
    %5748 = vdwg.mxu0
    %v5749 = vld [vmem:[%s59] sm:$0xff]
    %v5750 = vld [vmem:[%s59 + $0x8] sm:$0xff]
    %v5751 = vld [vmem:[%s59 + $0x10] sm:$0xff]
    %v5752 = vld [vmem:[%s59 + $0x18] sm:$0xff]
    %v5753 = vld [vmem:[%s59 + $0x20] sm:$0xff]
    %v5754 = vld [vmem:[%s59 + $0x28] sm:$0xff]
    %v5755 = vld [vmem:[%s59 + $0x30] sm:$0xff]
    %v5756 = vld [vmem:[%s59 + $0x38] sm:$0xff]
    %v5757 = vld [vmem:[%s59 + $0x40] sm:$0xff]
    %v5758 = vld [vmem:[%s59 + $0x48] sm:$0xff]
    %v5759 = vld [vmem:[%s59 + $0x50] sm:$0xff]
    %v5760 = vld [vmem:[%s59 + $0x58] sm:$0xff]
    %v5761 = vld [vmem:[%s59 + $0x60] sm:$0xff]
    %v5762 = vld [vmem:[%s59 + $0x68] sm:$0xff]
    %v5763 = vld [vmem:[%s59 + $0x70] sm:$0xff]
    %v5764 = vld [vmem:[%s59 + $0x78] sm:$0xff]
    %v5765 = vld [vmem:[%s59 + $0x80] sm:$0xff]
    %v5766 = vld [vmem:[%s59 + $0x88] sm:$0xff]
    %v5767 = vld [vmem:[%s59 + $0x90] sm:$0xff]
    %v5768 = vld [vmem:[%s59 + $0x98] sm:$0xff]
    %v5769 = vld [vmem:[%s59 + $0xa0] sm:$0xff]
    %v5770 = vld [vmem:[%s59 + $0xa8] sm:$0xff]
    %v5771 = vld [vmem:[%s59 + $0xb0] sm:$0xff]
    %v5772 = vld [vmem:[%s59 + $0xb8] sm:$0xff]
    %v5773 = vld [vmem:[%s59 + $0xc0] sm:$0xff]
    %v5774 = vld [vmem:[%s59 + $0xc8] sm:$0xff]
    %v5775 = vld [vmem:[%s59 + $0xd0] sm:$0xff]
    %v5776 = vld [vmem:[%s59 + $0xd8] sm:$0xff]
    %v5777 = vld [vmem:[%s59 + $0xe0] sm:$0xff]
    %v5778 = vld [vmem:[%s59 + $0xe8] sm:$0xff]
    %v5779 = vld [vmem:[%s59 + $0xf0] sm:$0xff]
    %v5780 = vld [vmem:[%s59 + $0xf8] sm:$0xff]
    %v5781 = vld [vmem:[%s59 + $0x100] sm:$0xff]
    %v5782 = vld [vmem:[%s59 + $0x108] sm:$0xff]
    %v5783 = vld [vmem:[%s59 + $0x110] sm:$0xff]
    %v5784 = vld [vmem:[%s59 + $0x118] sm:$0xff]
    %v5785 = vld [vmem:[%s59 + $0x120] sm:$0xff]
    %v5786 = vld [vmem:[%s59 + $0x128] sm:$0xff]
    %v5787 = vld [vmem:[%s59 + $0x130] sm:$0xff]
    %v5788 = vld [vmem:[%s59 + $0x138] sm:$0xff]
    %v5789 = vld [vmem:[%s59 + $0x140] sm:$0xff]
    %v5790 = vld [vmem:[%s59 + $0x148] sm:$0xff]
    %v5791 = vld [vmem:[%s59 + $0x150] sm:$0xff]
    %v5792 = vld [vmem:[%s59 + $0x158] sm:$0xff]
    %v5793 = vld [vmem:[%s59 + $0x160] sm:$0xff]
    %v5794 = vld [vmem:[%s59 + $0x168] sm:$0xff]
    %v5795 = vld [vmem:[%s59 + $0x170] sm:$0xff]
    %v5796 = vld [vmem:[%s59 + $0x178] sm:$0xff]
    %v5797 = vld [vmem:[%s59 + $0x180] sm:$0xff]
    %v5798 = vld [vmem:[%s59 + $0x188] sm:$0xff]
    %v5799 = vld [vmem:[%s59 + $0x190] sm:$0xff]
    %v5800 = vld [vmem:[%s59 + $0x198] sm:$0xff]
    %v5801 = vld [vmem:[%s59 + $0x1a0] sm:$0xff]
    %v5802 = vld [vmem:[%s59 + $0x1a8] sm:$0xff]
    %v5803 = vld [vmem:[%s59 + $0x1b0] sm:$0xff]
    %v5804 = vld [vmem:[%s59 + $0x1b8] sm:$0xff]
    %v5805 = vld [vmem:[%s59 + $0x1c0] sm:$0xff]
    %v5806 = vld [vmem:[%s59 + $0x1c8] sm:$0xff]
    %v5807 = vld [vmem:[%s59 + $0x1d0] sm:$0xff]
    %v5808 = vld [vmem:[%s59 + $0x1d8] sm:$0xff]
    %v5809 = vld [vmem:[%s59 + $0x1e0] sm:$0xff]
    %v5810 = vld [vmem:[%s59 + $0x1e8] sm:$0xff]
    %v5811 = vld [vmem:[%s59 + $0x1f0] sm:$0xff]
    %v5812 = vld [vmem:[%s59 + $0x1f8] sm:$0xff]
    %v5813 = vld [vmem:[%s59 + $0x200] sm:$0xff]
    %v5814 = vld [vmem:[%s59 + $0x208] sm:$0xff]
    %v5815 = vld [vmem:[%s59 + $0x210] sm:$0xff]
    %v5816 = vld [vmem:[%s59 + $0x218] sm:$0xff]
    %v5817 = vld [vmem:[%s59 + $0x220] sm:$0xff]
    %v5818 = vld [vmem:[%s59 + $0x228] sm:$0xff]
    %v5819 = vld [vmem:[%s59 + $0x230] sm:$0xff]
    %v5820 = vld [vmem:[%s59 + $0x238] sm:$0xff]
    %v5821 = vld [vmem:[%s59 + $0x240] sm:$0xff]
    %v5822 = vld [vmem:[%s59 + $0x248] sm:$0xff]
    %v5823 = vld [vmem:[%s59 + $0x250] sm:$0xff]
    %v5824 = vld [vmem:[%s59 + $0x258] sm:$0xff]
    %v5825 = vld [vmem:[%s59 + $0x260] sm:$0xff]
    %v5826 = vld [vmem:[%s59 + $0x268] sm:$0xff]
    %v5827 = vld [vmem:[%s59 + $0x270] sm:$0xff]
    %v5828 = vld [vmem:[%s59 + $0x278] sm:$0xff]
    %v5829 = vld [vmem:[%s59 + $0x280] sm:$0xff]
    %v5830 = vld [vmem:[%s59 + $0x288] sm:$0xff]
    %v5831 = vld [vmem:[%s59 + $0x290] sm:$0xff]
    %v5832 = vld [vmem:[%s59 + $0x298] sm:$0xff]
    %v5833 = vld [vmem:[%s59 + $0x2a0] sm:$0xff]
    %v5834 = vld [vmem:[%s59 + $0x2a8] sm:$0xff]
    %v5835 = vld [vmem:[%s59 + $0x2b0] sm:$0xff]
    %v5836 = vld [vmem:[%s59 + $0x2b8] sm:$0xff]
    %v5837 = vld [vmem:[%s59 + $0x2c0] sm:$0xff]
    %v5838 = vld [vmem:[%s59 + $0x2c8] sm:$0xff]
    %v5839 = vld [vmem:[%s59 + $0x2d0] sm:$0xff]
    %v5840 = vld [vmem:[%s59 + $0x2d8] sm:$0xff]
    %v5841 = vld [vmem:[%s59 + $0x2e0] sm:$0xff]
    %v5842 = vld [vmem:[%s59 + $0x2e8] sm:$0xff]
    %v5843 = vld [vmem:[%s59 + $0x2f0] sm:$0xff]
    %v5844 = vld [vmem:[%s59 + $0x2f8] sm:$0xff]
    %v5845 = vld [vmem:[%s59 + $0x300] sm:$0xff]
    %v5846 = vld [vmem:[%s59 + $0x308] sm:$0xff]
    %v5847 = vld [vmem:[%s59 + $0x310] sm:$0xff]
    %v5848 = vld [vmem:[%s59 + $0x318] sm:$0xff]
    %v5849 = vld [vmem:[%s59 + $0x320] sm:$0xff]
    %v5850 = vld [vmem:[%s59 + $0x328] sm:$0xff]
    %v5851 = vld [vmem:[%s59 + $0x330] sm:$0xff]
    %v5852 = vld [vmem:[%s59 + $0x338] sm:$0xff]
    %v5853 = vld [vmem:[%s59 + $0x340] sm:$0xff]
    %v5854 = vld [vmem:[%s59 + $0x348] sm:$0xff]
    %v5855 = vld [vmem:[%s59 + $0x350] sm:$0xff]
    %v5856 = vld [vmem:[%s59 + $0x358] sm:$0xff]
    %v5857 = vld [vmem:[%s59 + $0x360] sm:$0xff]
    %v5858 = vld [vmem:[%s59 + $0x368] sm:$0xff]
    %v5859 = vld [vmem:[%s59 + $0x370] sm:$0xff]
    %v5860 = vld [vmem:[%s59 + $0x378] sm:$0xff]
    %v5861 = vld [vmem:[%s59 + $0x380] sm:$0xff]
    %v5862 = vld [vmem:[%s59 + $0x388] sm:$0xff]
    %v5863 = vld [vmem:[%s59 + $0x390] sm:$0xff]
    %v5864 = vld [vmem:[%s59 + $0x398] sm:$0xff]
    %v5865 = vld [vmem:[%s59 + $0x3a0] sm:$0xff]
    %v5866 = vld [vmem:[%s59 + $0x3a8] sm:$0xff]
    %v5867 = vld [vmem:[%s59 + $0x3b0] sm:$0xff]
    %v5868 = vld [vmem:[%s59 + $0x3b8] sm:$0xff]
    %v5869 = vld [vmem:[%s59 + $0x3c0] sm:$0xff]
    %v5870 = vld [vmem:[%s59 + $0x3c8] sm:$0xff]
    %v5871 = vld [vmem:[%s59 + $0x3d0] sm:$0xff]
    %v5872 = vld [vmem:[%s59 + $0x3d8] sm:$0xff]
    %v5873 = vld [vmem:[%s59 + $0x3e0] sm:$0xff]
    %v5874 = vld [vmem:[%s59 + $0x3e8] sm:$0xff]
    %v5875 = vld [vmem:[%s59 + $0x3f0] sm:$0xff]
    %v5876 = vld [vmem:[%s59 + $0x3f8] sm:$0xff]
    %v5877 = vld [vmem:[%s59 + $0x400] sm:$0xff]
    %v5878 = vld [vmem:[%s59 + $0x408] sm:$0xff]
    %v5879 = vld [vmem:[%s59 + $0x410] sm:$0xff]
    %v5880 = vld [vmem:[%s59 + $0x418] sm:$0xff]
    %v5881 = vld [vmem:[%s59 + $0x420] sm:$0xff]
    %v5882 = vld [vmem:[%s59 + $0x428] sm:$0xff]
    %v5883 = vld [vmem:[%s59 + $0x430] sm:$0xff]
    %v5884 = vld [vmem:[%s59 + $0x438] sm:$0xff]
    %v5885 = vld [vmem:[%s59 + $0x440] sm:$0xff]
    %v5886 = vld [vmem:[%s59 + $0x448] sm:$0xff]
    %v5887 = vld [vmem:[%s59 + $0x450] sm:$0xff]
    %v5888 = vld [vmem:[%s59 + $0x458] sm:$0xff]
    %v5889 = vld [vmem:[%s59 + $0x460] sm:$0xff]
    %v5890 = vld [vmem:[%s59 + $0x468] sm:$0xff]
    %v5891 = vld [vmem:[%s59 + $0x470] sm:$0xff]
    %v5892 = vld [vmem:[%s59 + $0x478] sm:$0xff]
    %v5893 = vld [vmem:[%s59 + $0x480] sm:$0xff]
    %v5894 = vld [vmem:[%s59 + $0x488] sm:$0xff]
    %v5895 = vld [vmem:[%s59 + $0x490] sm:$0xff]
    %v5896 = vld [vmem:[%s59 + $0x498] sm:$0xff]
    %v5897 = vld [vmem:[%s59 + $0x4a0] sm:$0xff]
    %v5898 = vld [vmem:[%s59 + $0x4a8] sm:$0xff]
    %v5899 = vld [vmem:[%s59 + $0x4b0] sm:$0xff]
    %v5900 = vld [vmem:[%s59 + $0x4b8] sm:$0xff]
    %v5901 = vld [vmem:[%s59 + $0x4c0] sm:$0xff]
    %v5902 = vld [vmem:[%s59 + $0x4c8] sm:$0xff]
    %v5903 = vld [vmem:[%s59 + $0x4d0] sm:$0xff]
    %v5904 = vld [vmem:[%s59 + $0x4d8] sm:$0xff]
    %v5905 = vld [vmem:[%s59 + $0x4e0] sm:$0xff]
    %v5906 = vld [vmem:[%s59 + $0x4e8] sm:$0xff]
    %v5907 = vld [vmem:[%s59 + $0x4f0] sm:$0xff]
    %v5908 = vld [vmem:[%s59 + $0x4f8] sm:$0xff]
    %v5909 = vld [vmem:[%s59 + $0x500] sm:$0xff]
    %v5910 = vld [vmem:[%s59 + $0x508] sm:$0xff]
    %v5911 = vld [vmem:[%s59 + $0x510] sm:$0xff]
    %v5912 = vld [vmem:[%s59 + $0x518] sm:$0xff]
    %v5913 = vld [vmem:[%s59 + $0x520] sm:$0xff]
    %v5914 = vld [vmem:[%s59 + $0x528] sm:$0xff]
    %v5915 = vld [vmem:[%s59 + $0x530] sm:$0xff]
    %v5916 = vld [vmem:[%s59 + $0x538] sm:$0xff]
    %v5917 = vld [vmem:[%s59 + $0x540] sm:$0xff]
    %v5918 = vld [vmem:[%s59 + $0x548] sm:$0xff]
    %v5919 = vld [vmem:[%s59 + $0x550] sm:$0xff]
    %v5920 = vld [vmem:[%s59 + $0x558] sm:$0xff]
    %v5921 = vld [vmem:[%s59 + $0x560] sm:$0xff]
    %v5922 = vld [vmem:[%s59 + $0x568] sm:$0xff]
    %v5923 = vld [vmem:[%s59 + $0x570] sm:$0xff]
    %v5924 = vld [vmem:[%s59 + $0x578] sm:$0xff]
    %v5925 = vld [vmem:[%s59 + $0x580] sm:$0xff]
    %v5926 = vld [vmem:[%s59 + $0x588] sm:$0xff]
    %v5927 = vld [vmem:[%s59 + $0x590] sm:$0xff]
    %v5928 = vld [vmem:[%s59 + $0x598] sm:$0xff]
    %v5929 = vld [vmem:[%s59 + $0x5a0] sm:$0xff]
    %v5930 = vld [vmem:[%s59 + $0x5a8] sm:$0xff]
    %v5931 = vld [vmem:[%s59 + $0x5b0] sm:$0xff]
    %v5932 = vld [vmem:[%s59 + $0x5b8] sm:$0xff]
    %v5933 = vld [vmem:[%s59 + $0x5c0] sm:$0xff]
    %v5934 = vld [vmem:[%s59 + $0x5c8] sm:$0xff]
    %v5935 = vld [vmem:[%s59 + $0x5d0] sm:$0xff]
    %v5936 = vld [vmem:[%s59 + $0x5d8] sm:$0xff]
    %v5937 = vld [vmem:[%s59 + $0x5e0] sm:$0xff]
    %v5938 = vld [vmem:[%s59 + $0x5e8] sm:$0xff]
    %v5939 = vld [vmem:[%s59 + $0x5f0] sm:$0xff]
    %v5940 = vld [vmem:[%s59 + $0x5f8] sm:$0xff]
    %v5941 = vld [vmem:[%s59 + $0x600] sm:$0xff]
    %v5942 = vld [vmem:[%s59 + $0x608] sm:$0xff]
    %v5943 = vld [vmem:[%s59 + $0x610] sm:$0xff]
    %v5944 = vld [vmem:[%s59 + $0x618] sm:$0xff]
    %v5945 = vld [vmem:[%s59 + $0x620] sm:$0xff]
    %v5946 = vld [vmem:[%s59 + $0x628] sm:$0xff]
    %v5947 = vld [vmem:[%s59 + $0x630] sm:$0xff]
    %v5948 = vld [vmem:[%s59 + $0x638] sm:$0xff]
    %v5949 = vld [vmem:[%s59 + $0x640] sm:$0xff]
    %v5950 = vld [vmem:[%s59 + $0x648] sm:$0xff]
    %v5951 = vld [vmem:[%s59 + $0x650] sm:$0xff]
    %v5952 = vld [vmem:[%s59 + $0x658] sm:$0xff]
    %v5953 = vld [vmem:[%s59 + $0x660] sm:$0xff]
    %v5954 = vld [vmem:[%s59 + $0x668] sm:$0xff]
    %v5955 = vld [vmem:[%s59 + $0x670] sm:$0xff]
    %v5956 = vld [vmem:[%s59 + $0x678] sm:$0xff]
    %v5957 = vld [vmem:[%s59 + $0x680] sm:$0xff]
    %v5958 = vld [vmem:[%s59 + $0x688] sm:$0xff]
    %v5959 = vld [vmem:[%s59 + $0x690] sm:$0xff]
    %v5960 = vld [vmem:[%s59 + $0x698] sm:$0xff]
    %v5961 = vld [vmem:[%s59 + $0x6a0] sm:$0xff]
    %v5962 = vld [vmem:[%s59 + $0x6a8] sm:$0xff]
    %v5963 = vld [vmem:[%s59 + $0x6b0] sm:$0xff]
    %v5964 = vld [vmem:[%s59 + $0x6b8] sm:$0xff]
    %v5965 = vld [vmem:[%s59 + $0x6c0] sm:$0xff]
    %v5966 = vld [vmem:[%s59 + $0x6c8] sm:$0xff]
    %v5967 = vld [vmem:[%s59 + $0x6d0] sm:$0xff]
    %v5968 = vld [vmem:[%s59 + $0x6d8] sm:$0xff]
    %v5969 = vld [vmem:[%s59 + $0x6e0] sm:$0xff]
    %v5970 = vld [vmem:[%s59 + $0x6e8] sm:$0xff]
    %v5971 = vld [vmem:[%s59 + $0x6f0] sm:$0xff]
    %v5972 = vld [vmem:[%s59 + $0x6f8] sm:$0xff]
    %v5973 = vld [vmem:[%s59 + $0x700] sm:$0xff]
    %v5974 = vld [vmem:[%s59 + $0x708] sm:$0xff]
    %v5975 = vld [vmem:[%s59 + $0x710] sm:$0xff]
    %v5976 = vld [vmem:[%s59 + $0x718] sm:$0xff]
    %v5977 = vld [vmem:[%s59 + $0x720] sm:$0xff]
    %v5978 = vld [vmem:[%s59 + $0x728] sm:$0xff]
    %v5979 = vld [vmem:[%s59 + $0x730] sm:$0xff]
    %v5980 = vld [vmem:[%s59 + $0x738] sm:$0xff]
    %v5981 = vld [vmem:[%s59 + $0x740] sm:$0xff]
    %v5982 = vld [vmem:[%s59 + $0x748] sm:$0xff]
    %v5983 = vld [vmem:[%s59 + $0x750] sm:$0xff]
    %v5984 = vld [vmem:[%s59 + $0x758] sm:$0xff]
    %v5985 = vld [vmem:[%s59 + $0x760] sm:$0xff]
    %v5986 = vld [vmem:[%s59 + $0x768] sm:$0xff]
    %v5987 = vld [vmem:[%s59 + $0x770] sm:$0xff]
    %v5988 = vld [vmem:[%s59 + $0x778] sm:$0xff]
    %v5989 = vld [vmem:[%s59 + $0x780] sm:$0xff]
    %v5990 = vld [vmem:[%s59 + $0x788] sm:$0xff]
    %v5991 = vld [vmem:[%s59 + $0x790] sm:$0xff]
    %v5992 = vld [vmem:[%s59 + $0x798] sm:$0xff]
    %v5993 = vld [vmem:[%s59 + $0x7a0] sm:$0xff]
    %v5994 = vld [vmem:[%s59 + $0x7a8] sm:$0xff]
    %v5995 = vld [vmem:[%s59 + $0x7b0] sm:$0xff]
    %v5996 = vld [vmem:[%s59 + $0x7b8] sm:$0xff]
    %v5997 = vld [vmem:[%s59 + $0x7c0] sm:$0xff]
    %v5998 = vld [vmem:[%s59 + $0x7c8] sm:$0xff]
    %v5999 = vld [vmem:[%s59 + $0x7d0] sm:$0xff]
    %v6000 = vld [vmem:[%s59 + $0x7d8] sm:$0xff]
    %v6001 = vld [vmem:[%s59 + $0x7e0] sm:$0xff]
    %v6002 = vld [vmem:[%s59 + $0x7e8] sm:$0xff]
    %v6003 = vld [vmem:[%s59 + $0x7f0] sm:$0xff]
    %v6004 = vld [vmem:[%s59 + $0x7f8] sm:$0xff]
    %6005 = vmatprep.subr.mxu0 %v5750
    %6006 = vmatpush1.msra.mxu0 %v5749
    %6007 = vmatprep.subr.mxu0 %v5754
    %6008 = vmatpush1.msra.mxu0 %v5753
    %6009 = vmatprep.subr.mxu0 %v5758
    %6010 = vmatpush1.msra.mxu0 %v5757
    %6011 = vmatprep.subr.mxu0 %v5762
    %6012 = vmatpush1.msra.mxu0 %v5761
    %6013 = vmatprep.subr.mxu0 %v5766
    %6014 = vmatpush1.msra.mxu0 %v5765
    %6015 = vmatprep.subr.mxu0 %v5770
    %6016 = vmatpush1.msra.mxu0 %v5769
    %6017 = vmatprep.subr.mxu0 %v5774
    %6018 = vmatpush1.msra.mxu0 %v5773
    %6019 = vmatprep.subr.mxu0 %v5778
    %6020 = vmatpush1.msra.mxu0 %v5777
    %6021 = vmatprep.subr.mxu0 %v5782
    %6022 = vmatpush1.msra.mxu0 %v5781
    %6023 = vmatprep.subr.mxu0 %v5786
    %6024 = vmatpush1.msra.mxu0 %v5785
    %6025 = vmatprep.subr.mxu0 %v5790
    %6026 = vmatpush1.msra.mxu0 %v5789
    %6027 = vmatprep.subr.mxu0 %v5794
    %6028 = vmatpush1.msra.mxu0 %v5793
    %6029 = vmatprep.subr.mxu0 %v5798
    %6030 = vmatpush1.msra.mxu0 %v5797
    %6031 = vmatprep.subr.mxu0 %v5802
    %6032 = vmatpush1.msra.mxu0 %v5801
    %6033 = vmatprep.subr.mxu0 %v5806
    %6034 = vmatpush1.msra.mxu0 %v5805
    %6035 = vmatprep.subr.mxu0 %v5810
    %6036 = vmatpush1.msra.mxu0 %v5809
    %6037 = vmatprep.subr.mxu0 %v5814
    %6038 = vmatpush1.msra.mxu0 %v5813
    %6039 = vmatprep.subr.mxu0 %v5818
    %6040 = vmatpush1.msra.mxu0 %v5817
    %6041 = vmatprep.subr.mxu0 %v5822
    %6042 = vmatpush1.msra.mxu0 %v5821
    %6043 = vmatprep.subr.mxu0 %v5826
    %6044 = vmatpush1.msra.mxu0 %v5825
    %6045 = vmatprep.subr.mxu0 %v5830
    %6046 = vmatpush1.msra.mxu0 %v5829
    %6047 = vmatprep.subr.mxu0 %v5834
    %6048 = vmatpush1.msra.mxu0 %v5833
    %6049 = vmatprep.subr.mxu0 %v5838
    %6050 = vmatpush1.msra.mxu0 %v5837
    %6051 = vmatprep.subr.mxu0 %v5842
    %6052 = vmatpush1.msra.mxu0 %v5841
    %6053 = vmatprep.subr.mxu0 %v5846
    %6054 = vmatpush1.msra.mxu0 %v5845
    %6055 = vmatprep.subr.mxu0 %v5850
    %6056 = vmatpush1.msra.mxu0 %v5849
    %6057 = vmatprep.subr.mxu0 %v5854
    %6058 = vmatpush1.msra.mxu0 %v5853
    %6059 = vmatprep.subr.mxu0 %v5858
    %6060 = vmatpush1.msra.mxu0 %v5857
    %6061 = vmatprep.subr.mxu0 %v5862
    %6062 = vmatpush1.msra.mxu0 %v5861
    %6063 = vmatprep.subr.mxu0 %v5866
    %6064 = vmatpush1.msra.mxu0 %v5865
    %6065 = vmatprep.subr.mxu0 %v5870
    %6066 = vmatpush1.msra.mxu0 %v5869
    %6067 = vmatprep.subr.mxu0 %v5874
    %6068 = vmatpush1.msra.mxu0 %v5873
    %6069 = vmatprep.mubr.f32.mxu0 %v4986
    %6070 = vmatmul.mubr.f32.gmra.mrb[0].mxu0 %v4985
    %v6071 = vpop.f32.mrb[0].mxu0
    %v6072 = vadd.f32 0.0, %v6071
    %v6073 = vpop.f32.mrb[0].mxu0
    %v6074 = vadd.f32 0.0, %v6073
    %6075 = vmatprep.mubr.f32.mxu0 %v4990
    %6076 = vmatmul.mubr.f32.gmra.mrb[0].mxu0 %v4989
    %v6077 = vpop.f32.mrb[0].mxu0
    %v6078 = vadd.f32 0.0, %v6077
    %v6079 = vpop.f32.mrb[0].mxu0
    %v6080 = vadd.f32 0.0, %v6079
    %6081 = vdwg.mxu0
    %6082 = vmatprep.subr.mxu0 %v5878
    %6083 = vmatpush1.msra.mxu0 %v5877
    %6084 = vmatprep.subr.mxu0 %v5882
    %6085 = vmatpush1.msra.mxu0 %v5881
    %6086 = vmatprep.subr.mxu0 %v5886
    %6087 = vmatpush1.msra.mxu0 %v5885
    %6088 = vmatprep.subr.mxu0 %v5890
    %6089 = vmatpush1.msra.mxu0 %v5889
    %6090 = vmatprep.subr.mxu0 %v5894
    %6091 = vmatpush1.msra.mxu0 %v5893
    %6092 = vmatprep.subr.mxu0 %v5898
    %6093 = vmatpush1.msra.mxu0 %v5897
    %6094 = vmatprep.subr.mxu0 %v5902
    %6095 = vmatpush1.msra.mxu0 %v5901
    %6096 = vmatprep.subr.mxu0 %v5906
    %6097 = vmatpush1.msra.mxu0 %v5905
    %6098 = vmatprep.subr.mxu0 %v5910
    %6099 = vmatpush1.msra.mxu0 %v5909
    %6100 = vmatprep.subr.mxu0 %v5914
    %6101 = vmatpush1.msra.mxu0 %v5913
    %6102 = vmatprep.subr.mxu0 %v5918
    %6103 = vmatpush1.msra.mxu0 %v5917
    %6104 = vmatprep.subr.mxu0 %v5922
    %6105 = vmatpush1.msra.mxu0 %v5921
    %6106 = vmatprep.subr.mxu0 %v5926
    %6107 = vmatpush1.msra.mxu0 %v5925
    %6108 = vmatprep.subr.mxu0 %v5930
    %6109 = vmatpush1.msra.mxu0 %v5929
    %6110 = vmatprep.subr.mxu0 %v5934
    %6111 = vmatpush1.msra.mxu0 %v5933
    %6112 = vmatprep.subr.mxu0 %v5938
    %6113 = vmatpush1.msra.mxu0 %v5937
    %6114 = vmatprep.subr.mxu0 %v5942
    %6115 = vmatpush1.msra.mxu0 %v5941
    %6116 = vmatprep.subr.mxu0 %v5946
    %6117 = vmatpush1.msra.mxu0 %v5945
    %6118 = vmatprep.subr.mxu0 %v5950
    %6119 = vmatpush1.msra.mxu0 %v5949
    %6120 = vmatprep.subr.mxu0 %v5954
    %6121 = vmatpush1.msra.mxu0 %v5953
    %6122 = vmatprep.subr.mxu0 %v5958
    %6123 = vmatpush1.msra.mxu0 %v5957
    %6124 = vmatprep.subr.mxu0 %v5962
    %6125 = vmatpush1.msra.mxu0 %v5961
    %6126 = vmatprep.subr.mxu0 %v5966
    %6127 = vmatpush1.msra.mxu0 %v5965
    %6128 = vmatprep.subr.mxu0 %v5970
    %6129 = vmatpush1.msra.mxu0 %v5969
    %6130 = vmatprep.subr.mxu0 %v5974
    %6131 = vmatpush1.msra.mxu0 %v5973
    %6132 = vmatprep.subr.mxu0 %v5978
    %6133 = vmatpush1.msra.mxu0 %v5977
    %6134 = vmatprep.subr.mxu0 %v5982
    %6135 = vmatpush1.msra.mxu0 %v5981
    %6136 = vmatprep.subr.mxu0 %v5986
    %6137 = vmatpush1.msra.mxu0 %v5985
    %6138 = vmatprep.subr.mxu0 %v5990
    %6139 = vmatpush1.msra.mxu0 %v5989
    %6140 = vmatprep.subr.mxu0 %v5994
    %6141 = vmatpush1.msra.mxu0 %v5993
    %6142 = vmatprep.subr.mxu0 %v5998
    %6143 = vmatpush1.msra.mxu0 %v5997
    %6144 = vmatprep.subr.mxu0 %v6002
    %6145 = vmatpush1.msra.mxu0 %v6001
    %6146 = vmatprep.mubr.f32.mxu0 %v4988
    %6147 = vmatmul.mubr.f32.gmra.mrb[0].mxu0 %v4987
    %v6148 = vpop.f32.mrb[0].mxu0
    %v6149 = vadd.f32 %v6072, %v6148
    %v6150 = vpop.f32.mrb[0].mxu0
    %v6151 = vadd.f32 %v6074, %v6150
    %6152 = vmatprep.mubr.f32.mxu0 %v4992
    %6153 = vmatmul.mubr.f32.gmra.mrb[0].mxu0 %v4991
    %v6154 = vpop.f32.mrb[0].mxu0
    %v6155 = vadd.f32 %v6078, %v6154
    %v6156 = vpop.f32.mrb[0].mxu0
    %v6157 = vadd.f32 %v6080, %v6156
    %6158 = vdwg.mxu0
    %6159 = vmatprep.subr.mxu0 %v5752
    %6160 = vmatpush1.msra.mxu0 %v5751
    %6161 = vmatprep.subr.mxu0 %v5756
    %6162 = vmatpush1.msra.mxu0 %v5755
    %6163 = vmatprep.subr.mxu0 %v5760
    %6164 = vmatpush1.msra.mxu0 %v5759
    %6165 = vmatprep.subr.mxu0 %v5764
    %6166 = vmatpush1.msra.mxu0 %v5763
    %6167 = vmatprep.subr.mxu0 %v5768
    %6168 = vmatpush1.msra.mxu0 %v5767
    %6169 = vmatprep.subr.mxu0 %v5772
    %6170 = vmatpush1.msra.mxu0 %v5771
    %6171 = vmatprep.subr.mxu0 %v5776
    %6172 = vmatpush1.msra.mxu0 %v5775
    %6173 = vmatprep.subr.mxu0 %v5780
    %6174 = vmatpush1.msra.mxu0 %v5779
    %6175 = vmatprep.subr.mxu0 %v5784
    %6176 = vmatpush1.msra.mxu0 %v5783
    %6177 = vmatprep.subr.mxu0 %v5788
    %6178 = vmatpush1.msra.mxu0 %v5787
    %6179 = vmatprep.subr.mxu0 %v5792
    %6180 = vmatpush1.msra.mxu0 %v5791
    %6181 = vmatprep.subr.mxu0 %v5796
    %6182 = vmatpush1.msra.mxu0 %v5795
    %6183 = vmatprep.subr.mxu0 %v5800
    %6184 = vmatpush1.msra.mxu0 %v5799
    %6185 = vmatprep.subr.mxu0 %v5804
    %6186 = vmatpush1.msra.mxu0 %v5803
    %6187 = vmatprep.subr.mxu0 %v5808
    %6188 = vmatpush1.msra.mxu0 %v5807
    %6189 = vmatprep.subr.mxu0 %v5812
    %6190 = vmatpush1.msra.mxu0 %v5811
    %6191 = vmatprep.subr.mxu0 %v5816
    %6192 = vmatpush1.msra.mxu0 %v5815
    %6193 = vmatprep.subr.mxu0 %v5820
    %6194 = vmatpush1.msra.mxu0 %v5819
    %6195 = vmatprep.subr.mxu0 %v5824
    %6196 = vmatpush1.msra.mxu0 %v5823
    %6197 = vmatprep.subr.mxu0 %v5828
    %6198 = vmatpush1.msra.mxu0 %v5827
    %6199 = vmatprep.subr.mxu0 %v5832
    %6200 = vmatpush1.msra.mxu0 %v5831
    %6201 = vmatprep.subr.mxu0 %v5836
    %6202 = vmatpush1.msra.mxu0 %v5835
    %6203 = vmatprep.subr.mxu0 %v5840
    %6204 = vmatpush1.msra.mxu0 %v5839
    %6205 = vmatprep.subr.mxu0 %v5844
    %6206 = vmatpush1.msra.mxu0 %v5843
    %6207 = vmatprep.subr.mxu0 %v5848
    %6208 = vmatpush1.msra.mxu0 %v5847
    %6209 = vmatprep.subr.mxu0 %v5852
    %6210 = vmatpush1.msra.mxu0 %v5851
    %6211 = vmatprep.subr.mxu0 %v5856
    %6212 = vmatpush1.msra.mxu0 %v5855
    %6213 = vmatprep.subr.mxu0 %v5860
    %6214 = vmatpush1.msra.mxu0 %v5859
    %6215 = vmatprep.subr.mxu0 %v5864
    %6216 = vmatpush1.msra.mxu0 %v5863
    %6217 = vmatprep.subr.mxu0 %v5868
    %6218 = vmatpush1.msra.mxu0 %v5867
    %6219 = vmatprep.subr.mxu0 %v5872
    %6220 = vmatpush1.msra.mxu0 %v5871
    %6221 = vmatprep.subr.mxu0 %v5876
    %6222 = vmatpush1.msra.mxu0 %v5875
    %6223 = vmatprep.mubr.f32.mxu0 %v4986
    %6224 = vmatmul.mubr.f32.gmra.mrb[0].mxu0 %v4985
    %v6225 = vpop.f32.mrb[0].mxu0
    %v6226 = vadd.f32 0.0, %v6225
    %v6227 = vpop.f32.mrb[0].mxu0
    %v6228 = vadd.f32 0.0, %v6227
    %6229 = vmatprep.mubr.f32.mxu0 %v4990
    %6230 = vmatmul.mubr.f32.gmra.mrb[0].mxu0 %v4989
    %v6231 = vpop.f32.mrb[0].mxu0
    %v6232 = vadd.f32 0.0, %v6231
    %v6233 = vpop.f32.mrb[0].mxu0
    %v6234 = vadd.f32 0.0, %v6233
    %6235 = vdwg.mxu0
    %6236 = vmatprep.subr.mxu0 %v5880
    %6237 = vmatpush1.msra.mxu0 %v5879
    %6238 = vmatprep.subr.mxu0 %v5884
    %6239 = vmatpush1.msra.mxu0 %v5883
    %6240 = vmatprep.subr.mxu0 %v5888
    %6241 = vmatpush1.msra.mxu0 %v5887
    %6242 = vmatprep.subr.mxu0 %v5892
    %6243 = vmatpush1.msra.mxu0 %v5891
    %6244 = vmatprep.subr.mxu0 %v5896
    %6245 = vmatpush1.msra.mxu0 %v5895
    %6246 = vmatprep.subr.mxu0 %v5900
    %6247 = vmatpush1.msra.mxu0 %v5899
    %6248 = vmatprep.subr.mxu0 %v5904
    %6249 = vmatpush1.msra.mxu0 %v5903
    %6250 = vmatprep.subr.mxu0 %v5908
    %6251 = vmatpush1.msra.mxu0 %v5907
    %6252 = vmatprep.subr.mxu0 %v5912
    %6253 = vmatpush1.msra.mxu0 %v5911
    %6254 = vmatprep.subr.mxu0 %v5916
    %6255 = vmatpush1.msra.mxu0 %v5915
    %6256 = vmatprep.subr.mxu0 %v5920
    %6257 = vmatpush1.msra.mxu0 %v5919
    %6258 = vmatprep.subr.mxu0 %v5924
    %6259 = vmatpush1.msra.mxu0 %v5923
    %6260 = vmatprep.subr.mxu0 %v5928
    %6261 = vmatpush1.msra.mxu0 %v5927
    %6262 = vmatprep.subr.mxu0 %v5932
    %6263 = vmatpush1.msra.mxu0 %v5931
    %6264 = vmatprep.subr.mxu0 %v5936
    %6265 = vmatpush1.msra.mxu0 %v5935
    %6266 = vmatprep.subr.mxu0 %v5940
    %6267 = vmatpush1.msra.mxu0 %v5939
    %6268 = vmatprep.subr.mxu0 %v5944
    %6269 = vmatpush1.msra.mxu0 %v5943
    %6270 = vmatprep.subr.mxu0 %v5948
    %6271 = vmatpush1.msra.mxu0 %v5947
    %6272 = vmatprep.subr.mxu0 %v5952
    %6273 = vmatpush1.msra.mxu0 %v5951
    %6274 = vmatprep.subr.mxu0 %v5956
    %6275 = vmatpush1.msra.mxu0 %v5955
    %6276 = vmatprep.subr.mxu0 %v5960
    %6277 = vmatpush1.msra.mxu0 %v5959
    %6278 = vmatprep.subr.mxu0 %v5964
    %6279 = vmatpush1.msra.mxu0 %v5963
    %6280 = vmatprep.subr.mxu0 %v5968
    %6281 = vmatpush1.msra.mxu0 %v5967
    %6282 = vmatprep.subr.mxu0 %v5972
    %6283 = vmatpush1.msra.mxu0 %v5971
    %6284 = vmatprep.subr.mxu0 %v5976
    %6285 = vmatpush1.msra.mxu0 %v5975
    %6286 = vmatprep.subr.mxu0 %v5980
    %6287 = vmatpush1.msra.mxu0 %v5979
    %6288 = vmatprep.subr.mxu0 %v5984
    %6289 = vmatpush1.msra.mxu0 %v5983
    %6290 = vmatprep.subr.mxu0 %v5988
    %6291 = vmatpush1.msra.mxu0 %v5987
    %6292 = vmatprep.subr.mxu0 %v5992
    %6293 = vmatpush1.msra.mxu0 %v5991
    %6294 = vmatprep.subr.mxu0 %v5996
    %6295 = vmatpush1.msra.mxu0 %v5995
    %6296 = vmatprep.subr.mxu0 %v6000
    %6297 = vmatpush1.msra.mxu0 %v5999
    %6298 = vmatprep.subr.mxu0 %v6004
    %6299 = vmatpush1.msra.mxu0 %v6003
    %6300 = vmatprep.mubr.f32.mxu0 %v4988
    %6301 = vmatmul.mubr.f32.gmra.mrb[0].mxu0 %v4987
    %v6302 = vpop.f32.mrb[0].mxu0
    %v6303 = vadd.f32 %v6226, %v6302
    %v6304 = vpop.f32.mrb[0].mxu0
    %v6305 = vadd.f32 %v6228, %v6304
    %6306 = vmatprep.mubr.f32.mxu0 %v4992
    %6307 = vmatmul.mubr.f32.gmra.mrb[0].mxu0 %v4991
    %v6308 = vpop.f32.mrb[0].mxu0
    %v6309 = vadd.f32 %v6232, %v6308
    %v6310 = vpop.f32.mrb[0].mxu0
    %v6311 = vadd.f32 %v6234, %v6310
    %6312 = vdwg.mxu0
    %v6313 = vadd.f32 %v5662, %v6149
    %v6314 = vadd.f32 %v5664, %v6151
    %v6315 = vadd.f32 %v5739, %v6303
    %v6316 = vadd.f32 %v5741, %v6305
    %v6317 = vadd.f32 %v5668, %v6155
    %v6318 = vadd.f32 %v5670, %v6157
    %v6319 = vadd.f32 %v5745, %v6309
    %v6320 = vadd.f32 %v5747, %v6311
    %v6321 = vld [vmem:[#allocation31] sm:$0xff]
    %v6322 = vld [vmem:[#allocation31 + $0x8] sm:$0xff]
    %v6323 = vld [vmem:[#allocation31 + $0x10] sm:$0xff]
    %v6324 = vld [vmem:[#allocation31 + $0x18] sm:$0xff]
    %v6325 = vld [vmem:[#allocation31 + $0x20] sm:$0xff]
    %v6326 = vld [vmem:[#allocation31 + $0x28] sm:$0xff]
    %v6327 = vld [vmem:[#allocation31 + $0x30] sm:$0xff]
    %v6328 = vld [vmem:[#allocation31 + $0x38] sm:$0xff]
    %v6329 = vld [vmem:[#allocation31 + $0x40] sm:$0xff]
    %v6330 = vld [vmem:[#allocation31 + $0x48] sm:$0xff]
    %v6331 = vld [vmem:[#allocation31 + $0x50] sm:$0xff]
    %v6332 = vld [vmem:[#allocation31 + $0x58] sm:$0xff]
    %v6333 = vld [vmem:[#allocation31 + $0x60] sm:$0xff]
    %v6334 = vld [vmem:[#allocation31 + $0x68] sm:$0xff]
    %v6335 = vld [vmem:[#allocation31 + $0x70] sm:$0xff]
    %v6336 = vld [vmem:[#allocation31 + $0x78] sm:$0xff]
    %v6337 = vld [vmem:[#allocation31 + $0x80] sm:$0xff]
    %v6338 = vld [vmem:[#allocation31 + $0x88] sm:$0xff]
    %v6339 = vld [vmem:[#allocation31 + $0x90] sm:$0xff]
    %v6340 = vld [vmem:[#allocation31 + $0x98] sm:$0xff]
    %v6341 = vld [vmem:[#allocation31 + $0xa0] sm:$0xff]
    %v6342 = vld [vmem:[#allocation31 + $0xa8] sm:$0xff]
    %v6343 = vld [vmem:[#allocation31 + $0xb0] sm:$0xff]
    %v6344 = vld [vmem:[#allocation31 + $0xb8] sm:$0xff]
    %v6345 = vld [vmem:[#allocation31 + $0xc0] sm:$0xff]
    %v6346 = vld [vmem:[#allocation31 + $0xc8] sm:$0xff]
    %v6347 = vld [vmem:[#allocation31 + $0xd0] sm:$0xff]
    %v6348 = vld [vmem:[#allocation31 + $0xd8] sm:$0xff]
    %v6349 = vld [vmem:[#allocation31 + $0xe0] sm:$0xff]
    %v6350 = vld [vmem:[#allocation31 + $0xe8] sm:$0xff]
    %v6351 = vld [vmem:[#allocation31 + $0xf0] sm:$0xff]
    %v6352 = vld [vmem:[#allocation31 + $0xf8] sm:$0xff]
    %v6353 = vld [vmem:[#allocation31 + $0x100] sm:$0xff]
    %v6354 = vld [vmem:[#allocation31 + $0x108] sm:$0xff]
    %v6355 = vld [vmem:[#allocation31 + $0x110] sm:$0xff]
    %v6356 = vld [vmem:[#allocation31 + $0x118] sm:$0xff]
    %v6357 = vld [vmem:[#allocation31 + $0x120] sm:$0xff]
    %v6358 = vld [vmem:[#allocation31 + $0x128] sm:$0xff]
    %v6359 = vld [vmem:[#allocation31 + $0x130] sm:$0xff]
    %v6360 = vld [vmem:[#allocation31 + $0x138] sm:$0xff]
    %v6361 = vld [vmem:[#allocation31 + $0x140] sm:$0xff]
    %v6362 = vld [vmem:[#allocation31 + $0x148] sm:$0xff]
    %v6363 = vld [vmem:[#allocation31 + $0x150] sm:$0xff]
    %v6364 = vld [vmem:[#allocation31 + $0x158] sm:$0xff]
    %v6365 = vld [vmem:[#allocation31 + $0x160] sm:$0xff]
    %v6366 = vld [vmem:[#allocation31 + $0x168] sm:$0xff]
    %v6367 = vld [vmem:[#allocation31 + $0x170] sm:$0xff]
    %v6368 = vld [vmem:[#allocation31 + $0x178] sm:$0xff]
    %v6369 = vld [vmem:[#allocation31 + $0x180] sm:$0xff]
    %v6370 = vld [vmem:[#allocation31 + $0x188] sm:$0xff]
    %v6371 = vld [vmem:[#allocation31 + $0x190] sm:$0xff]
    %v6372 = vld [vmem:[#allocation31 + $0x198] sm:$0xff]
    %v6373 = vld [vmem:[#allocation31 + $0x1a0] sm:$0xff]
    %v6374 = vld [vmem:[#allocation31 + $0x1a8] sm:$0xff]
    %v6375 = vld [vmem:[#allocation31 + $0x1b0] sm:$0xff]
    %v6376 = vld [vmem:[#allocation31 + $0x1b8] sm:$0xff]
    %v6377 = vld [vmem:[#allocation31 + $0x1c0] sm:$0xff]
    %v6378 = vld [vmem:[#allocation31 + $0x1c8] sm:$0xff]
    %v6379 = vld [vmem:[#allocation31 + $0x1d0] sm:$0xff]
    %v6380 = vld [vmem:[#allocation31 + $0x1d8] sm:$0xff]
    %v6381 = vld [vmem:[#allocation31 + $0x1e0] sm:$0xff]
    %v6382 = vld [vmem:[#allocation31 + $0x1e8] sm:$0xff]
    %v6383 = vld [vmem:[#allocation31 + $0x1f0] sm:$0xff]
    %v6384 = vld [vmem:[#allocation31 + $0x1f8] sm:$0xff]
    %v6385 = vld [vmem:[#allocation31 + $0x200] sm:$0xff]
    %v6386 = vld [vmem:[#allocation31 + $0x208] sm:$0xff]
    %v6387 = vld [vmem:[#allocation31 + $0x210] sm:$0xff]
    %v6388 = vld [vmem:[#allocation31 + $0x218] sm:$0xff]
    %v6389 = vld [vmem:[#allocation31 + $0x220] sm:$0xff]
    %v6390 = vld [vmem:[#allocation31 + $0x228] sm:$0xff]
    %v6391 = vld [vmem:[#allocation31 + $0x230] sm:$0xff]
    %v6392 = vld [vmem:[#allocation31 + $0x238] sm:$0xff]
    %v6393 = vld [vmem:[#allocation31 + $0x240] sm:$0xff]
    %v6394 = vld [vmem:[#allocation31 + $0x248] sm:$0xff]
    %v6395 = vld [vmem:[#allocation31 + $0x250] sm:$0xff]
    %v6396 = vld [vmem:[#allocation31 + $0x258] sm:$0xff]
    %v6397 = vld [vmem:[#allocation31 + $0x260] sm:$0xff]
    %v6398 = vld [vmem:[#allocation31 + $0x268] sm:$0xff]
    %v6399 = vld [vmem:[#allocation31 + $0x270] sm:$0xff]
    %v6400 = vld [vmem:[#allocation31 + $0x278] sm:$0xff]
    %v6401 = vld [vmem:[#allocation31 + $0x280] sm:$0xff]
    %v6402 = vld [vmem:[#allocation31 + $0x288] sm:$0xff]
    %v6403 = vld [vmem:[#allocation31 + $0x290] sm:$0xff]
    %v6404 = vld [vmem:[#allocation31 + $0x298] sm:$0xff]
    %v6405 = vld [vmem:[#allocation31 + $0x2a0] sm:$0xff]
    %v6406 = vld [vmem:[#allocation31 + $0x2a8] sm:$0xff]
    %v6407 = vld [vmem:[#allocation31 + $0x2b0] sm:$0xff]
    %v6408 = vld [vmem:[#allocation31 + $0x2b8] sm:$0xff]
    %v6409 = vld [vmem:[#allocation31 + $0x2c0] sm:$0xff]
    %v6410 = vld [vmem:[#allocation31 + $0x2c8] sm:$0xff]
    %v6411 = vld [vmem:[#allocation31 + $0x2d0] sm:$0xff]
    %v6412 = vld [vmem:[#allocation31 + $0x2d8] sm:$0xff]
    %v6413 = vld [vmem:[#allocation31 + $0x2e0] sm:$0xff]
    %v6414 = vld [vmem:[#allocation31 + $0x2e8] sm:$0xff]
    %v6415 = vld [vmem:[#allocation31 + $0x2f0] sm:$0xff]
    %v6416 = vld [vmem:[#allocation31 + $0x2f8] sm:$0xff]
    %v6417 = vld [vmem:[#allocation31 + $0x300] sm:$0xff]
    %v6418 = vld [vmem:[#allocation31 + $0x308] sm:$0xff]
    %v6419 = vld [vmem:[#allocation31 + $0x310] sm:$0xff]
    %v6420 = vld [vmem:[#allocation31 + $0x318] sm:$0xff]
    %v6421 = vld [vmem:[#allocation31 + $0x320] sm:$0xff]
    %v6422 = vld [vmem:[#allocation31 + $0x328] sm:$0xff]
    %v6423 = vld [vmem:[#allocation31 + $0x330] sm:$0xff]
    %v6424 = vld [vmem:[#allocation31 + $0x338] sm:$0xff]
    %v6425 = vld [vmem:[#allocation31 + $0x340] sm:$0xff]
    %v6426 = vld [vmem:[#allocation31 + $0x348] sm:$0xff]
    %v6427 = vld [vmem:[#allocation31 + $0x350] sm:$0xff]
    %v6428 = vld [vmem:[#allocation31 + $0x358] sm:$0xff]
    %v6429 = vld [vmem:[#allocation31 + $0x360] sm:$0xff]
    %v6430 = vld [vmem:[#allocation31 + $0x368] sm:$0xff]
    %v6431 = vld [vmem:[#allocation31 + $0x370] sm:$0xff]
    %v6432 = vld [vmem:[#allocation31 + $0x378] sm:$0xff]
    %v6433 = vld [vmem:[#allocation31 + $0x380] sm:$0xff]
    %v6434 = vld [vmem:[#allocation31 + $0x388] sm:$0xff]
    %v6435 = vld [vmem:[#allocation31 + $0x390] sm:$0xff]
    %v6436 = vld [vmem:[#allocation31 + $0x398] sm:$0xff]
    %v6437 = vld [vmem:[#allocation31 + $0x3a0] sm:$0xff]
    %v6438 = vld [vmem:[#allocation31 + $0x3a8] sm:$0xff]
    %v6439 = vld [vmem:[#allocation31 + $0x3b0] sm:$0xff]
    %v6440 = vld [vmem:[#allocation31 + $0x3b8] sm:$0xff]
    %v6441 = vld [vmem:[#allocation31 + $0x3c0] sm:$0xff]
    %v6442 = vld [vmem:[#allocation31 + $0x3c8] sm:$0xff]
    %v6443 = vld [vmem:[#allocation31 + $0x3d0] sm:$0xff]
    %v6444 = vld [vmem:[#allocation31 + $0x3d8] sm:$0xff]
    %v6445 = vld [vmem:[#allocation31 + $0x3e0] sm:$0xff]
    %v6446 = vld [vmem:[#allocation31 + $0x3e8] sm:$0xff]
    %v6447 = vld [vmem:[#allocation31 + $0x3f0] sm:$0xff]
    %v6448 = vld [vmem:[#allocation31 + $0x3f8] sm:$0xff]
    %6449 = vmatprep.subr.mxu0 %v6322
    %6450 = vmatpush1.msra.mxu0 %v6321
    %6451 = vmatprep.subr.mxu0 %v6326
    %6452 = vmatpush1.msra.mxu0 %v6325
    %6453 = vmatprep.subr.mxu0 %v6330
    %6454 = vmatpush1.msra.mxu0 %v6329
    %6455 = vmatprep.subr.mxu0 %v6334
    %6456 = vmatpush1.msra.mxu0 %v6333
    %6457 = vmatprep.subr.mxu0 %v6338
    %6458 = vmatpush1.msra.mxu0 %v6337
    %6459 = vmatprep.subr.mxu0 %v6342
    %6460 = vmatpush1.msra.mxu0 %v6341
    %6461 = vmatprep.subr.mxu0 %v6346
    %6462 = vmatpush1.msra.mxu0 %v6345
    %6463 = vmatprep.subr.mxu0 %v6350
    %6464 = vmatpush1.msra.mxu0 %v6349
    %6465 = vmatprep.subr.mxu0 %v6354
    %6466 = vmatpush1.msra.mxu0 %v6353
    %6467 = vmatprep.subr.mxu0 %v6358
    %6468 = vmatpush1.msra.mxu0 %v6357
    %6469 = vmatprep.subr.mxu0 %v6362
    %6470 = vmatpush1.msra.mxu0 %v6361
    %6471 = vmatprep.subr.mxu0 %v6366
    %6472 = vmatpush1.msra.mxu0 %v6365
    %6473 = vmatprep.subr.mxu0 %v6370
    %6474 = vmatpush1.msra.mxu0 %v6369
    %6475 = vmatprep.subr.mxu0 %v6374
    %6476 = vmatpush1.msra.mxu0 %v6373
    %6477 = vmatprep.subr.mxu0 %v6378
    %6478 = vmatpush1.msra.mxu0 %v6377
    %6479 = vmatprep.subr.mxu0 %v6382
    %6480 = vmatpush1.msra.mxu0 %v6381
    %6481 = vmatprep.subr.mxu0 %v6386
    %6482 = vmatpush1.msra.mxu0 %v6385
    %6483 = vmatprep.subr.mxu0 %v6390
    %6484 = vmatpush1.msra.mxu0 %v6389
    %6485 = vmatprep.subr.mxu0 %v6394
    %6486 = vmatpush1.msra.mxu0 %v6393
    %6487 = vmatprep.subr.mxu0 %v6398
    %6488 = vmatpush1.msra.mxu0 %v6397
    %6489 = vmatprep.subr.mxu0 %v6402
    %6490 = vmatpush1.msra.mxu0 %v6401
    %6491 = vmatprep.subr.mxu0 %v6406
    %6492 = vmatpush1.msra.mxu0 %v6405
    %6493 = vmatprep.subr.mxu0 %v6410
    %6494 = vmatpush1.msra.mxu0 %v6409
    %6495 = vmatprep.subr.mxu0 %v6414
    %6496 = vmatpush1.msra.mxu0 %v6413
    %6497 = vmatprep.subr.mxu0 %v6418
    %6498 = vmatpush1.msra.mxu0 %v6417
    %6499 = vmatprep.subr.mxu0 %v6422
    %6500 = vmatpush1.msra.mxu0 %v6421
    %6501 = vmatprep.subr.mxu0 %v6426
    %6502 = vmatpush1.msra.mxu0 %v6425
    %6503 = vmatprep.subr.mxu0 %v6430
    %6504 = vmatpush1.msra.mxu0 %v6429
    %6505 = vmatprep.subr.mxu0 %v6434
    %6506 = vmatpush1.msra.mxu0 %v6433
    %6507 = vmatprep.subr.mxu0 %v6438
    %6508 = vmatpush1.msra.mxu0 %v6437
    %6509 = vmatprep.subr.mxu0 %v6442
    %6510 = vmatpush1.msra.mxu0 %v6441
    %6511 = vmatprep.subr.mxu0 %v6446
    %6512 = vmatpush1.msra.mxu0 %v6445
    %6513 = vmatprep.mubr.f32.mxu0 %v5112
    %6514 = vmatmul.mubr.f32.gmra.mrb[0].mxu0 %v5111
    %v6515 = vpop.f32.mrb[0].mxu0
    %v6516 = vadd.f32 0.0, %v6515
    %v6517 = vpop.f32.mrb[0].mxu0
    %v6518 = vadd.f32 0.0, %v6517
    %6519 = vmatprep.mubr.f32.mxu0 %v5114
    %6520 = vmatmul.mubr.f32.gmra.mrb[0].mxu0 %v5113
    %v6521 = vpop.f32.mrb[0].mxu0
    %v6522 = vadd.f32 0.0, %v6521
    %v6523 = vpop.f32.mrb[0].mxu0
    %v6524 = vadd.f32 0.0, %v6523
    %6525 = vdwg.mxu0
    %6526 = vmatprep.subr.mxu0 %v6324
    %6527 = vmatpush1.msra.mxu0 %v6323
    %6528 = vmatprep.subr.mxu0 %v6328
    %6529 = vmatpush1.msra.mxu0 %v6327
    %6530 = vmatprep.subr.mxu0 %v6332
    %6531 = vmatpush1.msra.mxu0 %v6331
    %6532 = vmatprep.subr.mxu0 %v6336
    %6533 = vmatpush1.msra.mxu0 %v6335
    %6534 = vmatprep.subr.mxu0 %v6340
    %6535 = vmatpush1.msra.mxu0 %v6339
    %6536 = vmatprep.subr.mxu0 %v6344
    %6537 = vmatpush1.msra.mxu0 %v6343
    %6538 = vmatprep.subr.mxu0 %v6348
    %6539 = vmatpush1.msra.mxu0 %v6347
    %6540 = vmatprep.subr.mxu0 %v6352
    %6541 = vmatpush1.msra.mxu0 %v6351
    %6542 = vmatprep.subr.mxu0 %v6356
    %6543 = vmatpush1.msra.mxu0 %v6355
    %6544 = vmatprep.subr.mxu0 %v6360
    %6545 = vmatpush1.msra.mxu0 %v6359
    %6546 = vmatprep.subr.mxu0 %v6364
    %6547 = vmatpush1.msra.mxu0 %v6363
    %6548 = vmatprep.subr.mxu0 %v6368
    %6549 = vmatpush1.msra.mxu0 %v6367
    %6550 = vmatprep.subr.mxu0 %v6372
    %6551 = vmatpush1.msra.mxu0 %v6371
    %6552 = vmatprep.subr.mxu0 %v6376
    %6553 = vmatpush1.msra.mxu0 %v6375
    %6554 = vmatprep.subr.mxu0 %v6380
    %6555 = vmatpush1.msra.mxu0 %v6379
    %6556 = vmatprep.subr.mxu0 %v6384
    %6557 = vmatpush1.msra.mxu0 %v6383
    %6558 = vmatprep.subr.mxu0 %v6388
    %6559 = vmatpush1.msra.mxu0 %v6387
    %6560 = vmatprep.subr.mxu0 %v6392
    %6561 = vmatpush1.msra.mxu0 %v6391
    %6562 = vmatprep.subr.mxu0 %v6396
    %6563 = vmatpush1.msra.mxu0 %v6395
    %6564 = vmatprep.subr.mxu0 %v6400
    %6565 = vmatpush1.msra.mxu0 %v6399
    %6566 = vmatprep.subr.mxu0 %v6404
    %6567 = vmatpush1.msra.mxu0 %v6403
    %6568 = vmatprep.subr.mxu0 %v6408
    %6569 = vmatpush1.msra.mxu0 %v6407
    %6570 = vmatprep.subr.mxu0 %v6412
    %6571 = vmatpush1.msra.mxu0 %v6411
    %6572 = vmatprep.subr.mxu0 %v6416
    %6573 = vmatpush1.msra.mxu0 %v6415
    %6574 = vmatprep.subr.mxu0 %v6420
    %6575 = vmatpush1.msra.mxu0 %v6419
    %6576 = vmatprep.subr.mxu0 %v6424
    %6577 = vmatpush1.msra.mxu0 %v6423
    %6578 = vmatprep.subr.mxu0 %v6428
    %6579 = vmatpush1.msra.mxu0 %v6427
    %6580 = vmatprep.subr.mxu0 %v6432
    %6581 = vmatpush1.msra.mxu0 %v6431
    %6582 = vmatprep.subr.mxu0 %v6436
    %6583 = vmatpush1.msra.mxu0 %v6435
    %6584 = vmatprep.subr.mxu0 %v6440
    %6585 = vmatpush1.msra.mxu0 %v6439
    %6586 = vmatprep.subr.mxu0 %v6444
    %6587 = vmatpush1.msra.mxu0 %v6443
    %6588 = vmatprep.subr.mxu0 %v6448
    %6589 = vmatpush1.msra.mxu0 %v6447
    %6590 = vmatprep.mubr.f32.mxu0 %v5112
    %6591 = vmatmul.mubr.f32.gmra.mrb[0].mxu0 %v5111
    %v6592 = vpop.f32.mrb[0].mxu0
    %v6593 = vadd.f32 0.0, %v6592
    %v6594 = vpop.f32.mrb[0].mxu0
    %v6595 = vadd.f32 0.0, %v6594
    %6596 = vmatprep.mubr.f32.mxu0 %v5114
    %6597 = vmatmul.mubr.f32.gmra.mrb[0].mxu0 %v5113
    %v6598 = vpop.f32.mrb[0].mxu0
    %v6599 = vadd.f32 0.0, %v6598
    %v6600 = vpop.f32.mrb[0].mxu0
    %v6601 = vadd.f32 0.0, %v6600
    %6602 = vdwg.mxu0
    %v6603 = vadd.f32 %v6313, %v6516
    %v6604 = vadd.f32 %v6314, %v6518
    %v6605 = vadd.f32 %v6315, %v6593
    %v6606 = vadd.f32 %v6316, %v6595
    %v6607 = vadd.f32 %v6317, %v6522
    %v6608 = vadd.f32 %v6318, %v6524
    %v6609 = vadd.f32 %v6319, %v6599
    %v6610 = vadd.f32 %v6320, %v6601
    %v6611 = vld [vmem:[#allocation32] sm:$0xf]
    %v6613 = vlaneseq
    %v6614 = vshrl.u32 %v6613, 7
    %v6615 = vsub.s32 0, %v6614
    %v6616 = vrot.slane %v6611, %v6615
    %v6617 = vlaneseq
    %v6618 = vshrl.u32 %v6617, 7
    %v6619 = vsub.s32 1, %v6618
    %v6620 = vrot.slane %v6611, %v6619
    %v6621 = vlaneseq
    %v6622 = vshrl.u32 %v6621, 7
    %v6623 = vsub.s32 2, %v6622
    %v6624 = vrot.slane %v6611, %v6623
    %v6625 = vlaneseq
    %v6626 = vshrl.u32 %v6625, 7
    %v6627 = vsub.s32 3, %v6626
    %v6628 = vrot.slane %v6611, %v6627
    %v6633 = vadd.f32 %v6603, %v6616
    %v6634 = vadd.f32 %v6604, %v6620
    %v6635 = vadd.f32 %v6605, %v6624
    %v6636 = vadd.f32 %v6606, %v6628
    %v6637 = vadd.f32 %v6607, %v6616
    %v6638 = vadd.f32 %v6608, %v6620
    %v6639 = vadd.f32 %v6609, %v6624
    %v6640 = vadd.f32 %v6610, %v6628
    %vm6641 = vcmp.ge.f32.partialorder %v6633, 0.0
    %vm6642 = vcmp.ge.f32.partialorder %v6634, 0.0
    %vm6643 = vcmp.ge.f32.partialorder %v6635, 0.0
    %vm6644 = vcmp.ge.f32.partialorder %v6636, 0.0
    %vm6645 = vcmp.ge.f32.partialorder %v6637, 0.0
    %vm6646 = vcmp.ge.f32.partialorder %v6638, 0.0
    %vm6647 = vcmp.ge.f32.partialorder %v6639, 0.0
    %vm6648 = vcmp.ge.f32.partialorder %v6640, 0.0
    %v6649 = vmul.f32 %v6633, 0.25
    %v6650 = vmul.f32 %v6634, 0.25
    %v6651 = vmul.f32 %v6635, 0.25
    %v6652 = vmul.f32 %v6636, 0.25
    %v6653 = vmul.f32 %v6637, 0.25
    %v6654 = vmul.f32 %v6638, 0.25
    %v6655 = vmul.f32 %v6639, 0.25
    %v6656 = vmul.f32 %v6640, 0.25
    %v6657 = vsel %vm6641, %v6633, %v6649
    %v6658 = vsel %vm6642, %v6634, %v6650
    %v6659 = vsel %vm6643, %v6635, %v6651
    %v6660 = vsel %vm6644, %v6636, %v6652
    %v6661 = vsel %vm6645, %v6637, %v6653
    %v6662 = vsel %vm6646, %v6638, %v6654
    %v6663 = vsel %vm6647, %v6639, %v6655
    %v6664 = vsel %vm6648, %v6640, %v6656
    %v6665 = vld [vmem:[%s65] sm:$0xff]
    %v6666 = vld [vmem:[%s65 + $0x8] sm:$0xff]
    %v6667 = vld [vmem:[%s65 + $0x10] sm:$0xff]
    %v6668 = vld [vmem:[%s65 + $0x18] sm:$0xff]
    %v6669 = vld [vmem:[%s65 + $0x20] sm:$0xff]
    %v6670 = vld [vmem:[%s65 + $0x28] sm:$0xff]
    %v6671 = vld [vmem:[%s65 + $0x30] sm:$0xff]
    %v6672 = vld [vmem:[%s65 + $0x38] sm:$0xff]
    %v6673 = vld [vmem:[%s65 + $0x40] sm:$0xff]
    %v6674 = vld [vmem:[%s65 + $0x48] sm:$0xff]
    %v6675 = vld [vmem:[%s65 + $0x50] sm:$0xff]
    %v6676 = vld [vmem:[%s65 + $0x58] sm:$0xff]
    %v6677 = vld [vmem:[%s65 + $0x60] sm:$0xff]
    %v6678 = vld [vmem:[%s65 + $0x68] sm:$0xff]
    %v6679 = vld [vmem:[%s65 + $0x70] sm:$0xff]
    %v6680 = vld [vmem:[%s65 + $0x78] sm:$0xff]
    %v6681 = vld [vmem:[%s65 + $0x80] sm:$0xff]
    %v6682 = vld [vmem:[%s65 + $0x88] sm:$0xff]
    %v6683 = vld [vmem:[%s65 + $0x90] sm:$0xff]
    %v6684 = vld [vmem:[%s65 + $0x98] sm:$0xff]
    %v6685 = vld [vmem:[%s65 + $0xa0] sm:$0xff]
    %v6686 = vld [vmem:[%s65 + $0xa8] sm:$0xff]
    %v6687 = vld [vmem:[%s65 + $0xb0] sm:$0xff]
    %v6688 = vld [vmem:[%s65 + $0xb8] sm:$0xff]
    %v6689 = vld [vmem:[%s65 + $0xc0] sm:$0xff]
    %v6690 = vld [vmem:[%s65 + $0xc8] sm:$0xff]
    %v6691 = vld [vmem:[%s65 + $0xd0] sm:$0xff]
    %v6692 = vld [vmem:[%s65 + $0xd8] sm:$0xff]
    %v6693 = vld [vmem:[%s65 + $0xe0] sm:$0xff]
    %v6694 = vld [vmem:[%s65 + $0xe8] sm:$0xff]
    %v6695 = vld [vmem:[%s65 + $0xf0] sm:$0xff]
    %v6696 = vld [vmem:[%s65 + $0xf8] sm:$0xff]
    %v6697 = vld [vmem:[%s65 + $0x100] sm:$0xff]
    %v6698 = vld [vmem:[%s65 + $0x108] sm:$0xff]
    %v6699 = vld [vmem:[%s65 + $0x110] sm:$0xff]
    %v6700 = vld [vmem:[%s65 + $0x118] sm:$0xff]
    %v6701 = vld [vmem:[%s65 + $0x120] sm:$0xff]
    %v6702 = vld [vmem:[%s65 + $0x128] sm:$0xff]
    %v6703 = vld [vmem:[%s65 + $0x130] sm:$0xff]
    %v6704 = vld [vmem:[%s65 + $0x138] sm:$0xff]
    %v6705 = vld [vmem:[%s65 + $0x140] sm:$0xff]
    %v6706 = vld [vmem:[%s65 + $0x148] sm:$0xff]
    %v6707 = vld [vmem:[%s65 + $0x150] sm:$0xff]
    %v6708 = vld [vmem:[%s65 + $0x158] sm:$0xff]
    %v6709 = vld [vmem:[%s65 + $0x160] sm:$0xff]
    %v6710 = vld [vmem:[%s65 + $0x168] sm:$0xff]
    %v6711 = vld [vmem:[%s65 + $0x170] sm:$0xff]
    %v6712 = vld [vmem:[%s65 + $0x178] sm:$0xff]
    %v6713 = vld [vmem:[%s65 + $0x180] sm:$0xff]
    %v6714 = vld [vmem:[%s65 + $0x188] sm:$0xff]
    %v6715 = vld [vmem:[%s65 + $0x190] sm:$0xff]
    %v6716 = vld [vmem:[%s65 + $0x198] sm:$0xff]
    %v6717 = vld [vmem:[%s65 + $0x1a0] sm:$0xff]
    %v6718 = vld [vmem:[%s65 + $0x1a8] sm:$0xff]
    %v6719 = vld [vmem:[%s65 + $0x1b0] sm:$0xff]
    %v6720 = vld [vmem:[%s65 + $0x1b8] sm:$0xff]
    %v6721 = vld [vmem:[%s65 + $0x1c0] sm:$0xff]
    %v6722 = vld [vmem:[%s65 + $0x1c8] sm:$0xff]
    %v6723 = vld [vmem:[%s65 + $0x1d0] sm:$0xff]
    %v6724 = vld [vmem:[%s65 + $0x1d8] sm:$0xff]
    %v6725 = vld [vmem:[%s65 + $0x1e0] sm:$0xff]
    %v6726 = vld [vmem:[%s65 + $0x1e8] sm:$0xff]
    %v6727 = vld [vmem:[%s65 + $0x1f0] sm:$0xff]
    %v6728 = vld [vmem:[%s65 + $0x1f8] sm:$0xff]
    %v6729 = vld [vmem:[#allocation34] sm:$0xff]
    %v6730 = vld [vmem:[#allocation34 + $0x8] sm:$0xff]
    %v6731 = vld [vmem:[#allocation34 + $0x10] sm:$0xff]
    %v6732 = vld [vmem:[#allocation34 + $0x18] sm:$0xff]
    %v6733 = vld [vmem:[#allocation34 + $0x20] sm:$0xff]
    %v6734 = vld [vmem:[#allocation34 + $0x28] sm:$0xff]
    %v6735 = vld [vmem:[#allocation34 + $0x30] sm:$0xff]
    %v6736 = vld [vmem:[#allocation34 + $0x38] sm:$0xff]
    %v6738 = vsel %vm3373, %v3561, 0
    %v6741 = vsel %vm3373, %v3562, 0
    %6743 = vmatprep.subr.mxu0 0.0
    %6744 = vmatpush1.msra.mxu0 %v6729
    %6745 = vmatprep.subr.mxu0 0.0
    %6746 = vmatpush1.msra.mxu0 %v6730
    %6747 = vmatprep.subr.mxu0 0.0
    %6748 = vmatpush1.msra.mxu0 %v6731
    %6749 = vmatprep.subr.mxu0 0.0
    %6750 = vmatpush1.msra.mxu0 %v6732
    %6751 = vmatprep.subr.mxu0 0.0
    %6752 = vmatpush1.msra.mxu0 %v6733
    %6753 = vmatprep.subr.mxu0 0.0
    %6754 = vmatpush1.msra.mxu0 %v6734
    %6755 = vmatprep.subr.mxu0 0.0
    %6756 = vmatpush1.msra.mxu0 %v6735
    %6757 = vmatprep.subr.mxu0 0.0
    %6758 = vmatpush1.msra.mxu0 %v6736
    %6759 = vmatprep.subr.mxu0 0.0
    %6760 = vmatpush1.msra.mxu0 0.0
    %6761 = vmatprep.subr.mxu0 0.0
    %6762 = vmatpush1.msra.mxu0 0.0
    %6763 = vmatprep.subr.mxu0 0.0
    %6764 = vmatpush1.msra.mxu0 0.0
    %6765 = vmatprep.subr.mxu0 0.0
    %6766 = vmatpush1.msra.mxu0 0.0
    %6767 = vmatprep.subr.mxu0 0.0
    %6768 = vmatpush1.msra.mxu0 0.0
    %6769 = vmatprep.subr.mxu0 0.0
    %6770 = vmatpush1.msra.mxu0 0.0
    %6771 = vmatprep.subr.mxu0 0.0
    %6772 = vmatpush1.msra.mxu0 0.0
    %6773 = vmatprep.subr.mxu0 0.0
    %6774 = vmatpush1.msra.mxu0 0.0
    %6775 = vmatprep.subr.mxu0 0.0
    %6776 = vmatpush1.msra.mxu0 0.0
    %6777 = vmatprep.subr.mxu0 0.0
    %6778 = vmatpush1.msra.mxu0 0.0
    %6779 = vmatprep.subr.mxu0 0.0
    %6780 = vmatpush1.msra.mxu0 0.0
    %6781 = vmatprep.subr.mxu0 0.0
    %6782 = vmatpush1.msra.mxu0 0.0
    %6783 = vmatprep.subr.mxu0 0.0
    %6784 = vmatpush1.msra.mxu0 0.0
    %6785 = vmatprep.subr.mxu0 0.0
    %6786 = vmatpush1.msra.mxu0 0.0
    %6787 = vmatprep.subr.mxu0 0.0
    %6788 = vmatpush1.msra.mxu0 0.0
    %6789 = vmatprep.subr.mxu0 0.0
    %6790 = vmatpush1.msra.mxu0 0.0
    %6791 = vmatprep.subr.mxu0 0.0
    %6792 = vmatpush1.msra.mxu0 0.0
    %6793 = vmatprep.subr.mxu0 0.0
    %6794 = vmatpush1.msra.mxu0 0.0
    %6795 = vmatprep.subr.mxu0 0.0
    %6796 = vmatpush1.msra.mxu0 0.0
    %6797 = vmatprep.subr.mxu0 0.0
    %6798 = vmatpush1.msra.mxu0 0.0
    %6799 = vmatprep.subr.mxu0 0.0
    %6800 = vmatpush1.msra.mxu0 0.0
    %6801 = vmatprep.subr.mxu0 0.0
    %6802 = vmatpush1.msra.mxu0 0.0
    %6803 = vmatprep.subr.mxu0 0.0
    %6804 = vmatpush1.msra.mxu0 0.0
    %6805 = vmatprep.subr.mxu0 0.0
    %6806 = vmatpush1.msra.mxu0 0.0
    %6807 = vmatprep.mubr.f32.mxu0 0.0
    %6808 = vmatmul.mubr.f32.gmra.mrb[0].mxu0 %v6738
    %v6809 = vpop.f32.mrb[0].mxu0
    %v6810 = vadd.f32 0.0, %v6809
    %v6811 = vpop.f32.mrb[0].mxu0
    %6812 = vmatprep.mubr.f32.mxu0 0.0
    %6813 = vmatmul.mubr.f32.gmra.mrb[0].mxu0 %v6741
    %v6814 = vpop.f32.mrb[0].mxu0
    %v6815 = vadd.f32 0.0, %v6814
    %v6816 = vpop.f32.mrb[0].mxu0
    %6817 = vdwg.mxu0
    %6818 = vmatprep.subr.mxu0 0.0
    %6819 = vmatpush1.msra.mxu0 %v6665
    %6820 = vmatprep.subr.mxu0 0.0
    %6821 = vmatpush1.msra.mxu0 %v6666
    %6822 = vmatprep.subr.mxu0 0.0
    %6823 = vmatpush1.msra.mxu0 %v6667
    %6824 = vmatprep.subr.mxu0 0.0
    %6825 = vmatpush1.msra.mxu0 %v6668
    %6826 = vmatprep.subr.mxu0 0.0
    %6827 = vmatpush1.msra.mxu0 %v6669
    %6828 = vmatprep.subr.mxu0 0.0
    %6829 = vmatpush1.msra.mxu0 %v6670
    %6830 = vmatprep.subr.mxu0 0.0
    %6831 = vmatpush1.msra.mxu0 %v6671
    %6832 = vmatprep.subr.mxu0 0.0
    %6833 = vmatpush1.msra.mxu0 %v6672
    %6834 = vmatprep.subr.mxu0 0.0
    %6835 = vmatpush1.msra.mxu0 %v6673
    %6836 = vmatprep.subr.mxu0 0.0
    %6837 = vmatpush1.msra.mxu0 %v6674
    %6838 = vmatprep.subr.mxu0 0.0
    %6839 = vmatpush1.msra.mxu0 %v6675
    %6840 = vmatprep.subr.mxu0 0.0
    %6841 = vmatpush1.msra.mxu0 %v6676
    %6842 = vmatprep.subr.mxu0 0.0
    %6843 = vmatpush1.msra.mxu0 %v6677
    %6844 = vmatprep.subr.mxu0 0.0
    %6845 = vmatpush1.msra.mxu0 %v6678
    %6846 = vmatprep.subr.mxu0 0.0
    %6847 = vmatpush1.msra.mxu0 %v6679
    %6848 = vmatprep.subr.mxu0 0.0
    %6849 = vmatpush1.msra.mxu0 %v6680
    %6850 = vmatprep.subr.mxu0 0.0
    %6851 = vmatpush1.msra.mxu0 %v6681
    %6852 = vmatprep.subr.mxu0 0.0
    %6853 = vmatpush1.msra.mxu0 %v6682
    %6854 = vmatprep.subr.mxu0 0.0
    %6855 = vmatpush1.msra.mxu0 %v6683
    %6856 = vmatprep.subr.mxu0 0.0
    %6857 = vmatpush1.msra.mxu0 %v6684
    %6858 = vmatprep.subr.mxu0 0.0
    %6859 = vmatpush1.msra.mxu0 %v6685
    %6860 = vmatprep.subr.mxu0 0.0
    %6861 = vmatpush1.msra.mxu0 %v6686
    %6862 = vmatprep.subr.mxu0 0.0
    %6863 = vmatpush1.msra.mxu0 %v6687
    %6864 = vmatprep.subr.mxu0 0.0
    %6865 = vmatpush1.msra.mxu0 %v6688
    %6866 = vmatprep.subr.mxu0 0.0
    %6867 = vmatpush1.msra.mxu0 %v6689
    %6868 = vmatprep.subr.mxu0 0.0
    %6869 = vmatpush1.msra.mxu0 %v6690
    %6870 = vmatprep.subr.mxu0 0.0
    %6871 = vmatpush1.msra.mxu0 %v6691
    %6872 = vmatprep.subr.mxu0 0.0
    %6873 = vmatpush1.msra.mxu0 %v6692
    %6874 = vmatprep.subr.mxu0 0.0
    %6875 = vmatpush1.msra.mxu0 %v6693
    %6876 = vmatprep.subr.mxu0 0.0
    %6877 = vmatpush1.msra.mxu0 %v6694
    %6878 = vmatprep.subr.mxu0 0.0
    %6879 = vmatpush1.msra.mxu0 %v6695
    %6880 = vmatprep.subr.mxu0 0.0
    %6881 = vmatpush1.msra.mxu0 %v6696
    %6882 = vmatprep.mubr.f32.mxu0 %v6658
    %6883 = vmatmul.mubr.f32.gmra.mrb[0].mxu0 %v6657
    %v6884 = vpop.f32.mrb[0].mxu0
    %v6885 = vadd.f32 %v6810, %v6884
    %v6886 = vpop.f32.mrb[0].mxu0
    %6887 = vmatprep.mubr.f32.mxu0 %v6662
    %6888 = vmatmul.mubr.f32.gmra.mrb[0].mxu0 %v6661
    %v6889 = vpop.f32.mrb[0].mxu0
    %v6890 = vadd.f32 %v6815, %v6889
    %v6891 = vpop.f32.mrb[0].mxu0
    %6892 = vdwg.mxu0
    %6893 = vmatprep.subr.mxu0 0.0
    %6894 = vmatpush1.msra.mxu0 %v6697
    %6895 = vmatprep.subr.mxu0 0.0
    %6896 = vmatpush1.msra.mxu0 %v6698
    %6897 = vmatprep.subr.mxu0 0.0
    %6898 = vmatpush1.msra.mxu0 %v6699
    %6899 = vmatprep.subr.mxu0 0.0
    %6900 = vmatpush1.msra.mxu0 %v6700
    %6901 = vmatprep.subr.mxu0 0.0
    %6902 = vmatpush1.msra.mxu0 %v6701
    %6903 = vmatprep.subr.mxu0 0.0
    %6904 = vmatpush1.msra.mxu0 %v6702
    %6905 = vmatprep.subr.mxu0 0.0
    %6906 = vmatpush1.msra.mxu0 %v6703
    %6907 = vmatprep.subr.mxu0 0.0
    %6908 = vmatpush1.msra.mxu0 %v6704
    %6909 = vmatprep.subr.mxu0 0.0
    %6910 = vmatpush1.msra.mxu0 %v6705
    %6911 = vmatprep.subr.mxu0 0.0
    %6912 = vmatpush1.msra.mxu0 %v6706
    %6913 = vmatprep.subr.mxu0 0.0
    %6914 = vmatpush1.msra.mxu0 %v6707
    %6915 = vmatprep.subr.mxu0 0.0
    %6916 = vmatpush1.msra.mxu0 %v6708
    %6917 = vmatprep.subr.mxu0 0.0
    %6918 = vmatpush1.msra.mxu0 %v6709
    %6919 = vmatprep.subr.mxu0 0.0
    %6920 = vmatpush1.msra.mxu0 %v6710
    %6921 = vmatprep.subr.mxu0 0.0
    %6922 = vmatpush1.msra.mxu0 %v6711
    %6923 = vmatprep.subr.mxu0 0.0
    %6924 = vmatpush1.msra.mxu0 %v6712
    %6925 = vmatprep.subr.mxu0 0.0
    %6926 = vmatpush1.msra.mxu0 %v6713
    %6927 = vmatprep.subr.mxu0 0.0
    %6928 = vmatpush1.msra.mxu0 %v6714
    %6929 = vmatprep.subr.mxu0 0.0
    %6930 = vmatpush1.msra.mxu0 %v6715
    %6931 = vmatprep.subr.mxu0 0.0
    %6932 = vmatpush1.msra.mxu0 %v6716
    %6933 = vmatprep.subr.mxu0 0.0
    %6934 = vmatpush1.msra.mxu0 %v6717
    %6935 = vmatprep.subr.mxu0 0.0
    %6936 = vmatpush1.msra.mxu0 %v6718
    %6937 = vmatprep.subr.mxu0 0.0
    %6938 = vmatpush1.msra.mxu0 %v6719
    %6939 = vmatprep.subr.mxu0 0.0
    %6940 = vmatpush1.msra.mxu0 %v6720
    %6941 = vmatprep.subr.mxu0 0.0
    %6942 = vmatpush1.msra.mxu0 %v6721
    %6943 = vmatprep.subr.mxu0 0.0
    %6944 = vmatpush1.msra.mxu0 %v6722
    %6945 = vmatprep.subr.mxu0 0.0
    %6946 = vmatpush1.msra.mxu0 %v6723
    %6947 = vmatprep.subr.mxu0 0.0
    %6948 = vmatpush1.msra.mxu0 %v6724
    %6949 = vmatprep.subr.mxu0 0.0
    %6950 = vmatpush1.msra.mxu0 %v6725
    %6951 = vmatprep.subr.mxu0 0.0
    %6952 = vmatpush1.msra.mxu0 %v6726
    %6953 = vmatprep.subr.mxu0 0.0
    %6954 = vmatpush1.msra.mxu0 %v6727
    %6955 = vmatprep.subr.mxu0 0.0
    %6956 = vmatpush1.msra.mxu0 %v6728
    %6957 = vmatprep.mubr.f32.mxu0 %v6660
    %6958 = vmatmul.mubr.f32.gmra.mrb[0].mxu0 %v6659
    %v6959 = vpop.f32.mrb[0].mxu0
    %v6960 = vadd.f32 %v6885, %v6959
    %v6961 = vpop.f32.mrb[0].mxu0
    %6962 = vmatprep.mubr.f32.mxu0 %v6664
    %6963 = vmatmul.mubr.f32.gmra.mrb[0].mxu0 %v6663
    %v6964 = vpop.f32.mrb[0].mxu0
    %v6965 = vadd.f32 %v6890, %v6964
    %v6966 = vpop.f32.mrb[0].mxu0
    %6967 = vdwg.mxu0
    %v6968 = vld [vmem:[#allocation2] sm:$0x1]
    %v6970 = vlaneseq
    %v6971 = vshrl.u32 %v6970, 7
    %v6972 = vsub.s32 0, %v6971
    %v6973 = vrot.slane %v6968, %v6972
    %v6975 = vadd.f32 %v6960, %v6973
    %v6976 = vadd.f32 %v6965, %v6973
    %vm6977 = vcmask 7168
    %6978 = vst.msk [vmem:[%s71] sm:$0xff] %vm6977, %v6975
    %6979 = vst.msk [vmem:[%s71 + $0x8] sm:$0xff] %vm6977, %v6976
    // Predicated region
    $region226: #{decision_maker_forward.1} parent=1 // pred_check
      _
    $region227: #{decision_maker_forward.1} parent=1 // pred_check_branch
      %6981 = sbr.rel (0) target = $region229
    $region228: #{decision_maker_forward.1} parent=1 // pred_region
      _
    $region229: #{decision_maker_forward.1} parent=1 // pred_fallthru
      _
    // Predicated region
    $region230: #{decision_maker_forward.1} parent=1 // pred_check
      _
    $region231: #{decision_maker_forward.1} parent=1 // pred_check_branch
      %6983 = sbr.rel (0) target = $region233
    $region232: #{decision_maker_forward.1} parent=1 // pred_region
      _
    $region233: #{decision_maker_forward.1} parent=1 // pred_fallthru
      _
    %6984 = vsyncpa [#allocation4], 1
    %6985 = vsyncpa [#allocation6], 1
    %6986 = vsyncpa [#allocation9], 1
    %6987 = vsyncpa [#allocation12], 1
    %6988 = vsyncpa [#allocation15], 1
    %6989 = vsyncpa [#allocation18], 1
    %6990 = vsyncpa [#allocation21], 1
    %6991 = vsyncpa [#allocation24], 1
    %6992 = vsyncpa [#allocation27], 1
    %6993 = vsyncpa [#allocation30], 1
    %6994 = vsyncpa [#allocation33], 1

</llo_original>
